<compile_context>
chip_gen: v7x
topology: tpu7x:2x2x1
jax: 0.10.0
libtpu: 0.0.40
codegen_flags: <defaults>
</compile_context>

<pallas_src>
import numpy as np
import jax
import jax.numpy as jnp
from jax import lax
from jax.experimental import pallas as pl
from jax.experimental.pallas import tpu as pltpu

# ----------------------------- problem sizes --------------------------------
N, D, H, W = 2, 4, 4, 4          # batch, 3D spatial
C = 32                           # dim
NH = 4                           # num_heads
HD = C // NH                     # head dim
WS = (2, 2, 2)                   # window_size (== max_window_size here)
SHIFT = (1, 1, 1)                # shift_size
L = WS[0] * WS[1] * WS[2]        # tokens per window
MLP_DIM = int(C * 4.0)           # mlp_ratio = 4
SCALE = float(HD) ** -0.5
EPS = 1e-5
NWS = (D // WS[0]) * (H // WS[1]) * (W // WS[2])   # windows per sample
NW = N * NWS                                       # total windows
TPS = NWS * L                                      # tokens per sample
NEG = -1e9                                         # finite mask value (robust vs -inf)


# ------------------------ host-side static tables (numpy) -------------------
def make_relative_position_index(window_size):
    ws = np.array(window_size)
    coords = np.stack(np.meshgrid(*[np.arange(s) for s in ws], indexing="ij"))
    coords_flat = coords.reshape(3, -1)                                   # (3, L)
    rel = coords_flat[:, :, None] - coords_flat[:, None, :]               # (3, L, L)
    rel = rel.transpose(1, 2, 0).astype(np.int64)                         # (L, L, 3)
    rel[..., 0] += ws[0] - 1
    rel[..., 1] += ws[1] - 1
    rel[..., 2] += ws[2] - 1
    rel[..., 0] *= (2 * ws[1] - 1) * (2 * ws[2] - 1)
    rel[..., 1] *= (2 * ws[2] - 1)
    return rel.sum(-1).reshape(-1).astype(np.int32)                       # (L*L,)


def make_attn_mask_add(window_size, shift_size):
    # Region ids in the ROLLED frame (x is rolled by +shift before partition):
    # along each dim, positions < shift hold tokens wrapped from the far end.
    ids = np.zeros((D, H, W), dtype=np.int32)
    for axis, (sz, sh) in enumerate(zip((D, H, W), shift_size)):
        if sh > 0:
            coord = (np.arange(sz) >= sh).astype(np.int32)
            shape = [1, 1, 1]
            shape[axis] = sz
            ids = ids * 2 + coord.reshape(shape)
        else:
            ids = ids * 2
    w0, w1, w2 = window_size
    idw = ids.reshape(D // w0, w0, H // w1, w1, W // w2, w2)
    idw = idw.transpose(0, 2, 4, 1, 3, 5).reshape(NWS, L)                 # (NWS, L)
    keep = idw[:, :, None] == idw[:, None, :]                             # (NWS, L, L)
    return np.where(keep, 0.0, NEG).astype(np.float32)


REL_INDEX = make_relative_position_index(WS)                              # (L*L,) int32


# ------------------------------ JAX glue -------------------------------------
def window_partition(x, window_size):
    n, d, h, w, c = x.shape
    w0, w1, w2 = window_size
    n0, n1, n2 = d // w0, h // w1, w // w2
    x = x.reshape(n, n0, w0, n1, w1, n2, w2, c)
    x = x.transpose(0, 1, 3, 5, 2, 4, 6, 7)
    return x.reshape(n * n0 * n1 * n2, w0 * w1 * w2, c), (n0, n1, n2)


def window_reverse(xw, window_size, n, num_windows, c):
    w0, w1, w2 = window_size
    n0, n1, n2 = num_windows
    x = xw.reshape(n, n0, n1, n2, w0, w1, w2, c)
    x = x.transpose(0, 1, 4, 2, 5, 3, 6, 7)
    return x.reshape(n, n0 * w0, n1 * w1, n2 * w2, c)


# ------------------------------ fused Pallas kernel ---------------------------
def _fused_block_kernel(xp_ref, mask_ref, rbias_ref,
                        g1_ref, b1_ref, wqkv_ref, bqkv_ref, wproj_ref, bproj_ref,
                        g2_ref, b2_ref, w1_ref, b1m_ref, w2_ref, b2m_ref,
                        o_ref):
    # One sample per grid step; tokens already in rolled + window-partitioned
    # order, windows contiguous chunks of L rows.
    xs = xp_ref[0]                                            # (TPS, C) raw tokens == shortcut

    # ---- LayerNorm1 ----
    mu = jnp.mean(xs, axis=-1, keepdims=True)
    dev = xs - mu
    var = jnp.mean(dev * dev, axis=-1, keepdims=True)
    xn = dev * lax.rsqrt(var + EPS) * g1_ref[...] + b1_ref[...]

    # ---- QKV projection for all windows at once: (TPS, C) x (C, 3C) ----
    qkv = jnp.dot(xn, wqkv_ref[...], preferred_element_type=jnp.float32) + bqkv_ref[...]

    mask_add = mask_ref[...]                                  # (NWS, L, L) additive (0 / -1e9)

    head_outs = []
    for h in range(NH):                                       # NH=4, unrolled at trace time
        q = (qkv[:, h * HD:(h + 1) * HD] * SCALE).reshape(NWS, L, HD)
        k = qkv[:, C + h * HD: C + (h + 1) * HD].reshape(NWS, L, HD)
        v = qkv[:, 2 * C + h * HD: 2 * C + (h + 1) * HD].reshape(NWS, L, HD)
        # window-batched scores: (NWS, L, L)
        s = jnp.einsum('wld,wmd->wlm', q, k, preferred_element_type=jnp.float32)
        s = s + rbias_ref[h][None] + mask_add
        s = s - jnp.max(s, axis=-1, keepdims=True)
        p = jnp.exp(s)
        p = p * pl.reciprocal(jnp.sum(p, axis=-1, keepdims=True), approx=True)
        o = jnp.einsum('wlm,wmd->wld', p, v, preferred_element_type=jnp.float32)
        head_outs.append(o.reshape(TPS, HD))
    attn = jnp.concatenate(head_outs, axis=-1)                # (TPS, C)
    attn = jnp.dot(attn, wproj_ref[...], preferred_element_type=jnp.float32) + bproj_ref[...]

    # ---- residual 1 ----
    y = xs + attn

    # ---- LayerNorm2 + MLP(GELU) + residual 2 ----
    mu2 = jnp.mean(y, axis=-1, keepdims=True)
    dev2 = y - mu2
    var2 = jnp.mean(dev2 * dev2, axis=-1, keepdims=True)
    yn = dev2 * lax.rsqrt(var2 + EPS) * g2_ref[...] + b2_ref[...]
    h1 = jnp.dot(yn, w1_ref[...], preferred_element_type=jnp.float32) + b1m_ref[...]
    h1 = 0.5 * h1 * (1.0 + lax.erf(h1 * (1.0 / np.sqrt(2.0))))   # exact (erf) GELU
    o_ref[0] = y + jnp.dot(h1, w2_ref[...], preferred_element_type=jnp.float32) + b2m_ref[...]


def fused_swin_block_call(xp, mask_add, rel_bias, params):
    full2 = lambda i: (0, 0)
    full3 = lambda i: (0, 0, 0)
    return pl.pallas_call(
        _fused_block_kernel,
        out_shape=jax.ShapeDtypeStruct((N, TPS, C), jnp.float32),
        grid=(N,),
        in_specs=[
            pl.BlockSpec((1, TPS, C), lambda i: (i, 0, 0)),   # tokens (permuted order)
            pl.BlockSpec((NWS, L, L), full3),                 # additive mask
            pl.BlockSpec((NH, L, L), full3),                  # relative-position bias
            pl.BlockSpec((1, C), full2),                      # g1
            pl.BlockSpec((1, C), full2),                      # b1
            pl.BlockSpec((C, 3 * C), full2),                  # wqkv
            pl.BlockSpec((1, 3 * C), full2),                  # bqkv
            pl.BlockSpec((C, C), full2),                      # wproj
            pl.BlockSpec((1, C), full2),                      # bproj
            pl.BlockSpec((1, C), full2),                      # g2
            pl.BlockSpec((1, C), full2),                      # b2
            pl.BlockSpec((C, MLP_DIM), full2),                # w1
            pl.BlockSpec((1, MLP_DIM), full2),                # b1_mlp
            pl.BlockSpec((MLP_DIM, C), full2),                # w2
            pl.BlockSpec((1, C), full2),                      # b2_mlp
        ],
        out_specs=pl.BlockSpec((1, TPS, C), lambda i: (i, 0, 0)),
        compiler_params=pltpu.CompilerParams(dimension_semantics=("parallel",)),
    )(xp, mask_add, rel_bias,
      params["g1"], params["b1"], params["wqkv"], params["bqkv"],
      params["wproj"], params["bproj"], params["g2"], params["b2"],
      params["w1"], params["b1_mlp"], params["w2"], params["b2_mlp"])


# ------------------------------ block forward --------------------------------
def swin_transformer_block(x, params, mask_add):
    n, d, h, w, c = x.shape
    rel_bias = params["rpb_table"][:, REL_INDEX].reshape(NH, L, L)        # (NH, L, L)

    # Static token permutation: cyclic shift + window partition (raw x; LN1,
    # residuals and MLP are per-token so they commute with the permutation).
    xr = jnp.roll(x, shift=SHIFT, axis=(1, 2, 3)) if any(SHIFT) else x
    xp, num_windows = window_partition(xr, WS)                            # (NW, L, C)
    xp = xp.reshape(n, TPS, c)                                            # (N, TPS, C)

    yp = fused_swin_block_call(xp, mask_add, rel_bias, params)            # (N, TPS, C)

    # Inverse permutation: window reverse + reverse shift.
    y = window_reverse(yp.reshape(n * NWS, L, c), WS, n, num_windows, c)
    if any(SHIFT):
        y = jnp.roll(y, shift=tuple(-s for s in SHIFT), axis=(1, 2, 3))
    return y


# ------------------------------ pure-JAX reference ----------------------------
def _layernorm_ref(v, g, b):
    mu = jnp.mean(v, axis=-1, keepdims=True)
    dv = v - mu
    var = jnp.mean(dv * dv, axis=-1, keepdims=True)
    return dv * lax.rsqrt(var + EPS) * g + b


def swin_block_reference(x, params, mask_add):
    n, d, h, w, c = x.shape
    shortcut = x
    rel_bias = params["rpb_table"][:, REL_INDEX].reshape(NH, L, L)
    xn = _layernorm_ref(x, params["g1"][0], params["b1"][0])
    xr = jnp.roll(xn, shift=SHIFT, axis=(1, 2, 3)) if any(SHIFT) else xn
    xw, num_windows = window_partition(xr, WS)                            # (NW, L, C)
    qkv = xw @ params["wqkv"] + params["bqkv"]                            # (NW, L, 3C)
    qkv = qkv.reshape(NW, L, 3, NH, HD).transpose(2, 0, 3, 1, 4)          # (3, NW, NH, L, HD)
    q, k, v = qkv[0] * SCALE, qkv[1], qkv[2]
    att = jnp.einsum("wnld,wnmd->wnlm", q, k)                             # (NW, NH, L, L)
    att = att + rel_bias[None]
    att = att.reshape(n, NWS, NH, L, L) + mask_add[None, :, None]
    att = jax.nn.softmax(att.reshape(NW, NH, L, L), axis=-1)
    o = jnp.einsum("wnlm,wnmd->wnld", att, v)                             # (NW, NH, L, HD)
    o = o.transpose(0, 2, 1, 3).reshape(NW, L, C)
    o = o @ params["wproj"] + params["bproj"]
    y = window_reverse(o, WS, n, num_windows, c)
    if any(SHIFT):
        y = jnp.roll(y, shift=tuple(-s for s in SHIFT), axis=(1, 2, 3))
    x1 = shortcut + y
    x1n = _layernorm_ref(x1, params["g2"][0], params["b2"][0])
    hm = x1n @ params["w1"] + params["b1_mlp"]
    hm = 0.5 * hm * (1.0 + lax.erf(hm * (1.0 / np.sqrt(2.0))))
    return x1 + hm @ params["w2"] + params["b2_mlp"]


# ------------------------------ params ---------------------------------------
def make_params(key):
    ks = jax.random.split(key, 12)
    table_size = int(np.prod(2 * np.array(WS) - 1))
    return {
        "g1": 1.0 + 0.02 * jax.random.normal(ks[0], (1, C), jnp.float32),
        "b1": 0.02 * jax.random.normal(ks[1], (1, C), jnp.float32),
        "rpb_table": 0.02 * jax.random.normal(ks[2], (NH, table_size), jnp.float32),
        "wqkv": 0.05 * jax.random.normal(ks[3], (C, 3 * C), jnp.float32),
        "bqkv": 0.02 * jax.random.normal(ks[4], (1, 3 * C), jnp.float32),
        "wproj": 0.05 * jax.random.normal(ks[5], (C, C), jnp.float32),
        "bproj": 0.02 * jax.random.normal(ks[6], (1, C), jnp.float32),
        "g2": 1.0 + 0.02 * jax.random.normal(ks[7], (1, C), jnp.float32),
        "b2": 0.02 * jax.random.normal(ks[8], (1, C), jnp.float32),
        "w1": 0.05 * jax.random.normal(ks[9], (C, MLP_DIM), jnp.float32),
        "b1_mlp": 0.02 * jax.random.normal(ks[10], (1, MLP_DIM), jnp.float32),
        "w2": 0.05 * jax.random.normal(ks[11], (MLP_DIM, C), jnp.float32),
        "b2_mlp": jnp.zeros((1, C), jnp.float32),
    }


if __name__ == "__main__":
    key = jax.random.PRNGKey(0)
    kx, kp = jax.random.split(key)
    x = jax.random.normal(kx, (N, D, H, W, C), jnp.float32)
    params = make_params(kp)
    mask_add = jnp.asarray(make_attn_mask_add(WS, SHIFT))                 # (NWS, L, L) f32

    fwd = jax.jit(swin_transformer_block)
    out = jax.block_until_ready(fwd(x, params, mask_add))
    assert out.shape == (N, D, H, W, C)
    assert bool(jnp.all(jnp.isfinite(out)))

    # correctness vs. pure-JAX reference of the PyTorch module (loose tol:
    # approx reciprocal in softmax + MXU fp32 accumulation path differences)
    with jax.default_matmul_precision("float32"):
        ref = swin_block_reference(x, params, mask_add)
    ref = jax.block_until_ready(ref)
    max_err = float(jnp.max(jnp.abs(out - ref)))
    assert max_err < 2e-2, f"mismatch vs reference: max abs err {max_err}"

    print("KERNEL_OK")
</pallas_src>

<mosaic_0001>
module attributes {stable_mosaic.version = 11 : i64} {
  func.func @_fused_block_kernel(%arg0: i32, %arg1: memref<1x64x32xf32, #tpu.memory_space<vmem>>, %arg2: memref<8x8x8xf32, #tpu.memory_space<vmem>>, %arg3: memref<4x8x8xf32, #tpu.memory_space<vmem>>, %arg4: memref<1x32xf32, #tpu.memory_space<vmem>>, %arg5: memref<1x32xf32, #tpu.memory_space<vmem>>, %arg6: memref<32x96xf32, #tpu.memory_space<vmem>>, %arg7: memref<1x96xf32, #tpu.memory_space<vmem>>, %arg8: memref<32x32xf32, #tpu.memory_space<vmem>>, %arg9: memref<1x32xf32, #tpu.memory_space<vmem>>, %arg10: memref<1x32xf32, #tpu.memory_space<vmem>>, %arg11: memref<1x32xf32, #tpu.memory_space<vmem>>, %arg12: memref<32x128xf32, #tpu.memory_space<vmem>>, %arg13: memref<1x128xf32, #tpu.memory_space<vmem>>, %arg14: memref<128x32xf32, #tpu.memory_space<vmem>>, %arg15: memref<1x32xf32, #tpu.memory_space<vmem>>, %arg16: memref<1x64x32xf32, #tpu.memory_space<vmem>>) attributes {dimension_semantics = [#tpu.dimension_semantics<parallel>], iteration_bounds = array<i64: 2>, scalar_prefetch = 0 : i64, scratch_operands = 0 : i64, tpu.core_type = #tpu.core_type<tc>, window_params = [{transform_indices = @transform_0, window_bounds = array<i64: 1, 64, 32>}, {pipeline_mode = #tpu.pipeline_mode<synchronous>, transform_indices = @transform_1, window_bounds = array<i64: 8, 8, 8>}, {pipeline_mode = #tpu.pipeline_mode<synchronous>, transform_indices = @transform_2, window_bounds = array<i64: 4, 8, 8>}, {pipeline_mode = #tpu.pipeline_mode<synchronous>, transform_indices = @transform_3, window_bounds = array<i64: 1, 32>}, {pipeline_mode = #tpu.pipeline_mode<synchronous>, transform_indices = @transform_4, window_bounds = array<i64: 1, 32>}, {pipeline_mode = #tpu.pipeline_mode<synchronous>, transform_indices = @transform_5, window_bounds = array<i64: 32, 96>}, {pipeline_mode = #tpu.pipeline_mode<synchronous>, transform_indices = @transform_6, window_bounds = array<i64: 1, 96>}, {pipeline_mode = #tpu.pipeline_mode<synchronous>, transform_indices = @transform_7, window_bounds = array<i64: 32, 32>}, {pipeline_mode = #tpu.pipeline_mode<synchronous>, transform_indices = @transform_8, window_bounds = array<i64: 1, 32>}, {pipeline_mode = #tpu.pipeline_mode<synchronous>, transform_indices = @transform_9, window_bounds = array<i64: 1, 32>}, {pipeline_mode = #tpu.pipeline_mode<synchronous>, transform_indices = @transform_10, window_bounds = array<i64: 1, 32>}, {pipeline_mode = #tpu.pipeline_mode<synchronous>, transform_indices = @transform_11, window_bounds = array<i64: 32, 128>}, {pipeline_mode = #tpu.pipeline_mode<synchronous>, transform_indices = @transform_12, window_bounds = array<i64: 1, 128>}, {pipeline_mode = #tpu.pipeline_mode<synchronous>, transform_indices = @transform_13, window_bounds = array<i64: 128, 32>}, {pipeline_mode = #tpu.pipeline_mode<synchronous>, transform_indices = @transform_14, window_bounds = array<i64: 1, 32>}, {transform_indices = @transform_15, window_bounds = array<i64: 1, 64, 32>}]} {
    %c0 = arith.constant 0 : index
    %c0_0 = arith.constant 0 : index
    %c0_1 = arith.constant 0 : index
    %0 = vector.load %arg1[%c0, %c0_0, %c0_1] : memref<1x64x32xf32, #tpu.memory_space<vmem>>, vector<1x64x32xf32>
    %1 = vector.shape_cast %0 : vector<1x64x32xf32> to vector<64x32xf32>
    %cst = arith.constant dense<0.000000e+00> : vector<64xf32>
    %2 = vector.multi_reduction <add>, %1, %cst [1] : vector<64x32xf32> to vector<64xf32>
    %3 = vector.shape_cast %2 : vector<64xf32> to vector<64x1xf32>
    %cst_2 = arith.constant 3.200000e+01 : f32
    %4 = vector.broadcast %cst_2 : f32 to vector<64x1xf32>
    %5 = arith.divf %3, %4 : vector<64x1xf32>
    %6 = vector.broadcast %5 : vector<64x1xf32> to vector<64x32xf32>
    %7 = arith.subf %1, %6 : vector<64x32xf32>
    %8 = arith.mulf %7, %7 : vector<64x32xf32>
    %cst_3 = arith.constant dense<0.000000e+00> : vector<64xf32>
    %9 = vector.multi_reduction <add>, %8, %cst_3 [1] : vector<64x32xf32> to vector<64xf32>
    %10 = vector.shape_cast %9 : vector<64xf32> to vector<64x1xf32>
    %cst_4 = arith.constant 3.200000e+01 : f32
    %11 = vector.broadcast %cst_4 : f32 to vector<64x1xf32>
    %12 = arith.divf %10, %11 : vector<64x1xf32>
    %cst_5 = arith.constant 9.99999974E-6 : f32
    %13 = vector.broadcast %cst_5 : f32 to vector<64x1xf32>
    %14 = arith.addf %12, %13 : vector<64x1xf32>
    %15 = math.rsqrt %14 : vector<64x1xf32>
    %16 = vector.broadcast %15 : vector<64x1xf32> to vector<64x32xf32>
    %17 = arith.mulf %7, %16 : vector<64x32xf32>
    %c0_6 = arith.constant 0 : index
    %c0_7 = arith.constant 0 : index
    %18 = vector.load %arg4[%c0_6, %c0_7] : memref<1x32xf32, #tpu.memory_space<vmem>>, vector<1x32xf32>
    %19 = vector.broadcast %18 : vector<1x32xf32> to vector<64x32xf32>
    %20 = arith.mulf %17, %19 : vector<64x32xf32>
    %c0_8 = arith.constant 0 : index
    %c0_9 = arith.constant 0 : index
    %21 = vector.load %arg5[%c0_8, %c0_9] : memref<1x32xf32, #tpu.memory_space<vmem>>, vector<1x32xf32>
    %22 = vector.broadcast %21 : vector<1x32xf32> to vector<64x32xf32>
    %23 = arith.addf %20, %22 : vector<64x32xf32>
    %c0_10 = arith.constant 0 : index
    %c0_11 = arith.constant 0 : index
    %24 = vector.load %arg6[%c0_10, %c0_11] : memref<32x96xf32, #tpu.memory_space<vmem>>, vector<32x96xf32>
    %cst_12 = arith.constant dense<0.000000e+00> : vector<64x96xf32>
    %25 = tpu.matmul %23, %24, %cst_12 {dimension_numbers = #tpu.dot_dimension_numbers<[1], [0], [0], [1], [0, 0, 1, 1], [], []>} : vector<64x32xf32>, vector<32x96xf32>, vector<64x96xf32> -> vector<64x96xf32>
    %c0_13 = arith.constant 0 : index
    %c0_14 = arith.constant 0 : index
    %26 = vector.load %arg7[%c0_13, %c0_14] : memref<1x96xf32, #tpu.memory_space<vmem>>, vector<1x96xf32>
    %27 = vector.broadcast %26 : vector<1x96xf32> to vector<64x96xf32>
    %28 = arith.addf %25, %27 : vector<64x96xf32>
    %c0_15 = arith.constant 0 : index
    %c0_16 = arith.constant 0 : index
    %c0_17 = arith.constant 0 : index
    %29 = vector.load %arg2[%c0_15, %c0_16, %c0_17] : memref<8x8x8xf32, #tpu.memory_space<vmem>>, vector<8x8x8xf32>
    %30 = vector.extract_strided_slice %28 {offsets = [0, 0], sizes = [64, 8], strides = [1, 1]} : vector<64x96xf32> to vector<64x8xf32>
    %cst_18 = arith.constant 0.353553385 : f32
    %31 = vector.broadcast %cst_18 : f32 to vector<64x8xf32>
    %32 = arith.mulf %30, %31 : vector<64x8xf32>
    %33 = vector.shape_cast %32 : vector<64x8xf32> to vector<8x8x8xf32>
    %34 = vector.extract_strided_slice %28 {offsets = [0, 32], sizes = [64, 8], strides = [1, 1]} : vector<64x96xf32> to vector<64x8xf32>
    %35 = vector.shape_cast %34 : vector<64x8xf32> to vector<8x8x8xf32>
    %36 = vector.extract_strided_slice %28 {offsets = [0, 64], sizes = [64, 8], strides = [1, 1]} : vector<64x96xf32> to vector<64x8xf32>
    %37 = vector.shape_cast %36 : vector<64x8xf32> to vector<8x8x8xf32>
    "tpu.trace_start"() <{level = 10 : i32, message = "wld,wmd->wlm"}> : () -> ()
    %cst_19 = arith.constant dense<0.000000e+00> : vector<8x8x8xf32>
    %38 = tpu.matmul %33, %35, %cst_19 {dimension_numbers = #tpu.dot_dimension_numbers<[2], [2], [1], [1], [0, 0, 0, 1, 1, 1], [0], [0]>} : vector<8x8x8xf32>, vector<8x8x8xf32>, vector<8x8x8xf32> -> vector<8x8x8xf32>
    "tpu.trace_stop"() : () -> ()
    %c0_20 = arith.constant 0 : index
    %c0_21 = arith.constant 0 : index
    %c0_22 = arith.constant 0 : index
    %39 = vector.load %arg3[%c0_20, %c0_21, %c0_22] : memref<4x8x8xf32, #tpu.memory_space<vmem>>, vector<1x8x8xf32>
    %40 = vector.shape_cast %39 : vector<1x8x8xf32> to vector<8x8xf32>
    %41 = vector.shape_cast %40 : vector<8x8xf32> to vector<1x8x8xf32>
    %42 = vector.broadcast %41 : vector<1x8x8xf32> to vector<8x8x8xf32>
    %43 = arith.addf %38, %42 : vector<8x8x8xf32>
    %44 = arith.addf %43, %29 : vector<8x8x8xf32>
    %cst_23 = arith.constant dense<0xFF800000> : vector<8x8xf32>
    %45 = vector.multi_reduction <maximumf>, %44, %cst_23 [2] : vector<8x8x8xf32> to vector<8x8xf32>
    %46 = vector.shape_cast %45 : vector<8x8xf32> to vector<8x8x1xf32>
    %47 = vector.broadcast %46 : vector<8x8x1xf32> to vector<8x8x8xf32>
    %48 = arith.subf %44, %47 : vector<8x8x8xf32>
    %49 = math.exp %48 : vector<8x8x8xf32>
    %cst_24 = arith.constant dense<0.000000e+00> : vector<8x8xf32>
    %50 = vector.multi_reduction <add>, %49, %cst_24 [2] : vector<8x8x8xf32> to vector<8x8xf32>
    %51 = vector.shape_cast %50 : vector<8x8xf32> to vector<8x8x1xf32>
    %52 = tpu.reciprocal %51 {approx = true} : vector<8x8x1xf32> -> vector<8x8x1xf32>
    %53 = vector.broadcast %52 : vector<8x8x1xf32> to vector<8x8x8xf32>
    %54 = arith.mulf %49, %53 : vector<8x8x8xf32>
    "tpu.trace_start"() <{level = 10 : i32, message = "wlm,wmd->wld"}> : () -> ()
    %cst_25 = arith.constant dense<0.000000e+00> : vector<8x8x8xf32>
    %55 = tpu.matmul %54, %37, %cst_25 {dimension_numbers = #tpu.dot_dimension_numbers<[2], [1], [1], [2], [0, 0, 0, 1, 1, 2], [0], [0]>} : vector<8x8x8xf32>, vector<8x8x8xf32>, vector<8x8x8xf32> -> vector<8x8x8xf32>
    "tpu.trace_stop"() : () -> ()
    %56 = vector.shape_cast %55 : vector<8x8x8xf32> to vector<64x8xf32>
    %57 = vector.extract_strided_slice %28 {offsets = [0, 8], sizes = [64, 8], strides = [1, 1]} : vector<64x96xf32> to vector<64x8xf32>
    %cst_26 = arith.constant 0.353553385 : f32
    %58 = vector.broadcast %cst_26 : f32 to vector<64x8xf32>
    %59 = arith.mulf %57, %58 : vector<64x8xf32>
    %60 = vector.shape_cast %59 : vector<64x8xf32> to vector<8x8x8xf32>
    %61 = vector.extract_strided_slice %28 {offsets = [0, 40], sizes = [64, 8], strides = [1, 1]} : vector<64x96xf32> to vector<64x8xf32>
    %62 = vector.shape_cast %61 : vector<64x8xf32> to vector<8x8x8xf32>
    %63 = vector.extract_strided_slice %28 {offsets = [0, 72], sizes = [64, 8], strides = [1, 1]} : vector<64x96xf32> to vector<64x8xf32>
    %64 = vector.shape_cast %63 : vector<64x8xf32> to vector<8x8x8xf32>
    "tpu.trace_start"() <{level = 10 : i32, message = "wld,wmd->wlm"}> : () -> ()
    %cst_27 = arith.constant dense<0.000000e+00> : vector<8x8x8xf32>
    %65 = tpu.matmul %60, %62, %cst_27 {dimension_numbers = #tpu.dot_dimension_numbers<[2], [2], [1], [1], [0, 0, 0, 1, 1, 1], [0], [0]>} : vector<8x8x8xf32>, vector<8x8x8xf32>, vector<8x8x8xf32> -> vector<8x8x8xf32>
    "tpu.trace_stop"() : () -> ()
    %c1 = arith.constant 1 : index
    %c0_28 = arith.constant 0 : index
    %c0_29 = arith.constant 0 : index
    %66 = vector.load %arg3[%c1, %c0_28, %c0_29] : memref<4x8x8xf32, #tpu.memory_space<vmem>>, vector<1x8x8xf32>
    %67 = vector.shape_cast %66 : vector<1x8x8xf32> to vector<8x8xf32>
    %68 = vector.shape_cast %67 : vector<8x8xf32> to vector<1x8x8xf32>
    %69 = vector.broadcast %68 : vector<1x8x8xf32> to vector<8x8x8xf32>
    %70 = arith.addf %65, %69 : vector<8x8x8xf32>
    %71 = arith.addf %70, %29 : vector<8x8x8xf32>
    %cst_30 = arith.constant dense<0xFF800000> : vector<8x8xf32>
    %72 = vector.multi_reduction <maximumf>, %71, %cst_30 [2] : vector<8x8x8xf32> to vector<8x8xf32>
    %73 = vector.shape_cast %72 : vector<8x8xf32> to vector<8x8x1xf32>
    %74 = vector.broadcast %73 : vector<8x8x1xf32> to vector<8x8x8xf32>
    %75 = arith.subf %71, %74 : vector<8x8x8xf32>
    %76 = math.exp %75 : vector<8x8x8xf32>
    %cst_31 = arith.constant dense<0.000000e+00> : vector<8x8xf32>
    %77 = vector.multi_reduction <add>, %76, %cst_31 [2] : vector<8x8x8xf32> to vector<8x8xf32>
    %78 = vector.shape_cast %77 : vector<8x8xf32> to vector<8x8x1xf32>
    %79 = tpu.reciprocal %78 {approx = true} : vector<8x8x1xf32> -> vector<8x8x1xf32>
    %80 = vector.broadcast %79 : vector<8x8x1xf32> to vector<8x8x8xf32>
    %81 = arith.mulf %76, %80 : vector<8x8x8xf32>
    "tpu.trace_start"() <{level = 10 : i32, message = "wlm,wmd->wld"}> : () -> ()
    %cst_32 = arith.constant dense<0.000000e+00> : vector<8x8x8xf32>
    %82 = tpu.matmul %81, %64, %cst_32 {dimension_numbers = #tpu.dot_dimension_numbers<[2], [1], [1], [2], [0, 0, 0, 1, 1, 2], [0], [0]>} : vector<8x8x8xf32>, vector<8x8x8xf32>, vector<8x8x8xf32> -> vector<8x8x8xf32>
    "tpu.trace_stop"() : () -> ()
    %83 = vector.shape_cast %82 : vector<8x8x8xf32> to vector<64x8xf32>
    %84 = vector.extract_strided_slice %28 {offsets = [0, 16], sizes = [64, 8], strides = [1, 1]} : vector<64x96xf32> to vector<64x8xf32>
    %cst_33 = arith.constant 0.353553385 : f32
    %85 = vector.broadcast %cst_33 : f32 to vector<64x8xf32>
    %86 = arith.mulf %84, %85 : vector<64x8xf32>
    %87 = vector.shape_cast %86 : vector<64x8xf32> to vector<8x8x8xf32>
    %88 = vector.extract_strided_slice %28 {offsets = [0, 48], sizes = [64, 8], strides = [1, 1]} : vector<64x96xf32> to vector<64x8xf32>
    %89 = vector.shape_cast %88 : vector<64x8xf32> to vector<8x8x8xf32>
    %90 = vector.extract_strided_slice %28 {offsets = [0, 80], sizes = [64, 8], strides = [1, 1]} : vector<64x96xf32> to vector<64x8xf32>
    %91 = vector.shape_cast %90 : vector<64x8xf32> to vector<8x8x8xf32>
    "tpu.trace_start"() <{level = 10 : i32, message = "wld,wmd->wlm"}> : () -> ()
    %cst_34 = arith.constant dense<0.000000e+00> : vector<8x8x8xf32>
    %92 = tpu.matmul %87, %89, %cst_34 {dimension_numbers = #tpu.dot_dimension_numbers<[2], [2], [1], [1], [0, 0, 0, 1, 1, 1], [0], [0]>} : vector<8x8x8xf32>, vector<8x8x8xf32>, vector<8x8x8xf32> -> vector<8x8x8xf32>
    "tpu.trace_stop"() : () -> ()
    %c2 = arith.constant 2 : index
    %c0_35 = arith.constant 0 : index
    %c0_36 = arith.constant 0 : index
    %93 = vector.load %arg3[%c2, %c0_35, %c0_36] : memref<4x8x8xf32, #tpu.memory_space<vmem>>, vector<1x8x8xf32>
    %94 = vector.shape_cast %93 : vector<1x8x8xf32> to vector<8x8xf32>
    %95 = vector.shape_cast %94 : vector<8x8xf32> to vector<1x8x8xf32>
    %96 = vector.broadcast %95 : vector<1x8x8xf32> to vector<8x8x8xf32>
    %97 = arith.addf %92, %96 : vector<8x8x8xf32>
    %98 = arith.addf %97, %29 : vector<8x8x8xf32>
    %cst_37 = arith.constant dense<0xFF800000> : vector<8x8xf32>
    %99 = vector.multi_reduction <maximumf>, %98, %cst_37 [2] : vector<8x8x8xf32> to vector<8x8xf32>
    %100 = vector.shape_cast %99 : vector<8x8xf32> to vector<8x8x1xf32>
    %101 = vector.broadcast %100 : vector<8x8x1xf32> to vector<8x8x8xf32>
    %102 = arith.subf %98, %101 : vector<8x8x8xf32>
    %103 = math.exp %102 : vector<8x8x8xf32>
    %cst_38 = arith.constant dense<0.000000e+00> : vector<8x8xf32>
    %104 = vector.multi_reduction <add>, %103, %cst_38 [2] : vector<8x8x8xf32> to vector<8x8xf32>
    %105 = vector.shape_cast %104 : vector<8x8xf32> to vector<8x8x1xf32>
    %106 = tpu.reciprocal %105 {approx = true} : vector<8x8x1xf32> -> vector<8x8x1xf32>
    %107 = vector.broadcast %106 : vector<8x8x1xf32> to vector<8x8x8xf32>
    %108 = arith.mulf %103, %107 : vector<8x8x8xf32>
    "tpu.trace_start"() <{level = 10 : i32, message = "wlm,wmd->wld"}> : () -> ()
    %cst_39 = arith.constant dense<0.000000e+00> : vector<8x8x8xf32>
    %109 = tpu.matmul %108, %91, %cst_39 {dimension_numbers = #tpu.dot_dimension_numbers<[2], [1], [1], [2], [0, 0, 0, 1, 1, 2], [0], [0]>} : vector<8x8x8xf32>, vector<8x8x8xf32>, vector<8x8x8xf32> -> vector<8x8x8xf32>
    "tpu.trace_stop"() : () -> ()
    %110 = vector.shape_cast %109 : vector<8x8x8xf32> to vector<64x8xf32>
    %111 = vector.extract_strided_slice %28 {offsets = [0, 24], sizes = [64, 8], strides = [1, 1]} : vector<64x96xf32> to vector<64x8xf32>
    %cst_40 = arith.constant 0.353553385 : f32
    %112 = vector.broadcast %cst_40 : f32 to vector<64x8xf32>
    %113 = arith.mulf %111, %112 : vector<64x8xf32>
    %114 = vector.shape_cast %113 : vector<64x8xf32> to vector<8x8x8xf32>
    %115 = vector.extract_strided_slice %28 {offsets = [0, 56], sizes = [64, 8], strides = [1, 1]} : vector<64x96xf32> to vector<64x8xf32>
    %116 = vector.shape_cast %115 : vector<64x8xf32> to vector<8x8x8xf32>
    %117 = vector.extract_strided_slice %28 {offsets = [0, 88], sizes = [64, 8], strides = [1, 1]} : vector<64x96xf32> to vector<64x8xf32>
    %118 = vector.shape_cast %117 : vector<64x8xf32> to vector<8x8x8xf32>
    "tpu.trace_start"() <{level = 10 : i32, message = "wld,wmd->wlm"}> : () -> ()
    %cst_41 = arith.constant dense<0.000000e+00> : vector<8x8x8xf32>
    %119 = tpu.matmul %114, %116, %cst_41 {dimension_numbers = #tpu.dot_dimension_numbers<[2], [2], [1], [1], [0, 0, 0, 1, 1, 1], [0], [0]>} : vector<8x8x8xf32>, vector<8x8x8xf32>, vector<8x8x8xf32> -> vector<8x8x8xf32>
    "tpu.trace_stop"() : () -> ()
    %c3 = arith.constant 3 : index
    %c0_42 = arith.constant 0 : index
    %c0_43 = arith.constant 0 : index
    %120 = vector.load %arg3[%c3, %c0_42, %c0_43] : memref<4x8x8xf32, #tpu.memory_space<vmem>>, vector<1x8x8xf32>
    %121 = vector.shape_cast %120 : vector<1x8x8xf32> to vector<8x8xf32>
    %122 = vector.shape_cast %121 : vector<8x8xf32> to vector<1x8x8xf32>
    %123 = vector.broadcast %122 : vector<1x8x8xf32> to vector<8x8x8xf32>
    %124 = arith.addf %119, %123 : vector<8x8x8xf32>
    %125 = arith.addf %124, %29 : vector<8x8x8xf32>
    %cst_44 = arith.constant dense<0xFF800000> : vector<8x8xf32>
    %126 = vector.multi_reduction <maximumf>, %125, %cst_44 [2] : vector<8x8x8xf32> to vector<8x8xf32>
    %127 = vector.shape_cast %126 : vector<8x8xf32> to vector<8x8x1xf32>
    %128 = vector.broadcast %127 : vector<8x8x1xf32> to vector<8x8x8xf32>
    %129 = arith.subf %125, %128 : vector<8x8x8xf32>
    %130 = math.exp %129 : vector<8x8x8xf32>
    %cst_45 = arith.constant dense<0.000000e+00> : vector<8x8xf32>
    %131 = vector.multi_reduction <add>, %130, %cst_45 [2] : vector<8x8x8xf32> to vector<8x8xf32>
    %132 = vector.shape_cast %131 : vector<8x8xf32> to vector<8x8x1xf32>
    %133 = tpu.reciprocal %132 {approx = true} : vector<8x8x1xf32> -> vector<8x8x1xf32>
    %134 = vector.broadcast %133 : vector<8x8x1xf32> to vector<8x8x8xf32>
    %135 = arith.mulf %130, %134 : vector<8x8x8xf32>
    "tpu.trace_start"() <{level = 10 : i32, message = "wlm,wmd->wld"}> : () -> ()
    %cst_46 = arith.constant dense<0.000000e+00> : vector<8x8x8xf32>
    %136 = tpu.matmul %135, %118, %cst_46 {dimension_numbers = #tpu.dot_dimension_numbers<[2], [1], [1], [2], [0, 0, 0, 1, 1, 2], [0], [0]>} : vector<8x8x8xf32>, vector<8x8x8xf32>, vector<8x8x8xf32> -> vector<8x8x8xf32>
    "tpu.trace_stop"() : () -> ()
    %137 = vector.shape_cast %136 : vector<8x8x8xf32> to vector<64x8xf32>
    %138 = tpu.concatenate %56, %83, %110, %137 in 1 : vector<64x8xf32>, vector<64x8xf32>, vector<64x8xf32>, vector<64x8xf32> -> vector<64x32xf32>
    %c0_47 = arith.constant 0 : index
    %c0_48 = arith.constant 0 : index
    %139 = vector.load %arg8[%c0_47, %c0_48] : memref<32x32xf32, #tpu.memory_space<vmem>>, vector<32x32xf32>
    %cst_49 = arith.constant dense<0.000000e+00> : vector<64x32xf32>
    %140 = tpu.matmul %138, %139, %cst_49 {dimension_numbers = #tpu.dot_dimension_numbers<[1], [0], [0], [1], [0, 0, 1, 1], [], []>} : vector<64x32xf32>, vector<32x32xf32>, vector<64x32xf32> -> vector<64x32xf32>
    %c0_50 = arith.constant 0 : index
    %c0_51 = arith.constant 0 : index
    %141 = vector.load %arg9[%c0_50, %c0_51] : memref<1x32xf32, #tpu.memory_space<vmem>>, vector<1x32xf32>
    %142 = vector.broadcast %141 : vector<1x32xf32> to vector<64x32xf32>
    %143 = arith.addf %140, %142 : vector<64x32xf32>
    %144 = arith.addf %1, %143 : vector<64x32xf32>
    %cst_52 = arith.constant dense<0.000000e+00> : vector<64xf32>
    %145 = vector.multi_reduction <add>, %144, %cst_52 [1] : vector<64x32xf32> to vector<64xf32>
    %146 = vector.shape_cast %145 : vector<64xf32> to vector<64x1xf32>
    %cst_53 = arith.constant 3.200000e+01 : f32
    %147 = vector.broadcast %cst_53 : f32 to vector<64x1xf32>
    %148 = arith.divf %146, %147 : vector<64x1xf32>
    %149 = vector.broadcast %148 : vector<64x1xf32> to vector<64x32xf32>
    %150 = arith.subf %144, %149 : vector<64x32xf32>
    %151 = arith.mulf %150, %150 : vector<64x32xf32>
    %cst_54 = arith.constant dense<0.000000e+00> : vector<64xf32>
    %152 = vector.multi_reduction <add>, %151, %cst_54 [1] : vector<64x32xf32> to vector<64xf32>
    %153 = vector.shape_cast %152 : vector<64xf32> to vector<64x1xf32>
    %cst_55 = arith.constant 3.200000e+01 : f32
    %154 = vector.broadcast %cst_55 : f32 to vector<64x1xf32>
    %155 = arith.divf %153, %154 : vector<64x1xf32>
    %cst_56 = arith.constant 9.99999974E-6 : f32
    %156 = vector.broadcast %cst_56 : f32 to vector<64x1xf32>
    %157 = arith.addf %155, %156 : vector<64x1xf32>
    %158 = math.rsqrt %157 : vector<64x1xf32>
    %159 = vector.broadcast %158 : vector<64x1xf32> to vector<64x32xf32>
    %160 = arith.mulf %150, %159 : vector<64x32xf32>
    %c0_57 = arith.constant 0 : index
    %c0_58 = arith.constant 0 : index
    %161 = vector.load %arg10[%c0_57, %c0_58] : memref<1x32xf32, #tpu.memory_space<vmem>>, vector<1x32xf32>
    %162 = vector.broadcast %161 : vector<1x32xf32> to vector<64x32xf32>
    %163 = arith.mulf %160, %162 : vector<64x32xf32>
    %c0_59 = arith.constant 0 : index
    %c0_60 = arith.constant 0 : index
    %164 = vector.load %arg11[%c0_59, %c0_60] : memref<1x32xf32, #tpu.memory_space<vmem>>, vector<1x32xf32>
    %165 = vector.broadcast %164 : vector<1x32xf32> to vector<64x32xf32>
    %166 = arith.addf %163, %165 : vector<64x32xf32>
    %c0_61 = arith.constant 0 : index
    %c0_62 = arith.constant 0 : index
    %167 = vector.load %arg12[%c0_61, %c0_62] : memref<32x128xf32, #tpu.memory_space<vmem>>, vector<32x128xf32>
    %cst_63 = arith.constant dense<0.000000e+00> : vector<64x128xf32>
    %168 = tpu.matmul %166, %167, %cst_63 {dimension_numbers = #tpu.dot_dimension_numbers<[1], [0], [0], [1], [0, 0, 1, 1], [], []>} : vector<64x32xf32>, vector<32x128xf32>, vector<64x128xf32> -> vector<64x128xf32>
    %c0_64 = arith.constant 0 : index
    %c0_65 = arith.constant 0 : index
    %169 = vector.load %arg13[%c0_64, %c0_65] : memref<1x128xf32, #tpu.memory_space<vmem>>, vector<1x128xf32>
    %170 = vector.broadcast %169 : vector<1x128xf32> to vector<64x128xf32>
    %171 = arith.addf %168, %170 : vector<64x128xf32>
    %cst_66 = arith.constant 5.000000e-01 : f32
    %172 = vector.broadcast %cst_66 : f32 to vector<64x128xf32>
    %173 = arith.mulf %172, %171 : vector<64x128xf32>
    %cst_67 = arith.constant 0.707106769 : f32
    %174 = vector.broadcast %cst_67 : f32 to vector<64x128xf32>
    %175 = arith.mulf %171, %174 : vector<64x128xf32>
    %176 = math.erf %175 : vector<64x128xf32>
    %cst_68 = arith.constant 1.000000e+00 : f32
    %177 = vector.broadcast %cst_68 : f32 to vector<64x128xf32>
    %178 = arith.addf %177, %176 : vector<64x128xf32>
    %179 = arith.mulf %173, %178 : vector<64x128xf32>
    %c0_69 = arith.constant 0 : index
    %c0_70 = arith.constant 0 : index
    %180 = vector.load %arg14[%c0_69, %c0_70] : memref<128x32xf32, #tpu.memory_space<vmem>>, vector<128x32xf32>
    %cst_71 = arith.constant dense<0.000000e+00> : vector<64x32xf32>
    %181 = tpu.matmul %179, %180, %cst_71 {dimension_numbers = #tpu.dot_dimension_numbers<[1], [0], [0], [1], [0, 0, 1, 1], [], []>} : vector<64x128xf32>, vector<128x32xf32>, vector<64x32xf32> -> vector<64x32xf32>
    %182 = arith.addf %144, %181 : vector<64x32xf32>
    %c0_72 = arith.constant 0 : index
    %c0_73 = arith.constant 0 : index
    %183 = vector.load %arg15[%c0_72, %c0_73] : memref<1x32xf32, #tpu.memory_space<vmem>>, vector<1x32xf32>
    %184 = vector.broadcast %183 : vector<1x32xf32> to vector<64x32xf32>
    %185 = arith.addf %182, %184 : vector<64x32xf32>
    %c0_74 = arith.constant 0 : index
    %c0_75 = arith.constant 0 : index
    %c0_76 = arith.constant 0 : index
    %186 = vector.load %arg16[%c0_74, %c0_75, %c0_76] : memref<1x64x32xf32, #tpu.memory_space<vmem>>, vector<1x64x32xf32>
    %187 = vector.shape_cast %186 : vector<1x64x32xf32> to vector<64x32xf32>
    %188 = vector.shape_cast %185 : vector<64x32xf32> to vector<1x64x32xf32>
    tpu.vector_store %arg16[%c0_74, %c0_75, %c0_76], %188 {strides = array<i32>} : memref<1x64x32xf32, #tpu.memory_space<vmem>>, vector<1x64x32xf32>,
    return
  }
  func.func @transform_0(%arg0: i32) -> (i32, i32, i32) {
    %c0_i32 = arith.constant 0 : i32
    %c0_i32_0 = arith.constant 0 : i32
    %c0_i32_1 = arith.constant 0 : i32
    return %arg0, %c0_i32, %c0_i32_0 : i32, i32, i32
  }
  func.func @transform_1(%arg0: i32) -> (i32, i32, i32) {
    %c0_i32 = arith.constant 0 : i32
    %c0_i32_0 = arith.constant 0 : i32
    %c0_i32_1 = arith.constant 0 : i32
    %c0_i32_2 = arith.constant 0 : i32
    return %c0_i32, %c0_i32_0, %c0_i32_1 : i32, i32, i32
  }
  func.func @transform_2(%arg0: i32) -> (i32, i32, i32) {
    %c0_i32 = arith.constant 0 : i32
    %c0_i32_0 = arith.constant 0 : i32
    %c0_i32_1 = arith.constant 0 : i32
    %c0_i32_2 = arith.constant 0 : i32
    return %c0_i32, %c0_i32_0, %c0_i32_1 : i32, i32, i32
  }
  func.func @transform_3(%arg0: i32) -> (i32, i32) {
    %c0_i32 = arith.constant 0 : i32
    %c0_i32_0 = arith.constant 0 : i32
    %c0_i32_1 = arith.constant 0 : i32
    return %c0_i32, %c0_i32_0 : i32, i32
  }
  func.func @transform_4(%arg0: i32) -> (i32, i32) {
    %c0_i32 = arith.constant 0 : i32
    %c0_i32_0 = arith.constant 0 : i32
    %c0_i32_1 = arith.constant 0 : i32
    return %c0_i32, %c0_i32_0 : i32, i32
  }
  func.func @transform_5(%arg0: i32) -> (i32, i32) {
    %c0_i32 = arith.constant 0 : i32
    %c0_i32_0 = arith.constant 0 : i32
    %c0_i32_1 = arith.constant 0 : i32
    return %c0_i32, %c0_i32_0 : i32, i32
  }
  func.func @transform_6(%arg0: i32) -> (i32, i32) {
    %c0_i32 = arith.constant 0 : i32
    %c0_i32_0 = arith.constant 0 : i32
    %c0_i32_1 = arith.constant 0 : i32
    return %c0_i32, %c0_i32_0 : i32, i32
  }
  func.func @transform_7(%arg0: i32) -> (i32, i32) {
    %c0_i32 = arith.constant 0 : i32
    %c0_i32_0 = arith.constant 0 : i32
    %c0_i32_1 = arith.constant 0 : i32
    return %c0_i32, %c0_i32_0 : i32, i32
  }
  func.func @transform_8(%arg0: i32) -> (i32, i32) {
    %c0_i32 = arith.constant 0 : i32
    %c0_i32_0 = arith.constant 0 : i32
    %c0_i32_1 = arith.constant 0 : i32
    return %c0_i32, %c0_i32_0 : i32, i32
  }
  func.func @transform_9(%arg0: i32) -> (i32, i32) {
    %c0_i32 = arith.constant 0 : i32
    %c0_i32_0 = arith.constant 0 : i32
    %c0_i32_1 = arith.constant 0 : i32
    return %c0_i32, %c0_i32_0 : i32, i32
  }
  func.func @transform_10(%arg0: i32) -> (i32, i32) {
    %c0_i32 = arith.constant 0 : i32
    %c0_i32_0 = arith.constant 0 : i32
    %c0_i32_1 = arith.constant 0 : i32
    return %c0_i32, %c0_i32_0 : i32, i32
  }
  func.func @transform_11(%arg0: i32) -> (i32, i32) {
    %c0_i32 = arith.constant 0 : i32
    %c0_i32_0 = arith.constant 0 : i32
    %c0_i32_1 = arith.constant 0 : i32
    return %c0_i32, %c0_i32_0 : i32, i32
  }
  func.func @transform_12(%arg0: i32) -> (i32, i32) {
    %c0_i32 = arith.constant 0 : i32
    %c0_i32_0 = arith.constant 0 : i32
    %c0_i32_1 = arith.constant 0 : i32
    return %c0_i32, %c0_i32_0 : i32, i32
  }
  func.func @transform_13(%arg0: i32) -> (i32, i32) {
    %c0_i32 = arith.constant 0 : i32
    %c0_i32_0 = arith.constant 0 : i32
    %c0_i32_1 = arith.constant 0 : i32
    return %c0_i32, %c0_i32_0 : i32, i32
  }
  func.func @transform_14(%arg0: i32) -> (i32, i32) {
    %c0_i32 = arith.constant 0 : i32
    %c0_i32_0 = arith.constant 0 : i32
    %c0_i32_1 = arith.constant 0 : i32
    return %c0_i32, %c0_i32_0 : i32, i32
  }
  func.func @transform_15(%arg0: i32) -> (i32, i32, i32) {
    %c0_i32 = arith.constant 0 : i32
    %c0_i32_0 = arith.constant 0 : i32
    %c0_i32_1 = arith.constant 0 : i32
    return %arg0, %c0_i32, %c0_i32_0 : i32, i32, i32
  }
}

</mosaic_0001>

<llo_original>
// kernel: swin_transformer_block.1
$region0: #{swin_transformer_block.1}
  #allocation0 [shape = 'u32[]', space=smem, size = 0x4, offset = 0x4, fixed_abs, tag = 'smem constant byte address 0x4 - core index']
  #allocation1 [shape = 'u32[144,128]{1,0:T(1,128)}', space=vmem, size = 0x12000, scoped, tag = 'internal scratch']
  %s0 = inlined_call_operand.vmem [shape: f32[2,64,32], index: 0, kind: input, shape index: {}]
  %s1 = inlined_call_operand.vmem [shape: f32[8,8,8], index: 1, kind: input, shape index: {}]
  %s2 = inlined_call_operand.vmem [shape: f32[4,8,8], index: 2, kind: input, shape index: {}]
  %s3 = inlined_call_operand.vmem [shape: f32[1,32], index: 3, kind: input, shape index: {}]
  %s4 = inlined_call_operand.vmem [shape: f32[1,32], index: 4, kind: input, shape index: {}]
  %s5 = inlined_call_operand.vmem [shape: f32[32,96], index: 5, kind: input, shape index: {}]
  %s6 = inlined_call_operand.vmem [shape: f32[1,96], index: 6, kind: input, shape index: {}]
  %s7 = inlined_call_operand.vmem [shape: f32[32,32], index: 7, kind: input, shape index: {}]
  %s8 = inlined_call_operand.vmem [shape: f32[1,32], index: 8, kind: input, shape index: {}]
  %s9 = inlined_call_operand.vmem [shape: f32[1,32], index: 9, kind: input, shape index: {}]
  %s10 = inlined_call_operand.vmem [shape: f32[1,32], index: 10, kind: input, shape index: {}]
  %s11 = inlined_call_operand.vmem [shape: f32[32,128], index: 11, kind: input, shape index: {}]
  %s12 = inlined_call_operand.vmem [shape: f32[1,128], index: 12, kind: input, shape index: {}]
  %s13 = inlined_call_operand.vmem [shape: f32[128,32], index: 13, kind: input, shape index: {}]
  %s14 = inlined_call_operand.vmem [shape: f32[1,32], index: 14, kind: input, shape index: {}]
  %s15 = inlined_call_operand.vmem [shape: f32[2,64,32], index: 15, kind: output, shape index: {}]
  %s16 = sld [smem:[#allocation0]]
  $region93: #{swin_transformer_block.1} parent=0
    _
  %s18 = ssub.s32 1, %s16
  %s19 = scalar_select 0, %s18, %s16
  loop: start=0, step=1, limit=4
  $region2: #{swin_transformer_block.1} parent=0 // loop_pre_header
    _
  $region3: #{swin_transformer_block.1} parent=0 // loop_header
    %s21 = sphi 0, %s25
    %p22 = scmp.ge.s32.totalorder %s21, 4
    %s31 = sphi 0, %s33
    %s34 = sphi 0, %s31
    %s35 = sphi 0, %s34
    %s51 = sphi 0, %s35
    %s55 = sphi 0, %s55
    %s57 = sphi 0, %s55
    %s58 = sphi 0, %s57
    %s72 = sphi 0, %s58
    %s76 = sphi 0, %s76
    %s78 = sphi 0, %s76
    %s79 = sphi 0, %s78
    %s93 = sphi 0, %s79
    %s97 = sphi 0, %s97
    %s99 = sphi 0, %s97
    %s100 = sphi 0, %s99
    %s114 = sphi 0, %s100
    %s118 = sphi 0, %s118
    %s120 = sphi 0, %s118
    %s121 = sphi 0, %s120
    %s135 = sphi 0, %s121
    %s139 = sphi 0, %s139
    %s141 = sphi 0, %s139
    %s142 = sphi 0, %s141
    %s156 = sphi 0, %s142
    %s160 = sphi 0, %s160
    %s162 = sphi 0, %s160
    %s163 = sphi 0, %s162
    %s177 = sphi 0, %s163
    %s181 = sphi 0, %s181
    %s183 = sphi 0, %s181
    %s184 = sphi 0, %s183
    %s198 = sphi 0, %s184
    %s202 = sphi 0, %s202
    %s204 = sphi 0, %s202
    %s205 = sphi 0, %s204
    %s219 = sphi 0, %s205
    %s223 = sphi 0, %s223
    %s225 = sphi 0, %s223
    %s226 = sphi 0, %s225
    %s240 = sphi 0, %s226
    %s244 = sphi 0, %s244
    %s246 = sphi 0, %s244
    %s247 = sphi 0, %s246
    %s261 = sphi 0, %s247
    %s265 = sphi 0, %s265
    %s267 = sphi 0, %s265
    %s268 = sphi 0, %s267
    %s282 = sphi 0, %s268
    %s286 = sphi 0, %s286
    %s288 = sphi 0, %s286
    %s289 = sphi 0, %s288
    %s303 = sphi 0, %s289
    %s307 = sphi 0, %s307
    %s309 = sphi 0, %s307
    %s310 = sphi 0, %s309
    %s324 = sphi 0, %s310
    %s328 = sphi 0, %s328
    %s330 = sphi 0, %s328
    %s331 = sphi 0, %s330
    %s345 = sphi 0, %s331
    %s351 = sphi 0, %s353
    %s354 = sphi 0, %s351
    %s355 = sphi 0, %s354
    %s371 = sphi 0, %s355
  $region4: #{swin_transformer_block.1} parent=0 // loop_header_branch
    %24 = sbr.rel (%p22) target = $region8
  $region5: #{swin_transformer_block.1} parent=0 // loop_body
    %s26 = ssub.s32 %s21, 1
    %s27 = ssub.s32 %s21, 2
    %s28 = sadd.s32 %s21, 1
    %s29 = ssub.s32 %s21, %s28
    %p30 = scmp.eq.s32.totalorder %s29, 0
    %s32 = sadd.s32 %s31, 1
    %s33 = scalar_select %p30, %s31, %s32
    %p36 = pneg %p30
    %p37 = scmp.eq.s32.totalorder %s21, 1
    %p38 = por %p36, %p37
    %p39 = scmp.ne.s32.totalorder %s31, %s34
    %p40 = scmp.eq.s32.totalorder %s21, 0
    %p41 = por %p39, %p40
    %p42 = scmp.ne.s32.totalorder %s31, %s34
    %p43 = scmp.eq.s32.totalorder %s26, 1
    %p44 = por %p42, %p43
    %p45 = scmp.ne.s32.totalorder %s34, %s35
    %p46 = scmp.eq.s32.totalorder %s26, 0
    %p47 = por %p45, %p46
    %p48 = scmp.ne.s32.totalorder %s34, %s35
    %p49 = scmp.eq.s32.totalorder %s27, 1
    %p50 = por %p48, %p49
    %p52 = scmp.ne.s32.totalorder %s35, %s51
    %p53 = scmp.eq.s32.totalorder %s27, 0
    %p54 = por %p52, %p53
    %s56 = sadd.s32 %s55, 1
    %p59 = scmp.eq.s32.totalorder %s21, 1
    %p60 = scmp.ne.s32.totalorder %s55, %s57
    %p61 = scmp.eq.s32.totalorder %s21, 0
    %p62 = por %p60, %p61
    %p63 = scmp.ne.s32.totalorder %s55, %s57
    %p64 = scmp.eq.s32.totalorder %s26, 1
    %p65 = por %p63, %p64
    %p66 = scmp.ne.s32.totalorder %s57, %s58
    %p67 = scmp.eq.s32.totalorder %s26, 0
    %p68 = por %p66, %p67
    %p69 = scmp.ne.s32.totalorder %s57, %s58
    %p70 = scmp.eq.s32.totalorder %s27, 1
    %p71 = por %p69, %p70
    %p73 = scmp.ne.s32.totalorder %s58, %s72
    %p74 = scmp.eq.s32.totalorder %s27, 0
    %p75 = por %p73, %p74
    %s77 = sadd.s32 %s76, 1
    %p80 = scmp.eq.s32.totalorder %s21, 1
    %p81 = scmp.ne.s32.totalorder %s76, %s78
    %p82 = scmp.eq.s32.totalorder %s21, 0
    %p83 = por %p81, %p82
    %p84 = scmp.ne.s32.totalorder %s76, %s78
    %p85 = scmp.eq.s32.totalorder %s26, 1
    %p86 = por %p84, %p85
    %p87 = scmp.ne.s32.totalorder %s78, %s79
    %p88 = scmp.eq.s32.totalorder %s26, 0
    %p89 = por %p87, %p88
    %p90 = scmp.ne.s32.totalorder %s78, %s79
    %p91 = scmp.eq.s32.totalorder %s27, 1
    %p92 = por %p90, %p91
    %p94 = scmp.ne.s32.totalorder %s79, %s93
    %p95 = scmp.eq.s32.totalorder %s27, 0
    %p96 = por %p94, %p95
    %s98 = sadd.s32 %s97, 1
    %p101 = scmp.eq.s32.totalorder %s21, 1
    %p102 = scmp.ne.s32.totalorder %s97, %s99
    %p103 = scmp.eq.s32.totalorder %s21, 0
    %p104 = por %p102, %p103
    %p105 = scmp.ne.s32.totalorder %s97, %s99
    %p106 = scmp.eq.s32.totalorder %s26, 1
    %p107 = por %p105, %p106
    %p108 = scmp.ne.s32.totalorder %s99, %s100
    %p109 = scmp.eq.s32.totalorder %s26, 0
    %p110 = por %p108, %p109
    %p111 = scmp.ne.s32.totalorder %s99, %s100
    %p112 = scmp.eq.s32.totalorder %s27, 1
    %p113 = por %p111, %p112
    %p115 = scmp.ne.s32.totalorder %s100, %s114
    %p116 = scmp.eq.s32.totalorder %s27, 0
    %p117 = por %p115, %p116
    %s119 = sadd.s32 %s118, 1
    %p122 = scmp.eq.s32.totalorder %s21, 1
    %p123 = scmp.ne.s32.totalorder %s118, %s120
    %p124 = scmp.eq.s32.totalorder %s21, 0
    %p125 = por %p123, %p124
    %p126 = scmp.ne.s32.totalorder %s118, %s120
    %p127 = scmp.eq.s32.totalorder %s26, 1
    %p128 = por %p126, %p127
    %p129 = scmp.ne.s32.totalorder %s120, %s121
    %p130 = scmp.eq.s32.totalorder %s26, 0
    %p131 = por %p129, %p130
    %p132 = scmp.ne.s32.totalorder %s120, %s121
    %p133 = scmp.eq.s32.totalorder %s27, 1
    %p134 = por %p132, %p133
    %p136 = scmp.ne.s32.totalorder %s121, %s135
    %p137 = scmp.eq.s32.totalorder %s27, 0
    %p138 = por %p136, %p137
    %s140 = sadd.s32 %s139, 1
    %p143 = scmp.eq.s32.totalorder %s21, 1
    %p144 = scmp.ne.s32.totalorder %s139, %s141
    %p145 = scmp.eq.s32.totalorder %s21, 0
    %p146 = por %p144, %p145
    %p147 = scmp.ne.s32.totalorder %s139, %s141
    %p148 = scmp.eq.s32.totalorder %s26, 1
    %p149 = por %p147, %p148
    %p150 = scmp.ne.s32.totalorder %s141, %s142
    %p151 = scmp.eq.s32.totalorder %s26, 0
    %p152 = por %p150, %p151
    %p153 = scmp.ne.s32.totalorder %s141, %s142
    %p154 = scmp.eq.s32.totalorder %s27, 1
    %p155 = por %p153, %p154
    %p157 = scmp.ne.s32.totalorder %s142, %s156
    %p158 = scmp.eq.s32.totalorder %s27, 0
    %p159 = por %p157, %p158
    %s161 = sadd.s32 %s160, 1
    %p164 = scmp.eq.s32.totalorder %s21, 1
    %p165 = scmp.ne.s32.totalorder %s160, %s162
    %p166 = scmp.eq.s32.totalorder %s21, 0
    %p167 = por %p165, %p166
    %p168 = scmp.ne.s32.totalorder %s160, %s162
    %p169 = scmp.eq.s32.totalorder %s26, 1
    %p170 = por %p168, %p169
    %p171 = scmp.ne.s32.totalorder %s162, %s163
    %p172 = scmp.eq.s32.totalorder %s26, 0
    %p173 = por %p171, %p172
    %p174 = scmp.ne.s32.totalorder %s162, %s163
    %p175 = scmp.eq.s32.totalorder %s27, 1
    %p176 = por %p174, %p175
    %p178 = scmp.ne.s32.totalorder %s163, %s177
    %p179 = scmp.eq.s32.totalorder %s27, 0
    %p180 = por %p178, %p179
    %s182 = sadd.s32 %s181, 1
    %p185 = scmp.eq.s32.totalorder %s21, 1
    %p186 = scmp.ne.s32.totalorder %s181, %s183
    %p187 = scmp.eq.s32.totalorder %s21, 0
    %p188 = por %p186, %p187
    %p189 = scmp.ne.s32.totalorder %s181, %s183
    %p190 = scmp.eq.s32.totalorder %s26, 1
    %p191 = por %p189, %p190
    %p192 = scmp.ne.s32.totalorder %s183, %s184
    %p193 = scmp.eq.s32.totalorder %s26, 0
    %p194 = por %p192, %p193
    %p195 = scmp.ne.s32.totalorder %s183, %s184
    %p196 = scmp.eq.s32.totalorder %s27, 1
    %p197 = por %p195, %p196
    %p199 = scmp.ne.s32.totalorder %s184, %s198
    %p200 = scmp.eq.s32.totalorder %s27, 0
    %p201 = por %p199, %p200
    %s203 = sadd.s32 %s202, 1
    %p206 = scmp.eq.s32.totalorder %s21, 1
    %p207 = scmp.ne.s32.totalorder %s202, %s204
    %p208 = scmp.eq.s32.totalorder %s21, 0
    %p209 = por %p207, %p208
    %p210 = scmp.ne.s32.totalorder %s202, %s204
    %p211 = scmp.eq.s32.totalorder %s26, 1
    %p212 = por %p210, %p211
    %p213 = scmp.ne.s32.totalorder %s204, %s205
    %p214 = scmp.eq.s32.totalorder %s26, 0
    %p215 = por %p213, %p214
    %p216 = scmp.ne.s32.totalorder %s204, %s205
    %p217 = scmp.eq.s32.totalorder %s27, 1
    %p218 = por %p216, %p217
    %p220 = scmp.ne.s32.totalorder %s205, %s219
    %p221 = scmp.eq.s32.totalorder %s27, 0
    %p222 = por %p220, %p221
    %s224 = sadd.s32 %s223, 1
    %p227 = scmp.eq.s32.totalorder %s21, 1
    %p228 = scmp.ne.s32.totalorder %s223, %s225
    %p229 = scmp.eq.s32.totalorder %s21, 0
    %p230 = por %p228, %p229
    %p231 = scmp.ne.s32.totalorder %s223, %s225
    %p232 = scmp.eq.s32.totalorder %s26, 1
    %p233 = por %p231, %p232
    %p234 = scmp.ne.s32.totalorder %s225, %s226
    %p235 = scmp.eq.s32.totalorder %s26, 0
    %p236 = por %p234, %p235
    %p237 = scmp.ne.s32.totalorder %s225, %s226
    %p238 = scmp.eq.s32.totalorder %s27, 1
    %p239 = por %p237, %p238
    %p241 = scmp.ne.s32.totalorder %s226, %s240
    %p242 = scmp.eq.s32.totalorder %s27, 0
    %p243 = por %p241, %p242
    %s245 = sadd.s32 %s244, 1
    %p248 = scmp.eq.s32.totalorder %s21, 1
    %p249 = scmp.ne.s32.totalorder %s244, %s246
    %p250 = scmp.eq.s32.totalorder %s21, 0
    %p251 = por %p249, %p250
    %p252 = scmp.ne.s32.totalorder %s244, %s246
    %p253 = scmp.eq.s32.totalorder %s26, 1
    %p254 = por %p252, %p253
    %p255 = scmp.ne.s32.totalorder %s246, %s247
    %p256 = scmp.eq.s32.totalorder %s26, 0
    %p257 = por %p255, %p256
    %p258 = scmp.ne.s32.totalorder %s246, %s247
    %p259 = scmp.eq.s32.totalorder %s27, 1
    %p260 = por %p258, %p259
    %p262 = scmp.ne.s32.totalorder %s247, %s261
    %p263 = scmp.eq.s32.totalorder %s27, 0
    %p264 = por %p262, %p263
    %s266 = sadd.s32 %s265, 1
    %p269 = scmp.eq.s32.totalorder %s21, 1
    %p270 = scmp.ne.s32.totalorder %s265, %s267
    %p271 = scmp.eq.s32.totalorder %s21, 0
    %p272 = por %p270, %p271
    %p273 = scmp.ne.s32.totalorder %s265, %s267
    %p274 = scmp.eq.s32.totalorder %s26, 1
    %p275 = por %p273, %p274
    %p276 = scmp.ne.s32.totalorder %s267, %s268
    %p277 = scmp.eq.s32.totalorder %s26, 0
    %p278 = por %p276, %p277
    %p279 = scmp.ne.s32.totalorder %s267, %s268
    %p280 = scmp.eq.s32.totalorder %s27, 1
    %p281 = por %p279, %p280
    %p283 = scmp.ne.s32.totalorder %s268, %s282
    %p284 = scmp.eq.s32.totalorder %s27, 0
    %p285 = por %p283, %p284
    %s287 = sadd.s32 %s286, 1
    %p290 = scmp.eq.s32.totalorder %s21, 1
    %p291 = scmp.ne.s32.totalorder %s286, %s288
    %p292 = scmp.eq.s32.totalorder %s21, 0
    %p293 = por %p291, %p292
    %p294 = scmp.ne.s32.totalorder %s286, %s288
    %p295 = scmp.eq.s32.totalorder %s26, 1
    %p296 = por %p294, %p295
    %p297 = scmp.ne.s32.totalorder %s288, %s289
    %p298 = scmp.eq.s32.totalorder %s26, 0
    %p299 = por %p297, %p298
    %p300 = scmp.ne.s32.totalorder %s288, %s289
    %p301 = scmp.eq.s32.totalorder %s27, 1
    %p302 = por %p300, %p301
    %p304 = scmp.ne.s32.totalorder %s289, %s303
    %p305 = scmp.eq.s32.totalorder %s27, 0
    %p306 = por %p304, %p305
    %s308 = sadd.s32 %s307, 1
    %p311 = scmp.eq.s32.totalorder %s21, 1
    %p312 = scmp.ne.s32.totalorder %s307, %s309
    %p313 = scmp.eq.s32.totalorder %s21, 0
    %p314 = por %p312, %p313
    %p315 = scmp.ne.s32.totalorder %s307, %s309
    %p316 = scmp.eq.s32.totalorder %s26, 1
    %p317 = por %p315, %p316
    %p318 = scmp.ne.s32.totalorder %s309, %s310
    %p319 = scmp.eq.s32.totalorder %s26, 0
    %p320 = por %p318, %p319
    %p321 = scmp.ne.s32.totalorder %s309, %s310
    %p322 = scmp.eq.s32.totalorder %s27, 1
    %p323 = por %p321, %p322
    %p325 = scmp.ne.s32.totalorder %s310, %s324
    %p326 = scmp.eq.s32.totalorder %s27, 0
    %p327 = por %p325, %p326
    %s329 = sadd.s32 %s328, 1
    %p332 = scmp.eq.s32.totalorder %s21, 1
    %p333 = scmp.ne.s32.totalorder %s328, %s330
    %p334 = scmp.eq.s32.totalorder %s21, 0
    %p335 = por %p333, %p334
    %p336 = scmp.ne.s32.totalorder %s328, %s330
    %p337 = scmp.eq.s32.totalorder %s26, 1
    %p338 = por %p336, %p337
    %p339 = scmp.ne.s32.totalorder %s330, %s331
    %p340 = scmp.eq.s32.totalorder %s26, 0
    %p341 = por %p339, %p340
    %p342 = scmp.ne.s32.totalorder %s330, %s331
    %p343 = scmp.eq.s32.totalorder %s27, 1
    %p344 = por %p342, %p343
    %p346 = scmp.ne.s32.totalorder %s331, %s345
    %p347 = scmp.eq.s32.totalorder %s27, 0
    %p348 = por %p346, %p347
    %s349 = ssub.s32 %s21, %s28
    %p350 = scmp.eq.s32.totalorder %s349, 0
    %s352 = sadd.s32 %s351, 1
    %s353 = scalar_select %p350, %s351, %s352
    %p356 = pneg %p350
    %p357 = scmp.eq.s32.totalorder %s21, 1
    %p358 = por %p356, %p357
    %p359 = scmp.ne.s32.totalorder %s351, %s354
    %p360 = scmp.eq.s32.totalorder %s21, 0
    %p361 = por %p359, %p360
    %p362 = scmp.ne.s32.totalorder %s351, %s354
    %p363 = scmp.eq.s32.totalorder %s26, 1
    %p364 = por %p362, %p363
    %p365 = scmp.ne.s32.totalorder %s354, %s355
    %p366 = scmp.eq.s32.totalorder %s26, 0
    %p367 = por %p365, %p366
    %p368 = scmp.ne.s32.totalorder %s354, %s355
    %p369 = scmp.eq.s32.totalorder %s27, 1
    %p370 = por %p368, %p369
    %p372 = scmp.ne.s32.totalorder %s355, %s371
    %p373 = scmp.eq.s32.totalorder %s27, 0
    %p374 = por %p372, %p373
    %p375 = scmp.le.s32.totalorder 1, %s21
    %p376 = scmp.lt.s32.totalorder %s21, 3
    %p377 = pnand %p375, %p376
    %p378 = pneg %p377
    // Predicated region
    $region9: #{swin_transformer_block.1} parent=5 // pred_check
      _
    $region10: #{swin_transformer_block.1} parent=5 // pred_check_branch
      %380 = sbr.rel (%p377) target = $region12
    $region11: #{swin_transformer_block.1} parent=5 // pred_region
      %s381 = ssub.s32 %s21, 1
      // Predicated region
      $region13: #{swin_transformer_block.1} parent=11 // pred_check
        %p382 = pneg %p68
      $region14: #{swin_transformer_block.1} parent=11 // pred_check_branch
        %384 = sbr.rel (%p382) target = $region16
      $region15: #{swin_transformer_block.1} parent=11 // pred_region
        _
      $region16: #{swin_transformer_block.1} parent=11 // pred_fallthru
        _
      // Predicated region
      $region17: #{swin_transformer_block.1} parent=11 // pred_check
        %p385 = pneg %p89
      $region18: #{swin_transformer_block.1} parent=11 // pred_check_branch
        %387 = sbr.rel (%p385) target = $region20
      $region19: #{swin_transformer_block.1} parent=11 // pred_region
        _
      $region20: #{swin_transformer_block.1} parent=11 // pred_fallthru
        _
      // Predicated region
      $region21: #{swin_transformer_block.1} parent=11 // pred_check
        %p388 = pneg %p110
      $region22: #{swin_transformer_block.1} parent=11 // pred_check_branch
        %390 = sbr.rel (%p388) target = $region24
      $region23: #{swin_transformer_block.1} parent=11 // pred_region
        _
      $region24: #{swin_transformer_block.1} parent=11 // pred_fallthru
        _
      // Predicated region
      $region25: #{swin_transformer_block.1} parent=11 // pred_check
        %p391 = pneg %p131
      $region26: #{swin_transformer_block.1} parent=11 // pred_check_branch
        %393 = sbr.rel (%p391) target = $region28
      $region27: #{swin_transformer_block.1} parent=11 // pred_region
        _
      $region28: #{swin_transformer_block.1} parent=11 // pred_fallthru
        _
      // Predicated region
      $region29: #{swin_transformer_block.1} parent=11 // pred_check
        %p394 = pneg %p152
      $region30: #{swin_transformer_block.1} parent=11 // pred_check_branch
        %396 = sbr.rel (%p394) target = $region32
      $region31: #{swin_transformer_block.1} parent=11 // pred_region
        _
      $region32: #{swin_transformer_block.1} parent=11 // pred_fallthru
        _
      // Predicated region
      $region33: #{swin_transformer_block.1} parent=11 // pred_check
        %p397 = pneg %p173
      $region34: #{swin_transformer_block.1} parent=11 // pred_check_branch
        %399 = sbr.rel (%p397) target = $region36
      $region35: #{swin_transformer_block.1} parent=11 // pred_region
        _
      $region36: #{swin_transformer_block.1} parent=11 // pred_fallthru
        _
      // Predicated region
      $region37: #{swin_transformer_block.1} parent=11 // pred_check
        %p400 = pneg %p194
      $region38: #{swin_transformer_block.1} parent=11 // pred_check_branch
        %402 = sbr.rel (%p400) target = $region40
      $region39: #{swin_transformer_block.1} parent=11 // pred_region
        _
      $region40: #{swin_transformer_block.1} parent=11 // pred_fallthru
        _
      // Predicated region
      $region41: #{swin_transformer_block.1} parent=11 // pred_check
        %p403 = pneg %p215
      $region42: #{swin_transformer_block.1} parent=11 // pred_check_branch
        %405 = sbr.rel (%p403) target = $region44
      $region43: #{swin_transformer_block.1} parent=11 // pred_region
        _
      $region44: #{swin_transformer_block.1} parent=11 // pred_fallthru
        _
      // Predicated region
      $region45: #{swin_transformer_block.1} parent=11 // pred_check
        %p406 = pneg %p236
      $region46: #{swin_transformer_block.1} parent=11 // pred_check_branch
        %408 = sbr.rel (%p406) target = $region48
      $region47: #{swin_transformer_block.1} parent=11 // pred_region
        _
      $region48: #{swin_transformer_block.1} parent=11 // pred_fallthru
        _
      // Predicated region
      $region49: #{swin_transformer_block.1} parent=11 // pred_check
        %p409 = pneg %p257
      $region50: #{swin_transformer_block.1} parent=11 // pred_check_branch
        %411 = sbr.rel (%p409) target = $region52
      $region51: #{swin_transformer_block.1} parent=11 // pred_region
        _
      $region52: #{swin_transformer_block.1} parent=11 // pred_fallthru
        _
      // Predicated region
      $region53: #{swin_transformer_block.1} parent=11 // pred_check
        %p412 = pneg %p278
      $region54: #{swin_transformer_block.1} parent=11 // pred_check_branch
        %414 = sbr.rel (%p412) target = $region56
      $region55: #{swin_transformer_block.1} parent=11 // pred_region
        _
      $region56: #{swin_transformer_block.1} parent=11 // pred_fallthru
        _
      // Predicated region
      $region57: #{swin_transformer_block.1} parent=11 // pred_check
        %p415 = pneg %p299
      $region58: #{swin_transformer_block.1} parent=11 // pred_check_branch
        %417 = sbr.rel (%p415) target = $region60
      $region59: #{swin_transformer_block.1} parent=11 // pred_region
        _
      $region60: #{swin_transformer_block.1} parent=11 // pred_fallthru
        _
      // Predicated region
      $region61: #{swin_transformer_block.1} parent=11 // pred_check
        %p418 = pneg %p320
      $region62: #{swin_transformer_block.1} parent=11 // pred_check_branch
        %420 = sbr.rel (%p418) target = $region64
      $region63: #{swin_transformer_block.1} parent=11 // pred_region
        _
      $region64: #{swin_transformer_block.1} parent=11 // pred_fallthru
        _
      // Predicated region
      $region65: #{swin_transformer_block.1} parent=11 // pred_check
        %p421 = pneg %p341
      $region66: #{swin_transformer_block.1} parent=11 // pred_check_branch
        %423 = sbr.rel (%p421) target = $region68
      $region67: #{swin_transformer_block.1} parent=11 // pred_region
        _
      $region68: #{swin_transformer_block.1} parent=11 // pred_fallthru
        _
    $region12: #{swin_transformer_block.1} parent=5 // pred_fallthru
      _
    %p424 = scmp.lt.s32.totalorder %s21, 2
    // Predicated region
    $region69: #{swin_transformer_block.1} parent=5 // pred_check
      %p425 = pneg %p424
    $region70: #{swin_transformer_block.1} parent=5 // pred_check_branch
      %427 = sbr.rel (%p425) target = $region72
    $region71: #{swin_transformer_block.1} parent=5 // pred_region
      // Predicated region
      $region73: #{swin_transformer_block.1} parent=71 // pred_check
        %p428 = pneg %p41
      $region74: #{swin_transformer_block.1} parent=71 // pred_check_branch
        %430 = sbr.rel (%p428) target = $region76
      $region75: #{swin_transformer_block.1} parent=71 // pred_region
        %p431 = scmp.lt.s32.totalorder %s21, 1
        %s432 = scalar_select %p431, %s21, 1
        %s433 = smul.addr %s432, 8
        %s434 = smul.addr %s433, 8
        %s435 = scalar_lea.vmem %s0, %s434
      $region76: #{swin_transformer_block.1} parent=71 // pred_fallthru
        _
    $region72: #{swin_transformer_block.1} parent=5 // pred_fallthru
      _
    %p436 = scmp.le.s32.totalorder 1, %s21
    %p437 = scmp.lt.s32.totalorder %s21, 3
    %p438 = pnand %p436, %p437
    %p439 = pneg %p438
    // Predicated region
    $region77: #{swin_transformer_block.1} parent=5 // pred_check
      _
    $region78: #{swin_transformer_block.1} parent=5 // pred_check_branch
      %441 = sbr.rel (%p438) target = $region80
    $region79: #{swin_transformer_block.1} parent=5 // pred_region
      %s442 = ssub.s32 %s21, 1
      %p443 = scmp.lt.s32.totalorder %s26, 1
      %s444 = scalar_select %p443, %s26, 1
      %s445 = smul.addr %s444, 8
      %s446 = smul.addr %s445, 8
      %s447 = scalar_lea.vmem %s0, %s446
      %p448 = pneg %p47
      %p449 = pneg %p44
      %p450 = pneg %p68
      %p451 = pneg %p65
      %p452 = pneg %p89
      %p453 = pneg %p86
      %p454 = pneg %p110
      %p455 = pneg %p107
      %p456 = pneg %p131
      %p457 = pneg %p128
      %p458 = pneg %p152
      %p459 = pneg %p149
      %p460 = pneg %p173
      %p461 = pneg %p170
      %p462 = pneg %p194
      %p463 = pneg %p191
      %p464 = pneg %p215
      %p465 = pneg %p212
      %p466 = pneg %p236
      %p467 = pneg %p233
      %p468 = pneg %p257
      %p469 = pneg %p254
      %p470 = pneg %p278
      %p471 = pneg %p275
      %p472 = pneg %p299
      %p473 = pneg %p296
      %p474 = pneg %p320
      %p475 = pneg %p317
      %p476 = pneg %p341
      %p477 = pneg %p338
      %p478 = pneg %p367
      %p479 = pneg %p364
      %p480 = scmp.lt.s32.totalorder %s26, 1
      %s481 = scalar_select %p480, %s26, 1
      %s482 = smul.addr %s481, 8
      %s483 = smul.addr %s482, 8
      %s484 = scalar_lea.vmem %s15, %s483
      %p485 = scmp.lt.s32.totalorder %s26, 1
      %s486 = scalar_select %p485, %s26, 1
      %s487 = smul.addr %s486, 8
      %s488 = smul.addr %s487, 8
      %s489 = scalar_lea.vmem %s0, %s488
      %p490 = scmp.lt.s32.totalorder %s26, 1
      %s491 = scalar_select %p490, %s26, 1
      %s492 = smul.addr %s491, 8
      %s493 = smul.addr %s492, 8
      %s494 = scalar_lea.vmem %s15, %s493
      %v495 = vld [vmem:[%s489] sm:$0xff]
      %v496 = vld [vmem:[%s489 + $0x8] sm:$0xff]
      %v497 = vld [vmem:[%s489 + $0x10] sm:$0xff]
      %v498 = vld [vmem:[%s489 + $0x18] sm:$0xff]
      %v499 = vld [vmem:[%s489 + $0x20] sm:$0xff]
      %v500 = vld [vmem:[%s489 + $0x28] sm:$0xff]
      %v501 = vld [vmem:[%s489 + $0x30] sm:$0xff]
      %v502 = vld [vmem:[%s489 + $0x38] sm:$0xff]
      %vm503 = vcmask 261120
      %v504 = vsel %vm503, %v495, 0.0
      %505 = vadd.xlane.f32.xlu0 %v504
      %v506 = vpop.xlane.xlu0 %505
      %v507 = vsel %vm503, %v496, 0.0
      %508 = vadd.xlane.f32.xlu0 %v507
      %v509 = vpop.xlane.xlu0 %508
      %v510 = vsel %vm503, %v497, 0.0
      %511 = vadd.xlane.f32.xlu0 %v510
      %v512 = vpop.xlane.xlu0 %511
      %v513 = vsel %vm503, %v498, 0.0
      %514 = vadd.xlane.f32.xlu0 %v513
      %v515 = vpop.xlane.xlu0 %514
      %v516 = vsel %vm503, %v499, 0.0
      %517 = vadd.xlane.f32.xlu0 %v516
      %v518 = vpop.xlane.xlu0 %517
      %v519 = vsel %vm503, %v500, 0.0
      %520 = vadd.xlane.f32.xlu0 %v519
      %v521 = vpop.xlane.xlu0 %520
      %v522 = vsel %vm503, %v501, 0.0
      %523 = vadd.xlane.f32.xlu0 %v522
      %v524 = vpop.xlane.xlu0 %523
      %v525 = vsel %vm503, %v502, 0.0
      %526 = vadd.xlane.f32.xlu0 %v525
      %v527 = vpop.xlane.xlu0 %526
      %v528 = vrcp.pop 32.0
      %v529 = vmul.f32 %v506, %v528
      %v530 = vmul.f32 %v509, %v528
      %v531 = vmul.f32 %v512, %v528
      %v532 = vmul.f32 %v515, %v528
      %v533 = vmul.f32 %v518, %v528
      %v534 = vmul.f32 %v521, %v528
      %v535 = vmul.f32 %v524, %v528
      %v536 = vmul.f32 %v527, %v528
      %v537 = vsub.f32 %v495, %v529
      %v538 = vsub.f32 %v496, %v530
      %v539 = vsub.f32 %v497, %v531
      %v540 = vsub.f32 %v498, %v532
      %v541 = vsub.f32 %v499, %v533
      %v542 = vsub.f32 %v500, %v534
      %v543 = vsub.f32 %v501, %v535
      %v544 = vsub.f32 %v502, %v536
      %v545 = vmul.f32 %v537, %v537
      %v546 = vmul.f32 %v538, %v538
      %v547 = vmul.f32 %v539, %v539
      %v548 = vmul.f32 %v540, %v540
      %v549 = vmul.f32 %v541, %v541
      %v550 = vmul.f32 %v542, %v542
      %v551 = vmul.f32 %v543, %v543
      %v552 = vmul.f32 %v544, %v544
      %v553 = vsel %vm503, %v545, 0.0
      %554 = vadd.xlane.f32.xlu0 %v553
      %v555 = vpop.xlane.xlu0 %554
      %v556 = vsel %vm503, %v546, 0.0
      %557 = vadd.xlane.f32.xlu0 %v556
      %v558 = vpop.xlane.xlu0 %557
      %v559 = vsel %vm503, %v547, 0.0
      %560 = vadd.xlane.f32.xlu0 %v559
      %v561 = vpop.xlane.xlu0 %560
      %v562 = vsel %vm503, %v548, 0.0
      %563 = vadd.xlane.f32.xlu0 %v562
      %v564 = vpop.xlane.xlu0 %563
      %v565 = vsel %vm503, %v549, 0.0
      %566 = vadd.xlane.f32.xlu0 %v565
      %v567 = vpop.xlane.xlu0 %566
      %v568 = vsel %vm503, %v550, 0.0
      %569 = vadd.xlane.f32.xlu0 %v568
      %v570 = vpop.xlane.xlu0 %569
      %v571 = vsel %vm503, %v551, 0.0
      %572 = vadd.xlane.f32.xlu0 %v571
      %v573 = vpop.xlane.xlu0 %572
      %v574 = vsel %vm503, %v552, 0.0
      %575 = vadd.xlane.f32.xlu0 %v574
      %v576 = vpop.xlane.xlu0 %575
      %v577 = vmul.f32 %v555, %v528
      %v578 = vmul.f32 %v558, %v528
      %v579 = vmul.f32 %v561, %v528
      %v580 = vmul.f32 %v564, %v528
      %v581 = vmul.f32 %v567, %v528
      %v582 = vmul.f32 %v570, %v528
      %v583 = vmul.f32 %v573, %v528
      %v584 = vmul.f32 %v576, %v528
      %v585 = vadd.f32 %v577, 1e-05
      %v586 = vadd.f32 %v578, 1e-05
      %v587 = vadd.f32 %v579, 1e-05
      %v588 = vadd.f32 %v580, 1e-05
      %v589 = vadd.f32 %v581, 1e-05
      %v590 = vadd.f32 %v582, 1e-05
      %v591 = vadd.f32 %v583, 1e-05
      %v592 = vadd.f32 %v584, 1e-05
      %v593 = vrsqrt.pop %v585
      %v594 = vrsqrt.pop %v586
      %v595 = vrsqrt.pop %v587
      %v596 = vrsqrt.pop %v588
      %v597 = vrsqrt.pop %v589
      %v598 = vrsqrt.pop %v590
      %v599 = vrsqrt.pop %v591
      %v600 = vrsqrt.pop %v592
      %v601 = vmul.f32 %v537, %v593
      %v602 = vmul.f32 %v538, %v594
      %v603 = vmul.f32 %v539, %v595
      %v604 = vmul.f32 %v540, %v596
      %v605 = vmul.f32 %v541, %v597
      %v606 = vmul.f32 %v542, %v598
      %v607 = vmul.f32 %v543, %v599
      %v608 = vmul.f32 %v544, %v600
      %v609 = vld [vmem:[%s3] sm:$0x1]
      %v611 = vlaneseq
      %v612 = vshrl.u32 %v611, 7
      %v613 = vsub.s32 0, %v612
      %v614 = vrot.slane %v609, %v613
      %v616 = vmul.f32 %v601, %v614
      %v617 = vmul.f32 %v602, %v614
      %v618 = vmul.f32 %v603, %v614
      %v619 = vmul.f32 %v604, %v614
      %v620 = vmul.f32 %v605, %v614
      %v621 = vmul.f32 %v606, %v614
      %v622 = vmul.f32 %v607, %v614
      %v623 = vmul.f32 %v608, %v614
      %v624 = vld [vmem:[%s4] sm:$0x1]
      %v626 = vlaneseq
      %v627 = vshrl.u32 %v626, 7
      %v628 = vsub.s32 0, %v627
      %v629 = vrot.slane %v624, %v628
      %v631 = vadd.f32 %v616, %v629
      %v632 = vadd.f32 %v617, %v629
      %v633 = vadd.f32 %v618, %v629
      %v634 = vadd.f32 %v619, %v629
      %v635 = vadd.f32 %v620, %v629
      %v636 = vadd.f32 %v621, %v629
      %v637 = vadd.f32 %v622, %v629
      %v638 = vadd.f32 %v623, %v629
      %v639 = vld [vmem:[%s5] sm:$0xff]
      %v640 = vld [vmem:[%s5 + $0x8] sm:$0xff]
      %v641 = vld [vmem:[%s5 + $0x10] sm:$0xff]
      %v642 = vld [vmem:[%s5 + $0x18] sm:$0xff]
      %v643 = vld [vmem:[%s6] sm:$0x1]
      %v645 = vlaneseq
      %v646 = vshrl.u32 %v645, 7
      %v647 = vsub.s32 0, %v646
      %v648 = vrot.slane %v643, %v647
      %v651 = vsel %vm503, %v631, 0
      %v654 = vsel %vm503, %v632, 0
      %v657 = vsel %vm503, %v633, 0
      %v660 = vsel %vm503, %v634, 0
      %v663 = vsel %vm503, %v635, 0
      %v666 = vsel %vm503, %v636, 0
      %v669 = vsel %vm503, %v637, 0
      %v672 = vsel %vm503, %v638, 0
      %674 = vmatprep.subr.mxu0 0.0
      %675 = vmatpush1.msra.mxu0 %v639
      %676 = vmatprep.subr.mxu0 0.0
      %677 = vmatpush1.msra.mxu0 %v640
      %678 = vmatprep.subr.mxu0 0.0
      %679 = vmatpush1.msra.mxu0 %v641
      %680 = vmatprep.subr.mxu0 0.0
      %681 = vmatpush1.msra.mxu0 %v642
      %682 = vmatprep.subr.mxu0 0.0
      %683 = vmatpush1.msra.mxu0 0.0
      %684 = vmatprep.subr.mxu0 0.0
      %685 = vmatpush1.msra.mxu0 0.0
      %686 = vmatprep.subr.mxu0 0.0
      %687 = vmatpush1.msra.mxu0 0.0
      %688 = vmatprep.subr.mxu0 0.0
      %689 = vmatpush1.msra.mxu0 0.0
      %690 = vmatprep.subr.mxu0 0.0
      %691 = vmatpush1.msra.mxu0 0.0
      %692 = vmatprep.subr.mxu0 0.0
      %693 = vmatpush1.msra.mxu0 0.0
      %694 = vmatprep.subr.mxu0 0.0
      %695 = vmatpush1.msra.mxu0 0.0
      %696 = vmatprep.subr.mxu0 0.0
      %697 = vmatpush1.msra.mxu0 0.0
      %698 = vmatprep.subr.mxu0 0.0
      %699 = vmatpush1.msra.mxu0 0.0
      %700 = vmatprep.subr.mxu0 0.0
      %701 = vmatpush1.msra.mxu0 0.0
      %702 = vmatprep.subr.mxu0 0.0
      %703 = vmatpush1.msra.mxu0 0.0
      %704 = vmatprep.subr.mxu0 0.0
      %705 = vmatpush1.msra.mxu0 0.0
      %706 = vmatprep.subr.mxu0 0.0
      %707 = vmatpush1.msra.mxu0 0.0
      %708 = vmatprep.subr.mxu0 0.0
      %709 = vmatpush1.msra.mxu0 0.0
      %710 = vmatprep.subr.mxu0 0.0
      %711 = vmatpush1.msra.mxu0 0.0
      %712 = vmatprep.subr.mxu0 0.0
      %713 = vmatpush1.msra.mxu0 0.0
      %714 = vmatprep.subr.mxu0 0.0
      %715 = vmatpush1.msra.mxu0 0.0
      %716 = vmatprep.subr.mxu0 0.0
      %717 = vmatpush1.msra.mxu0 0.0
      %718 = vmatprep.subr.mxu0 0.0
      %719 = vmatpush1.msra.mxu0 0.0
      %720 = vmatprep.subr.mxu0 0.0
      %721 = vmatpush1.msra.mxu0 0.0
      %722 = vmatprep.subr.mxu0 0.0
      %723 = vmatpush1.msra.mxu0 0.0
      %724 = vmatprep.subr.mxu0 0.0
      %725 = vmatpush1.msra.mxu0 0.0
      %726 = vmatprep.subr.mxu0 0.0
      %727 = vmatpush1.msra.mxu0 0.0
      %728 = vmatprep.subr.mxu0 0.0
      %729 = vmatpush1.msra.mxu0 0.0
      %730 = vmatprep.subr.mxu0 0.0
      %731 = vmatpush1.msra.mxu0 0.0
      %732 = vmatprep.subr.mxu0 0.0
      %733 = vmatpush1.msra.mxu0 0.0
      %734 = vmatprep.subr.mxu0 0.0
      %735 = vmatpush1.msra.mxu0 0.0
      %736 = vmatprep.subr.mxu0 0.0
      %737 = vmatpush1.msra.mxu0 0.0
      %738 = vmatprep.mubr.f32.mxu0 0.0
      %739 = vmatmul.mubr.f32.gmra.mrb[0].mxu0 %v651
      %v740 = vpop.f32.mrb[0].mxu0
      %v741 = vadd.f32 %v648, %v740
      %v742 = vpop.f32.mrb[0].mxu0
      %743 = vmatprep.mubr.f32.mxu0 0.0
      %744 = vmatmul.mubr.f32.gmra.mrb[0].mxu0 %v654
      %v745 = vpop.f32.mrb[0].mxu0
      %v746 = vadd.f32 %v648, %v745
      %v747 = vpop.f32.mrb[0].mxu0
      %748 = vmatprep.mubr.f32.mxu0 0.0
      %749 = vmatmul.mubr.f32.gmra.mrb[0].mxu0 %v657
      %v750 = vpop.f32.mrb[0].mxu0
      %v751 = vadd.f32 %v648, %v750
      %v752 = vpop.f32.mrb[0].mxu0
      %753 = vmatprep.mubr.f32.mxu0 0.0
      %754 = vmatmul.mubr.f32.gmra.mrb[0].mxu0 %v660
      %v755 = vpop.f32.mrb[0].mxu0
      %v756 = vadd.f32 %v648, %v755
      %v757 = vpop.f32.mrb[0].mxu0
      %758 = vmatprep.mubr.f32.mxu0 0.0
      %759 = vmatmul.mubr.f32.gmra.mrb[0].mxu0 %v663
      %v760 = vpop.f32.mrb[0].mxu0
      %v761 = vadd.f32 %v648, %v760
      %v762 = vpop.f32.mrb[0].mxu0
      %763 = vmatprep.mubr.f32.mxu0 0.0
      %764 = vmatmul.mubr.f32.gmra.mrb[0].mxu0 %v666
      %v765 = vpop.f32.mrb[0].mxu0
      %v766 = vadd.f32 %v648, %v765
      %v767 = vpop.f32.mrb[0].mxu0
      %768 = vmatprep.mubr.f32.mxu0 0.0
      %769 = vmatmul.mubr.f32.gmra.mrb[0].mxu0 %v669
      %v770 = vpop.f32.mrb[0].mxu0
      %v771 = vadd.f32 %v648, %v770
      %v772 = vpop.f32.mrb[0].mxu0
      %773 = vmatprep.mubr.f32.mxu0 0.0
      %774 = vmatmul.mubr.f32.gmra.mrb[0].mxu0 %v672
      %v775 = vpop.f32.mrb[0].mxu0
      %v776 = vadd.f32 %v648, %v775
      %v777 = vpop.f32.mrb[0].mxu0
      %778 = vdwg.mxu0
      %v779 = vld [vmem:[%s1] sm:$0xff]
      %v780 = vld [vmem:[%s1 + $0x8] sm:$0xff]
      %v781 = vld [vmem:[%s1 + $0x10] sm:$0xff]
      %v782 = vld [vmem:[%s1 + $0x18] sm:$0xff]
      %v783 = vld [vmem:[%s1 + $0x20] sm:$0xff]
      %v784 = vld [vmem:[%s1 + $0x28] sm:$0xff]
      %v785 = vld [vmem:[%s1 + $0x30] sm:$0xff]
      %v786 = vld [vmem:[%s1 + $0x38] sm:$0xff]
      %v787 = vmul.f32 %v741, 0.35355338
      %v788 = vmul.f32 %v746, 0.35355338
      %v789 = vmul.f32 %v751, 0.35355338
      %v790 = vmul.f32 %v756, 0.35355338
      %v791 = vmul.f32 %v761, 0.35355338
      %v792 = vmul.f32 %v766, 0.35355338
      %v793 = vmul.f32 %v771, 0.35355338
      %v794 = vmul.f32 %v776, 0.35355338
      %v795 = vld [vmem:[%s2] sm:$0xff]
      %797 = vrot.lane.b32.xlu0 %v741, 96
      %v798 = vpop.permute.xlu0 %797
      %vm799 = vcmask 64512
      %v801 = vsel %vm799, %v787, 0
      %v803 = vsel %vm799, %v798, 0
      %805 = vmatprep.subr.mxu0 0.0
      %806 = vmatpush1.xpose.msra.mxu0 %v803
      %807 = vmatprep.subr.mxu0 0.0
      %808 = vmatpush1.xpose.msra.mxu0 0.0
      %809 = vmatprep.subr.mxu0 0.0
      %810 = vmatpush1.xpose.msra.mxu0 0.0
      %811 = vmatprep.subr.mxu0 0.0
      %812 = vmatpush1.xpose.msra.mxu0 0.0
      %813 = vmatprep.subr.mxu0 0.0
      %814 = vmatpush1.xpose.msra.mxu0 0.0
      %815 = vmatprep.subr.mxu0 0.0
      %816 = vmatpush1.xpose.msra.mxu0 0.0
      %817 = vmatprep.subr.mxu0 0.0
      %818 = vmatpush1.xpose.msra.mxu0 0.0
      %819 = vmatprep.subr.mxu0 0.0
      %820 = vmatpush1.xpose.msra.mxu0 0.0
      %821 = vmatprep.subr.mxu0 0.0
      %822 = vmatpush1.xpose.msra.mxu0 0.0
      %823 = vmatprep.subr.mxu0 0.0
      %824 = vmatpush1.xpose.msra.mxu0 0.0
      %825 = vmatprep.subr.mxu0 0.0
      %826 = vmatpush1.xpose.msra.mxu0 0.0
      %827 = vmatprep.subr.mxu0 0.0
      %828 = vmatpush1.xpose.msra.mxu0 0.0
      %829 = vmatprep.subr.mxu0 0.0
      %830 = vmatpush1.xpose.msra.mxu0 0.0
      %831 = vmatprep.subr.mxu0 0.0
      %832 = vmatpush1.xpose.msra.mxu0 0.0
      %833 = vmatprep.subr.mxu0 0.0
      %834 = vmatpush1.xpose.msra.mxu0 0.0
      %835 = vmatprep.subr.mxu0 0.0
      %836 = vmatpush1.xpose.msra.mxu0 0.0
      %837 = vmatprep.subr.mxu0 0.0
      %838 = vmatpush1.xpose.msra.mxu0 0.0
      %839 = vmatprep.subr.mxu0 0.0
      %840 = vmatpush1.xpose.msra.mxu0 0.0
      %841 = vmatprep.subr.mxu0 0.0
      %842 = vmatpush1.xpose.msra.mxu0 0.0
      %843 = vmatprep.subr.mxu0 0.0
      %844 = vmatpush1.xpose.msra.mxu0 0.0
      %845 = vmatprep.subr.mxu0 0.0
      %846 = vmatpush1.xpose.msra.mxu0 0.0
      %847 = vmatprep.subr.mxu0 0.0
      %848 = vmatpush1.xpose.msra.mxu0 0.0
      %849 = vmatprep.subr.mxu0 0.0
      %850 = vmatpush1.xpose.msra.mxu0 0.0
      %851 = vmatprep.subr.mxu0 0.0
      %852 = vmatpush1.xpose.msra.mxu0 0.0
      %853 = vmatprep.subr.mxu0 0.0
      %854 = vmatpush1.xpose.msra.mxu0 0.0
      %855 = vmatprep.subr.mxu0 0.0
      %856 = vmatpush1.xpose.msra.mxu0 0.0
      %857 = vmatprep.subr.mxu0 0.0
      %858 = vmatpush1.xpose.msra.mxu0 0.0
      %859 = vmatprep.subr.mxu0 0.0
      %860 = vmatpush1.xpose.msra.mxu0 0.0
      %861 = vmatprep.subr.mxu0 0.0
      %862 = vmatpush1.xpose.msra.mxu0 0.0
      %863 = vmatprep.subr.mxu0 0.0
      %864 = vmatpush1.xpose.msra.mxu0 0.0
      %865 = vmatprep.subr.mxu0 0.0
      %866 = vmatpush1.xpose.msra.mxu0 0.0
      %867 = vmatprep.subr.mxu0 0.0
      %868 = vmatpush1.xpose.msra.mxu0 0.0
      %869 = vmatprep.mubr.f32.mxu0 0.0
      %870 = vmatmul.mubr.f32.gmra.mrb[0].mxu0 %v801
      %v871 = vpop.f32.mrb[0].mxu0
      %v872 = vadd.f32 %v795, %v871
      %v873 = vpop.f32.mrb[0].mxu0
      %874 = vdwg.mxu0
      %876 = vrot.lane.b32.xlu0 %v746, 96
      %v877 = vpop.permute.xlu0 %876
      %v879 = vsel %vm799, %v788, 0
      %v881 = vsel %vm799, %v877, 0
      %883 = vmatprep.subr.mxu0 0.0
      %884 = vmatpush1.xpose.msra.mxu0 %v881
      %885 = vmatprep.subr.mxu0 0.0
      %886 = vmatpush1.xpose.msra.mxu0 0.0
      %887 = vmatprep.subr.mxu0 0.0
      %888 = vmatpush1.xpose.msra.mxu0 0.0
      %889 = vmatprep.subr.mxu0 0.0
      %890 = vmatpush1.xpose.msra.mxu0 0.0
      %891 = vmatprep.subr.mxu0 0.0
      %892 = vmatpush1.xpose.msra.mxu0 0.0
      %893 = vmatprep.subr.mxu0 0.0
      %894 = vmatpush1.xpose.msra.mxu0 0.0
      %895 = vmatprep.subr.mxu0 0.0
      %896 = vmatpush1.xpose.msra.mxu0 0.0
      %897 = vmatprep.subr.mxu0 0.0
      %898 = vmatpush1.xpose.msra.mxu0 0.0
      %899 = vmatprep.subr.mxu0 0.0
      %900 = vmatpush1.xpose.msra.mxu0 0.0
      %901 = vmatprep.subr.mxu0 0.0
      %902 = vmatpush1.xpose.msra.mxu0 0.0
      %903 = vmatprep.subr.mxu0 0.0
      %904 = vmatpush1.xpose.msra.mxu0 0.0
      %905 = vmatprep.subr.mxu0 0.0
      %906 = vmatpush1.xpose.msra.mxu0 0.0
      %907 = vmatprep.subr.mxu0 0.0
      %908 = vmatpush1.xpose.msra.mxu0 0.0
      %909 = vmatprep.subr.mxu0 0.0
      %910 = vmatpush1.xpose.msra.mxu0 0.0
      %911 = vmatprep.subr.mxu0 0.0
      %912 = vmatpush1.xpose.msra.mxu0 0.0
      %913 = vmatprep.subr.mxu0 0.0
      %914 = vmatpush1.xpose.msra.mxu0 0.0
      %915 = vmatprep.subr.mxu0 0.0
      %916 = vmatpush1.xpose.msra.mxu0 0.0
      %917 = vmatprep.subr.mxu0 0.0
      %918 = vmatpush1.xpose.msra.mxu0 0.0
      %919 = vmatprep.subr.mxu0 0.0
      %920 = vmatpush1.xpose.msra.mxu0 0.0
      %921 = vmatprep.subr.mxu0 0.0
      %922 = vmatpush1.xpose.msra.mxu0 0.0
      %923 = vmatprep.subr.mxu0 0.0
      %924 = vmatpush1.xpose.msra.mxu0 0.0
      %925 = vmatprep.subr.mxu0 0.0
      %926 = vmatpush1.xpose.msra.mxu0 0.0
      %927 = vmatprep.subr.mxu0 0.0
      %928 = vmatpush1.xpose.msra.mxu0 0.0
      %929 = vmatprep.subr.mxu0 0.0
      %930 = vmatpush1.xpose.msra.mxu0 0.0
      %931 = vmatprep.subr.mxu0 0.0
      %932 = vmatpush1.xpose.msra.mxu0 0.0
      %933 = vmatprep.subr.mxu0 0.0
      %934 = vmatpush1.xpose.msra.mxu0 0.0
      %935 = vmatprep.subr.mxu0 0.0
      %936 = vmatpush1.xpose.msra.mxu0 0.0
      %937 = vmatprep.subr.mxu0 0.0
      %938 = vmatpush1.xpose.msra.mxu0 0.0
      %939 = vmatprep.subr.mxu0 0.0
      %940 = vmatpush1.xpose.msra.mxu0 0.0
      %941 = vmatprep.subr.mxu0 0.0
      %942 = vmatpush1.xpose.msra.mxu0 0.0
      %943 = vmatprep.subr.mxu0 0.0
      %944 = vmatpush1.xpose.msra.mxu0 0.0
      %945 = vmatprep.subr.mxu0 0.0
      %946 = vmatpush1.xpose.msra.mxu0 0.0
      %947 = vmatprep.mubr.f32.mxu0 0.0
      %948 = vmatmul.mubr.f32.gmra.mrb[0].mxu0 %v879
      %v949 = vpop.f32.mrb[0].mxu0
      %v950 = vadd.f32 %v795, %v949
      %v951 = vpop.f32.mrb[0].mxu0
      %952 = vdwg.mxu0
      %954 = vrot.lane.b32.xlu0 %v751, 96
      %v955 = vpop.permute.xlu0 %954
      %v957 = vsel %vm799, %v789, 0
      %v959 = vsel %vm799, %v955, 0
      %961 = vmatprep.subr.mxu0 0.0
      %962 = vmatpush1.xpose.msra.mxu0 %v959
      %963 = vmatprep.subr.mxu0 0.0
      %964 = vmatpush1.xpose.msra.mxu0 0.0
      %965 = vmatprep.subr.mxu0 0.0
      %966 = vmatpush1.xpose.msra.mxu0 0.0
      %967 = vmatprep.subr.mxu0 0.0
      %968 = vmatpush1.xpose.msra.mxu0 0.0
      %969 = vmatprep.subr.mxu0 0.0
      %970 = vmatpush1.xpose.msra.mxu0 0.0
      %971 = vmatprep.subr.mxu0 0.0
      %972 = vmatpush1.xpose.msra.mxu0 0.0
      %973 = vmatprep.subr.mxu0 0.0
      %974 = vmatpush1.xpose.msra.mxu0 0.0
      %975 = vmatprep.subr.mxu0 0.0
      %976 = vmatpush1.xpose.msra.mxu0 0.0
      %977 = vmatprep.subr.mxu0 0.0
      %978 = vmatpush1.xpose.msra.mxu0 0.0
      %979 = vmatprep.subr.mxu0 0.0
      %980 = vmatpush1.xpose.msra.mxu0 0.0
      %981 = vmatprep.subr.mxu0 0.0
      %982 = vmatpush1.xpose.msra.mxu0 0.0
      %983 = vmatprep.subr.mxu0 0.0
      %984 = vmatpush1.xpose.msra.mxu0 0.0
      %985 = vmatprep.subr.mxu0 0.0
      %986 = vmatpush1.xpose.msra.mxu0 0.0
      %987 = vmatprep.subr.mxu0 0.0
      %988 = vmatpush1.xpose.msra.mxu0 0.0
      %989 = vmatprep.subr.mxu0 0.0
      %990 = vmatpush1.xpose.msra.mxu0 0.0
      %991 = vmatprep.subr.mxu0 0.0
      %992 = vmatpush1.xpose.msra.mxu0 0.0
      %993 = vmatprep.subr.mxu0 0.0
      %994 = vmatpush1.xpose.msra.mxu0 0.0
      %995 = vmatprep.subr.mxu0 0.0
      %996 = vmatpush1.xpose.msra.mxu0 0.0
      %997 = vmatprep.subr.mxu0 0.0
      %998 = vmatpush1.xpose.msra.mxu0 0.0
      %999 = vmatprep.subr.mxu0 0.0
      %1000 = vmatpush1.xpose.msra.mxu0 0.0
      %1001 = vmatprep.subr.mxu0 0.0
      %1002 = vmatpush1.xpose.msra.mxu0 0.0
      %1003 = vmatprep.subr.mxu0 0.0
      %1004 = vmatpush1.xpose.msra.mxu0 0.0
      %1005 = vmatprep.subr.mxu0 0.0
      %1006 = vmatpush1.xpose.msra.mxu0 0.0
      %1007 = vmatprep.subr.mxu0 0.0
      %1008 = vmatpush1.xpose.msra.mxu0 0.0
      %1009 = vmatprep.subr.mxu0 0.0
      %1010 = vmatpush1.xpose.msra.mxu0 0.0
      %1011 = vmatprep.subr.mxu0 0.0
      %1012 = vmatpush1.xpose.msra.mxu0 0.0
      %1013 = vmatprep.subr.mxu0 0.0
      %1014 = vmatpush1.xpose.msra.mxu0 0.0
      %1015 = vmatprep.subr.mxu0 0.0
      %1016 = vmatpush1.xpose.msra.mxu0 0.0
      %1017 = vmatprep.subr.mxu0 0.0
      %1018 = vmatpush1.xpose.msra.mxu0 0.0
      %1019 = vmatprep.subr.mxu0 0.0
      %1020 = vmatpush1.xpose.msra.mxu0 0.0
      %1021 = vmatprep.subr.mxu0 0.0
      %1022 = vmatpush1.xpose.msra.mxu0 0.0
      %1023 = vmatprep.subr.mxu0 0.0
      %1024 = vmatpush1.xpose.msra.mxu0 0.0
      %1025 = vmatprep.mubr.f32.mxu0 0.0
      %1026 = vmatmul.mubr.f32.gmra.mrb[0].mxu0 %v957
      %v1027 = vpop.f32.mrb[0].mxu0
      %v1028 = vadd.f32 %v795, %v1027
      %v1029 = vpop.f32.mrb[0].mxu0
      %1030 = vdwg.mxu0
      %1032 = vrot.lane.b32.xlu0 %v756, 96
      %v1033 = vpop.permute.xlu0 %1032
      %v1035 = vsel %vm799, %v790, 0
      %v1037 = vsel %vm799, %v1033, 0
      %1039 = vmatprep.subr.mxu0 0.0
      %1040 = vmatpush1.xpose.msra.mxu0 %v1037
      %1041 = vmatprep.subr.mxu0 0.0
      %1042 = vmatpush1.xpose.msra.mxu0 0.0
      %1043 = vmatprep.subr.mxu0 0.0
      %1044 = vmatpush1.xpose.msra.mxu0 0.0
      %1045 = vmatprep.subr.mxu0 0.0
      %1046 = vmatpush1.xpose.msra.mxu0 0.0
      %1047 = vmatprep.subr.mxu0 0.0
      %1048 = vmatpush1.xpose.msra.mxu0 0.0
      %1049 = vmatprep.subr.mxu0 0.0
      %1050 = vmatpush1.xpose.msra.mxu0 0.0
      %1051 = vmatprep.subr.mxu0 0.0
      %1052 = vmatpush1.xpose.msra.mxu0 0.0
      %1053 = vmatprep.subr.mxu0 0.0
      %1054 = vmatpush1.xpose.msra.mxu0 0.0
      %1055 = vmatprep.subr.mxu0 0.0
      %1056 = vmatpush1.xpose.msra.mxu0 0.0
      %1057 = vmatprep.subr.mxu0 0.0
      %1058 = vmatpush1.xpose.msra.mxu0 0.0
      %1059 = vmatprep.subr.mxu0 0.0
      %1060 = vmatpush1.xpose.msra.mxu0 0.0
      %1061 = vmatprep.subr.mxu0 0.0
      %1062 = vmatpush1.xpose.msra.mxu0 0.0
      %1063 = vmatprep.subr.mxu0 0.0
      %1064 = vmatpush1.xpose.msra.mxu0 0.0
      %1065 = vmatprep.subr.mxu0 0.0
      %1066 = vmatpush1.xpose.msra.mxu0 0.0
      %1067 = vmatprep.subr.mxu0 0.0
      %1068 = vmatpush1.xpose.msra.mxu0 0.0
      %1069 = vmatprep.subr.mxu0 0.0
      %1070 = vmatpush1.xpose.msra.mxu0 0.0
      %1071 = vmatprep.subr.mxu0 0.0
      %1072 = vmatpush1.xpose.msra.mxu0 0.0
      %1073 = vmatprep.subr.mxu0 0.0
      %1074 = vmatpush1.xpose.msra.mxu0 0.0
      %1075 = vmatprep.subr.mxu0 0.0
      %1076 = vmatpush1.xpose.msra.mxu0 0.0
      %1077 = vmatprep.subr.mxu0 0.0
      %1078 = vmatpush1.xpose.msra.mxu0 0.0
      %1079 = vmatprep.subr.mxu0 0.0
      %1080 = vmatpush1.xpose.msra.mxu0 0.0
      %1081 = vmatprep.subr.mxu0 0.0
      %1082 = vmatpush1.xpose.msra.mxu0 0.0
      %1083 = vmatprep.subr.mxu0 0.0
      %1084 = vmatpush1.xpose.msra.mxu0 0.0
      %1085 = vmatprep.subr.mxu0 0.0
      %1086 = vmatpush1.xpose.msra.mxu0 0.0
      %1087 = vmatprep.subr.mxu0 0.0
      %1088 = vmatpush1.xpose.msra.mxu0 0.0
      %1089 = vmatprep.subr.mxu0 0.0
      %1090 = vmatpush1.xpose.msra.mxu0 0.0
      %1091 = vmatprep.subr.mxu0 0.0
      %1092 = vmatpush1.xpose.msra.mxu0 0.0
      %1093 = vmatprep.subr.mxu0 0.0
      %1094 = vmatpush1.xpose.msra.mxu0 0.0
      %1095 = vmatprep.subr.mxu0 0.0
      %1096 = vmatpush1.xpose.msra.mxu0 0.0
      %1097 = vmatprep.subr.mxu0 0.0
      %1098 = vmatpush1.xpose.msra.mxu0 0.0
      %1099 = vmatprep.subr.mxu0 0.0
      %1100 = vmatpush1.xpose.msra.mxu0 0.0
      %1101 = vmatprep.subr.mxu0 0.0
      %1102 = vmatpush1.xpose.msra.mxu0 0.0
      %1103 = vmatprep.mubr.f32.mxu0 0.0
      %1104 = vmatmul.mubr.f32.gmra.mrb[0].mxu0 %v1035
      %v1105 = vpop.f32.mrb[0].mxu0
      %v1106 = vadd.f32 %v795, %v1105
      %v1107 = vpop.f32.mrb[0].mxu0
      %1108 = vdwg.mxu0
      %1110 = vrot.lane.b32.xlu0 %v761, 96
      %v1111 = vpop.permute.xlu0 %1110
      %v1113 = vsel %vm799, %v791, 0
      %v1115 = vsel %vm799, %v1111, 0
      %1117 = vmatprep.subr.mxu0 0.0
      %1118 = vmatpush1.xpose.msra.mxu0 %v1115
      %1119 = vmatprep.subr.mxu0 0.0
      %1120 = vmatpush1.xpose.msra.mxu0 0.0
      %1121 = vmatprep.subr.mxu0 0.0
      %1122 = vmatpush1.xpose.msra.mxu0 0.0
      %1123 = vmatprep.subr.mxu0 0.0
      %1124 = vmatpush1.xpose.msra.mxu0 0.0
      %1125 = vmatprep.subr.mxu0 0.0
      %1126 = vmatpush1.xpose.msra.mxu0 0.0
      %1127 = vmatprep.subr.mxu0 0.0
      %1128 = vmatpush1.xpose.msra.mxu0 0.0
      %1129 = vmatprep.subr.mxu0 0.0
      %1130 = vmatpush1.xpose.msra.mxu0 0.0
      %1131 = vmatprep.subr.mxu0 0.0
      %1132 = vmatpush1.xpose.msra.mxu0 0.0
      %1133 = vmatprep.subr.mxu0 0.0
      %1134 = vmatpush1.xpose.msra.mxu0 0.0
      %1135 = vmatprep.subr.mxu0 0.0
      %1136 = vmatpush1.xpose.msra.mxu0 0.0
      %1137 = vmatprep.subr.mxu0 0.0
      %1138 = vmatpush1.xpose.msra.mxu0 0.0
      %1139 = vmatprep.subr.mxu0 0.0
      %1140 = vmatpush1.xpose.msra.mxu0 0.0
      %1141 = vmatprep.subr.mxu0 0.0
      %1142 = vmatpush1.xpose.msra.mxu0 0.0
      %1143 = vmatprep.subr.mxu0 0.0
      %1144 = vmatpush1.xpose.msra.mxu0 0.0
      %1145 = vmatprep.subr.mxu0 0.0
      %1146 = vmatpush1.xpose.msra.mxu0 0.0
      %1147 = vmatprep.subr.mxu0 0.0
      %1148 = vmatpush1.xpose.msra.mxu0 0.0
      %1149 = vmatprep.subr.mxu0 0.0
      %1150 = vmatpush1.xpose.msra.mxu0 0.0
      %1151 = vmatprep.subr.mxu0 0.0
      %1152 = vmatpush1.xpose.msra.mxu0 0.0
      %1153 = vmatprep.subr.mxu0 0.0
      %1154 = vmatpush1.xpose.msra.mxu0 0.0
      %1155 = vmatprep.subr.mxu0 0.0
      %1156 = vmatpush1.xpose.msra.mxu0 0.0
      %1157 = vmatprep.subr.mxu0 0.0
      %1158 = vmatpush1.xpose.msra.mxu0 0.0
      %1159 = vmatprep.subr.mxu0 0.0
      %1160 = vmatpush1.xpose.msra.mxu0 0.0
      %1161 = vmatprep.subr.mxu0 0.0
      %1162 = vmatpush1.xpose.msra.mxu0 0.0
      %1163 = vmatprep.subr.mxu0 0.0
      %1164 = vmatpush1.xpose.msra.mxu0 0.0
      %1165 = vmatprep.subr.mxu0 0.0
      %1166 = vmatpush1.xpose.msra.mxu0 0.0
      %1167 = vmatprep.subr.mxu0 0.0
      %1168 = vmatpush1.xpose.msra.mxu0 0.0
      %1169 = vmatprep.subr.mxu0 0.0
      %1170 = vmatpush1.xpose.msra.mxu0 0.0
      %1171 = vmatprep.subr.mxu0 0.0
      %1172 = vmatpush1.xpose.msra.mxu0 0.0
      %1173 = vmatprep.subr.mxu0 0.0
      %1174 = vmatpush1.xpose.msra.mxu0 0.0
      %1175 = vmatprep.subr.mxu0 0.0
      %1176 = vmatpush1.xpose.msra.mxu0 0.0
      %1177 = vmatprep.subr.mxu0 0.0
      %1178 = vmatpush1.xpose.msra.mxu0 0.0
      %1179 = vmatprep.subr.mxu0 0.0
      %1180 = vmatpush1.xpose.msra.mxu0 0.0
      %1181 = vmatprep.mubr.f32.mxu0 0.0
      %1182 = vmatmul.mubr.f32.gmra.mrb[0].mxu0 %v1113
      %v1183 = vpop.f32.mrb[0].mxu0
      %v1184 = vadd.f32 %v795, %v1183
      %v1185 = vpop.f32.mrb[0].mxu0
      %1186 = vdwg.mxu0
      %1188 = vrot.lane.b32.xlu0 %v766, 96
      %v1189 = vpop.permute.xlu0 %1188
      %v1191 = vsel %vm799, %v792, 0
      %v1193 = vsel %vm799, %v1189, 0
      %1195 = vmatprep.subr.mxu0 0.0
      %1196 = vmatpush1.xpose.msra.mxu0 %v1193
      %1197 = vmatprep.subr.mxu0 0.0
      %1198 = vmatpush1.xpose.msra.mxu0 0.0
      %1199 = vmatprep.subr.mxu0 0.0
      %1200 = vmatpush1.xpose.msra.mxu0 0.0
      %1201 = vmatprep.subr.mxu0 0.0
      %1202 = vmatpush1.xpose.msra.mxu0 0.0
      %1203 = vmatprep.subr.mxu0 0.0
      %1204 = vmatpush1.xpose.msra.mxu0 0.0
      %1205 = vmatprep.subr.mxu0 0.0
      %1206 = vmatpush1.xpose.msra.mxu0 0.0
      %1207 = vmatprep.subr.mxu0 0.0
      %1208 = vmatpush1.xpose.msra.mxu0 0.0
      %1209 = vmatprep.subr.mxu0 0.0
      %1210 = vmatpush1.xpose.msra.mxu0 0.0
      %1211 = vmatprep.subr.mxu0 0.0
      %1212 = vmatpush1.xpose.msra.mxu0 0.0
      %1213 = vmatprep.subr.mxu0 0.0
      %1214 = vmatpush1.xpose.msra.mxu0 0.0
      %1215 = vmatprep.subr.mxu0 0.0
      %1216 = vmatpush1.xpose.msra.mxu0 0.0
      %1217 = vmatprep.subr.mxu0 0.0
      %1218 = vmatpush1.xpose.msra.mxu0 0.0
      %1219 = vmatprep.subr.mxu0 0.0
      %1220 = vmatpush1.xpose.msra.mxu0 0.0
      %1221 = vmatprep.subr.mxu0 0.0
      %1222 = vmatpush1.xpose.msra.mxu0 0.0
      %1223 = vmatprep.subr.mxu0 0.0
      %1224 = vmatpush1.xpose.msra.mxu0 0.0
      %1225 = vmatprep.subr.mxu0 0.0
      %1226 = vmatpush1.xpose.msra.mxu0 0.0
      %1227 = vmatprep.subr.mxu0 0.0
      %1228 = vmatpush1.xpose.msra.mxu0 0.0
      %1229 = vmatprep.subr.mxu0 0.0
      %1230 = vmatpush1.xpose.msra.mxu0 0.0
      %1231 = vmatprep.subr.mxu0 0.0
      %1232 = vmatpush1.xpose.msra.mxu0 0.0
      %1233 = vmatprep.subr.mxu0 0.0
      %1234 = vmatpush1.xpose.msra.mxu0 0.0
      %1235 = vmatprep.subr.mxu0 0.0
      %1236 = vmatpush1.xpose.msra.mxu0 0.0
      %1237 = vmatprep.subr.mxu0 0.0
      %1238 = vmatpush1.xpose.msra.mxu0 0.0
      %1239 = vmatprep.subr.mxu0 0.0
      %1240 = vmatpush1.xpose.msra.mxu0 0.0
      %1241 = vmatprep.subr.mxu0 0.0
      %1242 = vmatpush1.xpose.msra.mxu0 0.0
      %1243 = vmatprep.subr.mxu0 0.0
      %1244 = vmatpush1.xpose.msra.mxu0 0.0
      %1245 = vmatprep.subr.mxu0 0.0
      %1246 = vmatpush1.xpose.msra.mxu0 0.0
      %1247 = vmatprep.subr.mxu0 0.0
      %1248 = vmatpush1.xpose.msra.mxu0 0.0
      %1249 = vmatprep.subr.mxu0 0.0
      %1250 = vmatpush1.xpose.msra.mxu0 0.0
      %1251 = vmatprep.subr.mxu0 0.0
      %1252 = vmatpush1.xpose.msra.mxu0 0.0
      %1253 = vmatprep.subr.mxu0 0.0
      %1254 = vmatpush1.xpose.msra.mxu0 0.0
      %1255 = vmatprep.subr.mxu0 0.0
      %1256 = vmatpush1.xpose.msra.mxu0 0.0
      %1257 = vmatprep.subr.mxu0 0.0
      %1258 = vmatpush1.xpose.msra.mxu0 0.0
      %1259 = vmatprep.mubr.f32.mxu0 0.0
      %1260 = vmatmul.mubr.f32.gmra.mrb[0].mxu0 %v1191
      %v1261 = vpop.f32.mrb[0].mxu0
      %v1262 = vadd.f32 %v795, %v1261
      %v1263 = vpop.f32.mrb[0].mxu0
      %1264 = vdwg.mxu0
      %1266 = vrot.lane.b32.xlu0 %v771, 96
      %v1267 = vpop.permute.xlu0 %1266
      %v1269 = vsel %vm799, %v793, 0
      %v1271 = vsel %vm799, %v1267, 0
      %1273 = vmatprep.subr.mxu0 0.0
      %1274 = vmatpush1.xpose.msra.mxu0 %v1271
      %1275 = vmatprep.subr.mxu0 0.0
      %1276 = vmatpush1.xpose.msra.mxu0 0.0
      %1277 = vmatprep.subr.mxu0 0.0
      %1278 = vmatpush1.xpose.msra.mxu0 0.0
      %1279 = vmatprep.subr.mxu0 0.0
      %1280 = vmatpush1.xpose.msra.mxu0 0.0
      %1281 = vmatprep.subr.mxu0 0.0
      %1282 = vmatpush1.xpose.msra.mxu0 0.0
      %1283 = vmatprep.subr.mxu0 0.0
      %1284 = vmatpush1.xpose.msra.mxu0 0.0
      %1285 = vmatprep.subr.mxu0 0.0
      %1286 = vmatpush1.xpose.msra.mxu0 0.0
      %1287 = vmatprep.subr.mxu0 0.0
      %1288 = vmatpush1.xpose.msra.mxu0 0.0
      %1289 = vmatprep.subr.mxu0 0.0
      %1290 = vmatpush1.xpose.msra.mxu0 0.0
      %1291 = vmatprep.subr.mxu0 0.0
      %1292 = vmatpush1.xpose.msra.mxu0 0.0
      %1293 = vmatprep.subr.mxu0 0.0
      %1294 = vmatpush1.xpose.msra.mxu0 0.0
      %1295 = vmatprep.subr.mxu0 0.0
      %1296 = vmatpush1.xpose.msra.mxu0 0.0
      %1297 = vmatprep.subr.mxu0 0.0
      %1298 = vmatpush1.xpose.msra.mxu0 0.0
      %1299 = vmatprep.subr.mxu0 0.0
      %1300 = vmatpush1.xpose.msra.mxu0 0.0
      %1301 = vmatprep.subr.mxu0 0.0
      %1302 = vmatpush1.xpose.msra.mxu0 0.0
      %1303 = vmatprep.subr.mxu0 0.0
      %1304 = vmatpush1.xpose.msra.mxu0 0.0
      %1305 = vmatprep.subr.mxu0 0.0
      %1306 = vmatpush1.xpose.msra.mxu0 0.0
      %1307 = vmatprep.subr.mxu0 0.0
      %1308 = vmatpush1.xpose.msra.mxu0 0.0
      %1309 = vmatprep.subr.mxu0 0.0
      %1310 = vmatpush1.xpose.msra.mxu0 0.0
      %1311 = vmatprep.subr.mxu0 0.0
      %1312 = vmatpush1.xpose.msra.mxu0 0.0
      %1313 = vmatprep.subr.mxu0 0.0
      %1314 = vmatpush1.xpose.msra.mxu0 0.0
      %1315 = vmatprep.subr.mxu0 0.0
      %1316 = vmatpush1.xpose.msra.mxu0 0.0
      %1317 = vmatprep.subr.mxu0 0.0
      %1318 = vmatpush1.xpose.msra.mxu0 0.0
      %1319 = vmatprep.subr.mxu0 0.0
      %1320 = vmatpush1.xpose.msra.mxu0 0.0
      %1321 = vmatprep.subr.mxu0 0.0
      %1322 = vmatpush1.xpose.msra.mxu0 0.0
      %1323 = vmatprep.subr.mxu0 0.0
      %1324 = vmatpush1.xpose.msra.mxu0 0.0
      %1325 = vmatprep.subr.mxu0 0.0
      %1326 = vmatpush1.xpose.msra.mxu0 0.0
      %1327 = vmatprep.subr.mxu0 0.0
      %1328 = vmatpush1.xpose.msra.mxu0 0.0
      %1329 = vmatprep.subr.mxu0 0.0
      %1330 = vmatpush1.xpose.msra.mxu0 0.0
      %1331 = vmatprep.subr.mxu0 0.0
      %1332 = vmatpush1.xpose.msra.mxu0 0.0
      %1333 = vmatprep.subr.mxu0 0.0
      %1334 = vmatpush1.xpose.msra.mxu0 0.0
      %1335 = vmatprep.subr.mxu0 0.0
      %1336 = vmatpush1.xpose.msra.mxu0 0.0
      %1337 = vmatprep.mubr.f32.mxu0 0.0
      %1338 = vmatmul.mubr.f32.gmra.mrb[0].mxu0 %v1269
      %v1339 = vpop.f32.mrb[0].mxu0
      %v1340 = vadd.f32 %v795, %v1339
      %v1341 = vpop.f32.mrb[0].mxu0
      %1342 = vdwg.mxu0
      %1344 = vrot.lane.b32.xlu0 %v776, 96
      %v1345 = vpop.permute.xlu0 %1344
      %v1347 = vsel %vm799, %v794, 0
      %v1349 = vsel %vm799, %v1345, 0
      %1351 = vmatprep.subr.mxu0 0.0
      %1352 = vmatpush1.xpose.msra.mxu0 %v1349
      %1353 = vmatprep.subr.mxu0 0.0
      %1354 = vmatpush1.xpose.msra.mxu0 0.0
      %1355 = vmatprep.subr.mxu0 0.0
      %1356 = vmatpush1.xpose.msra.mxu0 0.0
      %1357 = vmatprep.subr.mxu0 0.0
      %1358 = vmatpush1.xpose.msra.mxu0 0.0
      %1359 = vmatprep.subr.mxu0 0.0
      %1360 = vmatpush1.xpose.msra.mxu0 0.0
      %1361 = vmatprep.subr.mxu0 0.0
      %1362 = vmatpush1.xpose.msra.mxu0 0.0
      %1363 = vmatprep.subr.mxu0 0.0
      %1364 = vmatpush1.xpose.msra.mxu0 0.0
      %1365 = vmatprep.subr.mxu0 0.0
      %1366 = vmatpush1.xpose.msra.mxu0 0.0
      %1367 = vmatprep.subr.mxu0 0.0
      %1368 = vmatpush1.xpose.msra.mxu0 0.0
      %1369 = vmatprep.subr.mxu0 0.0
      %1370 = vmatpush1.xpose.msra.mxu0 0.0
      %1371 = vmatprep.subr.mxu0 0.0
      %1372 = vmatpush1.xpose.msra.mxu0 0.0
      %1373 = vmatprep.subr.mxu0 0.0
      %1374 = vmatpush1.xpose.msra.mxu0 0.0
      %1375 = vmatprep.subr.mxu0 0.0
      %1376 = vmatpush1.xpose.msra.mxu0 0.0
      %1377 = vmatprep.subr.mxu0 0.0
      %1378 = vmatpush1.xpose.msra.mxu0 0.0
      %1379 = vmatprep.subr.mxu0 0.0
      %1380 = vmatpush1.xpose.msra.mxu0 0.0
      %1381 = vmatprep.subr.mxu0 0.0
      %1382 = vmatpush1.xpose.msra.mxu0 0.0
      %1383 = vmatprep.subr.mxu0 0.0
      %1384 = vmatpush1.xpose.msra.mxu0 0.0
      %1385 = vmatprep.subr.mxu0 0.0
      %1386 = vmatpush1.xpose.msra.mxu0 0.0
      %1387 = vmatprep.subr.mxu0 0.0
      %1388 = vmatpush1.xpose.msra.mxu0 0.0
      %1389 = vmatprep.subr.mxu0 0.0
      %1390 = vmatpush1.xpose.msra.mxu0 0.0
      %1391 = vmatprep.subr.mxu0 0.0
      %1392 = vmatpush1.xpose.msra.mxu0 0.0
      %1393 = vmatprep.subr.mxu0 0.0
      %1394 = vmatpush1.xpose.msra.mxu0 0.0
      %1395 = vmatprep.subr.mxu0 0.0
      %1396 = vmatpush1.xpose.msra.mxu0 0.0
      %1397 = vmatprep.subr.mxu0 0.0
      %1398 = vmatpush1.xpose.msra.mxu0 0.0
      %1399 = vmatprep.subr.mxu0 0.0
      %1400 = vmatpush1.xpose.msra.mxu0 0.0
      %1401 = vmatprep.subr.mxu0 0.0
      %1402 = vmatpush1.xpose.msra.mxu0 0.0
      %1403 = vmatprep.subr.mxu0 0.0
      %1404 = vmatpush1.xpose.msra.mxu0 0.0
      %1405 = vmatprep.subr.mxu0 0.0
      %1406 = vmatpush1.xpose.msra.mxu0 0.0
      %1407 = vmatprep.subr.mxu0 0.0
      %1408 = vmatpush1.xpose.msra.mxu0 0.0
      %1409 = vmatprep.subr.mxu0 0.0
      %1410 = vmatpush1.xpose.msra.mxu0 0.0
      %1411 = vmatprep.subr.mxu0 0.0
      %1412 = vmatpush1.xpose.msra.mxu0 0.0
      %1413 = vmatprep.subr.mxu0 0.0
      %1414 = vmatpush1.xpose.msra.mxu0 0.0
      %1415 = vmatprep.mubr.f32.mxu0 0.0
      %1416 = vmatmul.mubr.f32.gmra.mrb[0].mxu0 %v1347
      %v1417 = vpop.f32.mrb[0].mxu0
      %v1418 = vadd.f32 %v795, %v1417
      %v1419 = vpop.f32.mrb[0].mxu0
      %1420 = vdwg.mxu0
      %v1421 = vadd.f32 %v872, %v779
      %v1422 = vadd.f32 %v950, %v780
      %v1423 = vadd.f32 %v1028, %v781
      %v1424 = vadd.f32 %v1106, %v782
      %v1425 = vadd.f32 %v1184, %v783
      %v1426 = vadd.f32 %v1262, %v784
      %v1427 = vadd.f32 %v1340, %v785
      %v1428 = vadd.f32 %v1418, %v786
      %v1429 = vsel %vm799, %v1421, -inf
      %1430 = vmax.xlane.f32.xlu0 %v1429
      %v1431 = vpop.xlane.xlu0 %1430
      %v1432 = vsel %vm799, %v1422, -inf
      %1433 = vmax.xlane.f32.xlu0 %v1432
      %v1434 = vpop.xlane.xlu0 %1433
      %v1435 = vsel %vm799, %v1423, -inf
      %1436 = vmax.xlane.f32.xlu0 %v1435
      %v1437 = vpop.xlane.xlu0 %1436
      %v1438 = vsel %vm799, %v1424, -inf
      %1439 = vmax.xlane.f32.xlu0 %v1438
      %v1440 = vpop.xlane.xlu0 %1439
      %v1441 = vsel %vm799, %v1425, -inf
      %1442 = vmax.xlane.f32.xlu0 %v1441
      %v1443 = vpop.xlane.xlu0 %1442
      %v1444 = vsel %vm799, %v1426, -inf
      %1445 = vmax.xlane.f32.xlu0 %v1444
      %v1446 = vpop.xlane.xlu0 %1445
      %v1447 = vsel %vm799, %v1427, -inf
      %1448 = vmax.xlane.f32.xlu0 %v1447
      %v1449 = vpop.xlane.xlu0 %1448
      %v1450 = vsel %vm799, %v1428, -inf
      %1451 = vmax.xlane.f32.xlu0 %v1450
      %v1452 = vpop.xlane.xlu0 %1451
      %v1453 = vsub.f32 %v1421, %v1431
      %v1454 = vsub.f32 %v1422, %v1434
      %v1455 = vsub.f32 %v1423, %v1437
      %v1456 = vsub.f32 %v1424, %v1440
      %v1457 = vsub.f32 %v1425, %v1443
      %v1458 = vsub.f32 %v1426, %v1446
      %v1459 = vsub.f32 %v1427, %v1449
      %v1460 = vsub.f32 %v1428, %v1452
      %v1461 = vmul.f32 %v1453, 1.442695
      %v1462 = vpow.pop %v1461
      %v1463 = vmul.f32 %v1454, 1.442695
      %v1464 = vpow.pop %v1463
      %v1465 = vmul.f32 %v1455, 1.442695
      %v1466 = vpow.pop %v1465
      %v1467 = vmul.f32 %v1456, 1.442695
      %v1468 = vpow.pop %v1467
      %v1469 = vmul.f32 %v1457, 1.442695
      %v1470 = vpow.pop %v1469
      %v1471 = vmul.f32 %v1458, 1.442695
      %v1472 = vpow.pop %v1471
      %v1473 = vmul.f32 %v1459, 1.442695
      %v1474 = vpow.pop %v1473
      %v1475 = vmul.f32 %v1460, 1.442695
      %v1476 = vpow.pop %v1475
      %v1477 = vsel %vm799, %v1462, 0.0
      %1478 = vadd.xlane.f32.xlu0 %v1477
      %v1479 = vpop.xlane.xlu0 %1478
      %v1480 = vsel %vm799, %v1464, 0.0
      %1481 = vadd.xlane.f32.xlu0 %v1480
      %v1482 = vpop.xlane.xlu0 %1481
      %v1483 = vsel %vm799, %v1466, 0.0
      %1484 = vadd.xlane.f32.xlu0 %v1483
      %v1485 = vpop.xlane.xlu0 %1484
      %v1486 = vsel %vm799, %v1468, 0.0
      %1487 = vadd.xlane.f32.xlu0 %v1486
      %v1488 = vpop.xlane.xlu0 %1487
      %v1489 = vsel %vm799, %v1470, 0.0
      %1490 = vadd.xlane.f32.xlu0 %v1489
      %v1491 = vpop.xlane.xlu0 %1490
      %v1492 = vsel %vm799, %v1472, 0.0
      %1493 = vadd.xlane.f32.xlu0 %v1492
      %v1494 = vpop.xlane.xlu0 %1493
      %v1495 = vsel %vm799, %v1474, 0.0
      %1496 = vadd.xlane.f32.xlu0 %v1495
      %v1497 = vpop.xlane.xlu0 %1496
      %v1498 = vsel %vm799, %v1476, 0.0
      %1499 = vadd.xlane.f32.xlu0 %v1498
      %v1500 = vpop.xlane.xlu0 %1499
      %v1501 = vrcp.pop %v1479
      %v1502 = vrcp.pop %v1482
      %v1503 = vrcp.pop %v1485
      %v1504 = vrcp.pop %v1488
      %v1505 = vrcp.pop %v1491
      %v1506 = vrcp.pop %v1494
      %v1507 = vrcp.pop %v1497
      %v1508 = vrcp.pop %v1500
      %v1509 = vmul.f32 %v1462, %v1501
      %v1510 = vmul.f32 %v1464, %v1502
      %v1511 = vmul.f32 %v1466, %v1503
      %v1512 = vmul.f32 %v1468, %v1504
      %v1513 = vmul.f32 %v1470, %v1505
      %v1514 = vmul.f32 %v1472, %v1506
      %v1515 = vmul.f32 %v1474, %v1507
      %v1516 = vmul.f32 %v1476, %v1508
      %1517 = vrot.lane.b32.xlu0 %v741, 64
      %v1518 = vpop.permute.xlu0 %1517
      %v1521 = vsel %vm799, %v1509, 0
      %1523 = vmatprep.subr.mxu0 0.0
      %1524 = vmatpush1.msra.mxu0 %v1518
      %1525 = vmatprep.subr.mxu0 0.0
      %1526 = vmatpush1.msra.mxu0 0.0
      %1527 = vmatprep.subr.mxu0 0.0
      %1528 = vmatpush1.msra.mxu0 0.0
      %1529 = vmatprep.subr.mxu0 0.0
      %1530 = vmatpush1.msra.mxu0 0.0
      %1531 = vmatprep.subr.mxu0 0.0
      %1532 = vmatpush1.msra.mxu0 0.0
      %1533 = vmatprep.subr.mxu0 0.0
      %1534 = vmatpush1.msra.mxu0 0.0
      %1535 = vmatprep.subr.mxu0 0.0
      %1536 = vmatpush1.msra.mxu0 0.0
      %1537 = vmatprep.subr.mxu0 0.0
      %1538 = vmatpush1.msra.mxu0 0.0
      %1539 = vmatprep.subr.mxu0 0.0
      %1540 = vmatpush1.msra.mxu0 0.0
      %1541 = vmatprep.subr.mxu0 0.0
      %1542 = vmatpush1.msra.mxu0 0.0
      %1543 = vmatprep.subr.mxu0 0.0
      %1544 = vmatpush1.msra.mxu0 0.0
      %1545 = vmatprep.subr.mxu0 0.0
      %1546 = vmatpush1.msra.mxu0 0.0
      %1547 = vmatprep.subr.mxu0 0.0
      %1548 = vmatpush1.msra.mxu0 0.0
      %1549 = vmatprep.subr.mxu0 0.0
      %1550 = vmatpush1.msra.mxu0 0.0
      %1551 = vmatprep.subr.mxu0 0.0
      %1552 = vmatpush1.msra.mxu0 0.0
      %1553 = vmatprep.subr.mxu0 0.0
      %1554 = vmatpush1.msra.mxu0 0.0
      %1555 = vmatprep.subr.mxu0 0.0
      %1556 = vmatpush1.msra.mxu0 0.0
      %1557 = vmatprep.subr.mxu0 0.0
      %1558 = vmatpush1.msra.mxu0 0.0
      %1559 = vmatprep.subr.mxu0 0.0
      %1560 = vmatpush1.msra.mxu0 0.0
      %1561 = vmatprep.subr.mxu0 0.0
      %1562 = vmatpush1.msra.mxu0 0.0
      %1563 = vmatprep.subr.mxu0 0.0
      %1564 = vmatpush1.msra.mxu0 0.0
      %1565 = vmatprep.subr.mxu0 0.0
      %1566 = vmatpush1.msra.mxu0 0.0
      %1567 = vmatprep.subr.mxu0 0.0
      %1568 = vmatpush1.msra.mxu0 0.0
      %1569 = vmatprep.subr.mxu0 0.0
      %1570 = vmatpush1.msra.mxu0 0.0
      %1571 = vmatprep.subr.mxu0 0.0
      %1572 = vmatpush1.msra.mxu0 0.0
      %1573 = vmatprep.subr.mxu0 0.0
      %1574 = vmatpush1.msra.mxu0 0.0
      %1575 = vmatprep.subr.mxu0 0.0
      %1576 = vmatpush1.msra.mxu0 0.0
      %1577 = vmatprep.subr.mxu0 0.0
      %1578 = vmatpush1.msra.mxu0 0.0
      %1579 = vmatprep.subr.mxu0 0.0
      %1580 = vmatpush1.msra.mxu0 0.0
      %1581 = vmatprep.subr.mxu0 0.0
      %1582 = vmatpush1.msra.mxu0 0.0
      %1583 = vmatprep.subr.mxu0 0.0
      %1584 = vmatpush1.msra.mxu0 0.0
      %1585 = vmatprep.subr.mxu0 0.0
      %1586 = vmatpush1.msra.mxu0 0.0
      %1587 = vmatprep.mubr.f32.mxu0 0.0
      %1588 = vmatmul.mubr.f32.gmra.mrb[0].mxu0 %v1521
      %v1589 = vpop.f32.mrb[0].mxu0
      %v1590 = vadd.f32 0.0, %v1589
      %v1591 = vpop.f32.mrb[0].mxu0
      %1592 = vdwg.mxu0
      %1593 = vrot.lane.b32.xlu0 %v746, 64
      %v1594 = vpop.permute.xlu0 %1593
      %v1597 = vsel %vm799, %v1510, 0
      %1599 = vmatprep.subr.mxu0 0.0
      %1600 = vmatpush1.msra.mxu0 %v1594
      %1601 = vmatprep.subr.mxu0 0.0
      %1602 = vmatpush1.msra.mxu0 0.0
      %1603 = vmatprep.subr.mxu0 0.0
      %1604 = vmatpush1.msra.mxu0 0.0
      %1605 = vmatprep.subr.mxu0 0.0
      %1606 = vmatpush1.msra.mxu0 0.0
      %1607 = vmatprep.subr.mxu0 0.0
      %1608 = vmatpush1.msra.mxu0 0.0
      %1609 = vmatprep.subr.mxu0 0.0
      %1610 = vmatpush1.msra.mxu0 0.0
      %1611 = vmatprep.subr.mxu0 0.0
      %1612 = vmatpush1.msra.mxu0 0.0
      %1613 = vmatprep.subr.mxu0 0.0
      %1614 = vmatpush1.msra.mxu0 0.0
      %1615 = vmatprep.subr.mxu0 0.0
      %1616 = vmatpush1.msra.mxu0 0.0
      %1617 = vmatprep.subr.mxu0 0.0
      %1618 = vmatpush1.msra.mxu0 0.0
      %1619 = vmatprep.subr.mxu0 0.0
      %1620 = vmatpush1.msra.mxu0 0.0
      %1621 = vmatprep.subr.mxu0 0.0
      %1622 = vmatpush1.msra.mxu0 0.0
      %1623 = vmatprep.subr.mxu0 0.0
      %1624 = vmatpush1.msra.mxu0 0.0
      %1625 = vmatprep.subr.mxu0 0.0
      %1626 = vmatpush1.msra.mxu0 0.0
      %1627 = vmatprep.subr.mxu0 0.0
      %1628 = vmatpush1.msra.mxu0 0.0
      %1629 = vmatprep.subr.mxu0 0.0
      %1630 = vmatpush1.msra.mxu0 0.0
      %1631 = vmatprep.subr.mxu0 0.0
      %1632 = vmatpush1.msra.mxu0 0.0
      %1633 = vmatprep.subr.mxu0 0.0
      %1634 = vmatpush1.msra.mxu0 0.0
      %1635 = vmatprep.subr.mxu0 0.0
      %1636 = vmatpush1.msra.mxu0 0.0
      %1637 = vmatprep.subr.mxu0 0.0
      %1638 = vmatpush1.msra.mxu0 0.0
      %1639 = vmatprep.subr.mxu0 0.0
      %1640 = vmatpush1.msra.mxu0 0.0
      %1641 = vmatprep.subr.mxu0 0.0
      %1642 = vmatpush1.msra.mxu0 0.0
      %1643 = vmatprep.subr.mxu0 0.0
      %1644 = vmatpush1.msra.mxu0 0.0
      %1645 = vmatprep.subr.mxu0 0.0
      %1646 = vmatpush1.msra.mxu0 0.0
      %1647 = vmatprep.subr.mxu0 0.0
      %1648 = vmatpush1.msra.mxu0 0.0
      %1649 = vmatprep.subr.mxu0 0.0
      %1650 = vmatpush1.msra.mxu0 0.0
      %1651 = vmatprep.subr.mxu0 0.0
      %1652 = vmatpush1.msra.mxu0 0.0
      %1653 = vmatprep.subr.mxu0 0.0
      %1654 = vmatpush1.msra.mxu0 0.0
      %1655 = vmatprep.subr.mxu0 0.0
      %1656 = vmatpush1.msra.mxu0 0.0
      %1657 = vmatprep.subr.mxu0 0.0
      %1658 = vmatpush1.msra.mxu0 0.0
      %1659 = vmatprep.subr.mxu0 0.0
      %1660 = vmatpush1.msra.mxu0 0.0
      %1661 = vmatprep.subr.mxu0 0.0
      %1662 = vmatpush1.msra.mxu0 0.0
      %1663 = vmatprep.mubr.f32.mxu0 0.0
      %1664 = vmatmul.mubr.f32.gmra.mrb[0].mxu0 %v1597
      %v1665 = vpop.f32.mrb[0].mxu0
      %v1666 = vadd.f32 0.0, %v1665
      %v1667 = vpop.f32.mrb[0].mxu0
      %1668 = vdwg.mxu0
      %1669 = vrot.lane.b32.xlu0 %v751, 64
      %v1670 = vpop.permute.xlu0 %1669
      %v1673 = vsel %vm799, %v1511, 0
      %1675 = vmatprep.subr.mxu0 0.0
      %1676 = vmatpush1.msra.mxu0 %v1670
      %1677 = vmatprep.subr.mxu0 0.0
      %1678 = vmatpush1.msra.mxu0 0.0
      %1679 = vmatprep.subr.mxu0 0.0
      %1680 = vmatpush1.msra.mxu0 0.0
      %1681 = vmatprep.subr.mxu0 0.0
      %1682 = vmatpush1.msra.mxu0 0.0
      %1683 = vmatprep.subr.mxu0 0.0
      %1684 = vmatpush1.msra.mxu0 0.0
      %1685 = vmatprep.subr.mxu0 0.0
      %1686 = vmatpush1.msra.mxu0 0.0
      %1687 = vmatprep.subr.mxu0 0.0
      %1688 = vmatpush1.msra.mxu0 0.0
      %1689 = vmatprep.subr.mxu0 0.0
      %1690 = vmatpush1.msra.mxu0 0.0
      %1691 = vmatprep.subr.mxu0 0.0
      %1692 = vmatpush1.msra.mxu0 0.0
      %1693 = vmatprep.subr.mxu0 0.0
      %1694 = vmatpush1.msra.mxu0 0.0
      %1695 = vmatprep.subr.mxu0 0.0
      %1696 = vmatpush1.msra.mxu0 0.0
      %1697 = vmatprep.subr.mxu0 0.0
      %1698 = vmatpush1.msra.mxu0 0.0
      %1699 = vmatprep.subr.mxu0 0.0
      %1700 = vmatpush1.msra.mxu0 0.0
      %1701 = vmatprep.subr.mxu0 0.0
      %1702 = vmatpush1.msra.mxu0 0.0
      %1703 = vmatprep.subr.mxu0 0.0
      %1704 = vmatpush1.msra.mxu0 0.0
      %1705 = vmatprep.subr.mxu0 0.0
      %1706 = vmatpush1.msra.mxu0 0.0
      %1707 = vmatprep.subr.mxu0 0.0
      %1708 = vmatpush1.msra.mxu0 0.0
      %1709 = vmatprep.subr.mxu0 0.0
      %1710 = vmatpush1.msra.mxu0 0.0
      %1711 = vmatprep.subr.mxu0 0.0
      %1712 = vmatpush1.msra.mxu0 0.0
      %1713 = vmatprep.subr.mxu0 0.0
      %1714 = vmatpush1.msra.mxu0 0.0
      %1715 = vmatprep.subr.mxu0 0.0
      %1716 = vmatpush1.msra.mxu0 0.0
      %1717 = vmatprep.subr.mxu0 0.0
      %1718 = vmatpush1.msra.mxu0 0.0
      %1719 = vmatprep.subr.mxu0 0.0
      %1720 = vmatpush1.msra.mxu0 0.0
      %1721 = vmatprep.subr.mxu0 0.0
      %1722 = vmatpush1.msra.mxu0 0.0
      %1723 = vmatprep.subr.mxu0 0.0
      %1724 = vmatpush1.msra.mxu0 0.0
      %1725 = vmatprep.subr.mxu0 0.0
      %1726 = vmatpush1.msra.mxu0 0.0
      %1727 = vmatprep.subr.mxu0 0.0
      %1728 = vmatpush1.msra.mxu0 0.0
      %1729 = vmatprep.subr.mxu0 0.0
      %1730 = vmatpush1.msra.mxu0 0.0
      %1731 = vmatprep.subr.mxu0 0.0
      %1732 = vmatpush1.msra.mxu0 0.0
      %1733 = vmatprep.subr.mxu0 0.0
      %1734 = vmatpush1.msra.mxu0 0.0
      %1735 = vmatprep.subr.mxu0 0.0
      %1736 = vmatpush1.msra.mxu0 0.0
      %1737 = vmatprep.subr.mxu0 0.0
      %1738 = vmatpush1.msra.mxu0 0.0
      %1739 = vmatprep.mubr.f32.mxu0 0.0
      %1740 = vmatmul.mubr.f32.gmra.mrb[0].mxu0 %v1673
      %v1741 = vpop.f32.mrb[0].mxu0
      %v1742 = vadd.f32 0.0, %v1741
      %v1743 = vpop.f32.mrb[0].mxu0
      %1744 = vdwg.mxu0
      %1745 = vrot.lane.b32.xlu0 %v756, 64
      %v1746 = vpop.permute.xlu0 %1745
      %v1749 = vsel %vm799, %v1512, 0
      %1751 = vmatprep.subr.mxu0 0.0
      %1752 = vmatpush1.msra.mxu0 %v1746
      %1753 = vmatprep.subr.mxu0 0.0
      %1754 = vmatpush1.msra.mxu0 0.0
      %1755 = vmatprep.subr.mxu0 0.0
      %1756 = vmatpush1.msra.mxu0 0.0
      %1757 = vmatprep.subr.mxu0 0.0
      %1758 = vmatpush1.msra.mxu0 0.0
      %1759 = vmatprep.subr.mxu0 0.0
      %1760 = vmatpush1.msra.mxu0 0.0
      %1761 = vmatprep.subr.mxu0 0.0
      %1762 = vmatpush1.msra.mxu0 0.0
      %1763 = vmatprep.subr.mxu0 0.0
      %1764 = vmatpush1.msra.mxu0 0.0
      %1765 = vmatprep.subr.mxu0 0.0
      %1766 = vmatpush1.msra.mxu0 0.0
      %1767 = vmatprep.subr.mxu0 0.0
      %1768 = vmatpush1.msra.mxu0 0.0
      %1769 = vmatprep.subr.mxu0 0.0
      %1770 = vmatpush1.msra.mxu0 0.0
      %1771 = vmatprep.subr.mxu0 0.0
      %1772 = vmatpush1.msra.mxu0 0.0
      %1773 = vmatprep.subr.mxu0 0.0
      %1774 = vmatpush1.msra.mxu0 0.0
      %1775 = vmatprep.subr.mxu0 0.0
      %1776 = vmatpush1.msra.mxu0 0.0
      %1777 = vmatprep.subr.mxu0 0.0
      %1778 = vmatpush1.msra.mxu0 0.0
      %1779 = vmatprep.subr.mxu0 0.0
      %1780 = vmatpush1.msra.mxu0 0.0
      %1781 = vmatprep.subr.mxu0 0.0
      %1782 = vmatpush1.msra.mxu0 0.0
      %1783 = vmatprep.subr.mxu0 0.0
      %1784 = vmatpush1.msra.mxu0 0.0
      %1785 = vmatprep.subr.mxu0 0.0
      %1786 = vmatpush1.msra.mxu0 0.0
      %1787 = vmatprep.subr.mxu0 0.0
      %1788 = vmatpush1.msra.mxu0 0.0
      %1789 = vmatprep.subr.mxu0 0.0
      %1790 = vmatpush1.msra.mxu0 0.0
      %1791 = vmatprep.subr.mxu0 0.0
      %1792 = vmatpush1.msra.mxu0 0.0
      %1793 = vmatprep.subr.mxu0 0.0
      %1794 = vmatpush1.msra.mxu0 0.0
      %1795 = vmatprep.subr.mxu0 0.0
      %1796 = vmatpush1.msra.mxu0 0.0
      %1797 = vmatprep.subr.mxu0 0.0
      %1798 = vmatpush1.msra.mxu0 0.0
      %1799 = vmatprep.subr.mxu0 0.0
      %1800 = vmatpush1.msra.mxu0 0.0
      %1801 = vmatprep.subr.mxu0 0.0
      %1802 = vmatpush1.msra.mxu0 0.0
      %1803 = vmatprep.subr.mxu0 0.0
      %1804 = vmatpush1.msra.mxu0 0.0
      %1805 = vmatprep.subr.mxu0 0.0
      %1806 = vmatpush1.msra.mxu0 0.0
      %1807 = vmatprep.subr.mxu0 0.0
      %1808 = vmatpush1.msra.mxu0 0.0
      %1809 = vmatprep.subr.mxu0 0.0
      %1810 = vmatpush1.msra.mxu0 0.0
      %1811 = vmatprep.subr.mxu0 0.0
      %1812 = vmatpush1.msra.mxu0 0.0
      %1813 = vmatprep.subr.mxu0 0.0
      %1814 = vmatpush1.msra.mxu0 0.0
      %1815 = vmatprep.mubr.f32.mxu0 0.0
      %1816 = vmatmul.mubr.f32.gmra.mrb[0].mxu0 %v1749
      %v1817 = vpop.f32.mrb[0].mxu0
      %v1818 = vadd.f32 0.0, %v1817
      %v1819 = vpop.f32.mrb[0].mxu0
      %1820 = vdwg.mxu0
      %1821 = vrot.lane.b32.xlu0 %v761, 64
      %v1822 = vpop.permute.xlu0 %1821
      %v1825 = vsel %vm799, %v1513, 0
      %1827 = vmatprep.subr.mxu0 0.0
      %1828 = vmatpush1.msra.mxu0 %v1822
      %1829 = vmatprep.subr.mxu0 0.0
      %1830 = vmatpush1.msra.mxu0 0.0
      %1831 = vmatprep.subr.mxu0 0.0
      %1832 = vmatpush1.msra.mxu0 0.0
      %1833 = vmatprep.subr.mxu0 0.0
      %1834 = vmatpush1.msra.mxu0 0.0
      %1835 = vmatprep.subr.mxu0 0.0
      %1836 = vmatpush1.msra.mxu0 0.0
      %1837 = vmatprep.subr.mxu0 0.0
      %1838 = vmatpush1.msra.mxu0 0.0
      %1839 = vmatprep.subr.mxu0 0.0
      %1840 = vmatpush1.msra.mxu0 0.0
      %1841 = vmatprep.subr.mxu0 0.0
      %1842 = vmatpush1.msra.mxu0 0.0
      %1843 = vmatprep.subr.mxu0 0.0
      %1844 = vmatpush1.msra.mxu0 0.0
      %1845 = vmatprep.subr.mxu0 0.0
      %1846 = vmatpush1.msra.mxu0 0.0
      %1847 = vmatprep.subr.mxu0 0.0
      %1848 = vmatpush1.msra.mxu0 0.0
      %1849 = vmatprep.subr.mxu0 0.0
      %1850 = vmatpush1.msra.mxu0 0.0
      %1851 = vmatprep.subr.mxu0 0.0
      %1852 = vmatpush1.msra.mxu0 0.0
      %1853 = vmatprep.subr.mxu0 0.0
      %1854 = vmatpush1.msra.mxu0 0.0
      %1855 = vmatprep.subr.mxu0 0.0
      %1856 = vmatpush1.msra.mxu0 0.0
      %1857 = vmatprep.subr.mxu0 0.0
      %1858 = vmatpush1.msra.mxu0 0.0
      %1859 = vmatprep.subr.mxu0 0.0
      %1860 = vmatpush1.msra.mxu0 0.0
      %1861 = vmatprep.subr.mxu0 0.0
      %1862 = vmatpush1.msra.mxu0 0.0
      %1863 = vmatprep.subr.mxu0 0.0
      %1864 = vmatpush1.msra.mxu0 0.0
      %1865 = vmatprep.subr.mxu0 0.0
      %1866 = vmatpush1.msra.mxu0 0.0
      %1867 = vmatprep.subr.mxu0 0.0
      %1868 = vmatpush1.msra.mxu0 0.0
      %1869 = vmatprep.subr.mxu0 0.0
      %1870 = vmatpush1.msra.mxu0 0.0
      %1871 = vmatprep.subr.mxu0 0.0
      %1872 = vmatpush1.msra.mxu0 0.0
      %1873 = vmatprep.subr.mxu0 0.0
      %1874 = vmatpush1.msra.mxu0 0.0
      %1875 = vmatprep.subr.mxu0 0.0
      %1876 = vmatpush1.msra.mxu0 0.0
      %1877 = vmatprep.subr.mxu0 0.0
      %1878 = vmatpush1.msra.mxu0 0.0
      %1879 = vmatprep.subr.mxu0 0.0
      %1880 = vmatpush1.msra.mxu0 0.0
      %1881 = vmatprep.subr.mxu0 0.0
      %1882 = vmatpush1.msra.mxu0 0.0
      %1883 = vmatprep.subr.mxu0 0.0
      %1884 = vmatpush1.msra.mxu0 0.0
      %1885 = vmatprep.subr.mxu0 0.0
      %1886 = vmatpush1.msra.mxu0 0.0
      %1887 = vmatprep.subr.mxu0 0.0
      %1888 = vmatpush1.msra.mxu0 0.0
      %1889 = vmatprep.subr.mxu0 0.0
      %1890 = vmatpush1.msra.mxu0 0.0
      %1891 = vmatprep.mubr.f32.mxu0 0.0
      %1892 = vmatmul.mubr.f32.gmra.mrb[0].mxu0 %v1825
      %v1893 = vpop.f32.mrb[0].mxu0
      %v1894 = vadd.f32 0.0, %v1893
      %v1895 = vpop.f32.mrb[0].mxu0
      %1896 = vdwg.mxu0
      %1897 = vrot.lane.b32.xlu0 %v766, 64
      %v1898 = vpop.permute.xlu0 %1897
      %v1901 = vsel %vm799, %v1514, 0
      %1903 = vmatprep.subr.mxu0 0.0
      %1904 = vmatpush1.msra.mxu0 %v1898
      %1905 = vmatprep.subr.mxu0 0.0
      %1906 = vmatpush1.msra.mxu0 0.0
      %1907 = vmatprep.subr.mxu0 0.0
      %1908 = vmatpush1.msra.mxu0 0.0
      %1909 = vmatprep.subr.mxu0 0.0
      %1910 = vmatpush1.msra.mxu0 0.0
      %1911 = vmatprep.subr.mxu0 0.0
      %1912 = vmatpush1.msra.mxu0 0.0
      %1913 = vmatprep.subr.mxu0 0.0
      %1914 = vmatpush1.msra.mxu0 0.0
      %1915 = vmatprep.subr.mxu0 0.0
      %1916 = vmatpush1.msra.mxu0 0.0
      %1917 = vmatprep.subr.mxu0 0.0
      %1918 = vmatpush1.msra.mxu0 0.0
      %1919 = vmatprep.subr.mxu0 0.0
      %1920 = vmatpush1.msra.mxu0 0.0
      %1921 = vmatprep.subr.mxu0 0.0
      %1922 = vmatpush1.msra.mxu0 0.0
      %1923 = vmatprep.subr.mxu0 0.0
      %1924 = vmatpush1.msra.mxu0 0.0
      %1925 = vmatprep.subr.mxu0 0.0
      %1926 = vmatpush1.msra.mxu0 0.0
      %1927 = vmatprep.subr.mxu0 0.0
      %1928 = vmatpush1.msra.mxu0 0.0
      %1929 = vmatprep.subr.mxu0 0.0
      %1930 = vmatpush1.msra.mxu0 0.0
      %1931 = vmatprep.subr.mxu0 0.0
      %1932 = vmatpush1.msra.mxu0 0.0
      %1933 = vmatprep.subr.mxu0 0.0
      %1934 = vmatpush1.msra.mxu0 0.0
      %1935 = vmatprep.subr.mxu0 0.0
      %1936 = vmatpush1.msra.mxu0 0.0
      %1937 = vmatprep.subr.mxu0 0.0
      %1938 = vmatpush1.msra.mxu0 0.0
      %1939 = vmatprep.subr.mxu0 0.0
      %1940 = vmatpush1.msra.mxu0 0.0
      %1941 = vmatprep.subr.mxu0 0.0
      %1942 = vmatpush1.msra.mxu0 0.0
      %1943 = vmatprep.subr.mxu0 0.0
      %1944 = vmatpush1.msra.mxu0 0.0
      %1945 = vmatprep.subr.mxu0 0.0
      %1946 = vmatpush1.msra.mxu0 0.0
      %1947 = vmatprep.subr.mxu0 0.0
      %1948 = vmatpush1.msra.mxu0 0.0
      %1949 = vmatprep.subr.mxu0 0.0
      %1950 = vmatpush1.msra.mxu0 0.0
      %1951 = vmatprep.subr.mxu0 0.0
      %1952 = vmatpush1.msra.mxu0 0.0
      %1953 = vmatprep.subr.mxu0 0.0
      %1954 = vmatpush1.msra.mxu0 0.0
      %1955 = vmatprep.subr.mxu0 0.0
      %1956 = vmatpush1.msra.mxu0 0.0
      %1957 = vmatprep.subr.mxu0 0.0
      %1958 = vmatpush1.msra.mxu0 0.0
      %1959 = vmatprep.subr.mxu0 0.0
      %1960 = vmatpush1.msra.mxu0 0.0
      %1961 = vmatprep.subr.mxu0 0.0
      %1962 = vmatpush1.msra.mxu0 0.0
      %1963 = vmatprep.subr.mxu0 0.0
      %1964 = vmatpush1.msra.mxu0 0.0
      %1965 = vmatprep.subr.mxu0 0.0
      %1966 = vmatpush1.msra.mxu0 0.0
      %1967 = vmatprep.mubr.f32.mxu0 0.0
      %1968 = vmatmul.mubr.f32.gmra.mrb[0].mxu0 %v1901
      %v1969 = vpop.f32.mrb[0].mxu0
      %v1970 = vadd.f32 0.0, %v1969
      %v1971 = vpop.f32.mrb[0].mxu0
      %1972 = vdwg.mxu0
      %1973 = vrot.lane.b32.xlu0 %v771, 64
      %v1974 = vpop.permute.xlu0 %1973
      %v1977 = vsel %vm799, %v1515, 0
      %1979 = vmatprep.subr.mxu0 0.0
      %1980 = vmatpush1.msra.mxu0 %v1974
      %1981 = vmatprep.subr.mxu0 0.0
      %1982 = vmatpush1.msra.mxu0 0.0
      %1983 = vmatprep.subr.mxu0 0.0
      %1984 = vmatpush1.msra.mxu0 0.0
      %1985 = vmatprep.subr.mxu0 0.0
      %1986 = vmatpush1.msra.mxu0 0.0
      %1987 = vmatprep.subr.mxu0 0.0
      %1988 = vmatpush1.msra.mxu0 0.0
      %1989 = vmatprep.subr.mxu0 0.0
      %1990 = vmatpush1.msra.mxu0 0.0
      %1991 = vmatprep.subr.mxu0 0.0
      %1992 = vmatpush1.msra.mxu0 0.0
      %1993 = vmatprep.subr.mxu0 0.0
      %1994 = vmatpush1.msra.mxu0 0.0
      %1995 = vmatprep.subr.mxu0 0.0
      %1996 = vmatpush1.msra.mxu0 0.0
      %1997 = vmatprep.subr.mxu0 0.0
      %1998 = vmatpush1.msra.mxu0 0.0
      %1999 = vmatprep.subr.mxu0 0.0
      %2000 = vmatpush1.msra.mxu0 0.0
      %2001 = vmatprep.subr.mxu0 0.0
      %2002 = vmatpush1.msra.mxu0 0.0
      %2003 = vmatprep.subr.mxu0 0.0
      %2004 = vmatpush1.msra.mxu0 0.0
      %2005 = vmatprep.subr.mxu0 0.0
      %2006 = vmatpush1.msra.mxu0 0.0
      %2007 = vmatprep.subr.mxu0 0.0
      %2008 = vmatpush1.msra.mxu0 0.0
      %2009 = vmatprep.subr.mxu0 0.0
      %2010 = vmatpush1.msra.mxu0 0.0
      %2011 = vmatprep.subr.mxu0 0.0
      %2012 = vmatpush1.msra.mxu0 0.0
      %2013 = vmatprep.subr.mxu0 0.0
      %2014 = vmatpush1.msra.mxu0 0.0
      %2015 = vmatprep.subr.mxu0 0.0
      %2016 = vmatpush1.msra.mxu0 0.0
      %2017 = vmatprep.subr.mxu0 0.0
      %2018 = vmatpush1.msra.mxu0 0.0
      %2019 = vmatprep.subr.mxu0 0.0
      %2020 = vmatpush1.msra.mxu0 0.0
      %2021 = vmatprep.subr.mxu0 0.0
      %2022 = vmatpush1.msra.mxu0 0.0
      %2023 = vmatprep.subr.mxu0 0.0
      %2024 = vmatpush1.msra.mxu0 0.0
      %2025 = vmatprep.subr.mxu0 0.0
      %2026 = vmatpush1.msra.mxu0 0.0
      %2027 = vmatprep.subr.mxu0 0.0
      %2028 = vmatpush1.msra.mxu0 0.0
      %2029 = vmatprep.subr.mxu0 0.0
      %2030 = vmatpush1.msra.mxu0 0.0
      %2031 = vmatprep.subr.mxu0 0.0
      %2032 = vmatpush1.msra.mxu0 0.0
      %2033 = vmatprep.subr.mxu0 0.0
      %2034 = vmatpush1.msra.mxu0 0.0
      %2035 = vmatprep.subr.mxu0 0.0
      %2036 = vmatpush1.msra.mxu0 0.0
      %2037 = vmatprep.subr.mxu0 0.0
      %2038 = vmatpush1.msra.mxu0 0.0
      %2039 = vmatprep.subr.mxu0 0.0
      %2040 = vmatpush1.msra.mxu0 0.0
      %2041 = vmatprep.subr.mxu0 0.0
      %2042 = vmatpush1.msra.mxu0 0.0
      %2043 = vmatprep.mubr.f32.mxu0 0.0
      %2044 = vmatmul.mubr.f32.gmra.mrb[0].mxu0 %v1977
      %v2045 = vpop.f32.mrb[0].mxu0
      %v2046 = vadd.f32 0.0, %v2045
      %v2047 = vpop.f32.mrb[0].mxu0
      %2048 = vdwg.mxu0
      %2049 = vrot.lane.b32.xlu0 %v776, 64
      %v2050 = vpop.permute.xlu0 %2049
      %v2053 = vsel %vm799, %v1516, 0
      %2055 = vmatprep.subr.mxu0 0.0
      %2056 = vmatpush1.msra.mxu0 %v2050
      %2057 = vmatprep.subr.mxu0 0.0
      %2058 = vmatpush1.msra.mxu0 0.0
      %2059 = vmatprep.subr.mxu0 0.0
      %2060 = vmatpush1.msra.mxu0 0.0
      %2061 = vmatprep.subr.mxu0 0.0
      %2062 = vmatpush1.msra.mxu0 0.0
      %2063 = vmatprep.subr.mxu0 0.0
      %2064 = vmatpush1.msra.mxu0 0.0
      %2065 = vmatprep.subr.mxu0 0.0
      %2066 = vmatpush1.msra.mxu0 0.0
      %2067 = vmatprep.subr.mxu0 0.0
      %2068 = vmatpush1.msra.mxu0 0.0
      %2069 = vmatprep.subr.mxu0 0.0
      %2070 = vmatpush1.msra.mxu0 0.0
      %2071 = vmatprep.subr.mxu0 0.0
      %2072 = vmatpush1.msra.mxu0 0.0
      %2073 = vmatprep.subr.mxu0 0.0
      %2074 = vmatpush1.msra.mxu0 0.0
      %2075 = vmatprep.subr.mxu0 0.0
      %2076 = vmatpush1.msra.mxu0 0.0
      %2077 = vmatprep.subr.mxu0 0.0
      %2078 = vmatpush1.msra.mxu0 0.0
      %2079 = vmatprep.subr.mxu0 0.0
      %2080 = vmatpush1.msra.mxu0 0.0
      %2081 = vmatprep.subr.mxu0 0.0
      %2082 = vmatpush1.msra.mxu0 0.0
      %2083 = vmatprep.subr.mxu0 0.0
      %2084 = vmatpush1.msra.mxu0 0.0
      %2085 = vmatprep.subr.mxu0 0.0
      %2086 = vmatpush1.msra.mxu0 0.0
      %2087 = vmatprep.subr.mxu0 0.0
      %2088 = vmatpush1.msra.mxu0 0.0
      %2089 = vmatprep.subr.mxu0 0.0
      %2090 = vmatpush1.msra.mxu0 0.0
      %2091 = vmatprep.subr.mxu0 0.0
      %2092 = vmatpush1.msra.mxu0 0.0
      %2093 = vmatprep.subr.mxu0 0.0
      %2094 = vmatpush1.msra.mxu0 0.0
      %2095 = vmatprep.subr.mxu0 0.0
      %2096 = vmatpush1.msra.mxu0 0.0
      %2097 = vmatprep.subr.mxu0 0.0
      %2098 = vmatpush1.msra.mxu0 0.0
      %2099 = vmatprep.subr.mxu0 0.0
      %2100 = vmatpush1.msra.mxu0 0.0
      %2101 = vmatprep.subr.mxu0 0.0
      %2102 = vmatpush1.msra.mxu0 0.0
      %2103 = vmatprep.subr.mxu0 0.0
      %2104 = vmatpush1.msra.mxu0 0.0
      %2105 = vmatprep.subr.mxu0 0.0
      %2106 = vmatpush1.msra.mxu0 0.0
      %2107 = vmatprep.subr.mxu0 0.0
      %2108 = vmatpush1.msra.mxu0 0.0
      %2109 = vmatprep.subr.mxu0 0.0
      %2110 = vmatpush1.msra.mxu0 0.0
      %2111 = vmatprep.subr.mxu0 0.0
      %2112 = vmatpush1.msra.mxu0 0.0
      %2113 = vmatprep.subr.mxu0 0.0
      %2114 = vmatpush1.msra.mxu0 0.0
      %2115 = vmatprep.subr.mxu0 0.0
      %2116 = vmatpush1.msra.mxu0 0.0
      %2117 = vmatprep.subr.mxu0 0.0
      %2118 = vmatpush1.msra.mxu0 0.0
      %2119 = vmatprep.mubr.f32.mxu0 0.0
      %2120 = vmatmul.mubr.f32.gmra.mrb[0].mxu0 %v2053
      %v2121 = vpop.f32.mrb[0].mxu0
      %v2122 = vadd.f32 0.0, %v2121
      %v2123 = vpop.f32.mrb[0].mxu0
      %2124 = vdwg.mxu0
      %s2125 = scalar_lea.vmem %s2, 8
      %v2126 = vld [vmem:[%s2125] sm:$0xff]
      %2127 = vrot.lane.b32.xlu0 %v787, 120
      %v2128 = vpop.permute.xlu0 %2127
      %2129 = vrot.lane.b32.xlu0 %v741, 88
      %v2130 = vpop.permute.xlu0 %2129
      %v2131 = vsel %vm799, %v2128, 0
      %v2133 = vsel %vm799, %v2130, 0
      %2135 = vmatprep.subr.mxu0 0.0
      %2136 = vmatpush1.xpose.msra.mxu0 %v2133
      %2137 = vmatprep.subr.mxu0 0.0
      %2138 = vmatpush1.xpose.msra.mxu0 0.0
      %2139 = vmatprep.subr.mxu0 0.0
      %2140 = vmatpush1.xpose.msra.mxu0 0.0
      %2141 = vmatprep.subr.mxu0 0.0
      %2142 = vmatpush1.xpose.msra.mxu0 0.0
      %2143 = vmatprep.subr.mxu0 0.0
      %2144 = vmatpush1.xpose.msra.mxu0 0.0
      %2145 = vmatprep.subr.mxu0 0.0
      %2146 = vmatpush1.xpose.msra.mxu0 0.0
      %2147 = vmatprep.subr.mxu0 0.0
      %2148 = vmatpush1.xpose.msra.mxu0 0.0
      %2149 = vmatprep.subr.mxu0 0.0
      %2150 = vmatpush1.xpose.msra.mxu0 0.0
      %2151 = vmatprep.subr.mxu0 0.0
      %2152 = vmatpush1.xpose.msra.mxu0 0.0
      %2153 = vmatprep.subr.mxu0 0.0
      %2154 = vmatpush1.xpose.msra.mxu0 0.0
      %2155 = vmatprep.subr.mxu0 0.0
      %2156 = vmatpush1.xpose.msra.mxu0 0.0
      %2157 = vmatprep.subr.mxu0 0.0
      %2158 = vmatpush1.xpose.msra.mxu0 0.0
      %2159 = vmatprep.subr.mxu0 0.0
      %2160 = vmatpush1.xpose.msra.mxu0 0.0
      %2161 = vmatprep.subr.mxu0 0.0
      %2162 = vmatpush1.xpose.msra.mxu0 0.0
      %2163 = vmatprep.subr.mxu0 0.0
      %2164 = vmatpush1.xpose.msra.mxu0 0.0
      %2165 = vmatprep.subr.mxu0 0.0
      %2166 = vmatpush1.xpose.msra.mxu0 0.0
      %2167 = vmatprep.subr.mxu0 0.0
      %2168 = vmatpush1.xpose.msra.mxu0 0.0
      %2169 = vmatprep.subr.mxu0 0.0
      %2170 = vmatpush1.xpose.msra.mxu0 0.0
      %2171 = vmatprep.subr.mxu0 0.0
      %2172 = vmatpush1.xpose.msra.mxu0 0.0
      %2173 = vmatprep.subr.mxu0 0.0
      %2174 = vmatpush1.xpose.msra.mxu0 0.0
      %2175 = vmatprep.subr.mxu0 0.0
      %2176 = vmatpush1.xpose.msra.mxu0 0.0
      %2177 = vmatprep.subr.mxu0 0.0
      %2178 = vmatpush1.xpose.msra.mxu0 0.0
      %2179 = vmatprep.subr.mxu0 0.0
      %2180 = vmatpush1.xpose.msra.mxu0 0.0
      %2181 = vmatprep.subr.mxu0 0.0
      %2182 = vmatpush1.xpose.msra.mxu0 0.0
      %2183 = vmatprep.subr.mxu0 0.0
      %2184 = vmatpush1.xpose.msra.mxu0 0.0
      %2185 = vmatprep.subr.mxu0 0.0
      %2186 = vmatpush1.xpose.msra.mxu0 0.0
      %2187 = vmatprep.subr.mxu0 0.0
      %2188 = vmatpush1.xpose.msra.mxu0 0.0
      %2189 = vmatprep.subr.mxu0 0.0
      %2190 = vmatpush1.xpose.msra.mxu0 0.0
      %2191 = vmatprep.subr.mxu0 0.0
      %2192 = vmatpush1.xpose.msra.mxu0 0.0
      %2193 = vmatprep.subr.mxu0 0.0
      %2194 = vmatpush1.xpose.msra.mxu0 0.0
      %2195 = vmatprep.subr.mxu0 0.0
      %2196 = vmatpush1.xpose.msra.mxu0 0.0
      %2197 = vmatprep.subr.mxu0 0.0
      %2198 = vmatpush1.xpose.msra.mxu0 0.0
      %2199 = vmatprep.mubr.f32.mxu0 0.0
      %2200 = vmatmul.mubr.f32.gmra.mrb[0].mxu0 %v2131
      %v2201 = vpop.f32.mrb[0].mxu0
      %v2202 = vadd.f32 %v2126, %v2201
      %v2203 = vpop.f32.mrb[0].mxu0
      %2204 = vdwg.mxu0
      %2205 = vrot.lane.b32.xlu0 %v788, 120
      %v2206 = vpop.permute.xlu0 %2205
      %2207 = vrot.lane.b32.xlu0 %v746, 88
      %v2208 = vpop.permute.xlu0 %2207
      %v2209 = vsel %vm799, %v2206, 0
      %v2211 = vsel %vm799, %v2208, 0
      %2213 = vmatprep.subr.mxu0 0.0
      %2214 = vmatpush1.xpose.msra.mxu0 %v2211
      %2215 = vmatprep.subr.mxu0 0.0
      %2216 = vmatpush1.xpose.msra.mxu0 0.0
      %2217 = vmatprep.subr.mxu0 0.0
      %2218 = vmatpush1.xpose.msra.mxu0 0.0
      %2219 = vmatprep.subr.mxu0 0.0
      %2220 = vmatpush1.xpose.msra.mxu0 0.0
      %2221 = vmatprep.subr.mxu0 0.0
      %2222 = vmatpush1.xpose.msra.mxu0 0.0
      %2223 = vmatprep.subr.mxu0 0.0
      %2224 = vmatpush1.xpose.msra.mxu0 0.0
      %2225 = vmatprep.subr.mxu0 0.0
      %2226 = vmatpush1.xpose.msra.mxu0 0.0
      %2227 = vmatprep.subr.mxu0 0.0
      %2228 = vmatpush1.xpose.msra.mxu0 0.0
      %2229 = vmatprep.subr.mxu0 0.0
      %2230 = vmatpush1.xpose.msra.mxu0 0.0
      %2231 = vmatprep.subr.mxu0 0.0
      %2232 = vmatpush1.xpose.msra.mxu0 0.0
      %2233 = vmatprep.subr.mxu0 0.0
      %2234 = vmatpush1.xpose.msra.mxu0 0.0
      %2235 = vmatprep.subr.mxu0 0.0
      %2236 = vmatpush1.xpose.msra.mxu0 0.0
      %2237 = vmatprep.subr.mxu0 0.0
      %2238 = vmatpush1.xpose.msra.mxu0 0.0
      %2239 = vmatprep.subr.mxu0 0.0
      %2240 = vmatpush1.xpose.msra.mxu0 0.0
      %2241 = vmatprep.subr.mxu0 0.0
      %2242 = vmatpush1.xpose.msra.mxu0 0.0
      %2243 = vmatprep.subr.mxu0 0.0
      %2244 = vmatpush1.xpose.msra.mxu0 0.0
      %2245 = vmatprep.subr.mxu0 0.0
      %2246 = vmatpush1.xpose.msra.mxu0 0.0
      %2247 = vmatprep.subr.mxu0 0.0
      %2248 = vmatpush1.xpose.msra.mxu0 0.0
      %2249 = vmatprep.subr.mxu0 0.0
      %2250 = vmatpush1.xpose.msra.mxu0 0.0
      %2251 = vmatprep.subr.mxu0 0.0
      %2252 = vmatpush1.xpose.msra.mxu0 0.0
      %2253 = vmatprep.subr.mxu0 0.0
      %2254 = vmatpush1.xpose.msra.mxu0 0.0
      %2255 = vmatprep.subr.mxu0 0.0
      %2256 = vmatpush1.xpose.msra.mxu0 0.0
      %2257 = vmatprep.subr.mxu0 0.0
      %2258 = vmatpush1.xpose.msra.mxu0 0.0
      %2259 = vmatprep.subr.mxu0 0.0
      %2260 = vmatpush1.xpose.msra.mxu0 0.0
      %2261 = vmatprep.subr.mxu0 0.0
      %2262 = vmatpush1.xpose.msra.mxu0 0.0
      %2263 = vmatprep.subr.mxu0 0.0
      %2264 = vmatpush1.xpose.msra.mxu0 0.0
      %2265 = vmatprep.subr.mxu0 0.0
      %2266 = vmatpush1.xpose.msra.mxu0 0.0
      %2267 = vmatprep.subr.mxu0 0.0
      %2268 = vmatpush1.xpose.msra.mxu0 0.0
      %2269 = vmatprep.subr.mxu0 0.0
      %2270 = vmatpush1.xpose.msra.mxu0 0.0
      %2271 = vmatprep.subr.mxu0 0.0
      %2272 = vmatpush1.xpose.msra.mxu0 0.0
      %2273 = vmatprep.subr.mxu0 0.0
      %2274 = vmatpush1.xpose.msra.mxu0 0.0
      %2275 = vmatprep.subr.mxu0 0.0
      %2276 = vmatpush1.xpose.msra.mxu0 0.0
      %2277 = vmatprep.mubr.f32.mxu0 0.0
      %2278 = vmatmul.mubr.f32.gmra.mrb[0].mxu0 %v2209
      %v2279 = vpop.f32.mrb[0].mxu0
      %v2280 = vadd.f32 %v2126, %v2279
      %v2281 = vpop.f32.mrb[0].mxu0
      %2282 = vdwg.mxu0
      %2283 = vrot.lane.b32.xlu0 %v789, 120
      %v2284 = vpop.permute.xlu0 %2283
      %2285 = vrot.lane.b32.xlu0 %v751, 88
      %v2286 = vpop.permute.xlu0 %2285
      %v2287 = vsel %vm799, %v2284, 0
      %v2289 = vsel %vm799, %v2286, 0
      %2291 = vmatprep.subr.mxu0 0.0
      %2292 = vmatpush1.xpose.msra.mxu0 %v2289
      %2293 = vmatprep.subr.mxu0 0.0
      %2294 = vmatpush1.xpose.msra.mxu0 0.0
      %2295 = vmatprep.subr.mxu0 0.0
      %2296 = vmatpush1.xpose.msra.mxu0 0.0
      %2297 = vmatprep.subr.mxu0 0.0
      %2298 = vmatpush1.xpose.msra.mxu0 0.0
      %2299 = vmatprep.subr.mxu0 0.0
      %2300 = vmatpush1.xpose.msra.mxu0 0.0
      %2301 = vmatprep.subr.mxu0 0.0
      %2302 = vmatpush1.xpose.msra.mxu0 0.0
      %2303 = vmatprep.subr.mxu0 0.0
      %2304 = vmatpush1.xpose.msra.mxu0 0.0
      %2305 = vmatprep.subr.mxu0 0.0
      %2306 = vmatpush1.xpose.msra.mxu0 0.0
      %2307 = vmatprep.subr.mxu0 0.0
      %2308 = vmatpush1.xpose.msra.mxu0 0.0
      %2309 = vmatprep.subr.mxu0 0.0
      %2310 = vmatpush1.xpose.msra.mxu0 0.0
      %2311 = vmatprep.subr.mxu0 0.0
      %2312 = vmatpush1.xpose.msra.mxu0 0.0
      %2313 = vmatprep.subr.mxu0 0.0
      %2314 = vmatpush1.xpose.msra.mxu0 0.0
      %2315 = vmatprep.subr.mxu0 0.0
      %2316 = vmatpush1.xpose.msra.mxu0 0.0
      %2317 = vmatprep.subr.mxu0 0.0
      %2318 = vmatpush1.xpose.msra.mxu0 0.0
      %2319 = vmatprep.subr.mxu0 0.0
      %2320 = vmatpush1.xpose.msra.mxu0 0.0
      %2321 = vmatprep.subr.mxu0 0.0
      %2322 = vmatpush1.xpose.msra.mxu0 0.0
      %2323 = vmatprep.subr.mxu0 0.0
      %2324 = vmatpush1.xpose.msra.mxu0 0.0
      %2325 = vmatprep.subr.mxu0 0.0
      %2326 = vmatpush1.xpose.msra.mxu0 0.0
      %2327 = vmatprep.subr.mxu0 0.0
      %2328 = vmatpush1.xpose.msra.mxu0 0.0
      %2329 = vmatprep.subr.mxu0 0.0
      %2330 = vmatpush1.xpose.msra.mxu0 0.0
      %2331 = vmatprep.subr.mxu0 0.0
      %2332 = vmatpush1.xpose.msra.mxu0 0.0
      %2333 = vmatprep.subr.mxu0 0.0
      %2334 = vmatpush1.xpose.msra.mxu0 0.0
      %2335 = vmatprep.subr.mxu0 0.0
      %2336 = vmatpush1.xpose.msra.mxu0 0.0
      %2337 = vmatprep.subr.mxu0 0.0
      %2338 = vmatpush1.xpose.msra.mxu0 0.0
      %2339 = vmatprep.subr.mxu0 0.0
      %2340 = vmatpush1.xpose.msra.mxu0 0.0
      %2341 = vmatprep.subr.mxu0 0.0
      %2342 = vmatpush1.xpose.msra.mxu0 0.0
      %2343 = vmatprep.subr.mxu0 0.0
      %2344 = vmatpush1.xpose.msra.mxu0 0.0
      %2345 = vmatprep.subr.mxu0 0.0
      %2346 = vmatpush1.xpose.msra.mxu0 0.0
      %2347 = vmatprep.subr.mxu0 0.0
      %2348 = vmatpush1.xpose.msra.mxu0 0.0
      %2349 = vmatprep.subr.mxu0 0.0
      %2350 = vmatpush1.xpose.msra.mxu0 0.0
      %2351 = vmatprep.subr.mxu0 0.0
      %2352 = vmatpush1.xpose.msra.mxu0 0.0
      %2353 = vmatprep.subr.mxu0 0.0
      %2354 = vmatpush1.xpose.msra.mxu0 0.0
      %2355 = vmatprep.mubr.f32.mxu0 0.0
      %2356 = vmatmul.mubr.f32.gmra.mrb[0].mxu0 %v2287
      %v2357 = vpop.f32.mrb[0].mxu0
      %v2358 = vadd.f32 %v2126, %v2357
      %v2359 = vpop.f32.mrb[0].mxu0
      %2360 = vdwg.mxu0
      %2361 = vrot.lane.b32.xlu0 %v790, 120
      %v2362 = vpop.permute.xlu0 %2361
      %2363 = vrot.lane.b32.xlu0 %v756, 88
      %v2364 = vpop.permute.xlu0 %2363
      %v2365 = vsel %vm799, %v2362, 0
      %v2367 = vsel %vm799, %v2364, 0
      %2369 = vmatprep.subr.mxu0 0.0
      %2370 = vmatpush1.xpose.msra.mxu0 %v2367
      %2371 = vmatprep.subr.mxu0 0.0
      %2372 = vmatpush1.xpose.msra.mxu0 0.0
      %2373 = vmatprep.subr.mxu0 0.0
      %2374 = vmatpush1.xpose.msra.mxu0 0.0
      %2375 = vmatprep.subr.mxu0 0.0
      %2376 = vmatpush1.xpose.msra.mxu0 0.0
      %2377 = vmatprep.subr.mxu0 0.0
      %2378 = vmatpush1.xpose.msra.mxu0 0.0
      %2379 = vmatprep.subr.mxu0 0.0
      %2380 = vmatpush1.xpose.msra.mxu0 0.0
      %2381 = vmatprep.subr.mxu0 0.0
      %2382 = vmatpush1.xpose.msra.mxu0 0.0
      %2383 = vmatprep.subr.mxu0 0.0
      %2384 = vmatpush1.xpose.msra.mxu0 0.0
      %2385 = vmatprep.subr.mxu0 0.0
      %2386 = vmatpush1.xpose.msra.mxu0 0.0
      %2387 = vmatprep.subr.mxu0 0.0
      %2388 = vmatpush1.xpose.msra.mxu0 0.0
      %2389 = vmatprep.subr.mxu0 0.0
      %2390 = vmatpush1.xpose.msra.mxu0 0.0
      %2391 = vmatprep.subr.mxu0 0.0
      %2392 = vmatpush1.xpose.msra.mxu0 0.0
      %2393 = vmatprep.subr.mxu0 0.0
      %2394 = vmatpush1.xpose.msra.mxu0 0.0
      %2395 = vmatprep.subr.mxu0 0.0
      %2396 = vmatpush1.xpose.msra.mxu0 0.0
      %2397 = vmatprep.subr.mxu0 0.0
      %2398 = vmatpush1.xpose.msra.mxu0 0.0
      %2399 = vmatprep.subr.mxu0 0.0
      %2400 = vmatpush1.xpose.msra.mxu0 0.0
      %2401 = vmatprep.subr.mxu0 0.0
      %2402 = vmatpush1.xpose.msra.mxu0 0.0
      %2403 = vmatprep.subr.mxu0 0.0
      %2404 = vmatpush1.xpose.msra.mxu0 0.0
      %2405 = vmatprep.subr.mxu0 0.0
      %2406 = vmatpush1.xpose.msra.mxu0 0.0
      %2407 = vmatprep.subr.mxu0 0.0
      %2408 = vmatpush1.xpose.msra.mxu0 0.0
      %2409 = vmatprep.subr.mxu0 0.0
      %2410 = vmatpush1.xpose.msra.mxu0 0.0
      %2411 = vmatprep.subr.mxu0 0.0
      %2412 = vmatpush1.xpose.msra.mxu0 0.0
      %2413 = vmatprep.subr.mxu0 0.0
      %2414 = vmatpush1.xpose.msra.mxu0 0.0
      %2415 = vmatprep.subr.mxu0 0.0
      %2416 = vmatpush1.xpose.msra.mxu0 0.0
      %2417 = vmatprep.subr.mxu0 0.0
      %2418 = vmatpush1.xpose.msra.mxu0 0.0
      %2419 = vmatprep.subr.mxu0 0.0
      %2420 = vmatpush1.xpose.msra.mxu0 0.0
      %2421 = vmatprep.subr.mxu0 0.0
      %2422 = vmatpush1.xpose.msra.mxu0 0.0
      %2423 = vmatprep.subr.mxu0 0.0
      %2424 = vmatpush1.xpose.msra.mxu0 0.0
      %2425 = vmatprep.subr.mxu0 0.0
      %2426 = vmatpush1.xpose.msra.mxu0 0.0
      %2427 = vmatprep.subr.mxu0 0.0
      %2428 = vmatpush1.xpose.msra.mxu0 0.0
      %2429 = vmatprep.subr.mxu0 0.0
      %2430 = vmatpush1.xpose.msra.mxu0 0.0
      %2431 = vmatprep.subr.mxu0 0.0
      %2432 = vmatpush1.xpose.msra.mxu0 0.0
      %2433 = vmatprep.mubr.f32.mxu0 0.0
      %2434 = vmatmul.mubr.f32.gmra.mrb[0].mxu0 %v2365
      %v2435 = vpop.f32.mrb[0].mxu0
      %v2436 = vadd.f32 %v2126, %v2435
      %v2437 = vpop.f32.mrb[0].mxu0
      %2438 = vdwg.mxu0
      %2439 = vrot.lane.b32.xlu0 %v791, 120
      %v2440 = vpop.permute.xlu0 %2439
      %2441 = vrot.lane.b32.xlu0 %v761, 88
      %v2442 = vpop.permute.xlu0 %2441
      %v2443 = vsel %vm799, %v2440, 0
      %v2445 = vsel %vm799, %v2442, 0
      %2447 = vmatprep.subr.mxu0 0.0
      %2448 = vmatpush1.xpose.msra.mxu0 %v2445
      %2449 = vmatprep.subr.mxu0 0.0
      %2450 = vmatpush1.xpose.msra.mxu0 0.0
      %2451 = vmatprep.subr.mxu0 0.0
      %2452 = vmatpush1.xpose.msra.mxu0 0.0
      %2453 = vmatprep.subr.mxu0 0.0
      %2454 = vmatpush1.xpose.msra.mxu0 0.0
      %2455 = vmatprep.subr.mxu0 0.0
      %2456 = vmatpush1.xpose.msra.mxu0 0.0
      %2457 = vmatprep.subr.mxu0 0.0
      %2458 = vmatpush1.xpose.msra.mxu0 0.0
      %2459 = vmatprep.subr.mxu0 0.0
      %2460 = vmatpush1.xpose.msra.mxu0 0.0
      %2461 = vmatprep.subr.mxu0 0.0
      %2462 = vmatpush1.xpose.msra.mxu0 0.0
      %2463 = vmatprep.subr.mxu0 0.0
      %2464 = vmatpush1.xpose.msra.mxu0 0.0
      %2465 = vmatprep.subr.mxu0 0.0
      %2466 = vmatpush1.xpose.msra.mxu0 0.0
      %2467 = vmatprep.subr.mxu0 0.0
      %2468 = vmatpush1.xpose.msra.mxu0 0.0
      %2469 = vmatprep.subr.mxu0 0.0
      %2470 = vmatpush1.xpose.msra.mxu0 0.0
      %2471 = vmatprep.subr.mxu0 0.0
      %2472 = vmatpush1.xpose.msra.mxu0 0.0
      %2473 = vmatprep.subr.mxu0 0.0
      %2474 = vmatpush1.xpose.msra.mxu0 0.0
      %2475 = vmatprep.subr.mxu0 0.0
      %2476 = vmatpush1.xpose.msra.mxu0 0.0
      %2477 = vmatprep.subr.mxu0 0.0
      %2478 = vmatpush1.xpose.msra.mxu0 0.0
      %2479 = vmatprep.subr.mxu0 0.0
      %2480 = vmatpush1.xpose.msra.mxu0 0.0
      %2481 = vmatprep.subr.mxu0 0.0
      %2482 = vmatpush1.xpose.msra.mxu0 0.0
      %2483 = vmatprep.subr.mxu0 0.0
      %2484 = vmatpush1.xpose.msra.mxu0 0.0
      %2485 = vmatprep.subr.mxu0 0.0
      %2486 = vmatpush1.xpose.msra.mxu0 0.0
      %2487 = vmatprep.subr.mxu0 0.0
      %2488 = vmatpush1.xpose.msra.mxu0 0.0
      %2489 = vmatprep.subr.mxu0 0.0
      %2490 = vmatpush1.xpose.msra.mxu0 0.0
      %2491 = vmatprep.subr.mxu0 0.0
      %2492 = vmatpush1.xpose.msra.mxu0 0.0
      %2493 = vmatprep.subr.mxu0 0.0
      %2494 = vmatpush1.xpose.msra.mxu0 0.0
      %2495 = vmatprep.subr.mxu0 0.0
      %2496 = vmatpush1.xpose.msra.mxu0 0.0
      %2497 = vmatprep.subr.mxu0 0.0
      %2498 = vmatpush1.xpose.msra.mxu0 0.0
      %2499 = vmatprep.subr.mxu0 0.0
      %2500 = vmatpush1.xpose.msra.mxu0 0.0
      %2501 = vmatprep.subr.mxu0 0.0
      %2502 = vmatpush1.xpose.msra.mxu0 0.0
      %2503 = vmatprep.subr.mxu0 0.0
      %2504 = vmatpush1.xpose.msra.mxu0 0.0
      %2505 = vmatprep.subr.mxu0 0.0
      %2506 = vmatpush1.xpose.msra.mxu0 0.0
      %2507 = vmatprep.subr.mxu0 0.0
      %2508 = vmatpush1.xpose.msra.mxu0 0.0
      %2509 = vmatprep.subr.mxu0 0.0
      %2510 = vmatpush1.xpose.msra.mxu0 0.0
      %2511 = vmatprep.mubr.f32.mxu0 0.0
      %2512 = vmatmul.mubr.f32.gmra.mrb[0].mxu0 %v2443
      %v2513 = vpop.f32.mrb[0].mxu0
      %v2514 = vadd.f32 %v2126, %v2513
      %v2515 = vpop.f32.mrb[0].mxu0
      %2516 = vdwg.mxu0
      %2517 = vrot.lane.b32.xlu0 %v792, 120
      %v2518 = vpop.permute.xlu0 %2517
      %2519 = vrot.lane.b32.xlu0 %v766, 88
      %v2520 = vpop.permute.xlu0 %2519
      %v2521 = vsel %vm799, %v2518, 0
      %v2523 = vsel %vm799, %v2520, 0
      %2525 = vmatprep.subr.mxu0 0.0
      %2526 = vmatpush1.xpose.msra.mxu0 %v2523
      %2527 = vmatprep.subr.mxu0 0.0
      %2528 = vmatpush1.xpose.msra.mxu0 0.0
      %2529 = vmatprep.subr.mxu0 0.0
      %2530 = vmatpush1.xpose.msra.mxu0 0.0
      %2531 = vmatprep.subr.mxu0 0.0
      %2532 = vmatpush1.xpose.msra.mxu0 0.0
      %2533 = vmatprep.subr.mxu0 0.0
      %2534 = vmatpush1.xpose.msra.mxu0 0.0
      %2535 = vmatprep.subr.mxu0 0.0
      %2536 = vmatpush1.xpose.msra.mxu0 0.0
      %2537 = vmatprep.subr.mxu0 0.0
      %2538 = vmatpush1.xpose.msra.mxu0 0.0
      %2539 = vmatprep.subr.mxu0 0.0
      %2540 = vmatpush1.xpose.msra.mxu0 0.0
      %2541 = vmatprep.subr.mxu0 0.0
      %2542 = vmatpush1.xpose.msra.mxu0 0.0
      %2543 = vmatprep.subr.mxu0 0.0
      %2544 = vmatpush1.xpose.msra.mxu0 0.0
      %2545 = vmatprep.subr.mxu0 0.0
      %2546 = vmatpush1.xpose.msra.mxu0 0.0
      %2547 = vmatprep.subr.mxu0 0.0
      %2548 = vmatpush1.xpose.msra.mxu0 0.0
      %2549 = vmatprep.subr.mxu0 0.0
      %2550 = vmatpush1.xpose.msra.mxu0 0.0
      %2551 = vmatprep.subr.mxu0 0.0
      %2552 = vmatpush1.xpose.msra.mxu0 0.0
      %2553 = vmatprep.subr.mxu0 0.0
      %2554 = vmatpush1.xpose.msra.mxu0 0.0
      %2555 = vmatprep.subr.mxu0 0.0
      %2556 = vmatpush1.xpose.msra.mxu0 0.0
      %2557 = vmatprep.subr.mxu0 0.0
      %2558 = vmatpush1.xpose.msra.mxu0 0.0
      %2559 = vmatprep.subr.mxu0 0.0
      %2560 = vmatpush1.xpose.msra.mxu0 0.0
      %2561 = vmatprep.subr.mxu0 0.0
      %2562 = vmatpush1.xpose.msra.mxu0 0.0
      %2563 = vmatprep.subr.mxu0 0.0
      %2564 = vmatpush1.xpose.msra.mxu0 0.0
      %2565 = vmatprep.subr.mxu0 0.0
      %2566 = vmatpush1.xpose.msra.mxu0 0.0
      %2567 = vmatprep.subr.mxu0 0.0
      %2568 = vmatpush1.xpose.msra.mxu0 0.0
      %2569 = vmatprep.subr.mxu0 0.0
      %2570 = vmatpush1.xpose.msra.mxu0 0.0
      %2571 = vmatprep.subr.mxu0 0.0
      %2572 = vmatpush1.xpose.msra.mxu0 0.0
      %2573 = vmatprep.subr.mxu0 0.0
      %2574 = vmatpush1.xpose.msra.mxu0 0.0
      %2575 = vmatprep.subr.mxu0 0.0
      %2576 = vmatpush1.xpose.msra.mxu0 0.0
      %2577 = vmatprep.subr.mxu0 0.0
      %2578 = vmatpush1.xpose.msra.mxu0 0.0
      %2579 = vmatprep.subr.mxu0 0.0
      %2580 = vmatpush1.xpose.msra.mxu0 0.0
      %2581 = vmatprep.subr.mxu0 0.0
      %2582 = vmatpush1.xpose.msra.mxu0 0.0
      %2583 = vmatprep.subr.mxu0 0.0
      %2584 = vmatpush1.xpose.msra.mxu0 0.0
      %2585 = vmatprep.subr.mxu0 0.0
      %2586 = vmatpush1.xpose.msra.mxu0 0.0
      %2587 = vmatprep.subr.mxu0 0.0
      %2588 = vmatpush1.xpose.msra.mxu0 0.0
      %2589 = vmatprep.mubr.f32.mxu0 0.0
      %2590 = vmatmul.mubr.f32.gmra.mrb[0].mxu0 %v2521
      %v2591 = vpop.f32.mrb[0].mxu0
      %v2592 = vadd.f32 %v2126, %v2591
      %v2593 = vpop.f32.mrb[0].mxu0
      %2594 = vdwg.mxu0
      %2595 = vrot.lane.b32.xlu0 %v793, 120
      %v2596 = vpop.permute.xlu0 %2595
      %2597 = vrot.lane.b32.xlu0 %v771, 88
      %v2598 = vpop.permute.xlu0 %2597
      %v2599 = vsel %vm799, %v2596, 0
      %v2601 = vsel %vm799, %v2598, 0
      %2603 = vmatprep.subr.mxu0 0.0
      %2604 = vmatpush1.xpose.msra.mxu0 %v2601
      %2605 = vmatprep.subr.mxu0 0.0
      %2606 = vmatpush1.xpose.msra.mxu0 0.0
      %2607 = vmatprep.subr.mxu0 0.0
      %2608 = vmatpush1.xpose.msra.mxu0 0.0
      %2609 = vmatprep.subr.mxu0 0.0
      %2610 = vmatpush1.xpose.msra.mxu0 0.0
      %2611 = vmatprep.subr.mxu0 0.0
      %2612 = vmatpush1.xpose.msra.mxu0 0.0
      %2613 = vmatprep.subr.mxu0 0.0
      %2614 = vmatpush1.xpose.msra.mxu0 0.0
      %2615 = vmatprep.subr.mxu0 0.0
      %2616 = vmatpush1.xpose.msra.mxu0 0.0
      %2617 = vmatprep.subr.mxu0 0.0
      %2618 = vmatpush1.xpose.msra.mxu0 0.0
      %2619 = vmatprep.subr.mxu0 0.0
      %2620 = vmatpush1.xpose.msra.mxu0 0.0
      %2621 = vmatprep.subr.mxu0 0.0
      %2622 = vmatpush1.xpose.msra.mxu0 0.0
      %2623 = vmatprep.subr.mxu0 0.0
      %2624 = vmatpush1.xpose.msra.mxu0 0.0
      %2625 = vmatprep.subr.mxu0 0.0
      %2626 = vmatpush1.xpose.msra.mxu0 0.0
      %2627 = vmatprep.subr.mxu0 0.0
      %2628 = vmatpush1.xpose.msra.mxu0 0.0
      %2629 = vmatprep.subr.mxu0 0.0
      %2630 = vmatpush1.xpose.msra.mxu0 0.0
      %2631 = vmatprep.subr.mxu0 0.0
      %2632 = vmatpush1.xpose.msra.mxu0 0.0
      %2633 = vmatprep.subr.mxu0 0.0
      %2634 = vmatpush1.xpose.msra.mxu0 0.0
      %2635 = vmatprep.subr.mxu0 0.0
      %2636 = vmatpush1.xpose.msra.mxu0 0.0
      %2637 = vmatprep.subr.mxu0 0.0
      %2638 = vmatpush1.xpose.msra.mxu0 0.0
      %2639 = vmatprep.subr.mxu0 0.0
      %2640 = vmatpush1.xpose.msra.mxu0 0.0
      %2641 = vmatprep.subr.mxu0 0.0
      %2642 = vmatpush1.xpose.msra.mxu0 0.0
      %2643 = vmatprep.subr.mxu0 0.0
      %2644 = vmatpush1.xpose.msra.mxu0 0.0
      %2645 = vmatprep.subr.mxu0 0.0
      %2646 = vmatpush1.xpose.msra.mxu0 0.0
      %2647 = vmatprep.subr.mxu0 0.0
      %2648 = vmatpush1.xpose.msra.mxu0 0.0
      %2649 = vmatprep.subr.mxu0 0.0
      %2650 = vmatpush1.xpose.msra.mxu0 0.0
      %2651 = vmatprep.subr.mxu0 0.0
      %2652 = vmatpush1.xpose.msra.mxu0 0.0
      %2653 = vmatprep.subr.mxu0 0.0
      %2654 = vmatpush1.xpose.msra.mxu0 0.0
      %2655 = vmatprep.subr.mxu0 0.0
      %2656 = vmatpush1.xpose.msra.mxu0 0.0
      %2657 = vmatprep.subr.mxu0 0.0
      %2658 = vmatpush1.xpose.msra.mxu0 0.0
      %2659 = vmatprep.subr.mxu0 0.0
      %2660 = vmatpush1.xpose.msra.mxu0 0.0
      %2661 = vmatprep.subr.mxu0 0.0
      %2662 = vmatpush1.xpose.msra.mxu0 0.0
      %2663 = vmatprep.subr.mxu0 0.0
      %2664 = vmatpush1.xpose.msra.mxu0 0.0
      %2665 = vmatprep.subr.mxu0 0.0
      %2666 = vmatpush1.xpose.msra.mxu0 0.0
      %2667 = vmatprep.mubr.f32.mxu0 0.0
      %2668 = vmatmul.mubr.f32.gmra.mrb[0].mxu0 %v2599
      %v2669 = vpop.f32.mrb[0].mxu0
      %v2670 = vadd.f32 %v2126, %v2669
      %v2671 = vpop.f32.mrb[0].mxu0
      %2672 = vdwg.mxu0
      %2673 = vrot.lane.b32.xlu0 %v794, 120
      %v2674 = vpop.permute.xlu0 %2673
      %2675 = vrot.lane.b32.xlu0 %v776, 88
      %v2676 = vpop.permute.xlu0 %2675
      %v2677 = vsel %vm799, %v2674, 0
      %v2679 = vsel %vm799, %v2676, 0
      %2681 = vmatprep.subr.mxu0 0.0
      %2682 = vmatpush1.xpose.msra.mxu0 %v2679
      %2683 = vmatprep.subr.mxu0 0.0
      %2684 = vmatpush1.xpose.msra.mxu0 0.0
      %2685 = vmatprep.subr.mxu0 0.0
      %2686 = vmatpush1.xpose.msra.mxu0 0.0
      %2687 = vmatprep.subr.mxu0 0.0
      %2688 = vmatpush1.xpose.msra.mxu0 0.0
      %2689 = vmatprep.subr.mxu0 0.0
      %2690 = vmatpush1.xpose.msra.mxu0 0.0
      %2691 = vmatprep.subr.mxu0 0.0
      %2692 = vmatpush1.xpose.msra.mxu0 0.0
      %2693 = vmatprep.subr.mxu0 0.0
      %2694 = vmatpush1.xpose.msra.mxu0 0.0
      %2695 = vmatprep.subr.mxu0 0.0
      %2696 = vmatpush1.xpose.msra.mxu0 0.0
      %2697 = vmatprep.subr.mxu0 0.0
      %2698 = vmatpush1.xpose.msra.mxu0 0.0
      %2699 = vmatprep.subr.mxu0 0.0
      %2700 = vmatpush1.xpose.msra.mxu0 0.0
      %2701 = vmatprep.subr.mxu0 0.0
      %2702 = vmatpush1.xpose.msra.mxu0 0.0
      %2703 = vmatprep.subr.mxu0 0.0
      %2704 = vmatpush1.xpose.msra.mxu0 0.0
      %2705 = vmatprep.subr.mxu0 0.0
      %2706 = vmatpush1.xpose.msra.mxu0 0.0
      %2707 = vmatprep.subr.mxu0 0.0
      %2708 = vmatpush1.xpose.msra.mxu0 0.0
      %2709 = vmatprep.subr.mxu0 0.0
      %2710 = vmatpush1.xpose.msra.mxu0 0.0
      %2711 = vmatprep.subr.mxu0 0.0
      %2712 = vmatpush1.xpose.msra.mxu0 0.0
      %2713 = vmatprep.subr.mxu0 0.0
      %2714 = vmatpush1.xpose.msra.mxu0 0.0
      %2715 = vmatprep.subr.mxu0 0.0
      %2716 = vmatpush1.xpose.msra.mxu0 0.0
      %2717 = vmatprep.subr.mxu0 0.0
      %2718 = vmatpush1.xpose.msra.mxu0 0.0
      %2719 = vmatprep.subr.mxu0 0.0
      %2720 = vmatpush1.xpose.msra.mxu0 0.0
      %2721 = vmatprep.subr.mxu0 0.0
      %2722 = vmatpush1.xpose.msra.mxu0 0.0
      %2723 = vmatprep.subr.mxu0 0.0
      %2724 = vmatpush1.xpose.msra.mxu0 0.0
      %2725 = vmatprep.subr.mxu0 0.0
      %2726 = vmatpush1.xpose.msra.mxu0 0.0
      %2727 = vmatprep.subr.mxu0 0.0
      %2728 = vmatpush1.xpose.msra.mxu0 0.0
      %2729 = vmatprep.subr.mxu0 0.0
      %2730 = vmatpush1.xpose.msra.mxu0 0.0
      %2731 = vmatprep.subr.mxu0 0.0
      %2732 = vmatpush1.xpose.msra.mxu0 0.0
      %2733 = vmatprep.subr.mxu0 0.0
      %2734 = vmatpush1.xpose.msra.mxu0 0.0
      %2735 = vmatprep.subr.mxu0 0.0
      %2736 = vmatpush1.xpose.msra.mxu0 0.0
      %2737 = vmatprep.subr.mxu0 0.0
      %2738 = vmatpush1.xpose.msra.mxu0 0.0
      %2739 = vmatprep.subr.mxu0 0.0
      %2740 = vmatpush1.xpose.msra.mxu0 0.0
      %2741 = vmatprep.subr.mxu0 0.0
      %2742 = vmatpush1.xpose.msra.mxu0 0.0
      %2743 = vmatprep.subr.mxu0 0.0
      %2744 = vmatpush1.xpose.msra.mxu0 0.0
      %2745 = vmatprep.mubr.f32.mxu0 0.0
      %2746 = vmatmul.mubr.f32.gmra.mrb[0].mxu0 %v2677
      %v2747 = vpop.f32.mrb[0].mxu0
      %v2748 = vadd.f32 %v2126, %v2747
      %v2749 = vpop.f32.mrb[0].mxu0
      %2750 = vdwg.mxu0
      %v2751 = vadd.f32 %v2202, %v779
      %v2752 = vadd.f32 %v2280, %v780
      %v2753 = vadd.f32 %v2358, %v781
      %v2754 = vadd.f32 %v2436, %v782
      %v2755 = vadd.f32 %v2514, %v783
      %v2756 = vadd.f32 %v2592, %v784
      %v2757 = vadd.f32 %v2670, %v785
      %v2758 = vadd.f32 %v2748, %v786
      %v2759 = vsel %vm799, %v2751, -inf
      %2760 = vmax.xlane.f32.xlu0 %v2759
      %v2761 = vpop.xlane.xlu0 %2760
      %v2762 = vsel %vm799, %v2752, -inf
      %2763 = vmax.xlane.f32.xlu0 %v2762
      %v2764 = vpop.xlane.xlu0 %2763
      %v2765 = vsel %vm799, %v2753, -inf
      %2766 = vmax.xlane.f32.xlu0 %v2765
      %v2767 = vpop.xlane.xlu0 %2766
      %v2768 = vsel %vm799, %v2754, -inf
      %2769 = vmax.xlane.f32.xlu0 %v2768
      %v2770 = vpop.xlane.xlu0 %2769
      %v2771 = vsel %vm799, %v2755, -inf
      %2772 = vmax.xlane.f32.xlu0 %v2771
      %v2773 = vpop.xlane.xlu0 %2772
      %v2774 = vsel %vm799, %v2756, -inf
      %2775 = vmax.xlane.f32.xlu0 %v2774
      %v2776 = vpop.xlane.xlu0 %2775
      %v2777 = vsel %vm799, %v2757, -inf
      %2778 = vmax.xlane.f32.xlu0 %v2777
      %v2779 = vpop.xlane.xlu0 %2778
      %v2780 = vsel %vm799, %v2758, -inf
      %2781 = vmax.xlane.f32.xlu0 %v2780
      %v2782 = vpop.xlane.xlu0 %2781
      %v2783 = vsub.f32 %v2751, %v2761
      %v2784 = vsub.f32 %v2752, %v2764
      %v2785 = vsub.f32 %v2753, %v2767
      %v2786 = vsub.f32 %v2754, %v2770
      %v2787 = vsub.f32 %v2755, %v2773
      %v2788 = vsub.f32 %v2756, %v2776
      %v2789 = vsub.f32 %v2757, %v2779
      %v2790 = vsub.f32 %v2758, %v2782
      %v2791 = vmul.f32 %v2783, 1.442695
      %v2792 = vpow.pop %v2791
      %v2793 = vmul.f32 %v2784, 1.442695
      %v2794 = vpow.pop %v2793
      %v2795 = vmul.f32 %v2785, 1.442695
      %v2796 = vpow.pop %v2795
      %v2797 = vmul.f32 %v2786, 1.442695
      %v2798 = vpow.pop %v2797
      %v2799 = vmul.f32 %v2787, 1.442695
      %v2800 = vpow.pop %v2799
      %v2801 = vmul.f32 %v2788, 1.442695
      %v2802 = vpow.pop %v2801
      %v2803 = vmul.f32 %v2789, 1.442695
      %v2804 = vpow.pop %v2803
      %v2805 = vmul.f32 %v2790, 1.442695
      %v2806 = vpow.pop %v2805
      %v2807 = vsel %vm799, %v2792, 0.0
      %2808 = vadd.xlane.f32.xlu0 %v2807
      %v2809 = vpop.xlane.xlu0 %2808
      %v2810 = vsel %vm799, %v2794, 0.0
      %2811 = vadd.xlane.f32.xlu0 %v2810
      %v2812 = vpop.xlane.xlu0 %2811
      %v2813 = vsel %vm799, %v2796, 0.0
      %2814 = vadd.xlane.f32.xlu0 %v2813
      %v2815 = vpop.xlane.xlu0 %2814
      %v2816 = vsel %vm799, %v2798, 0.0
      %2817 = vadd.xlane.f32.xlu0 %v2816
      %v2818 = vpop.xlane.xlu0 %2817
      %v2819 = vsel %vm799, %v2800, 0.0
      %2820 = vadd.xlane.f32.xlu0 %v2819
      %v2821 = vpop.xlane.xlu0 %2820
      %v2822 = vsel %vm799, %v2802, 0.0
      %2823 = vadd.xlane.f32.xlu0 %v2822
      %v2824 = vpop.xlane.xlu0 %2823
      %v2825 = vsel %vm799, %v2804, 0.0
      %2826 = vadd.xlane.f32.xlu0 %v2825
      %v2827 = vpop.xlane.xlu0 %2826
      %v2828 = vsel %vm799, %v2806, 0.0
      %2829 = vadd.xlane.f32.xlu0 %v2828
      %v2830 = vpop.xlane.xlu0 %2829
      %v2831 = vrcp.pop %v2809
      %v2832 = vrcp.pop %v2812
      %v2833 = vrcp.pop %v2815
      %v2834 = vrcp.pop %v2818
      %v2835 = vrcp.pop %v2821
      %v2836 = vrcp.pop %v2824
      %v2837 = vrcp.pop %v2827
      %v2838 = vrcp.pop %v2830
      %v2839 = vmul.f32 %v2792, %v2831
      %v2840 = vmul.f32 %v2794, %v2832
      %v2841 = vmul.f32 %v2796, %v2833
      %v2842 = vmul.f32 %v2798, %v2834
      %v2843 = vmul.f32 %v2800, %v2835
      %v2844 = vmul.f32 %v2802, %v2836
      %v2845 = vmul.f32 %v2804, %v2837
      %v2846 = vmul.f32 %v2806, %v2838
      %2847 = vrot.lane.b32.xlu0 %v741, 56
      %v2848 = vpop.permute.xlu0 %2847
      %v2851 = vsel %vm799, %v2839, 0
      %2853 = vmatprep.subr.mxu0 0.0
      %2854 = vmatpush1.msra.mxu0 %v2848
      %2855 = vmatprep.subr.mxu0 0.0
      %2856 = vmatpush1.msra.mxu0 0.0
      %2857 = vmatprep.subr.mxu0 0.0
      %2858 = vmatpush1.msra.mxu0 0.0
      %2859 = vmatprep.subr.mxu0 0.0
      %2860 = vmatpush1.msra.mxu0 0.0
      %2861 = vmatprep.subr.mxu0 0.0
      %2862 = vmatpush1.msra.mxu0 0.0
      %2863 = vmatprep.subr.mxu0 0.0
      %2864 = vmatpush1.msra.mxu0 0.0
      %2865 = vmatprep.subr.mxu0 0.0
      %2866 = vmatpush1.msra.mxu0 0.0
      %2867 = vmatprep.subr.mxu0 0.0
      %2868 = vmatpush1.msra.mxu0 0.0
      %2869 = vmatprep.subr.mxu0 0.0
      %2870 = vmatpush1.msra.mxu0 0.0
      %2871 = vmatprep.subr.mxu0 0.0
      %2872 = vmatpush1.msra.mxu0 0.0
      %2873 = vmatprep.subr.mxu0 0.0
      %2874 = vmatpush1.msra.mxu0 0.0
      %2875 = vmatprep.subr.mxu0 0.0
      %2876 = vmatpush1.msra.mxu0 0.0
      %2877 = vmatprep.subr.mxu0 0.0
      %2878 = vmatpush1.msra.mxu0 0.0
      %2879 = vmatprep.subr.mxu0 0.0
      %2880 = vmatpush1.msra.mxu0 0.0
      %2881 = vmatprep.subr.mxu0 0.0
      %2882 = vmatpush1.msra.mxu0 0.0
      %2883 = vmatprep.subr.mxu0 0.0
      %2884 = vmatpush1.msra.mxu0 0.0
      %2885 = vmatprep.subr.mxu0 0.0
      %2886 = vmatpush1.msra.mxu0 0.0
      %2887 = vmatprep.subr.mxu0 0.0
      %2888 = vmatpush1.msra.mxu0 0.0
      %2889 = vmatprep.subr.mxu0 0.0
      %2890 = vmatpush1.msra.mxu0 0.0
      %2891 = vmatprep.subr.mxu0 0.0
      %2892 = vmatpush1.msra.mxu0 0.0
      %2893 = vmatprep.subr.mxu0 0.0
      %2894 = vmatpush1.msra.mxu0 0.0
      %2895 = vmatprep.subr.mxu0 0.0
      %2896 = vmatpush1.msra.mxu0 0.0
      %2897 = vmatprep.subr.mxu0 0.0
      %2898 = vmatpush1.msra.mxu0 0.0
      %2899 = vmatprep.subr.mxu0 0.0
      %2900 = vmatpush1.msra.mxu0 0.0
      %2901 = vmatprep.subr.mxu0 0.0
      %2902 = vmatpush1.msra.mxu0 0.0
      %2903 = vmatprep.subr.mxu0 0.0
      %2904 = vmatpush1.msra.mxu0 0.0
      %2905 = vmatprep.subr.mxu0 0.0
      %2906 = vmatpush1.msra.mxu0 0.0
      %2907 = vmatprep.subr.mxu0 0.0
      %2908 = vmatpush1.msra.mxu0 0.0
      %2909 = vmatprep.subr.mxu0 0.0
      %2910 = vmatpush1.msra.mxu0 0.0
      %2911 = vmatprep.subr.mxu0 0.0
      %2912 = vmatpush1.msra.mxu0 0.0
      %2913 = vmatprep.subr.mxu0 0.0
      %2914 = vmatpush1.msra.mxu0 0.0
      %2915 = vmatprep.subr.mxu0 0.0
      %2916 = vmatpush1.msra.mxu0 0.0
      %2917 = vmatprep.mubr.f32.mxu0 0.0
      %2918 = vmatmul.mubr.f32.gmra.mrb[0].mxu0 %v2851
      %v2919 = vpop.f32.mrb[0].mxu0
      %v2920 = vadd.f32 0.0, %v2919
      %v2921 = vpop.f32.mrb[0].mxu0
      %2922 = vdwg.mxu0
      %2923 = vrot.lane.b32.xlu0 %v746, 56
      %v2924 = vpop.permute.xlu0 %2923
      %v2927 = vsel %vm799, %v2840, 0
      %2929 = vmatprep.subr.mxu0 0.0
      %2930 = vmatpush1.msra.mxu0 %v2924
      %2931 = vmatprep.subr.mxu0 0.0
      %2932 = vmatpush1.msra.mxu0 0.0
      %2933 = vmatprep.subr.mxu0 0.0
      %2934 = vmatpush1.msra.mxu0 0.0
      %2935 = vmatprep.subr.mxu0 0.0
      %2936 = vmatpush1.msra.mxu0 0.0
      %2937 = vmatprep.subr.mxu0 0.0
      %2938 = vmatpush1.msra.mxu0 0.0
      %2939 = vmatprep.subr.mxu0 0.0
      %2940 = vmatpush1.msra.mxu0 0.0
      %2941 = vmatprep.subr.mxu0 0.0
      %2942 = vmatpush1.msra.mxu0 0.0
      %2943 = vmatprep.subr.mxu0 0.0
      %2944 = vmatpush1.msra.mxu0 0.0
      %2945 = vmatprep.subr.mxu0 0.0
      %2946 = vmatpush1.msra.mxu0 0.0
      %2947 = vmatprep.subr.mxu0 0.0
      %2948 = vmatpush1.msra.mxu0 0.0
      %2949 = vmatprep.subr.mxu0 0.0
      %2950 = vmatpush1.msra.mxu0 0.0
      %2951 = vmatprep.subr.mxu0 0.0
      %2952 = vmatpush1.msra.mxu0 0.0
      %2953 = vmatprep.subr.mxu0 0.0
      %2954 = vmatpush1.msra.mxu0 0.0
      %2955 = vmatprep.subr.mxu0 0.0
      %2956 = vmatpush1.msra.mxu0 0.0
      %2957 = vmatprep.subr.mxu0 0.0
      %2958 = vmatpush1.msra.mxu0 0.0
      %2959 = vmatprep.subr.mxu0 0.0
      %2960 = vmatpush1.msra.mxu0 0.0
      %2961 = vmatprep.subr.mxu0 0.0
      %2962 = vmatpush1.msra.mxu0 0.0
      %2963 = vmatprep.subr.mxu0 0.0
      %2964 = vmatpush1.msra.mxu0 0.0
      %2965 = vmatprep.subr.mxu0 0.0
      %2966 = vmatpush1.msra.mxu0 0.0
      %2967 = vmatprep.subr.mxu0 0.0
      %2968 = vmatpush1.msra.mxu0 0.0
      %2969 = vmatprep.subr.mxu0 0.0
      %2970 = vmatpush1.msra.mxu0 0.0
      %2971 = vmatprep.subr.mxu0 0.0
      %2972 = vmatpush1.msra.mxu0 0.0
      %2973 = vmatprep.subr.mxu0 0.0
      %2974 = vmatpush1.msra.mxu0 0.0
      %2975 = vmatprep.subr.mxu0 0.0
      %2976 = vmatpush1.msra.mxu0 0.0
      %2977 = vmatprep.subr.mxu0 0.0
      %2978 = vmatpush1.msra.mxu0 0.0
      %2979 = vmatprep.subr.mxu0 0.0
      %2980 = vmatpush1.msra.mxu0 0.0
      %2981 = vmatprep.subr.mxu0 0.0
      %2982 = vmatpush1.msra.mxu0 0.0
      %2983 = vmatprep.subr.mxu0 0.0
      %2984 = vmatpush1.msra.mxu0 0.0
      %2985 = vmatprep.subr.mxu0 0.0
      %2986 = vmatpush1.msra.mxu0 0.0
      %2987 = vmatprep.subr.mxu0 0.0
      %2988 = vmatpush1.msra.mxu0 0.0
      %2989 = vmatprep.subr.mxu0 0.0
      %2990 = vmatpush1.msra.mxu0 0.0
      %2991 = vmatprep.subr.mxu0 0.0
      %2992 = vmatpush1.msra.mxu0 0.0
      %2993 = vmatprep.mubr.f32.mxu0 0.0
      %2994 = vmatmul.mubr.f32.gmra.mrb[0].mxu0 %v2927
      %v2995 = vpop.f32.mrb[0].mxu0
      %v2996 = vadd.f32 0.0, %v2995
      %v2997 = vpop.f32.mrb[0].mxu0
      %2998 = vdwg.mxu0
      %2999 = vrot.lane.b32.xlu0 %v751, 56
      %v3000 = vpop.permute.xlu0 %2999
      %v3003 = vsel %vm799, %v2841, 0
      %3005 = vmatprep.subr.mxu0 0.0
      %3006 = vmatpush1.msra.mxu0 %v3000
      %3007 = vmatprep.subr.mxu0 0.0
      %3008 = vmatpush1.msra.mxu0 0.0
      %3009 = vmatprep.subr.mxu0 0.0
      %3010 = vmatpush1.msra.mxu0 0.0
      %3011 = vmatprep.subr.mxu0 0.0
      %3012 = vmatpush1.msra.mxu0 0.0
      %3013 = vmatprep.subr.mxu0 0.0
      %3014 = vmatpush1.msra.mxu0 0.0
      %3015 = vmatprep.subr.mxu0 0.0
      %3016 = vmatpush1.msra.mxu0 0.0
      %3017 = vmatprep.subr.mxu0 0.0
      %3018 = vmatpush1.msra.mxu0 0.0
      %3019 = vmatprep.subr.mxu0 0.0
      %3020 = vmatpush1.msra.mxu0 0.0
      %3021 = vmatprep.subr.mxu0 0.0
      %3022 = vmatpush1.msra.mxu0 0.0
      %3023 = vmatprep.subr.mxu0 0.0
      %3024 = vmatpush1.msra.mxu0 0.0
      %3025 = vmatprep.subr.mxu0 0.0
      %3026 = vmatpush1.msra.mxu0 0.0
      %3027 = vmatprep.subr.mxu0 0.0
      %3028 = vmatpush1.msra.mxu0 0.0
      %3029 = vmatprep.subr.mxu0 0.0
      %3030 = vmatpush1.msra.mxu0 0.0
      %3031 = vmatprep.subr.mxu0 0.0
      %3032 = vmatpush1.msra.mxu0 0.0
      %3033 = vmatprep.subr.mxu0 0.0
      %3034 = vmatpush1.msra.mxu0 0.0
      %3035 = vmatprep.subr.mxu0 0.0
      %3036 = vmatpush1.msra.mxu0 0.0
      %3037 = vmatprep.subr.mxu0 0.0
      %3038 = vmatpush1.msra.mxu0 0.0
      %3039 = vmatprep.subr.mxu0 0.0
      %3040 = vmatpush1.msra.mxu0 0.0
      %3041 = vmatprep.subr.mxu0 0.0
      %3042 = vmatpush1.msra.mxu0 0.0
      %3043 = vmatprep.subr.mxu0 0.0
      %3044 = vmatpush1.msra.mxu0 0.0
      %3045 = vmatprep.subr.mxu0 0.0
      %3046 = vmatpush1.msra.mxu0 0.0
      %3047 = vmatprep.subr.mxu0 0.0
      %3048 = vmatpush1.msra.mxu0 0.0
      %3049 = vmatprep.subr.mxu0 0.0
      %3050 = vmatpush1.msra.mxu0 0.0
      %3051 = vmatprep.subr.mxu0 0.0
      %3052 = vmatpush1.msra.mxu0 0.0
      %3053 = vmatprep.subr.mxu0 0.0
      %3054 = vmatpush1.msra.mxu0 0.0
      %3055 = vmatprep.subr.mxu0 0.0
      %3056 = vmatpush1.msra.mxu0 0.0
      %3057 = vmatprep.subr.mxu0 0.0
      %3058 = vmatpush1.msra.mxu0 0.0
      %3059 = vmatprep.subr.mxu0 0.0
      %3060 = vmatpush1.msra.mxu0 0.0
      %3061 = vmatprep.subr.mxu0 0.0
      %3062 = vmatpush1.msra.mxu0 0.0
      %3063 = vmatprep.subr.mxu0 0.0
      %3064 = vmatpush1.msra.mxu0 0.0
      %3065 = vmatprep.subr.mxu0 0.0
      %3066 = vmatpush1.msra.mxu0 0.0
      %3067 = vmatprep.subr.mxu0 0.0
      %3068 = vmatpush1.msra.mxu0 0.0
      %3069 = vmatprep.mubr.f32.mxu0 0.0
      %3070 = vmatmul.mubr.f32.gmra.mrb[0].mxu0 %v3003
      %v3071 = vpop.f32.mrb[0].mxu0
      %v3072 = vadd.f32 0.0, %v3071
      %v3073 = vpop.f32.mrb[0].mxu0
      %3074 = vdwg.mxu0
      %3075 = vrot.lane.b32.xlu0 %v756, 56
      %v3076 = vpop.permute.xlu0 %3075
      %v3079 = vsel %vm799, %v2842, 0
      %3081 = vmatprep.subr.mxu0 0.0
      %3082 = vmatpush1.msra.mxu0 %v3076
      %3083 = vmatprep.subr.mxu0 0.0
      %3084 = vmatpush1.msra.mxu0 0.0
      %3085 = vmatprep.subr.mxu0 0.0
      %3086 = vmatpush1.msra.mxu0 0.0
      %3087 = vmatprep.subr.mxu0 0.0
      %3088 = vmatpush1.msra.mxu0 0.0
      %3089 = vmatprep.subr.mxu0 0.0
      %3090 = vmatpush1.msra.mxu0 0.0
      %3091 = vmatprep.subr.mxu0 0.0
      %3092 = vmatpush1.msra.mxu0 0.0
      %3093 = vmatprep.subr.mxu0 0.0
      %3094 = vmatpush1.msra.mxu0 0.0
      %3095 = vmatprep.subr.mxu0 0.0
      %3096 = vmatpush1.msra.mxu0 0.0
      %3097 = vmatprep.subr.mxu0 0.0
      %3098 = vmatpush1.msra.mxu0 0.0
      %3099 = vmatprep.subr.mxu0 0.0
      %3100 = vmatpush1.msra.mxu0 0.0
      %3101 = vmatprep.subr.mxu0 0.0
      %3102 = vmatpush1.msra.mxu0 0.0
      %3103 = vmatprep.subr.mxu0 0.0
      %3104 = vmatpush1.msra.mxu0 0.0
      %3105 = vmatprep.subr.mxu0 0.0
      %3106 = vmatpush1.msra.mxu0 0.0
      %3107 = vmatprep.subr.mxu0 0.0
      %3108 = vmatpush1.msra.mxu0 0.0
      %3109 = vmatprep.subr.mxu0 0.0
      %3110 = vmatpush1.msra.mxu0 0.0
      %3111 = vmatprep.subr.mxu0 0.0
      %3112 = vmatpush1.msra.mxu0 0.0
      %3113 = vmatprep.subr.mxu0 0.0
      %3114 = vmatpush1.msra.mxu0 0.0
      %3115 = vmatprep.subr.mxu0 0.0
      %3116 = vmatpush1.msra.mxu0 0.0
      %3117 = vmatprep.subr.mxu0 0.0
      %3118 = vmatpush1.msra.mxu0 0.0
      %3119 = vmatprep.subr.mxu0 0.0
      %3120 = vmatpush1.msra.mxu0 0.0
      %3121 = vmatprep.subr.mxu0 0.0
      %3122 = vmatpush1.msra.mxu0 0.0
      %3123 = vmatprep.subr.mxu0 0.0
      %3124 = vmatpush1.msra.mxu0 0.0
      %3125 = vmatprep.subr.mxu0 0.0
      %3126 = vmatpush1.msra.mxu0 0.0
      %3127 = vmatprep.subr.mxu0 0.0
      %3128 = vmatpush1.msra.mxu0 0.0
      %3129 = vmatprep.subr.mxu0 0.0
      %3130 = vmatpush1.msra.mxu0 0.0
      %3131 = vmatprep.subr.mxu0 0.0
      %3132 = vmatpush1.msra.mxu0 0.0
      %3133 = vmatprep.subr.mxu0 0.0
      %3134 = vmatpush1.msra.mxu0 0.0
      %3135 = vmatprep.subr.mxu0 0.0
      %3136 = vmatpush1.msra.mxu0 0.0
      %3137 = vmatprep.subr.mxu0 0.0
      %3138 = vmatpush1.msra.mxu0 0.0
      %3139 = vmatprep.subr.mxu0 0.0
      %3140 = vmatpush1.msra.mxu0 0.0
      %3141 = vmatprep.subr.mxu0 0.0
      %3142 = vmatpush1.msra.mxu0 0.0
      %3143 = vmatprep.subr.mxu0 0.0
      %3144 = vmatpush1.msra.mxu0 0.0
      %3145 = vmatprep.mubr.f32.mxu0 0.0
      %3146 = vmatmul.mubr.f32.gmra.mrb[0].mxu0 %v3079
      %v3147 = vpop.f32.mrb[0].mxu0
      %v3148 = vadd.f32 0.0, %v3147
      %v3149 = vpop.f32.mrb[0].mxu0
      %3150 = vdwg.mxu0
      %3151 = vrot.lane.b32.xlu0 %v761, 56
      %v3152 = vpop.permute.xlu0 %3151
      %v3155 = vsel %vm799, %v2843, 0
      %3157 = vmatprep.subr.mxu0 0.0
      %3158 = vmatpush1.msra.mxu0 %v3152
      %3159 = vmatprep.subr.mxu0 0.0
      %3160 = vmatpush1.msra.mxu0 0.0
      %3161 = vmatprep.subr.mxu0 0.0
      %3162 = vmatpush1.msra.mxu0 0.0
      %3163 = vmatprep.subr.mxu0 0.0
      %3164 = vmatpush1.msra.mxu0 0.0
      %3165 = vmatprep.subr.mxu0 0.0
      %3166 = vmatpush1.msra.mxu0 0.0
      %3167 = vmatprep.subr.mxu0 0.0
      %3168 = vmatpush1.msra.mxu0 0.0
      %3169 = vmatprep.subr.mxu0 0.0
      %3170 = vmatpush1.msra.mxu0 0.0
      %3171 = vmatprep.subr.mxu0 0.0
      %3172 = vmatpush1.msra.mxu0 0.0
      %3173 = vmatprep.subr.mxu0 0.0
      %3174 = vmatpush1.msra.mxu0 0.0
      %3175 = vmatprep.subr.mxu0 0.0
      %3176 = vmatpush1.msra.mxu0 0.0
      %3177 = vmatprep.subr.mxu0 0.0
      %3178 = vmatpush1.msra.mxu0 0.0
      %3179 = vmatprep.subr.mxu0 0.0
      %3180 = vmatpush1.msra.mxu0 0.0
      %3181 = vmatprep.subr.mxu0 0.0
      %3182 = vmatpush1.msra.mxu0 0.0
      %3183 = vmatprep.subr.mxu0 0.0
      %3184 = vmatpush1.msra.mxu0 0.0
      %3185 = vmatprep.subr.mxu0 0.0
      %3186 = vmatpush1.msra.mxu0 0.0
      %3187 = vmatprep.subr.mxu0 0.0
      %3188 = vmatpush1.msra.mxu0 0.0
      %3189 = vmatprep.subr.mxu0 0.0
      %3190 = vmatpush1.msra.mxu0 0.0
      %3191 = vmatprep.subr.mxu0 0.0
      %3192 = vmatpush1.msra.mxu0 0.0
      %3193 = vmatprep.subr.mxu0 0.0
      %3194 = vmatpush1.msra.mxu0 0.0
      %3195 = vmatprep.subr.mxu0 0.0
      %3196 = vmatpush1.msra.mxu0 0.0
      %3197 = vmatprep.subr.mxu0 0.0
      %3198 = vmatpush1.msra.mxu0 0.0
      %3199 = vmatprep.subr.mxu0 0.0
      %3200 = vmatpush1.msra.mxu0 0.0
      %3201 = vmatprep.subr.mxu0 0.0
      %3202 = vmatpush1.msra.mxu0 0.0
      %3203 = vmatprep.subr.mxu0 0.0
      %3204 = vmatpush1.msra.mxu0 0.0
      %3205 = vmatprep.subr.mxu0 0.0
      %3206 = vmatpush1.msra.mxu0 0.0
      %3207 = vmatprep.subr.mxu0 0.0
      %3208 = vmatpush1.msra.mxu0 0.0
      %3209 = vmatprep.subr.mxu0 0.0
      %3210 = vmatpush1.msra.mxu0 0.0
      %3211 = vmatprep.subr.mxu0 0.0
      %3212 = vmatpush1.msra.mxu0 0.0
      %3213 = vmatprep.subr.mxu0 0.0
      %3214 = vmatpush1.msra.mxu0 0.0
      %3215 = vmatprep.subr.mxu0 0.0
      %3216 = vmatpush1.msra.mxu0 0.0
      %3217 = vmatprep.subr.mxu0 0.0
      %3218 = vmatpush1.msra.mxu0 0.0
      %3219 = vmatprep.subr.mxu0 0.0
      %3220 = vmatpush1.msra.mxu0 0.0
      %3221 = vmatprep.mubr.f32.mxu0 0.0
      %3222 = vmatmul.mubr.f32.gmra.mrb[0].mxu0 %v3155
      %v3223 = vpop.f32.mrb[0].mxu0
      %v3224 = vadd.f32 0.0, %v3223
      %v3225 = vpop.f32.mrb[0].mxu0
      %3226 = vdwg.mxu0
      %3227 = vrot.lane.b32.xlu0 %v766, 56
      %v3228 = vpop.permute.xlu0 %3227
      %v3231 = vsel %vm799, %v2844, 0
      %3233 = vmatprep.subr.mxu0 0.0
      %3234 = vmatpush1.msra.mxu0 %v3228
      %3235 = vmatprep.subr.mxu0 0.0
      %3236 = vmatpush1.msra.mxu0 0.0
      %3237 = vmatprep.subr.mxu0 0.0
      %3238 = vmatpush1.msra.mxu0 0.0
      %3239 = vmatprep.subr.mxu0 0.0
      %3240 = vmatpush1.msra.mxu0 0.0
      %3241 = vmatprep.subr.mxu0 0.0
      %3242 = vmatpush1.msra.mxu0 0.0
      %3243 = vmatprep.subr.mxu0 0.0
      %3244 = vmatpush1.msra.mxu0 0.0
      %3245 = vmatprep.subr.mxu0 0.0
      %3246 = vmatpush1.msra.mxu0 0.0
      %3247 = vmatprep.subr.mxu0 0.0
      %3248 = vmatpush1.msra.mxu0 0.0
      %3249 = vmatprep.subr.mxu0 0.0
      %3250 = vmatpush1.msra.mxu0 0.0
      %3251 = vmatprep.subr.mxu0 0.0
      %3252 = vmatpush1.msra.mxu0 0.0
      %3253 = vmatprep.subr.mxu0 0.0
      %3254 = vmatpush1.msra.mxu0 0.0
      %3255 = vmatprep.subr.mxu0 0.0
      %3256 = vmatpush1.msra.mxu0 0.0
      %3257 = vmatprep.subr.mxu0 0.0
      %3258 = vmatpush1.msra.mxu0 0.0
      %3259 = vmatprep.subr.mxu0 0.0
      %3260 = vmatpush1.msra.mxu0 0.0
      %3261 = vmatprep.subr.mxu0 0.0
      %3262 = vmatpush1.msra.mxu0 0.0
      %3263 = vmatprep.subr.mxu0 0.0
      %3264 = vmatpush1.msra.mxu0 0.0
      %3265 = vmatprep.subr.mxu0 0.0
      %3266 = vmatpush1.msra.mxu0 0.0
      %3267 = vmatprep.subr.mxu0 0.0
      %3268 = vmatpush1.msra.mxu0 0.0
      %3269 = vmatprep.subr.mxu0 0.0
      %3270 = vmatpush1.msra.mxu0 0.0
      %3271 = vmatprep.subr.mxu0 0.0
      %3272 = vmatpush1.msra.mxu0 0.0
      %3273 = vmatprep.subr.mxu0 0.0
      %3274 = vmatpush1.msra.mxu0 0.0
      %3275 = vmatprep.subr.mxu0 0.0
      %3276 = vmatpush1.msra.mxu0 0.0
      %3277 = vmatprep.subr.mxu0 0.0
      %3278 = vmatpush1.msra.mxu0 0.0
      %3279 = vmatprep.subr.mxu0 0.0
      %3280 = vmatpush1.msra.mxu0 0.0
      %3281 = vmatprep.subr.mxu0 0.0
      %3282 = vmatpush1.msra.mxu0 0.0
      %3283 = vmatprep.subr.mxu0 0.0
      %3284 = vmatpush1.msra.mxu0 0.0
      %3285 = vmatprep.subr.mxu0 0.0
      %3286 = vmatpush1.msra.mxu0 0.0
      %3287 = vmatprep.subr.mxu0 0.0
      %3288 = vmatpush1.msra.mxu0 0.0
      %3289 = vmatprep.subr.mxu0 0.0
      %3290 = vmatpush1.msra.mxu0 0.0
      %3291 = vmatprep.subr.mxu0 0.0
      %3292 = vmatpush1.msra.mxu0 0.0
      %3293 = vmatprep.subr.mxu0 0.0
      %3294 = vmatpush1.msra.mxu0 0.0
      %3295 = vmatprep.subr.mxu0 0.0
      %3296 = vmatpush1.msra.mxu0 0.0
      %3297 = vmatprep.mubr.f32.mxu0 0.0
      %3298 = vmatmul.mubr.f32.gmra.mrb[0].mxu0 %v3231
      %v3299 = vpop.f32.mrb[0].mxu0
      %v3300 = vadd.f32 0.0, %v3299
      %v3301 = vpop.f32.mrb[0].mxu0
      %3302 = vdwg.mxu0
      %3303 = vrot.lane.b32.xlu0 %v771, 56
      %v3304 = vpop.permute.xlu0 %3303
      %v3307 = vsel %vm799, %v2845, 0
      %3309 = vmatprep.subr.mxu0 0.0
      %3310 = vmatpush1.msra.mxu0 %v3304
      %3311 = vmatprep.subr.mxu0 0.0
      %3312 = vmatpush1.msra.mxu0 0.0
      %3313 = vmatprep.subr.mxu0 0.0
      %3314 = vmatpush1.msra.mxu0 0.0
      %3315 = vmatprep.subr.mxu0 0.0
      %3316 = vmatpush1.msra.mxu0 0.0
      %3317 = vmatprep.subr.mxu0 0.0
      %3318 = vmatpush1.msra.mxu0 0.0
      %3319 = vmatprep.subr.mxu0 0.0
      %3320 = vmatpush1.msra.mxu0 0.0
      %3321 = vmatprep.subr.mxu0 0.0
      %3322 = vmatpush1.msra.mxu0 0.0
      %3323 = vmatprep.subr.mxu0 0.0
      %3324 = vmatpush1.msra.mxu0 0.0
      %3325 = vmatprep.subr.mxu0 0.0
      %3326 = vmatpush1.msra.mxu0 0.0
      %3327 = vmatprep.subr.mxu0 0.0
      %3328 = vmatpush1.msra.mxu0 0.0
      %3329 = vmatprep.subr.mxu0 0.0
      %3330 = vmatpush1.msra.mxu0 0.0
      %3331 = vmatprep.subr.mxu0 0.0
      %3332 = vmatpush1.msra.mxu0 0.0
      %3333 = vmatprep.subr.mxu0 0.0
      %3334 = vmatpush1.msra.mxu0 0.0
      %3335 = vmatprep.subr.mxu0 0.0
      %3336 = vmatpush1.msra.mxu0 0.0
      %3337 = vmatprep.subr.mxu0 0.0
      %3338 = vmatpush1.msra.mxu0 0.0
      %3339 = vmatprep.subr.mxu0 0.0
      %3340 = vmatpush1.msra.mxu0 0.0
      %3341 = vmatprep.subr.mxu0 0.0
      %3342 = vmatpush1.msra.mxu0 0.0
      %3343 = vmatprep.subr.mxu0 0.0
      %3344 = vmatpush1.msra.mxu0 0.0
      %3345 = vmatprep.subr.mxu0 0.0
      %3346 = vmatpush1.msra.mxu0 0.0
      %3347 = vmatprep.subr.mxu0 0.0
      %3348 = vmatpush1.msra.mxu0 0.0
      %3349 = vmatprep.subr.mxu0 0.0
      %3350 = vmatpush1.msra.mxu0 0.0
      %3351 = vmatprep.subr.mxu0 0.0
      %3352 = vmatpush1.msra.mxu0 0.0
      %3353 = vmatprep.subr.mxu0 0.0
      %3354 = vmatpush1.msra.mxu0 0.0
      %3355 = vmatprep.subr.mxu0 0.0
      %3356 = vmatpush1.msra.mxu0 0.0
      %3357 = vmatprep.subr.mxu0 0.0
      %3358 = vmatpush1.msra.mxu0 0.0
      %3359 = vmatprep.subr.mxu0 0.0
      %3360 = vmatpush1.msra.mxu0 0.0
      %3361 = vmatprep.subr.mxu0 0.0
      %3362 = vmatpush1.msra.mxu0 0.0
      %3363 = vmatprep.subr.mxu0 0.0
      %3364 = vmatpush1.msra.mxu0 0.0
      %3365 = vmatprep.subr.mxu0 0.0
      %3366 = vmatpush1.msra.mxu0 0.0
      %3367 = vmatprep.subr.mxu0 0.0
      %3368 = vmatpush1.msra.mxu0 0.0
      %3369 = vmatprep.subr.mxu0 0.0
      %3370 = vmatpush1.msra.mxu0 0.0
      %3371 = vmatprep.subr.mxu0 0.0
      %3372 = vmatpush1.msra.mxu0 0.0
      %3373 = vmatprep.mubr.f32.mxu0 0.0
      %3374 = vmatmul.mubr.f32.gmra.mrb[0].mxu0 %v3307
      %v3375 = vpop.f32.mrb[0].mxu0
      %v3376 = vadd.f32 0.0, %v3375
      %v3377 = vpop.f32.mrb[0].mxu0
      %3378 = vdwg.mxu0
      %3379 = vrot.lane.b32.xlu0 %v776, 56
      %v3380 = vpop.permute.xlu0 %3379
      %v3383 = vsel %vm799, %v2846, 0
      %3385 = vmatprep.subr.mxu0 0.0
      %3386 = vmatpush1.msra.mxu0 %v3380
      %3387 = vmatprep.subr.mxu0 0.0
      %3388 = vmatpush1.msra.mxu0 0.0
      %3389 = vmatprep.subr.mxu0 0.0
      %3390 = vmatpush1.msra.mxu0 0.0
      %3391 = vmatprep.subr.mxu0 0.0
      %3392 = vmatpush1.msra.mxu0 0.0
      %3393 = vmatprep.subr.mxu0 0.0
      %3394 = vmatpush1.msra.mxu0 0.0
      %3395 = vmatprep.subr.mxu0 0.0
      %3396 = vmatpush1.msra.mxu0 0.0
      %3397 = vmatprep.subr.mxu0 0.0
      %3398 = vmatpush1.msra.mxu0 0.0
      %3399 = vmatprep.subr.mxu0 0.0
      %3400 = vmatpush1.msra.mxu0 0.0
      %3401 = vmatprep.subr.mxu0 0.0
      %3402 = vmatpush1.msra.mxu0 0.0
      %3403 = vmatprep.subr.mxu0 0.0
      %3404 = vmatpush1.msra.mxu0 0.0
      %3405 = vmatprep.subr.mxu0 0.0
      %3406 = vmatpush1.msra.mxu0 0.0
      %3407 = vmatprep.subr.mxu0 0.0
      %3408 = vmatpush1.msra.mxu0 0.0
      %3409 = vmatprep.subr.mxu0 0.0
      %3410 = vmatpush1.msra.mxu0 0.0
      %3411 = vmatprep.subr.mxu0 0.0
      %3412 = vmatpush1.msra.mxu0 0.0
      %3413 = vmatprep.subr.mxu0 0.0
      %3414 = vmatpush1.msra.mxu0 0.0
      %3415 = vmatprep.subr.mxu0 0.0
      %3416 = vmatpush1.msra.mxu0 0.0
      %3417 = vmatprep.subr.mxu0 0.0
      %3418 = vmatpush1.msra.mxu0 0.0
      %3419 = vmatprep.subr.mxu0 0.0
      %3420 = vmatpush1.msra.mxu0 0.0
      %3421 = vmatprep.subr.mxu0 0.0
      %3422 = vmatpush1.msra.mxu0 0.0
      %3423 = vmatprep.subr.mxu0 0.0
      %3424 = vmatpush1.msra.mxu0 0.0
      %3425 = vmatprep.subr.mxu0 0.0
      %3426 = vmatpush1.msra.mxu0 0.0
      %3427 = vmatprep.subr.mxu0 0.0
      %3428 = vmatpush1.msra.mxu0 0.0
      %3429 = vmatprep.subr.mxu0 0.0
      %3430 = vmatpush1.msra.mxu0 0.0
      %3431 = vmatprep.subr.mxu0 0.0
      %3432 = vmatpush1.msra.mxu0 0.0
      %3433 = vmatprep.subr.mxu0 0.0
      %3434 = vmatpush1.msra.mxu0 0.0
      %3435 = vmatprep.subr.mxu0 0.0
      %3436 = vmatpush1.msra.mxu0 0.0
      %3437 = vmatprep.subr.mxu0 0.0
      %3438 = vmatpush1.msra.mxu0 0.0
      %3439 = vmatprep.subr.mxu0 0.0
      %3440 = vmatpush1.msra.mxu0 0.0
      %3441 = vmatprep.subr.mxu0 0.0
      %3442 = vmatpush1.msra.mxu0 0.0
      %3443 = vmatprep.subr.mxu0 0.0
      %3444 = vmatpush1.msra.mxu0 0.0
      %3445 = vmatprep.subr.mxu0 0.0
      %3446 = vmatpush1.msra.mxu0 0.0
      %3447 = vmatprep.subr.mxu0 0.0
      %3448 = vmatpush1.msra.mxu0 0.0
      %3449 = vmatprep.mubr.f32.mxu0 0.0
      %3450 = vmatmul.mubr.f32.gmra.mrb[0].mxu0 %v3383
      %v3451 = vpop.f32.mrb[0].mxu0
      %v3452 = vadd.f32 0.0, %v3451
      %v3453 = vpop.f32.mrb[0].mxu0
      %3454 = vdwg.mxu0
      %s3455 = scalar_lea.vmem %s2, 16
      %v3456 = vld [vmem:[%s3455] sm:$0xff]
      %3457 = vrot.lane.b32.xlu0 %v787, 112
      %v3458 = vpop.permute.xlu0 %3457
      %3459 = vrot.lane.b32.xlu0 %v741, 80
      %v3460 = vpop.permute.xlu0 %3459
      %v3461 = vsel %vm799, %v3458, 0
      %v3463 = vsel %vm799, %v3460, 0
      %3465 = vmatprep.subr.mxu0 0.0
      %3466 = vmatpush1.xpose.msra.mxu0 %v3463
      %3467 = vmatprep.subr.mxu0 0.0
      %3468 = vmatpush1.xpose.msra.mxu0 0.0
      %3469 = vmatprep.subr.mxu0 0.0
      %3470 = vmatpush1.xpose.msra.mxu0 0.0
      %3471 = vmatprep.subr.mxu0 0.0
      %3472 = vmatpush1.xpose.msra.mxu0 0.0
      %3473 = vmatprep.subr.mxu0 0.0
      %3474 = vmatpush1.xpose.msra.mxu0 0.0
      %3475 = vmatprep.subr.mxu0 0.0
      %3476 = vmatpush1.xpose.msra.mxu0 0.0
      %3477 = vmatprep.subr.mxu0 0.0
      %3478 = vmatpush1.xpose.msra.mxu0 0.0
      %3479 = vmatprep.subr.mxu0 0.0
      %3480 = vmatpush1.xpose.msra.mxu0 0.0
      %3481 = vmatprep.subr.mxu0 0.0
      %3482 = vmatpush1.xpose.msra.mxu0 0.0
      %3483 = vmatprep.subr.mxu0 0.0
      %3484 = vmatpush1.xpose.msra.mxu0 0.0
      %3485 = vmatprep.subr.mxu0 0.0
      %3486 = vmatpush1.xpose.msra.mxu0 0.0
      %3487 = vmatprep.subr.mxu0 0.0
      %3488 = vmatpush1.xpose.msra.mxu0 0.0
      %3489 = vmatprep.subr.mxu0 0.0
      %3490 = vmatpush1.xpose.msra.mxu0 0.0
      %3491 = vmatprep.subr.mxu0 0.0
      %3492 = vmatpush1.xpose.msra.mxu0 0.0
      %3493 = vmatprep.subr.mxu0 0.0
      %3494 = vmatpush1.xpose.msra.mxu0 0.0
      %3495 = vmatprep.subr.mxu0 0.0
      %3496 = vmatpush1.xpose.msra.mxu0 0.0
      %3497 = vmatprep.subr.mxu0 0.0
      %3498 = vmatpush1.xpose.msra.mxu0 0.0
      %3499 = vmatprep.subr.mxu0 0.0
      %3500 = vmatpush1.xpose.msra.mxu0 0.0
      %3501 = vmatprep.subr.mxu0 0.0
      %3502 = vmatpush1.xpose.msra.mxu0 0.0
      %3503 = vmatprep.subr.mxu0 0.0
      %3504 = vmatpush1.xpose.msra.mxu0 0.0
      %3505 = vmatprep.subr.mxu0 0.0
      %3506 = vmatpush1.xpose.msra.mxu0 0.0
      %3507 = vmatprep.subr.mxu0 0.0
      %3508 = vmatpush1.xpose.msra.mxu0 0.0
      %3509 = vmatprep.subr.mxu0 0.0
      %3510 = vmatpush1.xpose.msra.mxu0 0.0
      %3511 = vmatprep.subr.mxu0 0.0
      %3512 = vmatpush1.xpose.msra.mxu0 0.0
      %3513 = vmatprep.subr.mxu0 0.0
      %3514 = vmatpush1.xpose.msra.mxu0 0.0
      %3515 = vmatprep.subr.mxu0 0.0
      %3516 = vmatpush1.xpose.msra.mxu0 0.0
      %3517 = vmatprep.subr.mxu0 0.0
      %3518 = vmatpush1.xpose.msra.mxu0 0.0
      %3519 = vmatprep.subr.mxu0 0.0
      %3520 = vmatpush1.xpose.msra.mxu0 0.0
      %3521 = vmatprep.subr.mxu0 0.0
      %3522 = vmatpush1.xpose.msra.mxu0 0.0
      %3523 = vmatprep.subr.mxu0 0.0
      %3524 = vmatpush1.xpose.msra.mxu0 0.0
      %3525 = vmatprep.subr.mxu0 0.0
      %3526 = vmatpush1.xpose.msra.mxu0 0.0
      %3527 = vmatprep.subr.mxu0 0.0
      %3528 = vmatpush1.xpose.msra.mxu0 0.0
      %3529 = vmatprep.mubr.f32.mxu0 0.0
      %3530 = vmatmul.mubr.f32.gmra.mrb[0].mxu0 %v3461
      %v3531 = vpop.f32.mrb[0].mxu0
      %v3532 = vadd.f32 %v3456, %v3531
      %v3533 = vpop.f32.mrb[0].mxu0
      %3534 = vdwg.mxu0
      %3535 = vrot.lane.b32.xlu0 %v788, 112
      %v3536 = vpop.permute.xlu0 %3535
      %3537 = vrot.lane.b32.xlu0 %v746, 80
      %v3538 = vpop.permute.xlu0 %3537
      %v3539 = vsel %vm799, %v3536, 0
      %v3541 = vsel %vm799, %v3538, 0
      %3543 = vmatprep.subr.mxu0 0.0
      %3544 = vmatpush1.xpose.msra.mxu0 %v3541
      %3545 = vmatprep.subr.mxu0 0.0
      %3546 = vmatpush1.xpose.msra.mxu0 0.0
      %3547 = vmatprep.subr.mxu0 0.0
      %3548 = vmatpush1.xpose.msra.mxu0 0.0
      %3549 = vmatprep.subr.mxu0 0.0
      %3550 = vmatpush1.xpose.msra.mxu0 0.0
      %3551 = vmatprep.subr.mxu0 0.0
      %3552 = vmatpush1.xpose.msra.mxu0 0.0
      %3553 = vmatprep.subr.mxu0 0.0
      %3554 = vmatpush1.xpose.msra.mxu0 0.0
      %3555 = vmatprep.subr.mxu0 0.0
      %3556 = vmatpush1.xpose.msra.mxu0 0.0
      %3557 = vmatprep.subr.mxu0 0.0
      %3558 = vmatpush1.xpose.msra.mxu0 0.0
      %3559 = vmatprep.subr.mxu0 0.0
      %3560 = vmatpush1.xpose.msra.mxu0 0.0
      %3561 = vmatprep.subr.mxu0 0.0
      %3562 = vmatpush1.xpose.msra.mxu0 0.0
      %3563 = vmatprep.subr.mxu0 0.0
      %3564 = vmatpush1.xpose.msra.mxu0 0.0
      %3565 = vmatprep.subr.mxu0 0.0
      %3566 = vmatpush1.xpose.msra.mxu0 0.0
      %3567 = vmatprep.subr.mxu0 0.0
      %3568 = vmatpush1.xpose.msra.mxu0 0.0
      %3569 = vmatprep.subr.mxu0 0.0
      %3570 = vmatpush1.xpose.msra.mxu0 0.0
      %3571 = vmatprep.subr.mxu0 0.0
      %3572 = vmatpush1.xpose.msra.mxu0 0.0
      %3573 = vmatprep.subr.mxu0 0.0
      %3574 = vmatpush1.xpose.msra.mxu0 0.0
      %3575 = vmatprep.subr.mxu0 0.0
      %3576 = vmatpush1.xpose.msra.mxu0 0.0
      %3577 = vmatprep.subr.mxu0 0.0
      %3578 = vmatpush1.xpose.msra.mxu0 0.0
      %3579 = vmatprep.subr.mxu0 0.0
      %3580 = vmatpush1.xpose.msra.mxu0 0.0
      %3581 = vmatprep.subr.mxu0 0.0
      %3582 = vmatpush1.xpose.msra.mxu0 0.0
      %3583 = vmatprep.subr.mxu0 0.0
      %3584 = vmatpush1.xpose.msra.mxu0 0.0
      %3585 = vmatprep.subr.mxu0 0.0
      %3586 = vmatpush1.xpose.msra.mxu0 0.0
      %3587 = vmatprep.subr.mxu0 0.0
      %3588 = vmatpush1.xpose.msra.mxu0 0.0
      %3589 = vmatprep.subr.mxu0 0.0
      %3590 = vmatpush1.xpose.msra.mxu0 0.0
      %3591 = vmatprep.subr.mxu0 0.0
      %3592 = vmatpush1.xpose.msra.mxu0 0.0
      %3593 = vmatprep.subr.mxu0 0.0
      %3594 = vmatpush1.xpose.msra.mxu0 0.0
      %3595 = vmatprep.subr.mxu0 0.0
      %3596 = vmatpush1.xpose.msra.mxu0 0.0
      %3597 = vmatprep.subr.mxu0 0.0
      %3598 = vmatpush1.xpose.msra.mxu0 0.0
      %3599 = vmatprep.subr.mxu0 0.0
      %3600 = vmatpush1.xpose.msra.mxu0 0.0
      %3601 = vmatprep.subr.mxu0 0.0
      %3602 = vmatpush1.xpose.msra.mxu0 0.0
      %3603 = vmatprep.subr.mxu0 0.0
      %3604 = vmatpush1.xpose.msra.mxu0 0.0
      %3605 = vmatprep.subr.mxu0 0.0
      %3606 = vmatpush1.xpose.msra.mxu0 0.0
      %3607 = vmatprep.mubr.f32.mxu0 0.0
      %3608 = vmatmul.mubr.f32.gmra.mrb[0].mxu0 %v3539
      %v3609 = vpop.f32.mrb[0].mxu0
      %v3610 = vadd.f32 %v3456, %v3609
      %v3611 = vpop.f32.mrb[0].mxu0
      %3612 = vdwg.mxu0
      %3613 = vrot.lane.b32.xlu0 %v789, 112
      %v3614 = vpop.permute.xlu0 %3613
      %3615 = vrot.lane.b32.xlu0 %v751, 80
      %v3616 = vpop.permute.xlu0 %3615
      %v3617 = vsel %vm799, %v3614, 0
      %v3619 = vsel %vm799, %v3616, 0
      %3621 = vmatprep.subr.mxu0 0.0
      %3622 = vmatpush1.xpose.msra.mxu0 %v3619
      %3623 = vmatprep.subr.mxu0 0.0
      %3624 = vmatpush1.xpose.msra.mxu0 0.0
      %3625 = vmatprep.subr.mxu0 0.0
      %3626 = vmatpush1.xpose.msra.mxu0 0.0
      %3627 = vmatprep.subr.mxu0 0.0
      %3628 = vmatpush1.xpose.msra.mxu0 0.0
      %3629 = vmatprep.subr.mxu0 0.0
      %3630 = vmatpush1.xpose.msra.mxu0 0.0
      %3631 = vmatprep.subr.mxu0 0.0
      %3632 = vmatpush1.xpose.msra.mxu0 0.0
      %3633 = vmatprep.subr.mxu0 0.0
      %3634 = vmatpush1.xpose.msra.mxu0 0.0
      %3635 = vmatprep.subr.mxu0 0.0
      %3636 = vmatpush1.xpose.msra.mxu0 0.0
      %3637 = vmatprep.subr.mxu0 0.0
      %3638 = vmatpush1.xpose.msra.mxu0 0.0
      %3639 = vmatprep.subr.mxu0 0.0
      %3640 = vmatpush1.xpose.msra.mxu0 0.0
      %3641 = vmatprep.subr.mxu0 0.0
      %3642 = vmatpush1.xpose.msra.mxu0 0.0
      %3643 = vmatprep.subr.mxu0 0.0
      %3644 = vmatpush1.xpose.msra.mxu0 0.0
      %3645 = vmatprep.subr.mxu0 0.0
      %3646 = vmatpush1.xpose.msra.mxu0 0.0
      %3647 = vmatprep.subr.mxu0 0.0
      %3648 = vmatpush1.xpose.msra.mxu0 0.0
      %3649 = vmatprep.subr.mxu0 0.0
      %3650 = vmatpush1.xpose.msra.mxu0 0.0
      %3651 = vmatprep.subr.mxu0 0.0
      %3652 = vmatpush1.xpose.msra.mxu0 0.0
      %3653 = vmatprep.subr.mxu0 0.0
      %3654 = vmatpush1.xpose.msra.mxu0 0.0
      %3655 = vmatprep.subr.mxu0 0.0
      %3656 = vmatpush1.xpose.msra.mxu0 0.0
      %3657 = vmatprep.subr.mxu0 0.0
      %3658 = vmatpush1.xpose.msra.mxu0 0.0
      %3659 = vmatprep.subr.mxu0 0.0
      %3660 = vmatpush1.xpose.msra.mxu0 0.0
      %3661 = vmatprep.subr.mxu0 0.0
      %3662 = vmatpush1.xpose.msra.mxu0 0.0
      %3663 = vmatprep.subr.mxu0 0.0
      %3664 = vmatpush1.xpose.msra.mxu0 0.0
      %3665 = vmatprep.subr.mxu0 0.0
      %3666 = vmatpush1.xpose.msra.mxu0 0.0
      %3667 = vmatprep.subr.mxu0 0.0
      %3668 = vmatpush1.xpose.msra.mxu0 0.0
      %3669 = vmatprep.subr.mxu0 0.0
      %3670 = vmatpush1.xpose.msra.mxu0 0.0
      %3671 = vmatprep.subr.mxu0 0.0
      %3672 = vmatpush1.xpose.msra.mxu0 0.0
      %3673 = vmatprep.subr.mxu0 0.0
      %3674 = vmatpush1.xpose.msra.mxu0 0.0
      %3675 = vmatprep.subr.mxu0 0.0
      %3676 = vmatpush1.xpose.msra.mxu0 0.0
      %3677 = vmatprep.subr.mxu0 0.0
      %3678 = vmatpush1.xpose.msra.mxu0 0.0
      %3679 = vmatprep.subr.mxu0 0.0
      %3680 = vmatpush1.xpose.msra.mxu0 0.0
      %3681 = vmatprep.subr.mxu0 0.0
      %3682 = vmatpush1.xpose.msra.mxu0 0.0
      %3683 = vmatprep.subr.mxu0 0.0
      %3684 = vmatpush1.xpose.msra.mxu0 0.0
      %3685 = vmatprep.mubr.f32.mxu0 0.0
      %3686 = vmatmul.mubr.f32.gmra.mrb[0].mxu0 %v3617
      %v3687 = vpop.f32.mrb[0].mxu0
      %v3688 = vadd.f32 %v3456, %v3687
      %v3689 = vpop.f32.mrb[0].mxu0
      %3690 = vdwg.mxu0
      %3691 = vrot.lane.b32.xlu0 %v790, 112
      %v3692 = vpop.permute.xlu0 %3691
      %3693 = vrot.lane.b32.xlu0 %v756, 80
      %v3694 = vpop.permute.xlu0 %3693
      %v3695 = vsel %vm799, %v3692, 0
      %v3697 = vsel %vm799, %v3694, 0
      %3699 = vmatprep.subr.mxu0 0.0
      %3700 = vmatpush1.xpose.msra.mxu0 %v3697
      %3701 = vmatprep.subr.mxu0 0.0
      %3702 = vmatpush1.xpose.msra.mxu0 0.0
      %3703 = vmatprep.subr.mxu0 0.0
      %3704 = vmatpush1.xpose.msra.mxu0 0.0
      %3705 = vmatprep.subr.mxu0 0.0
      %3706 = vmatpush1.xpose.msra.mxu0 0.0
      %3707 = vmatprep.subr.mxu0 0.0
      %3708 = vmatpush1.xpose.msra.mxu0 0.0
      %3709 = vmatprep.subr.mxu0 0.0
      %3710 = vmatpush1.xpose.msra.mxu0 0.0
      %3711 = vmatprep.subr.mxu0 0.0
      %3712 = vmatpush1.xpose.msra.mxu0 0.0
      %3713 = vmatprep.subr.mxu0 0.0
      %3714 = vmatpush1.xpose.msra.mxu0 0.0
      %3715 = vmatprep.subr.mxu0 0.0
      %3716 = vmatpush1.xpose.msra.mxu0 0.0
      %3717 = vmatprep.subr.mxu0 0.0
      %3718 = vmatpush1.xpose.msra.mxu0 0.0
      %3719 = vmatprep.subr.mxu0 0.0
      %3720 = vmatpush1.xpose.msra.mxu0 0.0
      %3721 = vmatprep.subr.mxu0 0.0
      %3722 = vmatpush1.xpose.msra.mxu0 0.0
      %3723 = vmatprep.subr.mxu0 0.0
      %3724 = vmatpush1.xpose.msra.mxu0 0.0
      %3725 = vmatprep.subr.mxu0 0.0
      %3726 = vmatpush1.xpose.msra.mxu0 0.0
      %3727 = vmatprep.subr.mxu0 0.0
      %3728 = vmatpush1.xpose.msra.mxu0 0.0
      %3729 = vmatprep.subr.mxu0 0.0
      %3730 = vmatpush1.xpose.msra.mxu0 0.0
      %3731 = vmatprep.subr.mxu0 0.0
      %3732 = vmatpush1.xpose.msra.mxu0 0.0
      %3733 = vmatprep.subr.mxu0 0.0
      %3734 = vmatpush1.xpose.msra.mxu0 0.0
      %3735 = vmatprep.subr.mxu0 0.0
      %3736 = vmatpush1.xpose.msra.mxu0 0.0
      %3737 = vmatprep.subr.mxu0 0.0
      %3738 = vmatpush1.xpose.msra.mxu0 0.0
      %3739 = vmatprep.subr.mxu0 0.0
      %3740 = vmatpush1.xpose.msra.mxu0 0.0
      %3741 = vmatprep.subr.mxu0 0.0
      %3742 = vmatpush1.xpose.msra.mxu0 0.0
      %3743 = vmatprep.subr.mxu0 0.0
      %3744 = vmatpush1.xpose.msra.mxu0 0.0
      %3745 = vmatprep.subr.mxu0 0.0
      %3746 = vmatpush1.xpose.msra.mxu0 0.0
      %3747 = vmatprep.subr.mxu0 0.0
      %3748 = vmatpush1.xpose.msra.mxu0 0.0
      %3749 = vmatprep.subr.mxu0 0.0
      %3750 = vmatpush1.xpose.msra.mxu0 0.0
      %3751 = vmatprep.subr.mxu0 0.0
      %3752 = vmatpush1.xpose.msra.mxu0 0.0
      %3753 = vmatprep.subr.mxu0 0.0
      %3754 = vmatpush1.xpose.msra.mxu0 0.0
      %3755 = vmatprep.subr.mxu0 0.0
      %3756 = vmatpush1.xpose.msra.mxu0 0.0
      %3757 = vmatprep.subr.mxu0 0.0
      %3758 = vmatpush1.xpose.msra.mxu0 0.0
      %3759 = vmatprep.subr.mxu0 0.0
      %3760 = vmatpush1.xpose.msra.mxu0 0.0
      %3761 = vmatprep.subr.mxu0 0.0
      %3762 = vmatpush1.xpose.msra.mxu0 0.0
      %3763 = vmatprep.mubr.f32.mxu0 0.0
      %3764 = vmatmul.mubr.f32.gmra.mrb[0].mxu0 %v3695
      %v3765 = vpop.f32.mrb[0].mxu0
      %v3766 = vadd.f32 %v3456, %v3765
      %v3767 = vpop.f32.mrb[0].mxu0
      %3768 = vdwg.mxu0
      %3769 = vrot.lane.b32.xlu0 %v791, 112
      %v3770 = vpop.permute.xlu0 %3769
      %3771 = vrot.lane.b32.xlu0 %v761, 80
      %v3772 = vpop.permute.xlu0 %3771
      %v3773 = vsel %vm799, %v3770, 0
      %v3775 = vsel %vm799, %v3772, 0
      %3777 = vmatprep.subr.mxu0 0.0
      %3778 = vmatpush1.xpose.msra.mxu0 %v3775
      %3779 = vmatprep.subr.mxu0 0.0
      %3780 = vmatpush1.xpose.msra.mxu0 0.0
      %3781 = vmatprep.subr.mxu0 0.0
      %3782 = vmatpush1.xpose.msra.mxu0 0.0
      %3783 = vmatprep.subr.mxu0 0.0
      %3784 = vmatpush1.xpose.msra.mxu0 0.0
      %3785 = vmatprep.subr.mxu0 0.0
      %3786 = vmatpush1.xpose.msra.mxu0 0.0
      %3787 = vmatprep.subr.mxu0 0.0
      %3788 = vmatpush1.xpose.msra.mxu0 0.0
      %3789 = vmatprep.subr.mxu0 0.0
      %3790 = vmatpush1.xpose.msra.mxu0 0.0
      %3791 = vmatprep.subr.mxu0 0.0
      %3792 = vmatpush1.xpose.msra.mxu0 0.0
      %3793 = vmatprep.subr.mxu0 0.0
      %3794 = vmatpush1.xpose.msra.mxu0 0.0
      %3795 = vmatprep.subr.mxu0 0.0
      %3796 = vmatpush1.xpose.msra.mxu0 0.0
      %3797 = vmatprep.subr.mxu0 0.0
      %3798 = vmatpush1.xpose.msra.mxu0 0.0
      %3799 = vmatprep.subr.mxu0 0.0
      %3800 = vmatpush1.xpose.msra.mxu0 0.0
      %3801 = vmatprep.subr.mxu0 0.0
      %3802 = vmatpush1.xpose.msra.mxu0 0.0
      %3803 = vmatprep.subr.mxu0 0.0
      %3804 = vmatpush1.xpose.msra.mxu0 0.0
      %3805 = vmatprep.subr.mxu0 0.0
      %3806 = vmatpush1.xpose.msra.mxu0 0.0
      %3807 = vmatprep.subr.mxu0 0.0
      %3808 = vmatpush1.xpose.msra.mxu0 0.0
      %3809 = vmatprep.subr.mxu0 0.0
      %3810 = vmatpush1.xpose.msra.mxu0 0.0
      %3811 = vmatprep.subr.mxu0 0.0
      %3812 = vmatpush1.xpose.msra.mxu0 0.0
      %3813 = vmatprep.subr.mxu0 0.0
      %3814 = vmatpush1.xpose.msra.mxu0 0.0
      %3815 = vmatprep.subr.mxu0 0.0
      %3816 = vmatpush1.xpose.msra.mxu0 0.0
      %3817 = vmatprep.subr.mxu0 0.0
      %3818 = vmatpush1.xpose.msra.mxu0 0.0
      %3819 = vmatprep.subr.mxu0 0.0
      %3820 = vmatpush1.xpose.msra.mxu0 0.0
      %3821 = vmatprep.subr.mxu0 0.0
      %3822 = vmatpush1.xpose.msra.mxu0 0.0
      %3823 = vmatprep.subr.mxu0 0.0
      %3824 = vmatpush1.xpose.msra.mxu0 0.0
      %3825 = vmatprep.subr.mxu0 0.0
      %3826 = vmatpush1.xpose.msra.mxu0 0.0
      %3827 = vmatprep.subr.mxu0 0.0
      %3828 = vmatpush1.xpose.msra.mxu0 0.0
      %3829 = vmatprep.subr.mxu0 0.0
      %3830 = vmatpush1.xpose.msra.mxu0 0.0
      %3831 = vmatprep.subr.mxu0 0.0
      %3832 = vmatpush1.xpose.msra.mxu0 0.0
      %3833 = vmatprep.subr.mxu0 0.0
      %3834 = vmatpush1.xpose.msra.mxu0 0.0
      %3835 = vmatprep.subr.mxu0 0.0
      %3836 = vmatpush1.xpose.msra.mxu0 0.0
      %3837 = vmatprep.subr.mxu0 0.0
      %3838 = vmatpush1.xpose.msra.mxu0 0.0
      %3839 = vmatprep.subr.mxu0 0.0
      %3840 = vmatpush1.xpose.msra.mxu0 0.0
      %3841 = vmatprep.mubr.f32.mxu0 0.0
      %3842 = vmatmul.mubr.f32.gmra.mrb[0].mxu0 %v3773
      %v3843 = vpop.f32.mrb[0].mxu0
      %v3844 = vadd.f32 %v3456, %v3843
      %v3845 = vpop.f32.mrb[0].mxu0
      %3846 = vdwg.mxu0
      %3847 = vrot.lane.b32.xlu0 %v792, 112
      %v3848 = vpop.permute.xlu0 %3847
      %3849 = vrot.lane.b32.xlu0 %v766, 80
      %v3850 = vpop.permute.xlu0 %3849
      %v3851 = vsel %vm799, %v3848, 0
      %v3853 = vsel %vm799, %v3850, 0
      %3855 = vmatprep.subr.mxu0 0.0
      %3856 = vmatpush1.xpose.msra.mxu0 %v3853
      %3857 = vmatprep.subr.mxu0 0.0
      %3858 = vmatpush1.xpose.msra.mxu0 0.0
      %3859 = vmatprep.subr.mxu0 0.0
      %3860 = vmatpush1.xpose.msra.mxu0 0.0
      %3861 = vmatprep.subr.mxu0 0.0
      %3862 = vmatpush1.xpose.msra.mxu0 0.0
      %3863 = vmatprep.subr.mxu0 0.0
      %3864 = vmatpush1.xpose.msra.mxu0 0.0
      %3865 = vmatprep.subr.mxu0 0.0
      %3866 = vmatpush1.xpose.msra.mxu0 0.0
      %3867 = vmatprep.subr.mxu0 0.0
      %3868 = vmatpush1.xpose.msra.mxu0 0.0
      %3869 = vmatprep.subr.mxu0 0.0
      %3870 = vmatpush1.xpose.msra.mxu0 0.0
      %3871 = vmatprep.subr.mxu0 0.0
      %3872 = vmatpush1.xpose.msra.mxu0 0.0
      %3873 = vmatprep.subr.mxu0 0.0
      %3874 = vmatpush1.xpose.msra.mxu0 0.0
      %3875 = vmatprep.subr.mxu0 0.0
      %3876 = vmatpush1.xpose.msra.mxu0 0.0
      %3877 = vmatprep.subr.mxu0 0.0
      %3878 = vmatpush1.xpose.msra.mxu0 0.0
      %3879 = vmatprep.subr.mxu0 0.0
      %3880 = vmatpush1.xpose.msra.mxu0 0.0
      %3881 = vmatprep.subr.mxu0 0.0
      %3882 = vmatpush1.xpose.msra.mxu0 0.0
      %3883 = vmatprep.subr.mxu0 0.0
      %3884 = vmatpush1.xpose.msra.mxu0 0.0
      %3885 = vmatprep.subr.mxu0 0.0
      %3886 = vmatpush1.xpose.msra.mxu0 0.0
      %3887 = vmatprep.subr.mxu0 0.0
      %3888 = vmatpush1.xpose.msra.mxu0 0.0
      %3889 = vmatprep.subr.mxu0 0.0
      %3890 = vmatpush1.xpose.msra.mxu0 0.0
      %3891 = vmatprep.subr.mxu0 0.0
      %3892 = vmatpush1.xpose.msra.mxu0 0.0
      %3893 = vmatprep.subr.mxu0 0.0
      %3894 = vmatpush1.xpose.msra.mxu0 0.0
      %3895 = vmatprep.subr.mxu0 0.0
      %3896 = vmatpush1.xpose.msra.mxu0 0.0
      %3897 = vmatprep.subr.mxu0 0.0
      %3898 = vmatpush1.xpose.msra.mxu0 0.0
      %3899 = vmatprep.subr.mxu0 0.0
      %3900 = vmatpush1.xpose.msra.mxu0 0.0
      %3901 = vmatprep.subr.mxu0 0.0
      %3902 = vmatpush1.xpose.msra.mxu0 0.0
      %3903 = vmatprep.subr.mxu0 0.0
      %3904 = vmatpush1.xpose.msra.mxu0 0.0
      %3905 = vmatprep.subr.mxu0 0.0
      %3906 = vmatpush1.xpose.msra.mxu0 0.0
      %3907 = vmatprep.subr.mxu0 0.0
      %3908 = vmatpush1.xpose.msra.mxu0 0.0
      %3909 = vmatprep.subr.mxu0 0.0
      %3910 = vmatpush1.xpose.msra.mxu0 0.0
      %3911 = vmatprep.subr.mxu0 0.0
      %3912 = vmatpush1.xpose.msra.mxu0 0.0
      %3913 = vmatprep.subr.mxu0 0.0
      %3914 = vmatpush1.xpose.msra.mxu0 0.0
      %3915 = vmatprep.subr.mxu0 0.0
      %3916 = vmatpush1.xpose.msra.mxu0 0.0
      %3917 = vmatprep.subr.mxu0 0.0
      %3918 = vmatpush1.xpose.msra.mxu0 0.0
      %3919 = vmatprep.mubr.f32.mxu0 0.0
      %3920 = vmatmul.mubr.f32.gmra.mrb[0].mxu0 %v3851
      %v3921 = vpop.f32.mrb[0].mxu0
      %v3922 = vadd.f32 %v3456, %v3921
      %v3923 = vpop.f32.mrb[0].mxu0
      %3924 = vdwg.mxu0
      %3925 = vrot.lane.b32.xlu0 %v793, 112
      %v3926 = vpop.permute.xlu0 %3925
      %3927 = vrot.lane.b32.xlu0 %v771, 80
      %v3928 = vpop.permute.xlu0 %3927
      %v3929 = vsel %vm799, %v3926, 0
      %v3931 = vsel %vm799, %v3928, 0
      %3933 = vmatprep.subr.mxu0 0.0
      %3934 = vmatpush1.xpose.msra.mxu0 %v3931
      %3935 = vmatprep.subr.mxu0 0.0
      %3936 = vmatpush1.xpose.msra.mxu0 0.0
      %3937 = vmatprep.subr.mxu0 0.0
      %3938 = vmatpush1.xpose.msra.mxu0 0.0
      %3939 = vmatprep.subr.mxu0 0.0
      %3940 = vmatpush1.xpose.msra.mxu0 0.0
      %3941 = vmatprep.subr.mxu0 0.0
      %3942 = vmatpush1.xpose.msra.mxu0 0.0
      %3943 = vmatprep.subr.mxu0 0.0
      %3944 = vmatpush1.xpose.msra.mxu0 0.0
      %3945 = vmatprep.subr.mxu0 0.0
      %3946 = vmatpush1.xpose.msra.mxu0 0.0
      %3947 = vmatprep.subr.mxu0 0.0
      %3948 = vmatpush1.xpose.msra.mxu0 0.0
      %3949 = vmatprep.subr.mxu0 0.0
      %3950 = vmatpush1.xpose.msra.mxu0 0.0
      %3951 = vmatprep.subr.mxu0 0.0
      %3952 = vmatpush1.xpose.msra.mxu0 0.0
      %3953 = vmatprep.subr.mxu0 0.0
      %3954 = vmatpush1.xpose.msra.mxu0 0.0
      %3955 = vmatprep.subr.mxu0 0.0
      %3956 = vmatpush1.xpose.msra.mxu0 0.0
      %3957 = vmatprep.subr.mxu0 0.0
      %3958 = vmatpush1.xpose.msra.mxu0 0.0
      %3959 = vmatprep.subr.mxu0 0.0
      %3960 = vmatpush1.xpose.msra.mxu0 0.0
      %3961 = vmatprep.subr.mxu0 0.0
      %3962 = vmatpush1.xpose.msra.mxu0 0.0
      %3963 = vmatprep.subr.mxu0 0.0
      %3964 = vmatpush1.xpose.msra.mxu0 0.0
      %3965 = vmatprep.subr.mxu0 0.0
      %3966 = vmatpush1.xpose.msra.mxu0 0.0
      %3967 = vmatprep.subr.mxu0 0.0
      %3968 = vmatpush1.xpose.msra.mxu0 0.0
      %3969 = vmatprep.subr.mxu0 0.0
      %3970 = vmatpush1.xpose.msra.mxu0 0.0
      %3971 = vmatprep.subr.mxu0 0.0
      %3972 = vmatpush1.xpose.msra.mxu0 0.0
      %3973 = vmatprep.subr.mxu0 0.0
      %3974 = vmatpush1.xpose.msra.mxu0 0.0
      %3975 = vmatprep.subr.mxu0 0.0
      %3976 = vmatpush1.xpose.msra.mxu0 0.0
      %3977 = vmatprep.subr.mxu0 0.0
      %3978 = vmatpush1.xpose.msra.mxu0 0.0
      %3979 = vmatprep.subr.mxu0 0.0
      %3980 = vmatpush1.xpose.msra.mxu0 0.0
      %3981 = vmatprep.subr.mxu0 0.0
      %3982 = vmatpush1.xpose.msra.mxu0 0.0
      %3983 = vmatprep.subr.mxu0 0.0
      %3984 = vmatpush1.xpose.msra.mxu0 0.0
      %3985 = vmatprep.subr.mxu0 0.0
      %3986 = vmatpush1.xpose.msra.mxu0 0.0
      %3987 = vmatprep.subr.mxu0 0.0
      %3988 = vmatpush1.xpose.msra.mxu0 0.0
      %3989 = vmatprep.subr.mxu0 0.0
      %3990 = vmatpush1.xpose.msra.mxu0 0.0
      %3991 = vmatprep.subr.mxu0 0.0
      %3992 = vmatpush1.xpose.msra.mxu0 0.0
      %3993 = vmatprep.subr.mxu0 0.0
      %3994 = vmatpush1.xpose.msra.mxu0 0.0
      %3995 = vmatprep.subr.mxu0 0.0
      %3996 = vmatpush1.xpose.msra.mxu0 0.0
      %3997 = vmatprep.mubr.f32.mxu0 0.0
      %3998 = vmatmul.mubr.f32.gmra.mrb[0].mxu0 %v3929
      %v3999 = vpop.f32.mrb[0].mxu0
      %v4000 = vadd.f32 %v3456, %v3999
      %v4001 = vpop.f32.mrb[0].mxu0
      %4002 = vdwg.mxu0
      %4003 = vrot.lane.b32.xlu0 %v794, 112
      %v4004 = vpop.permute.xlu0 %4003
      %4005 = vrot.lane.b32.xlu0 %v776, 80
      %v4006 = vpop.permute.xlu0 %4005
      %v4007 = vsel %vm799, %v4004, 0
      %v4009 = vsel %vm799, %v4006, 0
      %4011 = vmatprep.subr.mxu0 0.0
      %4012 = vmatpush1.xpose.msra.mxu0 %v4009
      %4013 = vmatprep.subr.mxu0 0.0
      %4014 = vmatpush1.xpose.msra.mxu0 0.0
      %4015 = vmatprep.subr.mxu0 0.0
      %4016 = vmatpush1.xpose.msra.mxu0 0.0
      %4017 = vmatprep.subr.mxu0 0.0
      %4018 = vmatpush1.xpose.msra.mxu0 0.0
      %4019 = vmatprep.subr.mxu0 0.0
      %4020 = vmatpush1.xpose.msra.mxu0 0.0
      %4021 = vmatprep.subr.mxu0 0.0
      %4022 = vmatpush1.xpose.msra.mxu0 0.0
      %4023 = vmatprep.subr.mxu0 0.0
      %4024 = vmatpush1.xpose.msra.mxu0 0.0
      %4025 = vmatprep.subr.mxu0 0.0
      %4026 = vmatpush1.xpose.msra.mxu0 0.0
      %4027 = vmatprep.subr.mxu0 0.0
      %4028 = vmatpush1.xpose.msra.mxu0 0.0
      %4029 = vmatprep.subr.mxu0 0.0
      %4030 = vmatpush1.xpose.msra.mxu0 0.0
      %4031 = vmatprep.subr.mxu0 0.0
      %4032 = vmatpush1.xpose.msra.mxu0 0.0
      %4033 = vmatprep.subr.mxu0 0.0
      %4034 = vmatpush1.xpose.msra.mxu0 0.0
      %4035 = vmatprep.subr.mxu0 0.0
      %4036 = vmatpush1.xpose.msra.mxu0 0.0
      %4037 = vmatprep.subr.mxu0 0.0
      %4038 = vmatpush1.xpose.msra.mxu0 0.0
      %4039 = vmatprep.subr.mxu0 0.0
      %4040 = vmatpush1.xpose.msra.mxu0 0.0
      %4041 = vmatprep.subr.mxu0 0.0
      %4042 = vmatpush1.xpose.msra.mxu0 0.0
      %4043 = vmatprep.subr.mxu0 0.0
      %4044 = vmatpush1.xpose.msra.mxu0 0.0
      %4045 = vmatprep.subr.mxu0 0.0
      %4046 = vmatpush1.xpose.msra.mxu0 0.0
      %4047 = vmatprep.subr.mxu0 0.0
      %4048 = vmatpush1.xpose.msra.mxu0 0.0
      %4049 = vmatprep.subr.mxu0 0.0
      %4050 = vmatpush1.xpose.msra.mxu0 0.0
      %4051 = vmatprep.subr.mxu0 0.0
      %4052 = vmatpush1.xpose.msra.mxu0 0.0
      %4053 = vmatprep.subr.mxu0 0.0
      %4054 = vmatpush1.xpose.msra.mxu0 0.0
      %4055 = vmatprep.subr.mxu0 0.0
      %4056 = vmatpush1.xpose.msra.mxu0 0.0
      %4057 = vmatprep.subr.mxu0 0.0
      %4058 = vmatpush1.xpose.msra.mxu0 0.0
      %4059 = vmatprep.subr.mxu0 0.0
      %4060 = vmatpush1.xpose.msra.mxu0 0.0
      %4061 = vmatprep.subr.mxu0 0.0
      %4062 = vmatpush1.xpose.msra.mxu0 0.0
      %4063 = vmatprep.subr.mxu0 0.0
      %4064 = vmatpush1.xpose.msra.mxu0 0.0
      %4065 = vmatprep.subr.mxu0 0.0
      %4066 = vmatpush1.xpose.msra.mxu0 0.0
      %4067 = vmatprep.subr.mxu0 0.0
      %4068 = vmatpush1.xpose.msra.mxu0 0.0
      %4069 = vmatprep.subr.mxu0 0.0
      %4070 = vmatpush1.xpose.msra.mxu0 0.0
      %4071 = vmatprep.subr.mxu0 0.0
      %4072 = vmatpush1.xpose.msra.mxu0 0.0
      %4073 = vmatprep.subr.mxu0 0.0
      %4074 = vmatpush1.xpose.msra.mxu0 0.0
      %4075 = vmatprep.mubr.f32.mxu0 0.0
      %4076 = vmatmul.mubr.f32.gmra.mrb[0].mxu0 %v4007
      %v4077 = vpop.f32.mrb[0].mxu0
      %v4078 = vadd.f32 %v3456, %v4077
      %v4079 = vpop.f32.mrb[0].mxu0
      %4080 = vdwg.mxu0
      %v4081 = vadd.f32 %v3532, %v779
      %v4082 = vadd.f32 %v3610, %v780
      %v4083 = vadd.f32 %v3688, %v781
      %v4084 = vadd.f32 %v3766, %v782
      %v4085 = vadd.f32 %v3844, %v783
      %v4086 = vadd.f32 %v3922, %v784
      %v4087 = vadd.f32 %v4000, %v785
      %v4088 = vadd.f32 %v4078, %v786
      %v4089 = vsel %vm799, %v4081, -inf
      %4090 = vmax.xlane.f32.xlu0 %v4089
      %v4091 = vpop.xlane.xlu0 %4090
      %v4092 = vsel %vm799, %v4082, -inf
      %4093 = vmax.xlane.f32.xlu0 %v4092
      %v4094 = vpop.xlane.xlu0 %4093
      %v4095 = vsel %vm799, %v4083, -inf
      %4096 = vmax.xlane.f32.xlu0 %v4095
      %v4097 = vpop.xlane.xlu0 %4096
      %v4098 = vsel %vm799, %v4084, -inf
      %4099 = vmax.xlane.f32.xlu0 %v4098
      %v4100 = vpop.xlane.xlu0 %4099
      %v4101 = vsel %vm799, %v4085, -inf
      %4102 = vmax.xlane.f32.xlu0 %v4101
      %v4103 = vpop.xlane.xlu0 %4102
      %v4104 = vsel %vm799, %v4086, -inf
      %4105 = vmax.xlane.f32.xlu0 %v4104
      %v4106 = vpop.xlane.xlu0 %4105
      %v4107 = vsel %vm799, %v4087, -inf
      %4108 = vmax.xlane.f32.xlu0 %v4107
      %v4109 = vpop.xlane.xlu0 %4108
      %v4110 = vsel %vm799, %v4088, -inf
      %4111 = vmax.xlane.f32.xlu0 %v4110
      %v4112 = vpop.xlane.xlu0 %4111
      %v4113 = vsub.f32 %v4081, %v4091
      %v4114 = vsub.f32 %v4082, %v4094
      %v4115 = vsub.f32 %v4083, %v4097
      %v4116 = vsub.f32 %v4084, %v4100
      %v4117 = vsub.f32 %v4085, %v4103
      %v4118 = vsub.f32 %v4086, %v4106
      %v4119 = vsub.f32 %v4087, %v4109
      %v4120 = vsub.f32 %v4088, %v4112
      %v4121 = vmul.f32 %v4113, 1.442695
      %v4122 = vpow.pop %v4121
      %v4123 = vmul.f32 %v4114, 1.442695
      %v4124 = vpow.pop %v4123
      %v4125 = vmul.f32 %v4115, 1.442695
      %v4126 = vpow.pop %v4125
      %v4127 = vmul.f32 %v4116, 1.442695
      %v4128 = vpow.pop %v4127
      %v4129 = vmul.f32 %v4117, 1.442695
      %v4130 = vpow.pop %v4129
      %v4131 = vmul.f32 %v4118, 1.442695
      %v4132 = vpow.pop %v4131
      %v4133 = vmul.f32 %v4119, 1.442695
      %v4134 = vpow.pop %v4133
      %v4135 = vmul.f32 %v4120, 1.442695
      %v4136 = vpow.pop %v4135
      %v4137 = vsel %vm799, %v4122, 0.0
      %4138 = vadd.xlane.f32.xlu0 %v4137
      %v4139 = vpop.xlane.xlu0 %4138
      %v4140 = vsel %vm799, %v4124, 0.0
      %4141 = vadd.xlane.f32.xlu0 %v4140
      %v4142 = vpop.xlane.xlu0 %4141
      %v4143 = vsel %vm799, %v4126, 0.0
      %4144 = vadd.xlane.f32.xlu0 %v4143
      %v4145 = vpop.xlane.xlu0 %4144
      %v4146 = vsel %vm799, %v4128, 0.0
      %4147 = vadd.xlane.f32.xlu0 %v4146
      %v4148 = vpop.xlane.xlu0 %4147
      %v4149 = vsel %vm799, %v4130, 0.0
      %4150 = vadd.xlane.f32.xlu0 %v4149
      %v4151 = vpop.xlane.xlu0 %4150
      %v4152 = vsel %vm799, %v4132, 0.0
      %4153 = vadd.xlane.f32.xlu0 %v4152
      %v4154 = vpop.xlane.xlu0 %4153
      %v4155 = vsel %vm799, %v4134, 0.0
      %4156 = vadd.xlane.f32.xlu0 %v4155
      %v4157 = vpop.xlane.xlu0 %4156
      %v4158 = vsel %vm799, %v4136, 0.0
      %4159 = vadd.xlane.f32.xlu0 %v4158
      %v4160 = vpop.xlane.xlu0 %4159
      %v4161 = vrcp.pop %v4139
      %v4162 = vrcp.pop %v4142
      %v4163 = vrcp.pop %v4145
      %v4164 = vrcp.pop %v4148
      %v4165 = vrcp.pop %v4151
      %v4166 = vrcp.pop %v4154
      %v4167 = vrcp.pop %v4157
      %v4168 = vrcp.pop %v4160
      %v4169 = vmul.f32 %v4122, %v4161
      %v4170 = vmul.f32 %v4124, %v4162
      %v4171 = vmul.f32 %v4126, %v4163
      %v4172 = vmul.f32 %v4128, %v4164
      %v4173 = vmul.f32 %v4130, %v4165
      %v4174 = vmul.f32 %v4132, %v4166
      %v4175 = vmul.f32 %v4134, %v4167
      %v4176 = vmul.f32 %v4136, %v4168
      %4177 = vrot.lane.b32.xlu0 %v741, 48
      %v4178 = vpop.permute.xlu0 %4177
      %v4181 = vsel %vm799, %v4169, 0
      %4183 = vmatprep.subr.mxu0 0.0
      %4184 = vmatpush1.msra.mxu0 %v4178
      %4185 = vmatprep.subr.mxu0 0.0
      %4186 = vmatpush1.msra.mxu0 0.0
      %4187 = vmatprep.subr.mxu0 0.0
      %4188 = vmatpush1.msra.mxu0 0.0
      %4189 = vmatprep.subr.mxu0 0.0
      %4190 = vmatpush1.msra.mxu0 0.0
      %4191 = vmatprep.subr.mxu0 0.0
      %4192 = vmatpush1.msra.mxu0 0.0
      %4193 = vmatprep.subr.mxu0 0.0
      %4194 = vmatpush1.msra.mxu0 0.0
      %4195 = vmatprep.subr.mxu0 0.0
      %4196 = vmatpush1.msra.mxu0 0.0
      %4197 = vmatprep.subr.mxu0 0.0
      %4198 = vmatpush1.msra.mxu0 0.0
      %4199 = vmatprep.subr.mxu0 0.0
      %4200 = vmatpush1.msra.mxu0 0.0
      %4201 = vmatprep.subr.mxu0 0.0
      %4202 = vmatpush1.msra.mxu0 0.0
      %4203 = vmatprep.subr.mxu0 0.0
      %4204 = vmatpush1.msra.mxu0 0.0
      %4205 = vmatprep.subr.mxu0 0.0
      %4206 = vmatpush1.msra.mxu0 0.0
      %4207 = vmatprep.subr.mxu0 0.0
      %4208 = vmatpush1.msra.mxu0 0.0
      %4209 = vmatprep.subr.mxu0 0.0
      %4210 = vmatpush1.msra.mxu0 0.0
      %4211 = vmatprep.subr.mxu0 0.0
      %4212 = vmatpush1.msra.mxu0 0.0
      %4213 = vmatprep.subr.mxu0 0.0
      %4214 = vmatpush1.msra.mxu0 0.0
      %4215 = vmatprep.subr.mxu0 0.0
      %4216 = vmatpush1.msra.mxu0 0.0
      %4217 = vmatprep.subr.mxu0 0.0
      %4218 = vmatpush1.msra.mxu0 0.0
      %4219 = vmatprep.subr.mxu0 0.0
      %4220 = vmatpush1.msra.mxu0 0.0
      %4221 = vmatprep.subr.mxu0 0.0
      %4222 = vmatpush1.msra.mxu0 0.0
      %4223 = vmatprep.subr.mxu0 0.0
      %4224 = vmatpush1.msra.mxu0 0.0
      %4225 = vmatprep.subr.mxu0 0.0
      %4226 = vmatpush1.msra.mxu0 0.0
      %4227 = vmatprep.subr.mxu0 0.0
      %4228 = vmatpush1.msra.mxu0 0.0
      %4229 = vmatprep.subr.mxu0 0.0
      %4230 = vmatpush1.msra.mxu0 0.0
      %4231 = vmatprep.subr.mxu0 0.0
      %4232 = vmatpush1.msra.mxu0 0.0
      %4233 = vmatprep.subr.mxu0 0.0
      %4234 = vmatpush1.msra.mxu0 0.0
      %4235 = vmatprep.subr.mxu0 0.0
      %4236 = vmatpush1.msra.mxu0 0.0
      %4237 = vmatprep.subr.mxu0 0.0
      %4238 = vmatpush1.msra.mxu0 0.0
      %4239 = vmatprep.subr.mxu0 0.0
      %4240 = vmatpush1.msra.mxu0 0.0
      %4241 = vmatprep.subr.mxu0 0.0
      %4242 = vmatpush1.msra.mxu0 0.0
      %4243 = vmatprep.subr.mxu0 0.0
      %4244 = vmatpush1.msra.mxu0 0.0
      %4245 = vmatprep.subr.mxu0 0.0
      %4246 = vmatpush1.msra.mxu0 0.0
      %4247 = vmatprep.mubr.f32.mxu0 0.0
      %4248 = vmatmul.mubr.f32.gmra.mrb[0].mxu0 %v4181
      %v4249 = vpop.f32.mrb[0].mxu0
      %v4250 = vadd.f32 0.0, %v4249
      %v4251 = vpop.f32.mrb[0].mxu0
      %4252 = vdwg.mxu0
      %4253 = vrot.lane.b32.xlu0 %v746, 48
      %v4254 = vpop.permute.xlu0 %4253
      %v4257 = vsel %vm799, %v4170, 0
      %4259 = vmatprep.subr.mxu0 0.0
      %4260 = vmatpush1.msra.mxu0 %v4254
      %4261 = vmatprep.subr.mxu0 0.0
      %4262 = vmatpush1.msra.mxu0 0.0
      %4263 = vmatprep.subr.mxu0 0.0
      %4264 = vmatpush1.msra.mxu0 0.0
      %4265 = vmatprep.subr.mxu0 0.0
      %4266 = vmatpush1.msra.mxu0 0.0
      %4267 = vmatprep.subr.mxu0 0.0
      %4268 = vmatpush1.msra.mxu0 0.0
      %4269 = vmatprep.subr.mxu0 0.0
      %4270 = vmatpush1.msra.mxu0 0.0
      %4271 = vmatprep.subr.mxu0 0.0
      %4272 = vmatpush1.msra.mxu0 0.0
      %4273 = vmatprep.subr.mxu0 0.0
      %4274 = vmatpush1.msra.mxu0 0.0
      %4275 = vmatprep.subr.mxu0 0.0
      %4276 = vmatpush1.msra.mxu0 0.0
      %4277 = vmatprep.subr.mxu0 0.0
      %4278 = vmatpush1.msra.mxu0 0.0
      %4279 = vmatprep.subr.mxu0 0.0
      %4280 = vmatpush1.msra.mxu0 0.0
      %4281 = vmatprep.subr.mxu0 0.0
      %4282 = vmatpush1.msra.mxu0 0.0
      %4283 = vmatprep.subr.mxu0 0.0
      %4284 = vmatpush1.msra.mxu0 0.0
      %4285 = vmatprep.subr.mxu0 0.0
      %4286 = vmatpush1.msra.mxu0 0.0
      %4287 = vmatprep.subr.mxu0 0.0
      %4288 = vmatpush1.msra.mxu0 0.0
      %4289 = vmatprep.subr.mxu0 0.0
      %4290 = vmatpush1.msra.mxu0 0.0
      %4291 = vmatprep.subr.mxu0 0.0
      %4292 = vmatpush1.msra.mxu0 0.0
      %4293 = vmatprep.subr.mxu0 0.0
      %4294 = vmatpush1.msra.mxu0 0.0
      %4295 = vmatprep.subr.mxu0 0.0
      %4296 = vmatpush1.msra.mxu0 0.0
      %4297 = vmatprep.subr.mxu0 0.0
      %4298 = vmatpush1.msra.mxu0 0.0
      %4299 = vmatprep.subr.mxu0 0.0
      %4300 = vmatpush1.msra.mxu0 0.0
      %4301 = vmatprep.subr.mxu0 0.0
      %4302 = vmatpush1.msra.mxu0 0.0
      %4303 = vmatprep.subr.mxu0 0.0
      %4304 = vmatpush1.msra.mxu0 0.0
      %4305 = vmatprep.subr.mxu0 0.0
      %4306 = vmatpush1.msra.mxu0 0.0
      %4307 = vmatprep.subr.mxu0 0.0
      %4308 = vmatpush1.msra.mxu0 0.0
      %4309 = vmatprep.subr.mxu0 0.0
      %4310 = vmatpush1.msra.mxu0 0.0
      %4311 = vmatprep.subr.mxu0 0.0
      %4312 = vmatpush1.msra.mxu0 0.0
      %4313 = vmatprep.subr.mxu0 0.0
      %4314 = vmatpush1.msra.mxu0 0.0
      %4315 = vmatprep.subr.mxu0 0.0
      %4316 = vmatpush1.msra.mxu0 0.0
      %4317 = vmatprep.subr.mxu0 0.0
      %4318 = vmatpush1.msra.mxu0 0.0
      %4319 = vmatprep.subr.mxu0 0.0
      %4320 = vmatpush1.msra.mxu0 0.0
      %4321 = vmatprep.subr.mxu0 0.0
      %4322 = vmatpush1.msra.mxu0 0.0
      %4323 = vmatprep.mubr.f32.mxu0 0.0
      %4324 = vmatmul.mubr.f32.gmra.mrb[0].mxu0 %v4257
      %v4325 = vpop.f32.mrb[0].mxu0
      %v4326 = vadd.f32 0.0, %v4325
      %v4327 = vpop.f32.mrb[0].mxu0
      %4328 = vdwg.mxu0
      %4329 = vrot.lane.b32.xlu0 %v751, 48
      %v4330 = vpop.permute.xlu0 %4329
      %v4333 = vsel %vm799, %v4171, 0
      %4335 = vmatprep.subr.mxu0 0.0
      %4336 = vmatpush1.msra.mxu0 %v4330
      %4337 = vmatprep.subr.mxu0 0.0
      %4338 = vmatpush1.msra.mxu0 0.0
      %4339 = vmatprep.subr.mxu0 0.0
      %4340 = vmatpush1.msra.mxu0 0.0
      %4341 = vmatprep.subr.mxu0 0.0
      %4342 = vmatpush1.msra.mxu0 0.0
      %4343 = vmatprep.subr.mxu0 0.0
      %4344 = vmatpush1.msra.mxu0 0.0
      %4345 = vmatprep.subr.mxu0 0.0
      %4346 = vmatpush1.msra.mxu0 0.0
      %4347 = vmatprep.subr.mxu0 0.0
      %4348 = vmatpush1.msra.mxu0 0.0
      %4349 = vmatprep.subr.mxu0 0.0
      %4350 = vmatpush1.msra.mxu0 0.0
      %4351 = vmatprep.subr.mxu0 0.0
      %4352 = vmatpush1.msra.mxu0 0.0
      %4353 = vmatprep.subr.mxu0 0.0
      %4354 = vmatpush1.msra.mxu0 0.0
      %4355 = vmatprep.subr.mxu0 0.0
      %4356 = vmatpush1.msra.mxu0 0.0
      %4357 = vmatprep.subr.mxu0 0.0
      %4358 = vmatpush1.msra.mxu0 0.0
      %4359 = vmatprep.subr.mxu0 0.0
      %4360 = vmatpush1.msra.mxu0 0.0
      %4361 = vmatprep.subr.mxu0 0.0
      %4362 = vmatpush1.msra.mxu0 0.0
      %4363 = vmatprep.subr.mxu0 0.0
      %4364 = vmatpush1.msra.mxu0 0.0
      %4365 = vmatprep.subr.mxu0 0.0
      %4366 = vmatpush1.msra.mxu0 0.0
      %4367 = vmatprep.subr.mxu0 0.0
      %4368 = vmatpush1.msra.mxu0 0.0
      %4369 = vmatprep.subr.mxu0 0.0
      %4370 = vmatpush1.msra.mxu0 0.0
      %4371 = vmatprep.subr.mxu0 0.0
      %4372 = vmatpush1.msra.mxu0 0.0
      %4373 = vmatprep.subr.mxu0 0.0
      %4374 = vmatpush1.msra.mxu0 0.0
      %4375 = vmatprep.subr.mxu0 0.0
      %4376 = vmatpush1.msra.mxu0 0.0
      %4377 = vmatprep.subr.mxu0 0.0
      %4378 = vmatpush1.msra.mxu0 0.0
      %4379 = vmatprep.subr.mxu0 0.0
      %4380 = vmatpush1.msra.mxu0 0.0
      %4381 = vmatprep.subr.mxu0 0.0
      %4382 = vmatpush1.msra.mxu0 0.0
      %4383 = vmatprep.subr.mxu0 0.0
      %4384 = vmatpush1.msra.mxu0 0.0
      %4385 = vmatprep.subr.mxu0 0.0
      %4386 = vmatpush1.msra.mxu0 0.0
      %4387 = vmatprep.subr.mxu0 0.0
      %4388 = vmatpush1.msra.mxu0 0.0
      %4389 = vmatprep.subr.mxu0 0.0
      %4390 = vmatpush1.msra.mxu0 0.0
      %4391 = vmatprep.subr.mxu0 0.0
      %4392 = vmatpush1.msra.mxu0 0.0
      %4393 = vmatprep.subr.mxu0 0.0
      %4394 = vmatpush1.msra.mxu0 0.0
      %4395 = vmatprep.subr.mxu0 0.0
      %4396 = vmatpush1.msra.mxu0 0.0
      %4397 = vmatprep.subr.mxu0 0.0
      %4398 = vmatpush1.msra.mxu0 0.0
      %4399 = vmatprep.mubr.f32.mxu0 0.0
      %4400 = vmatmul.mubr.f32.gmra.mrb[0].mxu0 %v4333
      %v4401 = vpop.f32.mrb[0].mxu0
      %v4402 = vadd.f32 0.0, %v4401
      %v4403 = vpop.f32.mrb[0].mxu0
      %4404 = vdwg.mxu0
      %4405 = vrot.lane.b32.xlu0 %v756, 48
      %v4406 = vpop.permute.xlu0 %4405
      %v4409 = vsel %vm799, %v4172, 0
      %4411 = vmatprep.subr.mxu0 0.0
      %4412 = vmatpush1.msra.mxu0 %v4406
      %4413 = vmatprep.subr.mxu0 0.0
      %4414 = vmatpush1.msra.mxu0 0.0
      %4415 = vmatprep.subr.mxu0 0.0
      %4416 = vmatpush1.msra.mxu0 0.0
      %4417 = vmatprep.subr.mxu0 0.0
      %4418 = vmatpush1.msra.mxu0 0.0
      %4419 = vmatprep.subr.mxu0 0.0
      %4420 = vmatpush1.msra.mxu0 0.0
      %4421 = vmatprep.subr.mxu0 0.0
      %4422 = vmatpush1.msra.mxu0 0.0
      %4423 = vmatprep.subr.mxu0 0.0
      %4424 = vmatpush1.msra.mxu0 0.0
      %4425 = vmatprep.subr.mxu0 0.0
      %4426 = vmatpush1.msra.mxu0 0.0
      %4427 = vmatprep.subr.mxu0 0.0
      %4428 = vmatpush1.msra.mxu0 0.0
      %4429 = vmatprep.subr.mxu0 0.0
      %4430 = vmatpush1.msra.mxu0 0.0
      %4431 = vmatprep.subr.mxu0 0.0
      %4432 = vmatpush1.msra.mxu0 0.0
      %4433 = vmatprep.subr.mxu0 0.0
      %4434 = vmatpush1.msra.mxu0 0.0
      %4435 = vmatprep.subr.mxu0 0.0
      %4436 = vmatpush1.msra.mxu0 0.0
      %4437 = vmatprep.subr.mxu0 0.0
      %4438 = vmatpush1.msra.mxu0 0.0
      %4439 = vmatprep.subr.mxu0 0.0
      %4440 = vmatpush1.msra.mxu0 0.0
      %4441 = vmatprep.subr.mxu0 0.0
      %4442 = vmatpush1.msra.mxu0 0.0
      %4443 = vmatprep.subr.mxu0 0.0
      %4444 = vmatpush1.msra.mxu0 0.0
      %4445 = vmatprep.subr.mxu0 0.0
      %4446 = vmatpush1.msra.mxu0 0.0
      %4447 = vmatprep.subr.mxu0 0.0
      %4448 = vmatpush1.msra.mxu0 0.0
      %4449 = vmatprep.subr.mxu0 0.0
      %4450 = vmatpush1.msra.mxu0 0.0
      %4451 = vmatprep.subr.mxu0 0.0
      %4452 = vmatpush1.msra.mxu0 0.0
      %4453 = vmatprep.subr.mxu0 0.0
      %4454 = vmatpush1.msra.mxu0 0.0
      %4455 = vmatprep.subr.mxu0 0.0
      %4456 = vmatpush1.msra.mxu0 0.0
      %4457 = vmatprep.subr.mxu0 0.0
      %4458 = vmatpush1.msra.mxu0 0.0
      %4459 = vmatprep.subr.mxu0 0.0
      %4460 = vmatpush1.msra.mxu0 0.0
      %4461 = vmatprep.subr.mxu0 0.0
      %4462 = vmatpush1.msra.mxu0 0.0
      %4463 = vmatprep.subr.mxu0 0.0
      %4464 = vmatpush1.msra.mxu0 0.0
      %4465 = vmatprep.subr.mxu0 0.0
      %4466 = vmatpush1.msra.mxu0 0.0
      %4467 = vmatprep.subr.mxu0 0.0
      %4468 = vmatpush1.msra.mxu0 0.0
      %4469 = vmatprep.subr.mxu0 0.0
      %4470 = vmatpush1.msra.mxu0 0.0
      %4471 = vmatprep.subr.mxu0 0.0
      %4472 = vmatpush1.msra.mxu0 0.0
      %4473 = vmatprep.subr.mxu0 0.0
      %4474 = vmatpush1.msra.mxu0 0.0
      %4475 = vmatprep.mubr.f32.mxu0 0.0
      %4476 = vmatmul.mubr.f32.gmra.mrb[0].mxu0 %v4409
      %v4477 = vpop.f32.mrb[0].mxu0
      %v4478 = vadd.f32 0.0, %v4477
      %v4479 = vpop.f32.mrb[0].mxu0
      %4480 = vdwg.mxu0
      %4481 = vrot.lane.b32.xlu0 %v761, 48
      %v4482 = vpop.permute.xlu0 %4481
      %v4485 = vsel %vm799, %v4173, 0
      %4487 = vmatprep.subr.mxu0 0.0
      %4488 = vmatpush1.msra.mxu0 %v4482
      %4489 = vmatprep.subr.mxu0 0.0
      %4490 = vmatpush1.msra.mxu0 0.0
      %4491 = vmatprep.subr.mxu0 0.0
      %4492 = vmatpush1.msra.mxu0 0.0
      %4493 = vmatprep.subr.mxu0 0.0
      %4494 = vmatpush1.msra.mxu0 0.0
      %4495 = vmatprep.subr.mxu0 0.0
      %4496 = vmatpush1.msra.mxu0 0.0
      %4497 = vmatprep.subr.mxu0 0.0
      %4498 = vmatpush1.msra.mxu0 0.0
      %4499 = vmatprep.subr.mxu0 0.0
      %4500 = vmatpush1.msra.mxu0 0.0
      %4501 = vmatprep.subr.mxu0 0.0
      %4502 = vmatpush1.msra.mxu0 0.0
      %4503 = vmatprep.subr.mxu0 0.0
      %4504 = vmatpush1.msra.mxu0 0.0
      %4505 = vmatprep.subr.mxu0 0.0
      %4506 = vmatpush1.msra.mxu0 0.0
      %4507 = vmatprep.subr.mxu0 0.0
      %4508 = vmatpush1.msra.mxu0 0.0
      %4509 = vmatprep.subr.mxu0 0.0
      %4510 = vmatpush1.msra.mxu0 0.0
      %4511 = vmatprep.subr.mxu0 0.0
      %4512 = vmatpush1.msra.mxu0 0.0
      %4513 = vmatprep.subr.mxu0 0.0
      %4514 = vmatpush1.msra.mxu0 0.0
      %4515 = vmatprep.subr.mxu0 0.0
      %4516 = vmatpush1.msra.mxu0 0.0
      %4517 = vmatprep.subr.mxu0 0.0
      %4518 = vmatpush1.msra.mxu0 0.0
      %4519 = vmatprep.subr.mxu0 0.0
      %4520 = vmatpush1.msra.mxu0 0.0
      %4521 = vmatprep.subr.mxu0 0.0
      %4522 = vmatpush1.msra.mxu0 0.0
      %4523 = vmatprep.subr.mxu0 0.0
      %4524 = vmatpush1.msra.mxu0 0.0
      %4525 = vmatprep.subr.mxu0 0.0
      %4526 = vmatpush1.msra.mxu0 0.0
      %4527 = vmatprep.subr.mxu0 0.0
      %4528 = vmatpush1.msra.mxu0 0.0
      %4529 = vmatprep.subr.mxu0 0.0
      %4530 = vmatpush1.msra.mxu0 0.0
      %4531 = vmatprep.subr.mxu0 0.0
      %4532 = vmatpush1.msra.mxu0 0.0
      %4533 = vmatprep.subr.mxu0 0.0
      %4534 = vmatpush1.msra.mxu0 0.0
      %4535 = vmatprep.subr.mxu0 0.0
      %4536 = vmatpush1.msra.mxu0 0.0
      %4537 = vmatprep.subr.mxu0 0.0
      %4538 = vmatpush1.msra.mxu0 0.0
      %4539 = vmatprep.subr.mxu0 0.0
      %4540 = vmatpush1.msra.mxu0 0.0
      %4541 = vmatprep.subr.mxu0 0.0
      %4542 = vmatpush1.msra.mxu0 0.0
      %4543 = vmatprep.subr.mxu0 0.0
      %4544 = vmatpush1.msra.mxu0 0.0
      %4545 = vmatprep.subr.mxu0 0.0
      %4546 = vmatpush1.msra.mxu0 0.0
      %4547 = vmatprep.subr.mxu0 0.0
      %4548 = vmatpush1.msra.mxu0 0.0
      %4549 = vmatprep.subr.mxu0 0.0
      %4550 = vmatpush1.msra.mxu0 0.0
      %4551 = vmatprep.mubr.f32.mxu0 0.0
      %4552 = vmatmul.mubr.f32.gmra.mrb[0].mxu0 %v4485
      %v4553 = vpop.f32.mrb[0].mxu0
      %v4554 = vadd.f32 0.0, %v4553
      %v4555 = vpop.f32.mrb[0].mxu0
      %4556 = vdwg.mxu0
      %4557 = vrot.lane.b32.xlu0 %v766, 48
      %v4558 = vpop.permute.xlu0 %4557
      %v4561 = vsel %vm799, %v4174, 0
      %4563 = vmatprep.subr.mxu0 0.0
      %4564 = vmatpush1.msra.mxu0 %v4558
      %4565 = vmatprep.subr.mxu0 0.0
      %4566 = vmatpush1.msra.mxu0 0.0
      %4567 = vmatprep.subr.mxu0 0.0
      %4568 = vmatpush1.msra.mxu0 0.0
      %4569 = vmatprep.subr.mxu0 0.0
      %4570 = vmatpush1.msra.mxu0 0.0
      %4571 = vmatprep.subr.mxu0 0.0
      %4572 = vmatpush1.msra.mxu0 0.0
      %4573 = vmatprep.subr.mxu0 0.0
      %4574 = vmatpush1.msra.mxu0 0.0
      %4575 = vmatprep.subr.mxu0 0.0
      %4576 = vmatpush1.msra.mxu0 0.0
      %4577 = vmatprep.subr.mxu0 0.0
      %4578 = vmatpush1.msra.mxu0 0.0
      %4579 = vmatprep.subr.mxu0 0.0
      %4580 = vmatpush1.msra.mxu0 0.0
      %4581 = vmatprep.subr.mxu0 0.0
      %4582 = vmatpush1.msra.mxu0 0.0
      %4583 = vmatprep.subr.mxu0 0.0
      %4584 = vmatpush1.msra.mxu0 0.0
      %4585 = vmatprep.subr.mxu0 0.0
      %4586 = vmatpush1.msra.mxu0 0.0
      %4587 = vmatprep.subr.mxu0 0.0
      %4588 = vmatpush1.msra.mxu0 0.0
      %4589 = vmatprep.subr.mxu0 0.0
      %4590 = vmatpush1.msra.mxu0 0.0
      %4591 = vmatprep.subr.mxu0 0.0
      %4592 = vmatpush1.msra.mxu0 0.0
      %4593 = vmatprep.subr.mxu0 0.0
      %4594 = vmatpush1.msra.mxu0 0.0
      %4595 = vmatprep.subr.mxu0 0.0
      %4596 = vmatpush1.msra.mxu0 0.0
      %4597 = vmatprep.subr.mxu0 0.0
      %4598 = vmatpush1.msra.mxu0 0.0
      %4599 = vmatprep.subr.mxu0 0.0
      %4600 = vmatpush1.msra.mxu0 0.0
      %4601 = vmatprep.subr.mxu0 0.0
      %4602 = vmatpush1.msra.mxu0 0.0
      %4603 = vmatprep.subr.mxu0 0.0
      %4604 = vmatpush1.msra.mxu0 0.0
      %4605 = vmatprep.subr.mxu0 0.0
      %4606 = vmatpush1.msra.mxu0 0.0
      %4607 = vmatprep.subr.mxu0 0.0
      %4608 = vmatpush1.msra.mxu0 0.0
      %4609 = vmatprep.subr.mxu0 0.0
      %4610 = vmatpush1.msra.mxu0 0.0
      %4611 = vmatprep.subr.mxu0 0.0
      %4612 = vmatpush1.msra.mxu0 0.0
      %4613 = vmatprep.subr.mxu0 0.0
      %4614 = vmatpush1.msra.mxu0 0.0
      %4615 = vmatprep.subr.mxu0 0.0
      %4616 = vmatpush1.msra.mxu0 0.0
      %4617 = vmatprep.subr.mxu0 0.0
      %4618 = vmatpush1.msra.mxu0 0.0
      %4619 = vmatprep.subr.mxu0 0.0
      %4620 = vmatpush1.msra.mxu0 0.0
      %4621 = vmatprep.subr.mxu0 0.0
      %4622 = vmatpush1.msra.mxu0 0.0
      %4623 = vmatprep.subr.mxu0 0.0
      %4624 = vmatpush1.msra.mxu0 0.0
      %4625 = vmatprep.subr.mxu0 0.0
      %4626 = vmatpush1.msra.mxu0 0.0
      %4627 = vmatprep.mubr.f32.mxu0 0.0
      %4628 = vmatmul.mubr.f32.gmra.mrb[0].mxu0 %v4561
      %v4629 = vpop.f32.mrb[0].mxu0
      %v4630 = vadd.f32 0.0, %v4629
      %v4631 = vpop.f32.mrb[0].mxu0
      %4632 = vdwg.mxu0
      %4633 = vrot.lane.b32.xlu0 %v771, 48
      %v4634 = vpop.permute.xlu0 %4633
      %v4637 = vsel %vm799, %v4175, 0
      %4639 = vmatprep.subr.mxu0 0.0
      %4640 = vmatpush1.msra.mxu0 %v4634
      %4641 = vmatprep.subr.mxu0 0.0
      %4642 = vmatpush1.msra.mxu0 0.0
      %4643 = vmatprep.subr.mxu0 0.0
      %4644 = vmatpush1.msra.mxu0 0.0
      %4645 = vmatprep.subr.mxu0 0.0
      %4646 = vmatpush1.msra.mxu0 0.0
      %4647 = vmatprep.subr.mxu0 0.0
      %4648 = vmatpush1.msra.mxu0 0.0
      %4649 = vmatprep.subr.mxu0 0.0
      %4650 = vmatpush1.msra.mxu0 0.0
      %4651 = vmatprep.subr.mxu0 0.0
      %4652 = vmatpush1.msra.mxu0 0.0
      %4653 = vmatprep.subr.mxu0 0.0
      %4654 = vmatpush1.msra.mxu0 0.0
      %4655 = vmatprep.subr.mxu0 0.0
      %4656 = vmatpush1.msra.mxu0 0.0
      %4657 = vmatprep.subr.mxu0 0.0
      %4658 = vmatpush1.msra.mxu0 0.0
      %4659 = vmatprep.subr.mxu0 0.0
      %4660 = vmatpush1.msra.mxu0 0.0
      %4661 = vmatprep.subr.mxu0 0.0
      %4662 = vmatpush1.msra.mxu0 0.0
      %4663 = vmatprep.subr.mxu0 0.0
      %4664 = vmatpush1.msra.mxu0 0.0
      %4665 = vmatprep.subr.mxu0 0.0
      %4666 = vmatpush1.msra.mxu0 0.0
      %4667 = vmatprep.subr.mxu0 0.0
      %4668 = vmatpush1.msra.mxu0 0.0
      %4669 = vmatprep.subr.mxu0 0.0
      %4670 = vmatpush1.msra.mxu0 0.0
      %4671 = vmatprep.subr.mxu0 0.0
      %4672 = vmatpush1.msra.mxu0 0.0
      %4673 = vmatprep.subr.mxu0 0.0
      %4674 = vmatpush1.msra.mxu0 0.0
      %4675 = vmatprep.subr.mxu0 0.0
      %4676 = vmatpush1.msra.mxu0 0.0
      %4677 = vmatprep.subr.mxu0 0.0
      %4678 = vmatpush1.msra.mxu0 0.0
      %4679 = vmatprep.subr.mxu0 0.0
      %4680 = vmatpush1.msra.mxu0 0.0
      %4681 = vmatprep.subr.mxu0 0.0
      %4682 = vmatpush1.msra.mxu0 0.0
      %4683 = vmatprep.subr.mxu0 0.0
      %4684 = vmatpush1.msra.mxu0 0.0
      %4685 = vmatprep.subr.mxu0 0.0
      %4686 = vmatpush1.msra.mxu0 0.0
      %4687 = vmatprep.subr.mxu0 0.0
      %4688 = vmatpush1.msra.mxu0 0.0
      %4689 = vmatprep.subr.mxu0 0.0
      %4690 = vmatpush1.msra.mxu0 0.0
      %4691 = vmatprep.subr.mxu0 0.0
      %4692 = vmatpush1.msra.mxu0 0.0
      %4693 = vmatprep.subr.mxu0 0.0
      %4694 = vmatpush1.msra.mxu0 0.0
      %4695 = vmatprep.subr.mxu0 0.0
      %4696 = vmatpush1.msra.mxu0 0.0
      %4697 = vmatprep.subr.mxu0 0.0
      %4698 = vmatpush1.msra.mxu0 0.0
      %4699 = vmatprep.subr.mxu0 0.0
      %4700 = vmatpush1.msra.mxu0 0.0
      %4701 = vmatprep.subr.mxu0 0.0
      %4702 = vmatpush1.msra.mxu0 0.0
      %4703 = vmatprep.mubr.f32.mxu0 0.0
      %4704 = vmatmul.mubr.f32.gmra.mrb[0].mxu0 %v4637
      %v4705 = vpop.f32.mrb[0].mxu0
      %v4706 = vadd.f32 0.0, %v4705
      %v4707 = vpop.f32.mrb[0].mxu0
      %4708 = vdwg.mxu0
      %4709 = vrot.lane.b32.xlu0 %v776, 48
      %v4710 = vpop.permute.xlu0 %4709
      %v4713 = vsel %vm799, %v4176, 0
      %4715 = vmatprep.subr.mxu0 0.0
      %4716 = vmatpush1.msra.mxu0 %v4710
      %4717 = vmatprep.subr.mxu0 0.0
      %4718 = vmatpush1.msra.mxu0 0.0
      %4719 = vmatprep.subr.mxu0 0.0
      %4720 = vmatpush1.msra.mxu0 0.0
      %4721 = vmatprep.subr.mxu0 0.0
      %4722 = vmatpush1.msra.mxu0 0.0
      %4723 = vmatprep.subr.mxu0 0.0
      %4724 = vmatpush1.msra.mxu0 0.0
      %4725 = vmatprep.subr.mxu0 0.0
      %4726 = vmatpush1.msra.mxu0 0.0
      %4727 = vmatprep.subr.mxu0 0.0
      %4728 = vmatpush1.msra.mxu0 0.0
      %4729 = vmatprep.subr.mxu0 0.0
      %4730 = vmatpush1.msra.mxu0 0.0
      %4731 = vmatprep.subr.mxu0 0.0
      %4732 = vmatpush1.msra.mxu0 0.0
      %4733 = vmatprep.subr.mxu0 0.0
      %4734 = vmatpush1.msra.mxu0 0.0
      %4735 = vmatprep.subr.mxu0 0.0
      %4736 = vmatpush1.msra.mxu0 0.0
      %4737 = vmatprep.subr.mxu0 0.0
      %4738 = vmatpush1.msra.mxu0 0.0
      %4739 = vmatprep.subr.mxu0 0.0
      %4740 = vmatpush1.msra.mxu0 0.0
      %4741 = vmatprep.subr.mxu0 0.0
      %4742 = vmatpush1.msra.mxu0 0.0
      %4743 = vmatprep.subr.mxu0 0.0
      %4744 = vmatpush1.msra.mxu0 0.0
      %4745 = vmatprep.subr.mxu0 0.0
      %4746 = vmatpush1.msra.mxu0 0.0
      %4747 = vmatprep.subr.mxu0 0.0
      %4748 = vmatpush1.msra.mxu0 0.0
      %4749 = vmatprep.subr.mxu0 0.0
      %4750 = vmatpush1.msra.mxu0 0.0
      %4751 = vmatprep.subr.mxu0 0.0
      %4752 = vmatpush1.msra.mxu0 0.0
      %4753 = vmatprep.subr.mxu0 0.0
      %4754 = vmatpush1.msra.mxu0 0.0
      %4755 = vmatprep.subr.mxu0 0.0
      %4756 = vmatpush1.msra.mxu0 0.0
      %4757 = vmatprep.subr.mxu0 0.0
      %4758 = vmatpush1.msra.mxu0 0.0
      %4759 = vmatprep.subr.mxu0 0.0
      %4760 = vmatpush1.msra.mxu0 0.0
      %4761 = vmatprep.subr.mxu0 0.0
      %4762 = vmatpush1.msra.mxu0 0.0
      %4763 = vmatprep.subr.mxu0 0.0
      %4764 = vmatpush1.msra.mxu0 0.0
      %4765 = vmatprep.subr.mxu0 0.0
      %4766 = vmatpush1.msra.mxu0 0.0
      %4767 = vmatprep.subr.mxu0 0.0
      %4768 = vmatpush1.msra.mxu0 0.0
      %4769 = vmatprep.subr.mxu0 0.0
      %4770 = vmatpush1.msra.mxu0 0.0
      %4771 = vmatprep.subr.mxu0 0.0
      %4772 = vmatpush1.msra.mxu0 0.0
      %4773 = vmatprep.subr.mxu0 0.0
      %4774 = vmatpush1.msra.mxu0 0.0
      %4775 = vmatprep.subr.mxu0 0.0
      %4776 = vmatpush1.msra.mxu0 0.0
      %4777 = vmatprep.subr.mxu0 0.0
      %4778 = vmatpush1.msra.mxu0 0.0
      %4779 = vmatprep.mubr.f32.mxu0 0.0
      %4780 = vmatmul.mubr.f32.gmra.mrb[0].mxu0 %v4713
      %v4781 = vpop.f32.mrb[0].mxu0
      %v4782 = vadd.f32 0.0, %v4781
      %v4783 = vpop.f32.mrb[0].mxu0
      %4784 = vdwg.mxu0
      %s4785 = scalar_lea.vmem %s2, 24
      %v4786 = vld [vmem:[%s4785] sm:$0xff]
      %4787 = vrot.lane.b32.xlu0 %v787, 104
      %v4788 = vpop.permute.xlu0 %4787
      %4789 = vrot.lane.b32.xlu0 %v741, 72
      %v4790 = vpop.permute.xlu0 %4789
      %v4791 = vsel %vm799, %v4788, 0
      %v4793 = vsel %vm799, %v4790, 0
      %4795 = vmatprep.subr.mxu0 0.0
      %4796 = vmatpush1.xpose.msra.mxu0 %v4793
      %4797 = vmatprep.subr.mxu0 0.0
      %4798 = vmatpush1.xpose.msra.mxu0 0.0
      %4799 = vmatprep.subr.mxu0 0.0
      %4800 = vmatpush1.xpose.msra.mxu0 0.0
      %4801 = vmatprep.subr.mxu0 0.0
      %4802 = vmatpush1.xpose.msra.mxu0 0.0
      %4803 = vmatprep.subr.mxu0 0.0
      %4804 = vmatpush1.xpose.msra.mxu0 0.0
      %4805 = vmatprep.subr.mxu0 0.0
      %4806 = vmatpush1.xpose.msra.mxu0 0.0
      %4807 = vmatprep.subr.mxu0 0.0
      %4808 = vmatpush1.xpose.msra.mxu0 0.0
      %4809 = vmatprep.subr.mxu0 0.0
      %4810 = vmatpush1.xpose.msra.mxu0 0.0
      %4811 = vmatprep.subr.mxu0 0.0
      %4812 = vmatpush1.xpose.msra.mxu0 0.0
      %4813 = vmatprep.subr.mxu0 0.0
      %4814 = vmatpush1.xpose.msra.mxu0 0.0
      %4815 = vmatprep.subr.mxu0 0.0
      %4816 = vmatpush1.xpose.msra.mxu0 0.0
      %4817 = vmatprep.subr.mxu0 0.0
      %4818 = vmatpush1.xpose.msra.mxu0 0.0
      %4819 = vmatprep.subr.mxu0 0.0
      %4820 = vmatpush1.xpose.msra.mxu0 0.0
      %4821 = vmatprep.subr.mxu0 0.0
      %4822 = vmatpush1.xpose.msra.mxu0 0.0
      %4823 = vmatprep.subr.mxu0 0.0
      %4824 = vmatpush1.xpose.msra.mxu0 0.0
      %4825 = vmatprep.subr.mxu0 0.0
      %4826 = vmatpush1.xpose.msra.mxu0 0.0
      %4827 = vmatprep.subr.mxu0 0.0
      %4828 = vmatpush1.xpose.msra.mxu0 0.0
      %4829 = vmatprep.subr.mxu0 0.0
      %4830 = vmatpush1.xpose.msra.mxu0 0.0
      %4831 = vmatprep.subr.mxu0 0.0
      %4832 = vmatpush1.xpose.msra.mxu0 0.0
      %4833 = vmatprep.subr.mxu0 0.0
      %4834 = vmatpush1.xpose.msra.mxu0 0.0
      %4835 = vmatprep.subr.mxu0 0.0
      %4836 = vmatpush1.xpose.msra.mxu0 0.0
      %4837 = vmatprep.subr.mxu0 0.0
      %4838 = vmatpush1.xpose.msra.mxu0 0.0
      %4839 = vmatprep.subr.mxu0 0.0
      %4840 = vmatpush1.xpose.msra.mxu0 0.0
      %4841 = vmatprep.subr.mxu0 0.0
      %4842 = vmatpush1.xpose.msra.mxu0 0.0
      %4843 = vmatprep.subr.mxu0 0.0
      %4844 = vmatpush1.xpose.msra.mxu0 0.0
      %4845 = vmatprep.subr.mxu0 0.0
      %4846 = vmatpush1.xpose.msra.mxu0 0.0
      %4847 = vmatprep.subr.mxu0 0.0
      %4848 = vmatpush1.xpose.msra.mxu0 0.0
      %4849 = vmatprep.subr.mxu0 0.0
      %4850 = vmatpush1.xpose.msra.mxu0 0.0
      %4851 = vmatprep.subr.mxu0 0.0
      %4852 = vmatpush1.xpose.msra.mxu0 0.0
      %4853 = vmatprep.subr.mxu0 0.0
      %4854 = vmatpush1.xpose.msra.mxu0 0.0
      %4855 = vmatprep.subr.mxu0 0.0
      %4856 = vmatpush1.xpose.msra.mxu0 0.0
      %4857 = vmatprep.subr.mxu0 0.0
      %4858 = vmatpush1.xpose.msra.mxu0 0.0
      %4859 = vmatprep.mubr.f32.mxu0 0.0
      %4860 = vmatmul.mubr.f32.gmra.mrb[0].mxu0 %v4791
      %v4861 = vpop.f32.mrb[0].mxu0
      %v4862 = vadd.f32 %v4786, %v4861
      %v4863 = vpop.f32.mrb[0].mxu0
      %4864 = vdwg.mxu0
      %4865 = vrot.lane.b32.xlu0 %v788, 104
      %v4866 = vpop.permute.xlu0 %4865
      %4867 = vrot.lane.b32.xlu0 %v746, 72
      %v4868 = vpop.permute.xlu0 %4867
      %v4869 = vsel %vm799, %v4866, 0
      %v4871 = vsel %vm799, %v4868, 0
      %4873 = vmatprep.subr.mxu0 0.0
      %4874 = vmatpush1.xpose.msra.mxu0 %v4871
      %4875 = vmatprep.subr.mxu0 0.0
      %4876 = vmatpush1.xpose.msra.mxu0 0.0
      %4877 = vmatprep.subr.mxu0 0.0
      %4878 = vmatpush1.xpose.msra.mxu0 0.0
      %4879 = vmatprep.subr.mxu0 0.0
      %4880 = vmatpush1.xpose.msra.mxu0 0.0
      %4881 = vmatprep.subr.mxu0 0.0
      %4882 = vmatpush1.xpose.msra.mxu0 0.0
      %4883 = vmatprep.subr.mxu0 0.0
      %4884 = vmatpush1.xpose.msra.mxu0 0.0
      %4885 = vmatprep.subr.mxu0 0.0
      %4886 = vmatpush1.xpose.msra.mxu0 0.0
      %4887 = vmatprep.subr.mxu0 0.0
      %4888 = vmatpush1.xpose.msra.mxu0 0.0
      %4889 = vmatprep.subr.mxu0 0.0
      %4890 = vmatpush1.xpose.msra.mxu0 0.0
      %4891 = vmatprep.subr.mxu0 0.0
      %4892 = vmatpush1.xpose.msra.mxu0 0.0
      %4893 = vmatprep.subr.mxu0 0.0
      %4894 = vmatpush1.xpose.msra.mxu0 0.0
      %4895 = vmatprep.subr.mxu0 0.0
      %4896 = vmatpush1.xpose.msra.mxu0 0.0
      %4897 = vmatprep.subr.mxu0 0.0
      %4898 = vmatpush1.xpose.msra.mxu0 0.0
      %4899 = vmatprep.subr.mxu0 0.0
      %4900 = vmatpush1.xpose.msra.mxu0 0.0
      %4901 = vmatprep.subr.mxu0 0.0
      %4902 = vmatpush1.xpose.msra.mxu0 0.0
      %4903 = vmatprep.subr.mxu0 0.0
      %4904 = vmatpush1.xpose.msra.mxu0 0.0
      %4905 = vmatprep.subr.mxu0 0.0
      %4906 = vmatpush1.xpose.msra.mxu0 0.0
      %4907 = vmatprep.subr.mxu0 0.0
      %4908 = vmatpush1.xpose.msra.mxu0 0.0
      %4909 = vmatprep.subr.mxu0 0.0
      %4910 = vmatpush1.xpose.msra.mxu0 0.0
      %4911 = vmatprep.subr.mxu0 0.0
      %4912 = vmatpush1.xpose.msra.mxu0 0.0
      %4913 = vmatprep.subr.mxu0 0.0
      %4914 = vmatpush1.xpose.msra.mxu0 0.0
      %4915 = vmatprep.subr.mxu0 0.0
      %4916 = vmatpush1.xpose.msra.mxu0 0.0
      %4917 = vmatprep.subr.mxu0 0.0
      %4918 = vmatpush1.xpose.msra.mxu0 0.0
      %4919 = vmatprep.subr.mxu0 0.0
      %4920 = vmatpush1.xpose.msra.mxu0 0.0
      %4921 = vmatprep.subr.mxu0 0.0
      %4922 = vmatpush1.xpose.msra.mxu0 0.0
      %4923 = vmatprep.subr.mxu0 0.0
      %4924 = vmatpush1.xpose.msra.mxu0 0.0
      %4925 = vmatprep.subr.mxu0 0.0
      %4926 = vmatpush1.xpose.msra.mxu0 0.0
      %4927 = vmatprep.subr.mxu0 0.0
      %4928 = vmatpush1.xpose.msra.mxu0 0.0
      %4929 = vmatprep.subr.mxu0 0.0
      %4930 = vmatpush1.xpose.msra.mxu0 0.0
      %4931 = vmatprep.subr.mxu0 0.0
      %4932 = vmatpush1.xpose.msra.mxu0 0.0
      %4933 = vmatprep.subr.mxu0 0.0
      %4934 = vmatpush1.xpose.msra.mxu0 0.0
      %4935 = vmatprep.subr.mxu0 0.0
      %4936 = vmatpush1.xpose.msra.mxu0 0.0
      %4937 = vmatprep.mubr.f32.mxu0 0.0
      %4938 = vmatmul.mubr.f32.gmra.mrb[0].mxu0 %v4869
      %v4939 = vpop.f32.mrb[0].mxu0
      %v4940 = vadd.f32 %v4786, %v4939
      %v4941 = vpop.f32.mrb[0].mxu0
      %4942 = vdwg.mxu0
      %4943 = vrot.lane.b32.xlu0 %v789, 104
      %v4944 = vpop.permute.xlu0 %4943
      %4945 = vrot.lane.b32.xlu0 %v751, 72
      %v4946 = vpop.permute.xlu0 %4945
      %v4947 = vsel %vm799, %v4944, 0
      %v4949 = vsel %vm799, %v4946, 0
      %4951 = vmatprep.subr.mxu0 0.0
      %4952 = vmatpush1.xpose.msra.mxu0 %v4949
      %4953 = vmatprep.subr.mxu0 0.0
      %4954 = vmatpush1.xpose.msra.mxu0 0.0
      %4955 = vmatprep.subr.mxu0 0.0
      %4956 = vmatpush1.xpose.msra.mxu0 0.0
      %4957 = vmatprep.subr.mxu0 0.0
      %4958 = vmatpush1.xpose.msra.mxu0 0.0
      %4959 = vmatprep.subr.mxu0 0.0
      %4960 = vmatpush1.xpose.msra.mxu0 0.0
      %4961 = vmatprep.subr.mxu0 0.0
      %4962 = vmatpush1.xpose.msra.mxu0 0.0
      %4963 = vmatprep.subr.mxu0 0.0
      %4964 = vmatpush1.xpose.msra.mxu0 0.0
      %4965 = vmatprep.subr.mxu0 0.0
      %4966 = vmatpush1.xpose.msra.mxu0 0.0
      %4967 = vmatprep.subr.mxu0 0.0
      %4968 = vmatpush1.xpose.msra.mxu0 0.0
      %4969 = vmatprep.subr.mxu0 0.0
      %4970 = vmatpush1.xpose.msra.mxu0 0.0
      %4971 = vmatprep.subr.mxu0 0.0
      %4972 = vmatpush1.xpose.msra.mxu0 0.0
      %4973 = vmatprep.subr.mxu0 0.0
      %4974 = vmatpush1.xpose.msra.mxu0 0.0
      %4975 = vmatprep.subr.mxu0 0.0
      %4976 = vmatpush1.xpose.msra.mxu0 0.0
      %4977 = vmatprep.subr.mxu0 0.0
      %4978 = vmatpush1.xpose.msra.mxu0 0.0
      %4979 = vmatprep.subr.mxu0 0.0
      %4980 = vmatpush1.xpose.msra.mxu0 0.0
      %4981 = vmatprep.subr.mxu0 0.0
      %4982 = vmatpush1.xpose.msra.mxu0 0.0
      %4983 = vmatprep.subr.mxu0 0.0
      %4984 = vmatpush1.xpose.msra.mxu0 0.0
      %4985 = vmatprep.subr.mxu0 0.0
      %4986 = vmatpush1.xpose.msra.mxu0 0.0
      %4987 = vmatprep.subr.mxu0 0.0
      %4988 = vmatpush1.xpose.msra.mxu0 0.0
      %4989 = vmatprep.subr.mxu0 0.0
      %4990 = vmatpush1.xpose.msra.mxu0 0.0
      %4991 = vmatprep.subr.mxu0 0.0
      %4992 = vmatpush1.xpose.msra.mxu0 0.0
      %4993 = vmatprep.subr.mxu0 0.0
      %4994 = vmatpush1.xpose.msra.mxu0 0.0
      %4995 = vmatprep.subr.mxu0 0.0
      %4996 = vmatpush1.xpose.msra.mxu0 0.0
      %4997 = vmatprep.subr.mxu0 0.0
      %4998 = vmatpush1.xpose.msra.mxu0 0.0
      %4999 = vmatprep.subr.mxu0 0.0
      %5000 = vmatpush1.xpose.msra.mxu0 0.0
      %5001 = vmatprep.subr.mxu0 0.0
      %5002 = vmatpush1.xpose.msra.mxu0 0.0
      %5003 = vmatprep.subr.mxu0 0.0
      %5004 = vmatpush1.xpose.msra.mxu0 0.0
      %5005 = vmatprep.subr.mxu0 0.0
      %5006 = vmatpush1.xpose.msra.mxu0 0.0
      %5007 = vmatprep.subr.mxu0 0.0
      %5008 = vmatpush1.xpose.msra.mxu0 0.0
      %5009 = vmatprep.subr.mxu0 0.0
      %5010 = vmatpush1.xpose.msra.mxu0 0.0
      %5011 = vmatprep.subr.mxu0 0.0
      %5012 = vmatpush1.xpose.msra.mxu0 0.0
      %5013 = vmatprep.subr.mxu0 0.0
      %5014 = vmatpush1.xpose.msra.mxu0 0.0
      %5015 = vmatprep.mubr.f32.mxu0 0.0
      %5016 = vmatmul.mubr.f32.gmra.mrb[0].mxu0 %v4947
      %v5017 = vpop.f32.mrb[0].mxu0
      %v5018 = vadd.f32 %v4786, %v5017
      %v5019 = vpop.f32.mrb[0].mxu0
      %5020 = vdwg.mxu0
      %5021 = vrot.lane.b32.xlu0 %v790, 104
      %v5022 = vpop.permute.xlu0 %5021
      %5023 = vrot.lane.b32.xlu0 %v756, 72
      %v5024 = vpop.permute.xlu0 %5023
      %v5025 = vsel %vm799, %v5022, 0
      %v5027 = vsel %vm799, %v5024, 0
      %5029 = vmatprep.subr.mxu0 0.0
      %5030 = vmatpush1.xpose.msra.mxu0 %v5027
      %5031 = vmatprep.subr.mxu0 0.0
      %5032 = vmatpush1.xpose.msra.mxu0 0.0
      %5033 = vmatprep.subr.mxu0 0.0
      %5034 = vmatpush1.xpose.msra.mxu0 0.0
      %5035 = vmatprep.subr.mxu0 0.0
      %5036 = vmatpush1.xpose.msra.mxu0 0.0
      %5037 = vmatprep.subr.mxu0 0.0
      %5038 = vmatpush1.xpose.msra.mxu0 0.0
      %5039 = vmatprep.subr.mxu0 0.0
      %5040 = vmatpush1.xpose.msra.mxu0 0.0
      %5041 = vmatprep.subr.mxu0 0.0
      %5042 = vmatpush1.xpose.msra.mxu0 0.0
      %5043 = vmatprep.subr.mxu0 0.0
      %5044 = vmatpush1.xpose.msra.mxu0 0.0
      %5045 = vmatprep.subr.mxu0 0.0
      %5046 = vmatpush1.xpose.msra.mxu0 0.0
      %5047 = vmatprep.subr.mxu0 0.0
      %5048 = vmatpush1.xpose.msra.mxu0 0.0
      %5049 = vmatprep.subr.mxu0 0.0
      %5050 = vmatpush1.xpose.msra.mxu0 0.0
      %5051 = vmatprep.subr.mxu0 0.0
      %5052 = vmatpush1.xpose.msra.mxu0 0.0
      %5053 = vmatprep.subr.mxu0 0.0
      %5054 = vmatpush1.xpose.msra.mxu0 0.0
      %5055 = vmatprep.subr.mxu0 0.0
      %5056 = vmatpush1.xpose.msra.mxu0 0.0
      %5057 = vmatprep.subr.mxu0 0.0
      %5058 = vmatpush1.xpose.msra.mxu0 0.0
      %5059 = vmatprep.subr.mxu0 0.0
      %5060 = vmatpush1.xpose.msra.mxu0 0.0
      %5061 = vmatprep.subr.mxu0 0.0
      %5062 = vmatpush1.xpose.msra.mxu0 0.0
      %5063 = vmatprep.subr.mxu0 0.0
      %5064 = vmatpush1.xpose.msra.mxu0 0.0
      %5065 = vmatprep.subr.mxu0 0.0
      %5066 = vmatpush1.xpose.msra.mxu0 0.0
      %5067 = vmatprep.subr.mxu0 0.0
      %5068 = vmatpush1.xpose.msra.mxu0 0.0
      %5069 = vmatprep.subr.mxu0 0.0
      %5070 = vmatpush1.xpose.msra.mxu0 0.0
      %5071 = vmatprep.subr.mxu0 0.0
      %5072 = vmatpush1.xpose.msra.mxu0 0.0
      %5073 = vmatprep.subr.mxu0 0.0
      %5074 = vmatpush1.xpose.msra.mxu0 0.0
      %5075 = vmatprep.subr.mxu0 0.0
      %5076 = vmatpush1.xpose.msra.mxu0 0.0
      %5077 = vmatprep.subr.mxu0 0.0
      %5078 = vmatpush1.xpose.msra.mxu0 0.0
      %5079 = vmatprep.subr.mxu0 0.0
      %5080 = vmatpush1.xpose.msra.mxu0 0.0
      %5081 = vmatprep.subr.mxu0 0.0
      %5082 = vmatpush1.xpose.msra.mxu0 0.0
      %5083 = vmatprep.subr.mxu0 0.0
      %5084 = vmatpush1.xpose.msra.mxu0 0.0
      %5085 = vmatprep.subr.mxu0 0.0
      %5086 = vmatpush1.xpose.msra.mxu0 0.0
      %5087 = vmatprep.subr.mxu0 0.0
      %5088 = vmatpush1.xpose.msra.mxu0 0.0
      %5089 = vmatprep.subr.mxu0 0.0
      %5090 = vmatpush1.xpose.msra.mxu0 0.0
      %5091 = vmatprep.subr.mxu0 0.0
      %5092 = vmatpush1.xpose.msra.mxu0 0.0
      %5093 = vmatprep.mubr.f32.mxu0 0.0
      %5094 = vmatmul.mubr.f32.gmra.mrb[0].mxu0 %v5025
      %v5095 = vpop.f32.mrb[0].mxu0
      %v5096 = vadd.f32 %v4786, %v5095
      %v5097 = vpop.f32.mrb[0].mxu0
      %5098 = vdwg.mxu0
      %5099 = vrot.lane.b32.xlu0 %v791, 104
      %v5100 = vpop.permute.xlu0 %5099
      %5101 = vrot.lane.b32.xlu0 %v761, 72
      %v5102 = vpop.permute.xlu0 %5101
      %v5103 = vsel %vm799, %v5100, 0
      %v5105 = vsel %vm799, %v5102, 0
      %5107 = vmatprep.subr.mxu0 0.0
      %5108 = vmatpush1.xpose.msra.mxu0 %v5105
      %5109 = vmatprep.subr.mxu0 0.0
      %5110 = vmatpush1.xpose.msra.mxu0 0.0
      %5111 = vmatprep.subr.mxu0 0.0
      %5112 = vmatpush1.xpose.msra.mxu0 0.0
      %5113 = vmatprep.subr.mxu0 0.0
      %5114 = vmatpush1.xpose.msra.mxu0 0.0
      %5115 = vmatprep.subr.mxu0 0.0
      %5116 = vmatpush1.xpose.msra.mxu0 0.0
      %5117 = vmatprep.subr.mxu0 0.0
      %5118 = vmatpush1.xpose.msra.mxu0 0.0
      %5119 = vmatprep.subr.mxu0 0.0
      %5120 = vmatpush1.xpose.msra.mxu0 0.0
      %5121 = vmatprep.subr.mxu0 0.0
      %5122 = vmatpush1.xpose.msra.mxu0 0.0
      %5123 = vmatprep.subr.mxu0 0.0
      %5124 = vmatpush1.xpose.msra.mxu0 0.0
      %5125 = vmatprep.subr.mxu0 0.0
      %5126 = vmatpush1.xpose.msra.mxu0 0.0
      %5127 = vmatprep.subr.mxu0 0.0
      %5128 = vmatpush1.xpose.msra.mxu0 0.0
      %5129 = vmatprep.subr.mxu0 0.0
      %5130 = vmatpush1.xpose.msra.mxu0 0.0
      %5131 = vmatprep.subr.mxu0 0.0
      %5132 = vmatpush1.xpose.msra.mxu0 0.0
      %5133 = vmatprep.subr.mxu0 0.0
      %5134 = vmatpush1.xpose.msra.mxu0 0.0
      %5135 = vmatprep.subr.mxu0 0.0
      %5136 = vmatpush1.xpose.msra.mxu0 0.0
      %5137 = vmatprep.subr.mxu0 0.0
      %5138 = vmatpush1.xpose.msra.mxu0 0.0
      %5139 = vmatprep.subr.mxu0 0.0
      %5140 = vmatpush1.xpose.msra.mxu0 0.0
      %5141 = vmatprep.subr.mxu0 0.0
      %5142 = vmatpush1.xpose.msra.mxu0 0.0
      %5143 = vmatprep.subr.mxu0 0.0
      %5144 = vmatpush1.xpose.msra.mxu0 0.0
      %5145 = vmatprep.subr.mxu0 0.0
      %5146 = vmatpush1.xpose.msra.mxu0 0.0
      %5147 = vmatprep.subr.mxu0 0.0
      %5148 = vmatpush1.xpose.msra.mxu0 0.0
      %5149 = vmatprep.subr.mxu0 0.0
      %5150 = vmatpush1.xpose.msra.mxu0 0.0
      %5151 = vmatprep.subr.mxu0 0.0
      %5152 = vmatpush1.xpose.msra.mxu0 0.0
      %5153 = vmatprep.subr.mxu0 0.0
      %5154 = vmatpush1.xpose.msra.mxu0 0.0
      %5155 = vmatprep.subr.mxu0 0.0
      %5156 = vmatpush1.xpose.msra.mxu0 0.0
      %5157 = vmatprep.subr.mxu0 0.0
      %5158 = vmatpush1.xpose.msra.mxu0 0.0
      %5159 = vmatprep.subr.mxu0 0.0
      %5160 = vmatpush1.xpose.msra.mxu0 0.0
      %5161 = vmatprep.subr.mxu0 0.0
      %5162 = vmatpush1.xpose.msra.mxu0 0.0
      %5163 = vmatprep.subr.mxu0 0.0
      %5164 = vmatpush1.xpose.msra.mxu0 0.0
      %5165 = vmatprep.subr.mxu0 0.0
      %5166 = vmatpush1.xpose.msra.mxu0 0.0
      %5167 = vmatprep.subr.mxu0 0.0
      %5168 = vmatpush1.xpose.msra.mxu0 0.0
      %5169 = vmatprep.subr.mxu0 0.0
      %5170 = vmatpush1.xpose.msra.mxu0 0.0
      %5171 = vmatprep.mubr.f32.mxu0 0.0
      %5172 = vmatmul.mubr.f32.gmra.mrb[0].mxu0 %v5103
      %v5173 = vpop.f32.mrb[0].mxu0
      %v5174 = vadd.f32 %v4786, %v5173
      %v5175 = vpop.f32.mrb[0].mxu0
      %5176 = vdwg.mxu0
      %5177 = vrot.lane.b32.xlu0 %v792, 104
      %v5178 = vpop.permute.xlu0 %5177
      %5179 = vrot.lane.b32.xlu0 %v766, 72
      %v5180 = vpop.permute.xlu0 %5179
      %v5181 = vsel %vm799, %v5178, 0
      %v5183 = vsel %vm799, %v5180, 0
      %5185 = vmatprep.subr.mxu0 0.0
      %5186 = vmatpush1.xpose.msra.mxu0 %v5183
      %5187 = vmatprep.subr.mxu0 0.0
      %5188 = vmatpush1.xpose.msra.mxu0 0.0
      %5189 = vmatprep.subr.mxu0 0.0
      %5190 = vmatpush1.xpose.msra.mxu0 0.0
      %5191 = vmatprep.subr.mxu0 0.0
      %5192 = vmatpush1.xpose.msra.mxu0 0.0
      %5193 = vmatprep.subr.mxu0 0.0
      %5194 = vmatpush1.xpose.msra.mxu0 0.0
      %5195 = vmatprep.subr.mxu0 0.0
      %5196 = vmatpush1.xpose.msra.mxu0 0.0
      %5197 = vmatprep.subr.mxu0 0.0
      %5198 = vmatpush1.xpose.msra.mxu0 0.0
      %5199 = vmatprep.subr.mxu0 0.0
      %5200 = vmatpush1.xpose.msra.mxu0 0.0
      %5201 = vmatprep.subr.mxu0 0.0
      %5202 = vmatpush1.xpose.msra.mxu0 0.0
      %5203 = vmatprep.subr.mxu0 0.0
      %5204 = vmatpush1.xpose.msra.mxu0 0.0
      %5205 = vmatprep.subr.mxu0 0.0
      %5206 = vmatpush1.xpose.msra.mxu0 0.0
      %5207 = vmatprep.subr.mxu0 0.0
      %5208 = vmatpush1.xpose.msra.mxu0 0.0
      %5209 = vmatprep.subr.mxu0 0.0
      %5210 = vmatpush1.xpose.msra.mxu0 0.0
      %5211 = vmatprep.subr.mxu0 0.0
      %5212 = vmatpush1.xpose.msra.mxu0 0.0
      %5213 = vmatprep.subr.mxu0 0.0
      %5214 = vmatpush1.xpose.msra.mxu0 0.0
      %5215 = vmatprep.subr.mxu0 0.0
      %5216 = vmatpush1.xpose.msra.mxu0 0.0
      %5217 = vmatprep.subr.mxu0 0.0
      %5218 = vmatpush1.xpose.msra.mxu0 0.0
      %5219 = vmatprep.subr.mxu0 0.0
      %5220 = vmatpush1.xpose.msra.mxu0 0.0
      %5221 = vmatprep.subr.mxu0 0.0
      %5222 = vmatpush1.xpose.msra.mxu0 0.0
      %5223 = vmatprep.subr.mxu0 0.0
      %5224 = vmatpush1.xpose.msra.mxu0 0.0
      %5225 = vmatprep.subr.mxu0 0.0
      %5226 = vmatpush1.xpose.msra.mxu0 0.0
      %5227 = vmatprep.subr.mxu0 0.0
      %5228 = vmatpush1.xpose.msra.mxu0 0.0
      %5229 = vmatprep.subr.mxu0 0.0
      %5230 = vmatpush1.xpose.msra.mxu0 0.0
      %5231 = vmatprep.subr.mxu0 0.0
      %5232 = vmatpush1.xpose.msra.mxu0 0.0
      %5233 = vmatprep.subr.mxu0 0.0
      %5234 = vmatpush1.xpose.msra.mxu0 0.0
      %5235 = vmatprep.subr.mxu0 0.0
      %5236 = vmatpush1.xpose.msra.mxu0 0.0
      %5237 = vmatprep.subr.mxu0 0.0
      %5238 = vmatpush1.xpose.msra.mxu0 0.0
      %5239 = vmatprep.subr.mxu0 0.0
      %5240 = vmatpush1.xpose.msra.mxu0 0.0
      %5241 = vmatprep.subr.mxu0 0.0
      %5242 = vmatpush1.xpose.msra.mxu0 0.0
      %5243 = vmatprep.subr.mxu0 0.0
      %5244 = vmatpush1.xpose.msra.mxu0 0.0
      %5245 = vmatprep.subr.mxu0 0.0
      %5246 = vmatpush1.xpose.msra.mxu0 0.0
      %5247 = vmatprep.subr.mxu0 0.0
      %5248 = vmatpush1.xpose.msra.mxu0 0.0
      %5249 = vmatprep.mubr.f32.mxu0 0.0
      %5250 = vmatmul.mubr.f32.gmra.mrb[0].mxu0 %v5181
      %v5251 = vpop.f32.mrb[0].mxu0
      %v5252 = vadd.f32 %v4786, %v5251
      %v5253 = vpop.f32.mrb[0].mxu0
      %5254 = vdwg.mxu0
      %5255 = vrot.lane.b32.xlu0 %v793, 104
      %v5256 = vpop.permute.xlu0 %5255
      %5257 = vrot.lane.b32.xlu0 %v771, 72
      %v5258 = vpop.permute.xlu0 %5257
      %v5259 = vsel %vm799, %v5256, 0
      %v5261 = vsel %vm799, %v5258, 0
      %5263 = vmatprep.subr.mxu0 0.0
      %5264 = vmatpush1.xpose.msra.mxu0 %v5261
      %5265 = vmatprep.subr.mxu0 0.0
      %5266 = vmatpush1.xpose.msra.mxu0 0.0
      %5267 = vmatprep.subr.mxu0 0.0
      %5268 = vmatpush1.xpose.msra.mxu0 0.0
      %5269 = vmatprep.subr.mxu0 0.0
      %5270 = vmatpush1.xpose.msra.mxu0 0.0
      %5271 = vmatprep.subr.mxu0 0.0
      %5272 = vmatpush1.xpose.msra.mxu0 0.0
      %5273 = vmatprep.subr.mxu0 0.0
      %5274 = vmatpush1.xpose.msra.mxu0 0.0
      %5275 = vmatprep.subr.mxu0 0.0
      %5276 = vmatpush1.xpose.msra.mxu0 0.0
      %5277 = vmatprep.subr.mxu0 0.0
      %5278 = vmatpush1.xpose.msra.mxu0 0.0
      %5279 = vmatprep.subr.mxu0 0.0
      %5280 = vmatpush1.xpose.msra.mxu0 0.0
      %5281 = vmatprep.subr.mxu0 0.0
      %5282 = vmatpush1.xpose.msra.mxu0 0.0
      %5283 = vmatprep.subr.mxu0 0.0
      %5284 = vmatpush1.xpose.msra.mxu0 0.0
      %5285 = vmatprep.subr.mxu0 0.0
      %5286 = vmatpush1.xpose.msra.mxu0 0.0
      %5287 = vmatprep.subr.mxu0 0.0
      %5288 = vmatpush1.xpose.msra.mxu0 0.0
      %5289 = vmatprep.subr.mxu0 0.0
      %5290 = vmatpush1.xpose.msra.mxu0 0.0
      %5291 = vmatprep.subr.mxu0 0.0
      %5292 = vmatpush1.xpose.msra.mxu0 0.0
      %5293 = vmatprep.subr.mxu0 0.0
      %5294 = vmatpush1.xpose.msra.mxu0 0.0
      %5295 = vmatprep.subr.mxu0 0.0
      %5296 = vmatpush1.xpose.msra.mxu0 0.0
      %5297 = vmatprep.subr.mxu0 0.0
      %5298 = vmatpush1.xpose.msra.mxu0 0.0
      %5299 = vmatprep.subr.mxu0 0.0
      %5300 = vmatpush1.xpose.msra.mxu0 0.0
      %5301 = vmatprep.subr.mxu0 0.0
      %5302 = vmatpush1.xpose.msra.mxu0 0.0
      %5303 = vmatprep.subr.mxu0 0.0
      %5304 = vmatpush1.xpose.msra.mxu0 0.0
      %5305 = vmatprep.subr.mxu0 0.0
      %5306 = vmatpush1.xpose.msra.mxu0 0.0
      %5307 = vmatprep.subr.mxu0 0.0
      %5308 = vmatpush1.xpose.msra.mxu0 0.0
      %5309 = vmatprep.subr.mxu0 0.0
      %5310 = vmatpush1.xpose.msra.mxu0 0.0
      %5311 = vmatprep.subr.mxu0 0.0
      %5312 = vmatpush1.xpose.msra.mxu0 0.0
      %5313 = vmatprep.subr.mxu0 0.0
      %5314 = vmatpush1.xpose.msra.mxu0 0.0
      %5315 = vmatprep.subr.mxu0 0.0
      %5316 = vmatpush1.xpose.msra.mxu0 0.0
      %5317 = vmatprep.subr.mxu0 0.0
      %5318 = vmatpush1.xpose.msra.mxu0 0.0
      %5319 = vmatprep.subr.mxu0 0.0
      %5320 = vmatpush1.xpose.msra.mxu0 0.0
      %5321 = vmatprep.subr.mxu0 0.0
      %5322 = vmatpush1.xpose.msra.mxu0 0.0
      %5323 = vmatprep.subr.mxu0 0.0
      %5324 = vmatpush1.xpose.msra.mxu0 0.0
      %5325 = vmatprep.subr.mxu0 0.0
      %5326 = vmatpush1.xpose.msra.mxu0 0.0
      %5327 = vmatprep.mubr.f32.mxu0 0.0
      %5328 = vmatmul.mubr.f32.gmra.mrb[0].mxu0 %v5259
      %v5329 = vpop.f32.mrb[0].mxu0
      %v5330 = vadd.f32 %v4786, %v5329
      %v5331 = vpop.f32.mrb[0].mxu0
      %5332 = vdwg.mxu0
      %5333 = vrot.lane.b32.xlu0 %v794, 104
      %v5334 = vpop.permute.xlu0 %5333
      %5335 = vrot.lane.b32.xlu0 %v776, 72
      %v5336 = vpop.permute.xlu0 %5335
      %v5337 = vsel %vm799, %v5334, 0
      %v5339 = vsel %vm799, %v5336, 0
      %5341 = vmatprep.subr.mxu0 0.0
      %5342 = vmatpush1.xpose.msra.mxu0 %v5339
      %5343 = vmatprep.subr.mxu0 0.0
      %5344 = vmatpush1.xpose.msra.mxu0 0.0
      %5345 = vmatprep.subr.mxu0 0.0
      %5346 = vmatpush1.xpose.msra.mxu0 0.0
      %5347 = vmatprep.subr.mxu0 0.0
      %5348 = vmatpush1.xpose.msra.mxu0 0.0
      %5349 = vmatprep.subr.mxu0 0.0
      %5350 = vmatpush1.xpose.msra.mxu0 0.0
      %5351 = vmatprep.subr.mxu0 0.0
      %5352 = vmatpush1.xpose.msra.mxu0 0.0
      %5353 = vmatprep.subr.mxu0 0.0
      %5354 = vmatpush1.xpose.msra.mxu0 0.0
      %5355 = vmatprep.subr.mxu0 0.0
      %5356 = vmatpush1.xpose.msra.mxu0 0.0
      %5357 = vmatprep.subr.mxu0 0.0
      %5358 = vmatpush1.xpose.msra.mxu0 0.0
      %5359 = vmatprep.subr.mxu0 0.0
      %5360 = vmatpush1.xpose.msra.mxu0 0.0
      %5361 = vmatprep.subr.mxu0 0.0
      %5362 = vmatpush1.xpose.msra.mxu0 0.0
      %5363 = vmatprep.subr.mxu0 0.0
      %5364 = vmatpush1.xpose.msra.mxu0 0.0
      %5365 = vmatprep.subr.mxu0 0.0
      %5366 = vmatpush1.xpose.msra.mxu0 0.0
      %5367 = vmatprep.subr.mxu0 0.0
      %5368 = vmatpush1.xpose.msra.mxu0 0.0
      %5369 = vmatprep.subr.mxu0 0.0
      %5370 = vmatpush1.xpose.msra.mxu0 0.0
      %5371 = vmatprep.subr.mxu0 0.0
      %5372 = vmatpush1.xpose.msra.mxu0 0.0
      %5373 = vmatprep.subr.mxu0 0.0
      %5374 = vmatpush1.xpose.msra.mxu0 0.0
      %5375 = vmatprep.subr.mxu0 0.0
      %5376 = vmatpush1.xpose.msra.mxu0 0.0
      %5377 = vmatprep.subr.mxu0 0.0
      %5378 = vmatpush1.xpose.msra.mxu0 0.0
      %5379 = vmatprep.subr.mxu0 0.0
      %5380 = vmatpush1.xpose.msra.mxu0 0.0
      %5381 = vmatprep.subr.mxu0 0.0
      %5382 = vmatpush1.xpose.msra.mxu0 0.0
      %5383 = vmatprep.subr.mxu0 0.0
      %5384 = vmatpush1.xpose.msra.mxu0 0.0
      %5385 = vmatprep.subr.mxu0 0.0
      %5386 = vmatpush1.xpose.msra.mxu0 0.0
      %5387 = vmatprep.subr.mxu0 0.0
      %5388 = vmatpush1.xpose.msra.mxu0 0.0
      %5389 = vmatprep.subr.mxu0 0.0
      %5390 = vmatpush1.xpose.msra.mxu0 0.0
      %5391 = vmatprep.subr.mxu0 0.0
      %5392 = vmatpush1.xpose.msra.mxu0 0.0
      %5393 = vmatprep.subr.mxu0 0.0
      %5394 = vmatpush1.xpose.msra.mxu0 0.0
      %5395 = vmatprep.subr.mxu0 0.0
      %5396 = vmatpush1.xpose.msra.mxu0 0.0
      %5397 = vmatprep.subr.mxu0 0.0
      %5398 = vmatpush1.xpose.msra.mxu0 0.0
      %5399 = vmatprep.subr.mxu0 0.0
      %5400 = vmatpush1.xpose.msra.mxu0 0.0
      %5401 = vmatprep.subr.mxu0 0.0
      %5402 = vmatpush1.xpose.msra.mxu0 0.0
      %5403 = vmatprep.subr.mxu0 0.0
      %5404 = vmatpush1.xpose.msra.mxu0 0.0
      %5405 = vmatprep.mubr.f32.mxu0 0.0
      %5406 = vmatmul.mubr.f32.gmra.mrb[0].mxu0 %v5337
      %v5407 = vpop.f32.mrb[0].mxu0
      %v5408 = vadd.f32 %v4786, %v5407
      %v5409 = vpop.f32.mrb[0].mxu0
      %5410 = vdwg.mxu0
      %v5411 = vadd.f32 %v4862, %v779
      %v5412 = vadd.f32 %v4940, %v780
      %v5413 = vadd.f32 %v5018, %v781
      %v5414 = vadd.f32 %v5096, %v782
      %v5415 = vadd.f32 %v5174, %v783
      %v5416 = vadd.f32 %v5252, %v784
      %v5417 = vadd.f32 %v5330, %v785
      %v5418 = vadd.f32 %v5408, %v786
      %v5419 = vsel %vm799, %v5411, -inf
      %5420 = vmax.xlane.f32.xlu0 %v5419
      %v5421 = vpop.xlane.xlu0 %5420
      %v5422 = vsel %vm799, %v5412, -inf
      %5423 = vmax.xlane.f32.xlu0 %v5422
      %v5424 = vpop.xlane.xlu0 %5423
      %v5425 = vsel %vm799, %v5413, -inf
      %5426 = vmax.xlane.f32.xlu0 %v5425
      %v5427 = vpop.xlane.xlu0 %5426
      %v5428 = vsel %vm799, %v5414, -inf
      %5429 = vmax.xlane.f32.xlu0 %v5428
      %v5430 = vpop.xlane.xlu0 %5429
      %v5431 = vsel %vm799, %v5415, -inf
      %5432 = vmax.xlane.f32.xlu0 %v5431
      %v5433 = vpop.xlane.xlu0 %5432
      %v5434 = vsel %vm799, %v5416, -inf
      %5435 = vmax.xlane.f32.xlu0 %v5434
      %v5436 = vpop.xlane.xlu0 %5435
      %v5437 = vsel %vm799, %v5417, -inf
      %5438 = vmax.xlane.f32.xlu0 %v5437
      %v5439 = vpop.xlane.xlu0 %5438
      %v5440 = vsel %vm799, %v5418, -inf
      %5441 = vmax.xlane.f32.xlu0 %v5440
      %v5442 = vpop.xlane.xlu0 %5441
      %v5443 = vsub.f32 %v5411, %v5421
      %v5444 = vsub.f32 %v5412, %v5424
      %v5445 = vsub.f32 %v5413, %v5427
      %v5446 = vsub.f32 %v5414, %v5430
      %v5447 = vsub.f32 %v5415, %v5433
      %v5448 = vsub.f32 %v5416, %v5436
      %v5449 = vsub.f32 %v5417, %v5439
      %v5450 = vsub.f32 %v5418, %v5442
      %v5451 = vmul.f32 %v5443, 1.442695
      %v5452 = vpow.pop %v5451
      %v5453 = vmul.f32 %v5444, 1.442695
      %v5454 = vpow.pop %v5453
      %v5455 = vmul.f32 %v5445, 1.442695
      %v5456 = vpow.pop %v5455
      %v5457 = vmul.f32 %v5446, 1.442695
      %v5458 = vpow.pop %v5457
      %v5459 = vmul.f32 %v5447, 1.442695
      %v5460 = vpow.pop %v5459
      %v5461 = vmul.f32 %v5448, 1.442695
      %v5462 = vpow.pop %v5461
      %v5463 = vmul.f32 %v5449, 1.442695
      %v5464 = vpow.pop %v5463
      %v5465 = vmul.f32 %v5450, 1.442695
      %v5466 = vpow.pop %v5465
      %v5467 = vsel %vm799, %v5452, 0.0
      %5468 = vadd.xlane.f32.xlu0 %v5467
      %v5469 = vpop.xlane.xlu0 %5468
      %v5470 = vsel %vm799, %v5454, 0.0
      %5471 = vadd.xlane.f32.xlu0 %v5470
      %v5472 = vpop.xlane.xlu0 %5471
      %v5473 = vsel %vm799, %v5456, 0.0
      %5474 = vadd.xlane.f32.xlu0 %v5473
      %v5475 = vpop.xlane.xlu0 %5474
      %v5476 = vsel %vm799, %v5458, 0.0
      %5477 = vadd.xlane.f32.xlu0 %v5476
      %v5478 = vpop.xlane.xlu0 %5477
      %v5479 = vsel %vm799, %v5460, 0.0
      %5480 = vadd.xlane.f32.xlu0 %v5479
      %v5481 = vpop.xlane.xlu0 %5480
      %v5482 = vsel %vm799, %v5462, 0.0
      %5483 = vadd.xlane.f32.xlu0 %v5482
      %v5484 = vpop.xlane.xlu0 %5483
      %v5485 = vsel %vm799, %v5464, 0.0
      %5486 = vadd.xlane.f32.xlu0 %v5485
      %v5487 = vpop.xlane.xlu0 %5486
      %v5488 = vsel %vm799, %v5466, 0.0
      %5489 = vadd.xlane.f32.xlu0 %v5488
      %v5490 = vpop.xlane.xlu0 %5489
      %v5491 = vrcp.pop %v5469
      %v5492 = vrcp.pop %v5472
      %v5493 = vrcp.pop %v5475
      %v5494 = vrcp.pop %v5478
      %v5495 = vrcp.pop %v5481
      %v5496 = vrcp.pop %v5484
      %v5497 = vrcp.pop %v5487
      %v5498 = vrcp.pop %v5490
      %v5499 = vmul.f32 %v5452, %v5491
      %v5500 = vmul.f32 %v5454, %v5492
      %v5501 = vmul.f32 %v5456, %v5493
      %v5502 = vmul.f32 %v5458, %v5494
      %v5503 = vmul.f32 %v5460, %v5495
      %v5504 = vmul.f32 %v5462, %v5496
      %v5505 = vmul.f32 %v5464, %v5497
      %v5506 = vmul.f32 %v5466, %v5498
      %5507 = vrot.lane.b32.xlu0 %v741, 40
      %v5508 = vpop.permute.xlu0 %5507
      %v5511 = vsel %vm799, %v5499, 0
      %5513 = vmatprep.subr.mxu0 0.0
      %5514 = vmatpush1.msra.mxu0 %v5508
      %5515 = vmatprep.subr.mxu0 0.0
      %5516 = vmatpush1.msra.mxu0 0.0
      %5517 = vmatprep.subr.mxu0 0.0
      %5518 = vmatpush1.msra.mxu0 0.0
      %5519 = vmatprep.subr.mxu0 0.0
      %5520 = vmatpush1.msra.mxu0 0.0
      %5521 = vmatprep.subr.mxu0 0.0
      %5522 = vmatpush1.msra.mxu0 0.0
      %5523 = vmatprep.subr.mxu0 0.0
      %5524 = vmatpush1.msra.mxu0 0.0
      %5525 = vmatprep.subr.mxu0 0.0
      %5526 = vmatpush1.msra.mxu0 0.0
      %5527 = vmatprep.subr.mxu0 0.0
      %5528 = vmatpush1.msra.mxu0 0.0
      %5529 = vmatprep.subr.mxu0 0.0
      %5530 = vmatpush1.msra.mxu0 0.0
      %5531 = vmatprep.subr.mxu0 0.0
      %5532 = vmatpush1.msra.mxu0 0.0
      %5533 = vmatprep.subr.mxu0 0.0
      %5534 = vmatpush1.msra.mxu0 0.0
      %5535 = vmatprep.subr.mxu0 0.0
      %5536 = vmatpush1.msra.mxu0 0.0
      %5537 = vmatprep.subr.mxu0 0.0
      %5538 = vmatpush1.msra.mxu0 0.0
      %5539 = vmatprep.subr.mxu0 0.0
      %5540 = vmatpush1.msra.mxu0 0.0
      %5541 = vmatprep.subr.mxu0 0.0
      %5542 = vmatpush1.msra.mxu0 0.0
      %5543 = vmatprep.subr.mxu0 0.0
      %5544 = vmatpush1.msra.mxu0 0.0
      %5545 = vmatprep.subr.mxu0 0.0
      %5546 = vmatpush1.msra.mxu0 0.0
      %5547 = vmatprep.subr.mxu0 0.0
      %5548 = vmatpush1.msra.mxu0 0.0
      %5549 = vmatprep.subr.mxu0 0.0
      %5550 = vmatpush1.msra.mxu0 0.0
      %5551 = vmatprep.subr.mxu0 0.0
      %5552 = vmatpush1.msra.mxu0 0.0
      %5553 = vmatprep.subr.mxu0 0.0
      %5554 = vmatpush1.msra.mxu0 0.0
      %5555 = vmatprep.subr.mxu0 0.0
      %5556 = vmatpush1.msra.mxu0 0.0
      %5557 = vmatprep.subr.mxu0 0.0
      %5558 = vmatpush1.msra.mxu0 0.0
      %5559 = vmatprep.subr.mxu0 0.0
      %5560 = vmatpush1.msra.mxu0 0.0
      %5561 = vmatprep.subr.mxu0 0.0
      %5562 = vmatpush1.msra.mxu0 0.0
      %5563 = vmatprep.subr.mxu0 0.0
      %5564 = vmatpush1.msra.mxu0 0.0
      %5565 = vmatprep.subr.mxu0 0.0
      %5566 = vmatpush1.msra.mxu0 0.0
      %5567 = vmatprep.subr.mxu0 0.0
      %5568 = vmatpush1.msra.mxu0 0.0
      %5569 = vmatprep.subr.mxu0 0.0
      %5570 = vmatpush1.msra.mxu0 0.0
      %5571 = vmatprep.subr.mxu0 0.0
      %5572 = vmatpush1.msra.mxu0 0.0
      %5573 = vmatprep.subr.mxu0 0.0
      %5574 = vmatpush1.msra.mxu0 0.0
      %5575 = vmatprep.subr.mxu0 0.0
      %5576 = vmatpush1.msra.mxu0 0.0
      %5577 = vmatprep.mubr.f32.mxu0 0.0
      %5578 = vmatmul.mubr.f32.gmra.mrb[0].mxu0 %v5511
      %v5579 = vpop.f32.mrb[0].mxu0
      %v5580 = vadd.f32 0.0, %v5579
      %v5581 = vpop.f32.mrb[0].mxu0
      %5582 = vdwg.mxu0
      %5583 = vrot.lane.b32.xlu0 %v746, 40
      %v5584 = vpop.permute.xlu0 %5583
      %v5587 = vsel %vm799, %v5500, 0
      %5589 = vmatprep.subr.mxu0 0.0
      %5590 = vmatpush1.msra.mxu0 %v5584
      %5591 = vmatprep.subr.mxu0 0.0
      %5592 = vmatpush1.msra.mxu0 0.0
      %5593 = vmatprep.subr.mxu0 0.0
      %5594 = vmatpush1.msra.mxu0 0.0
      %5595 = vmatprep.subr.mxu0 0.0
      %5596 = vmatpush1.msra.mxu0 0.0
      %5597 = vmatprep.subr.mxu0 0.0
      %5598 = vmatpush1.msra.mxu0 0.0
      %5599 = vmatprep.subr.mxu0 0.0
      %5600 = vmatpush1.msra.mxu0 0.0
      %5601 = vmatprep.subr.mxu0 0.0
      %5602 = vmatpush1.msra.mxu0 0.0
      %5603 = vmatprep.subr.mxu0 0.0
      %5604 = vmatpush1.msra.mxu0 0.0
      %5605 = vmatprep.subr.mxu0 0.0
      %5606 = vmatpush1.msra.mxu0 0.0
      %5607 = vmatprep.subr.mxu0 0.0
      %5608 = vmatpush1.msra.mxu0 0.0
      %5609 = vmatprep.subr.mxu0 0.0
      %5610 = vmatpush1.msra.mxu0 0.0
      %5611 = vmatprep.subr.mxu0 0.0
      %5612 = vmatpush1.msra.mxu0 0.0
      %5613 = vmatprep.subr.mxu0 0.0
      %5614 = vmatpush1.msra.mxu0 0.0
      %5615 = vmatprep.subr.mxu0 0.0
      %5616 = vmatpush1.msra.mxu0 0.0
      %5617 = vmatprep.subr.mxu0 0.0
      %5618 = vmatpush1.msra.mxu0 0.0
      %5619 = vmatprep.subr.mxu0 0.0
      %5620 = vmatpush1.msra.mxu0 0.0
      %5621 = vmatprep.subr.mxu0 0.0
      %5622 = vmatpush1.msra.mxu0 0.0
      %5623 = vmatprep.subr.mxu0 0.0
      %5624 = vmatpush1.msra.mxu0 0.0
      %5625 = vmatprep.subr.mxu0 0.0
      %5626 = vmatpush1.msra.mxu0 0.0
      %5627 = vmatprep.subr.mxu0 0.0
      %5628 = vmatpush1.msra.mxu0 0.0
      %5629 = vmatprep.subr.mxu0 0.0
      %5630 = vmatpush1.msra.mxu0 0.0
      %5631 = vmatprep.subr.mxu0 0.0
      %5632 = vmatpush1.msra.mxu0 0.0
      %5633 = vmatprep.subr.mxu0 0.0
      %5634 = vmatpush1.msra.mxu0 0.0
      %5635 = vmatprep.subr.mxu0 0.0
      %5636 = vmatpush1.msra.mxu0 0.0
      %5637 = vmatprep.subr.mxu0 0.0
      %5638 = vmatpush1.msra.mxu0 0.0
      %5639 = vmatprep.subr.mxu0 0.0
      %5640 = vmatpush1.msra.mxu0 0.0
      %5641 = vmatprep.subr.mxu0 0.0
      %5642 = vmatpush1.msra.mxu0 0.0
      %5643 = vmatprep.subr.mxu0 0.0
      %5644 = vmatpush1.msra.mxu0 0.0
      %5645 = vmatprep.subr.mxu0 0.0
      %5646 = vmatpush1.msra.mxu0 0.0
      %5647 = vmatprep.subr.mxu0 0.0
      %5648 = vmatpush1.msra.mxu0 0.0
      %5649 = vmatprep.subr.mxu0 0.0
      %5650 = vmatpush1.msra.mxu0 0.0
      %5651 = vmatprep.subr.mxu0 0.0
      %5652 = vmatpush1.msra.mxu0 0.0
      %5653 = vmatprep.mubr.f32.mxu0 0.0
      %5654 = vmatmul.mubr.f32.gmra.mrb[0].mxu0 %v5587
      %v5655 = vpop.f32.mrb[0].mxu0
      %v5656 = vadd.f32 0.0, %v5655
      %v5657 = vpop.f32.mrb[0].mxu0
      %5658 = vdwg.mxu0
      %5659 = vrot.lane.b32.xlu0 %v751, 40
      %v5660 = vpop.permute.xlu0 %5659
      %v5663 = vsel %vm799, %v5501, 0
      %5665 = vmatprep.subr.mxu0 0.0
      %5666 = vmatpush1.msra.mxu0 %v5660
      %5667 = vmatprep.subr.mxu0 0.0
      %5668 = vmatpush1.msra.mxu0 0.0
      %5669 = vmatprep.subr.mxu0 0.0
      %5670 = vmatpush1.msra.mxu0 0.0
      %5671 = vmatprep.subr.mxu0 0.0
      %5672 = vmatpush1.msra.mxu0 0.0
      %5673 = vmatprep.subr.mxu0 0.0
      %5674 = vmatpush1.msra.mxu0 0.0
      %5675 = vmatprep.subr.mxu0 0.0
      %5676 = vmatpush1.msra.mxu0 0.0
      %5677 = vmatprep.subr.mxu0 0.0
      %5678 = vmatpush1.msra.mxu0 0.0
      %5679 = vmatprep.subr.mxu0 0.0
      %5680 = vmatpush1.msra.mxu0 0.0
      %5681 = vmatprep.subr.mxu0 0.0
      %5682 = vmatpush1.msra.mxu0 0.0
      %5683 = vmatprep.subr.mxu0 0.0
      %5684 = vmatpush1.msra.mxu0 0.0
      %5685 = vmatprep.subr.mxu0 0.0
      %5686 = vmatpush1.msra.mxu0 0.0
      %5687 = vmatprep.subr.mxu0 0.0
      %5688 = vmatpush1.msra.mxu0 0.0
      %5689 = vmatprep.subr.mxu0 0.0
      %5690 = vmatpush1.msra.mxu0 0.0
      %5691 = vmatprep.subr.mxu0 0.0
      %5692 = vmatpush1.msra.mxu0 0.0
      %5693 = vmatprep.subr.mxu0 0.0
      %5694 = vmatpush1.msra.mxu0 0.0
      %5695 = vmatprep.subr.mxu0 0.0
      %5696 = vmatpush1.msra.mxu0 0.0
      %5697 = vmatprep.subr.mxu0 0.0
      %5698 = vmatpush1.msra.mxu0 0.0
      %5699 = vmatprep.subr.mxu0 0.0
      %5700 = vmatpush1.msra.mxu0 0.0
      %5701 = vmatprep.subr.mxu0 0.0
      %5702 = vmatpush1.msra.mxu0 0.0
      %5703 = vmatprep.subr.mxu0 0.0
      %5704 = vmatpush1.msra.mxu0 0.0
      %5705 = vmatprep.subr.mxu0 0.0
      %5706 = vmatpush1.msra.mxu0 0.0
      %5707 = vmatprep.subr.mxu0 0.0
      %5708 = vmatpush1.msra.mxu0 0.0
      %5709 = vmatprep.subr.mxu0 0.0
      %5710 = vmatpush1.msra.mxu0 0.0
      %5711 = vmatprep.subr.mxu0 0.0
      %5712 = vmatpush1.msra.mxu0 0.0
      %5713 = vmatprep.subr.mxu0 0.0
      %5714 = vmatpush1.msra.mxu0 0.0
      %5715 = vmatprep.subr.mxu0 0.0
      %5716 = vmatpush1.msra.mxu0 0.0
      %5717 = vmatprep.subr.mxu0 0.0
      %5718 = vmatpush1.msra.mxu0 0.0
      %5719 = vmatprep.subr.mxu0 0.0
      %5720 = vmatpush1.msra.mxu0 0.0
      %5721 = vmatprep.subr.mxu0 0.0
      %5722 = vmatpush1.msra.mxu0 0.0
      %5723 = vmatprep.subr.mxu0 0.0
      %5724 = vmatpush1.msra.mxu0 0.0
      %5725 = vmatprep.subr.mxu0 0.0
      %5726 = vmatpush1.msra.mxu0 0.0
      %5727 = vmatprep.subr.mxu0 0.0
      %5728 = vmatpush1.msra.mxu0 0.0
      %5729 = vmatprep.mubr.f32.mxu0 0.0
      %5730 = vmatmul.mubr.f32.gmra.mrb[0].mxu0 %v5663
      %v5731 = vpop.f32.mrb[0].mxu0
      %v5732 = vadd.f32 0.0, %v5731
      %v5733 = vpop.f32.mrb[0].mxu0
      %5734 = vdwg.mxu0
      %5735 = vrot.lane.b32.xlu0 %v756, 40
      %v5736 = vpop.permute.xlu0 %5735
      %v5739 = vsel %vm799, %v5502, 0
      %5741 = vmatprep.subr.mxu0 0.0
      %5742 = vmatpush1.msra.mxu0 %v5736
      %5743 = vmatprep.subr.mxu0 0.0
      %5744 = vmatpush1.msra.mxu0 0.0
      %5745 = vmatprep.subr.mxu0 0.0
      %5746 = vmatpush1.msra.mxu0 0.0
      %5747 = vmatprep.subr.mxu0 0.0
      %5748 = vmatpush1.msra.mxu0 0.0
      %5749 = vmatprep.subr.mxu0 0.0
      %5750 = vmatpush1.msra.mxu0 0.0
      %5751 = vmatprep.subr.mxu0 0.0
      %5752 = vmatpush1.msra.mxu0 0.0
      %5753 = vmatprep.subr.mxu0 0.0
      %5754 = vmatpush1.msra.mxu0 0.0
      %5755 = vmatprep.subr.mxu0 0.0
      %5756 = vmatpush1.msra.mxu0 0.0
      %5757 = vmatprep.subr.mxu0 0.0
      %5758 = vmatpush1.msra.mxu0 0.0
      %5759 = vmatprep.subr.mxu0 0.0
      %5760 = vmatpush1.msra.mxu0 0.0
      %5761 = vmatprep.subr.mxu0 0.0
      %5762 = vmatpush1.msra.mxu0 0.0
      %5763 = vmatprep.subr.mxu0 0.0
      %5764 = vmatpush1.msra.mxu0 0.0
      %5765 = vmatprep.subr.mxu0 0.0
      %5766 = vmatpush1.msra.mxu0 0.0
      %5767 = vmatprep.subr.mxu0 0.0
      %5768 = vmatpush1.msra.mxu0 0.0
      %5769 = vmatprep.subr.mxu0 0.0
      %5770 = vmatpush1.msra.mxu0 0.0
      %5771 = vmatprep.subr.mxu0 0.0
      %5772 = vmatpush1.msra.mxu0 0.0
      %5773 = vmatprep.subr.mxu0 0.0
      %5774 = vmatpush1.msra.mxu0 0.0
      %5775 = vmatprep.subr.mxu0 0.0
      %5776 = vmatpush1.msra.mxu0 0.0
      %5777 = vmatprep.subr.mxu0 0.0
      %5778 = vmatpush1.msra.mxu0 0.0
      %5779 = vmatprep.subr.mxu0 0.0
      %5780 = vmatpush1.msra.mxu0 0.0
      %5781 = vmatprep.subr.mxu0 0.0
      %5782 = vmatpush1.msra.mxu0 0.0
      %5783 = vmatprep.subr.mxu0 0.0
      %5784 = vmatpush1.msra.mxu0 0.0
      %5785 = vmatprep.subr.mxu0 0.0
      %5786 = vmatpush1.msra.mxu0 0.0
      %5787 = vmatprep.subr.mxu0 0.0
      %5788 = vmatpush1.msra.mxu0 0.0
      %5789 = vmatprep.subr.mxu0 0.0
      %5790 = vmatpush1.msra.mxu0 0.0
      %5791 = vmatprep.subr.mxu0 0.0
      %5792 = vmatpush1.msra.mxu0 0.0
      %5793 = vmatprep.subr.mxu0 0.0
      %5794 = vmatpush1.msra.mxu0 0.0
      %5795 = vmatprep.subr.mxu0 0.0
      %5796 = vmatpush1.msra.mxu0 0.0
      %5797 = vmatprep.subr.mxu0 0.0
      %5798 = vmatpush1.msra.mxu0 0.0
      %5799 = vmatprep.subr.mxu0 0.0
      %5800 = vmatpush1.msra.mxu0 0.0
      %5801 = vmatprep.subr.mxu0 0.0
      %5802 = vmatpush1.msra.mxu0 0.0
      %5803 = vmatprep.subr.mxu0 0.0
      %5804 = vmatpush1.msra.mxu0 0.0
      %5805 = vmatprep.mubr.f32.mxu0 0.0
      %5806 = vmatmul.mubr.f32.gmra.mrb[0].mxu0 %v5739
      %v5807 = vpop.f32.mrb[0].mxu0
      %v5808 = vadd.f32 0.0, %v5807
      %v5809 = vpop.f32.mrb[0].mxu0
      %5810 = vdwg.mxu0
      %5811 = vrot.lane.b32.xlu0 %v761, 40
      %v5812 = vpop.permute.xlu0 %5811
      %v5815 = vsel %vm799, %v5503, 0
      %5817 = vmatprep.subr.mxu0 0.0
      %5818 = vmatpush1.msra.mxu0 %v5812
      %5819 = vmatprep.subr.mxu0 0.0
      %5820 = vmatpush1.msra.mxu0 0.0
      %5821 = vmatprep.subr.mxu0 0.0
      %5822 = vmatpush1.msra.mxu0 0.0
      %5823 = vmatprep.subr.mxu0 0.0
      %5824 = vmatpush1.msra.mxu0 0.0
      %5825 = vmatprep.subr.mxu0 0.0
      %5826 = vmatpush1.msra.mxu0 0.0
      %5827 = vmatprep.subr.mxu0 0.0
      %5828 = vmatpush1.msra.mxu0 0.0
      %5829 = vmatprep.subr.mxu0 0.0
      %5830 = vmatpush1.msra.mxu0 0.0
      %5831 = vmatprep.subr.mxu0 0.0
      %5832 = vmatpush1.msra.mxu0 0.0
      %5833 = vmatprep.subr.mxu0 0.0
      %5834 = vmatpush1.msra.mxu0 0.0
      %5835 = vmatprep.subr.mxu0 0.0
      %5836 = vmatpush1.msra.mxu0 0.0
      %5837 = vmatprep.subr.mxu0 0.0
      %5838 = vmatpush1.msra.mxu0 0.0
      %5839 = vmatprep.subr.mxu0 0.0
      %5840 = vmatpush1.msra.mxu0 0.0
      %5841 = vmatprep.subr.mxu0 0.0
      %5842 = vmatpush1.msra.mxu0 0.0
      %5843 = vmatprep.subr.mxu0 0.0
      %5844 = vmatpush1.msra.mxu0 0.0
      %5845 = vmatprep.subr.mxu0 0.0
      %5846 = vmatpush1.msra.mxu0 0.0
      %5847 = vmatprep.subr.mxu0 0.0
      %5848 = vmatpush1.msra.mxu0 0.0
      %5849 = vmatprep.subr.mxu0 0.0
      %5850 = vmatpush1.msra.mxu0 0.0
      %5851 = vmatprep.subr.mxu0 0.0
      %5852 = vmatpush1.msra.mxu0 0.0
      %5853 = vmatprep.subr.mxu0 0.0
      %5854 = vmatpush1.msra.mxu0 0.0
      %5855 = vmatprep.subr.mxu0 0.0
      %5856 = vmatpush1.msra.mxu0 0.0
      %5857 = vmatprep.subr.mxu0 0.0
      %5858 = vmatpush1.msra.mxu0 0.0
      %5859 = vmatprep.subr.mxu0 0.0
      %5860 = vmatpush1.msra.mxu0 0.0
      %5861 = vmatprep.subr.mxu0 0.0
      %5862 = vmatpush1.msra.mxu0 0.0
      %5863 = vmatprep.subr.mxu0 0.0
      %5864 = vmatpush1.msra.mxu0 0.0
      %5865 = vmatprep.subr.mxu0 0.0
      %5866 = vmatpush1.msra.mxu0 0.0
      %5867 = vmatprep.subr.mxu0 0.0
      %5868 = vmatpush1.msra.mxu0 0.0
      %5869 = vmatprep.subr.mxu0 0.0
      %5870 = vmatpush1.msra.mxu0 0.0
      %5871 = vmatprep.subr.mxu0 0.0
      %5872 = vmatpush1.msra.mxu0 0.0
      %5873 = vmatprep.subr.mxu0 0.0
      %5874 = vmatpush1.msra.mxu0 0.0
      %5875 = vmatprep.subr.mxu0 0.0
      %5876 = vmatpush1.msra.mxu0 0.0
      %5877 = vmatprep.subr.mxu0 0.0
      %5878 = vmatpush1.msra.mxu0 0.0
      %5879 = vmatprep.subr.mxu0 0.0
      %5880 = vmatpush1.msra.mxu0 0.0
      %5881 = vmatprep.mubr.f32.mxu0 0.0
      %5882 = vmatmul.mubr.f32.gmra.mrb[0].mxu0 %v5815
      %v5883 = vpop.f32.mrb[0].mxu0
      %v5884 = vadd.f32 0.0, %v5883
      %v5885 = vpop.f32.mrb[0].mxu0
      %5886 = vdwg.mxu0
      %5887 = vrot.lane.b32.xlu0 %v766, 40
      %v5888 = vpop.permute.xlu0 %5887
      %v5891 = vsel %vm799, %v5504, 0
      %5893 = vmatprep.subr.mxu0 0.0
      %5894 = vmatpush1.msra.mxu0 %v5888
      %5895 = vmatprep.subr.mxu0 0.0
      %5896 = vmatpush1.msra.mxu0 0.0
      %5897 = vmatprep.subr.mxu0 0.0
      %5898 = vmatpush1.msra.mxu0 0.0
      %5899 = vmatprep.subr.mxu0 0.0
      %5900 = vmatpush1.msra.mxu0 0.0
      %5901 = vmatprep.subr.mxu0 0.0
      %5902 = vmatpush1.msra.mxu0 0.0
      %5903 = vmatprep.subr.mxu0 0.0
      %5904 = vmatpush1.msra.mxu0 0.0
      %5905 = vmatprep.subr.mxu0 0.0
      %5906 = vmatpush1.msra.mxu0 0.0
      %5907 = vmatprep.subr.mxu0 0.0
      %5908 = vmatpush1.msra.mxu0 0.0
      %5909 = vmatprep.subr.mxu0 0.0
      %5910 = vmatpush1.msra.mxu0 0.0
      %5911 = vmatprep.subr.mxu0 0.0
      %5912 = vmatpush1.msra.mxu0 0.0
      %5913 = vmatprep.subr.mxu0 0.0
      %5914 = vmatpush1.msra.mxu0 0.0
      %5915 = vmatprep.subr.mxu0 0.0
      %5916 = vmatpush1.msra.mxu0 0.0
      %5917 = vmatprep.subr.mxu0 0.0
      %5918 = vmatpush1.msra.mxu0 0.0
      %5919 = vmatprep.subr.mxu0 0.0
      %5920 = vmatpush1.msra.mxu0 0.0
      %5921 = vmatprep.subr.mxu0 0.0
      %5922 = vmatpush1.msra.mxu0 0.0
      %5923 = vmatprep.subr.mxu0 0.0
      %5924 = vmatpush1.msra.mxu0 0.0
      %5925 = vmatprep.subr.mxu0 0.0
      %5926 = vmatpush1.msra.mxu0 0.0
      %5927 = vmatprep.subr.mxu0 0.0
      %5928 = vmatpush1.msra.mxu0 0.0
      %5929 = vmatprep.subr.mxu0 0.0
      %5930 = vmatpush1.msra.mxu0 0.0
      %5931 = vmatprep.subr.mxu0 0.0
      %5932 = vmatpush1.msra.mxu0 0.0
      %5933 = vmatprep.subr.mxu0 0.0
      %5934 = vmatpush1.msra.mxu0 0.0
      %5935 = vmatprep.subr.mxu0 0.0
      %5936 = vmatpush1.msra.mxu0 0.0
      %5937 = vmatprep.subr.mxu0 0.0
      %5938 = vmatpush1.msra.mxu0 0.0
      %5939 = vmatprep.subr.mxu0 0.0
      %5940 = vmatpush1.msra.mxu0 0.0
      %5941 = vmatprep.subr.mxu0 0.0
      %5942 = vmatpush1.msra.mxu0 0.0
      %5943 = vmatprep.subr.mxu0 0.0
      %5944 = vmatpush1.msra.mxu0 0.0
      %5945 = vmatprep.subr.mxu0 0.0
      %5946 = vmatpush1.msra.mxu0 0.0
      %5947 = vmatprep.subr.mxu0 0.0
      %5948 = vmatpush1.msra.mxu0 0.0
      %5949 = vmatprep.subr.mxu0 0.0
      %5950 = vmatpush1.msra.mxu0 0.0
      %5951 = vmatprep.subr.mxu0 0.0
      %5952 = vmatpush1.msra.mxu0 0.0
      %5953 = vmatprep.subr.mxu0 0.0
      %5954 = vmatpush1.msra.mxu0 0.0
      %5955 = vmatprep.subr.mxu0 0.0
      %5956 = vmatpush1.msra.mxu0 0.0
      %5957 = vmatprep.mubr.f32.mxu0 0.0
      %5958 = vmatmul.mubr.f32.gmra.mrb[0].mxu0 %v5891
      %v5959 = vpop.f32.mrb[0].mxu0
      %v5960 = vadd.f32 0.0, %v5959
      %v5961 = vpop.f32.mrb[0].mxu0
      %5962 = vdwg.mxu0
      %5963 = vrot.lane.b32.xlu0 %v771, 40
      %v5964 = vpop.permute.xlu0 %5963
      %v5967 = vsel %vm799, %v5505, 0
      %5969 = vmatprep.subr.mxu0 0.0
      %5970 = vmatpush1.msra.mxu0 %v5964
      %5971 = vmatprep.subr.mxu0 0.0
      %5972 = vmatpush1.msra.mxu0 0.0
      %5973 = vmatprep.subr.mxu0 0.0
      %5974 = vmatpush1.msra.mxu0 0.0
      %5975 = vmatprep.subr.mxu0 0.0
      %5976 = vmatpush1.msra.mxu0 0.0
      %5977 = vmatprep.subr.mxu0 0.0
      %5978 = vmatpush1.msra.mxu0 0.0
      %5979 = vmatprep.subr.mxu0 0.0
      %5980 = vmatpush1.msra.mxu0 0.0
      %5981 = vmatprep.subr.mxu0 0.0
      %5982 = vmatpush1.msra.mxu0 0.0
      %5983 = vmatprep.subr.mxu0 0.0
      %5984 = vmatpush1.msra.mxu0 0.0
      %5985 = vmatprep.subr.mxu0 0.0
      %5986 = vmatpush1.msra.mxu0 0.0
      %5987 = vmatprep.subr.mxu0 0.0
      %5988 = vmatpush1.msra.mxu0 0.0
      %5989 = vmatprep.subr.mxu0 0.0
      %5990 = vmatpush1.msra.mxu0 0.0
      %5991 = vmatprep.subr.mxu0 0.0
      %5992 = vmatpush1.msra.mxu0 0.0
      %5993 = vmatprep.subr.mxu0 0.0
      %5994 = vmatpush1.msra.mxu0 0.0
      %5995 = vmatprep.subr.mxu0 0.0
      %5996 = vmatpush1.msra.mxu0 0.0
      %5997 = vmatprep.subr.mxu0 0.0
      %5998 = vmatpush1.msra.mxu0 0.0
      %5999 = vmatprep.subr.mxu0 0.0
      %6000 = vmatpush1.msra.mxu0 0.0
      %6001 = vmatprep.subr.mxu0 0.0
      %6002 = vmatpush1.msra.mxu0 0.0
      %6003 = vmatprep.subr.mxu0 0.0
      %6004 = vmatpush1.msra.mxu0 0.0
      %6005 = vmatprep.subr.mxu0 0.0
      %6006 = vmatpush1.msra.mxu0 0.0
      %6007 = vmatprep.subr.mxu0 0.0
      %6008 = vmatpush1.msra.mxu0 0.0
      %6009 = vmatprep.subr.mxu0 0.0
      %6010 = vmatpush1.msra.mxu0 0.0
      %6011 = vmatprep.subr.mxu0 0.0
      %6012 = vmatpush1.msra.mxu0 0.0
      %6013 = vmatprep.subr.mxu0 0.0
      %6014 = vmatpush1.msra.mxu0 0.0
      %6015 = vmatprep.subr.mxu0 0.0
      %6016 = vmatpush1.msra.mxu0 0.0
      %6017 = vmatprep.subr.mxu0 0.0
      %6018 = vmatpush1.msra.mxu0 0.0
      %6019 = vmatprep.subr.mxu0 0.0
      %6020 = vmatpush1.msra.mxu0 0.0
      %6021 = vmatprep.subr.mxu0 0.0
      %6022 = vmatpush1.msra.mxu0 0.0
      %6023 = vmatprep.subr.mxu0 0.0
      %6024 = vmatpush1.msra.mxu0 0.0
      %6025 = vmatprep.subr.mxu0 0.0
      %6026 = vmatpush1.msra.mxu0 0.0
      %6027 = vmatprep.subr.mxu0 0.0
      %6028 = vmatpush1.msra.mxu0 0.0
      %6029 = vmatprep.subr.mxu0 0.0
      %6030 = vmatpush1.msra.mxu0 0.0
      %6031 = vmatprep.subr.mxu0 0.0
      %6032 = vmatpush1.msra.mxu0 0.0
      %6033 = vmatprep.mubr.f32.mxu0 0.0
      %6034 = vmatmul.mubr.f32.gmra.mrb[0].mxu0 %v5967
      %v6035 = vpop.f32.mrb[0].mxu0
      %v6036 = vadd.f32 0.0, %v6035
      %v6037 = vpop.f32.mrb[0].mxu0
      %6038 = vdwg.mxu0
      %6039 = vrot.lane.b32.xlu0 %v776, 40
      %v6040 = vpop.permute.xlu0 %6039
      %v6043 = vsel %vm799, %v5506, 0
      %6045 = vmatprep.subr.mxu0 0.0
      %6046 = vmatpush1.msra.mxu0 %v6040
      %6047 = vmatprep.subr.mxu0 0.0
      %6048 = vmatpush1.msra.mxu0 0.0
      %6049 = vmatprep.subr.mxu0 0.0
      %6050 = vmatpush1.msra.mxu0 0.0
      %6051 = vmatprep.subr.mxu0 0.0
      %6052 = vmatpush1.msra.mxu0 0.0
      %6053 = vmatprep.subr.mxu0 0.0
      %6054 = vmatpush1.msra.mxu0 0.0
      %6055 = vmatprep.subr.mxu0 0.0
      %6056 = vmatpush1.msra.mxu0 0.0
      %6057 = vmatprep.subr.mxu0 0.0
      %6058 = vmatpush1.msra.mxu0 0.0
      %6059 = vmatprep.subr.mxu0 0.0
      %6060 = vmatpush1.msra.mxu0 0.0
      %6061 = vmatprep.subr.mxu0 0.0
      %6062 = vmatpush1.msra.mxu0 0.0
      %6063 = vmatprep.subr.mxu0 0.0
      %6064 = vmatpush1.msra.mxu0 0.0
      %6065 = vmatprep.subr.mxu0 0.0
      %6066 = vmatpush1.msra.mxu0 0.0
      %6067 = vmatprep.subr.mxu0 0.0
      %6068 = vmatpush1.msra.mxu0 0.0
      %6069 = vmatprep.subr.mxu0 0.0
      %6070 = vmatpush1.msra.mxu0 0.0
      %6071 = vmatprep.subr.mxu0 0.0
      %6072 = vmatpush1.msra.mxu0 0.0
      %6073 = vmatprep.subr.mxu0 0.0
      %6074 = vmatpush1.msra.mxu0 0.0
      %6075 = vmatprep.subr.mxu0 0.0
      %6076 = vmatpush1.msra.mxu0 0.0
      %6077 = vmatprep.subr.mxu0 0.0
      %6078 = vmatpush1.msra.mxu0 0.0
      %6079 = vmatprep.subr.mxu0 0.0
      %6080 = vmatpush1.msra.mxu0 0.0
      %6081 = vmatprep.subr.mxu0 0.0
      %6082 = vmatpush1.msra.mxu0 0.0
      %6083 = vmatprep.subr.mxu0 0.0
      %6084 = vmatpush1.msra.mxu0 0.0
      %6085 = vmatprep.subr.mxu0 0.0
      %6086 = vmatpush1.msra.mxu0 0.0
      %6087 = vmatprep.subr.mxu0 0.0
      %6088 = vmatpush1.msra.mxu0 0.0
      %6089 = vmatprep.subr.mxu0 0.0
      %6090 = vmatpush1.msra.mxu0 0.0
      %6091 = vmatprep.subr.mxu0 0.0
      %6092 = vmatpush1.msra.mxu0 0.0
      %6093 = vmatprep.subr.mxu0 0.0
      %6094 = vmatpush1.msra.mxu0 0.0
      %6095 = vmatprep.subr.mxu0 0.0
      %6096 = vmatpush1.msra.mxu0 0.0
      %6097 = vmatprep.subr.mxu0 0.0
      %6098 = vmatpush1.msra.mxu0 0.0
      %6099 = vmatprep.subr.mxu0 0.0
      %6100 = vmatpush1.msra.mxu0 0.0
      %6101 = vmatprep.subr.mxu0 0.0
      %6102 = vmatpush1.msra.mxu0 0.0
      %6103 = vmatprep.subr.mxu0 0.0
      %6104 = vmatpush1.msra.mxu0 0.0
      %6105 = vmatprep.subr.mxu0 0.0
      %6106 = vmatpush1.msra.mxu0 0.0
      %6107 = vmatprep.subr.mxu0 0.0
      %6108 = vmatpush1.msra.mxu0 0.0
      %6109 = vmatprep.mubr.f32.mxu0 0.0
      %6110 = vmatmul.mubr.f32.gmra.mrb[0].mxu0 %v6043
      %v6111 = vpop.f32.mrb[0].mxu0
      %v6112 = vadd.f32 0.0, %v6111
      %v6113 = vpop.f32.mrb[0].mxu0
      %6114 = vdwg.mxu0
      %6123 = vrot.lane.b32.xlu0 %v2920, 8
      %v6124 = vpop.permute.xlu0 %6123
      %6125 = vrot.lane.b32.xlu0 %v2996, 8
      %v6126 = vpop.permute.xlu0 %6125
      %6127 = vrot.lane.b32.xlu0 %v3072, 8
      %v6128 = vpop.permute.xlu0 %6127
      %6129 = vrot.lane.b32.xlu0 %v3148, 8
      %v6130 = vpop.permute.xlu0 %6129
      %6131 = vrot.lane.b32.xlu0 %v3224, 8
      %v6132 = vpop.permute.xlu0 %6131
      %6133 = vrot.lane.b32.xlu0 %v3300, 8
      %v6134 = vpop.permute.xlu0 %6133
      %6135 = vrot.lane.b32.xlu0 %v3376, 8
      %v6136 = vpop.permute.xlu0 %6135
      %6137 = vrot.lane.b32.xlu0 %v3452, 8
      %v6138 = vpop.permute.xlu0 %6137
      %6155 = vrot.lane.b32.xlu0 %v4250, 16
      %v6156 = vpop.permute.xlu0 %6155
      %6157 = vrot.lane.b32.xlu0 %v4326, 16
      %v6158 = vpop.permute.xlu0 %6157
      %6159 = vrot.lane.b32.xlu0 %v4402, 16
      %v6160 = vpop.permute.xlu0 %6159
      %6161 = vrot.lane.b32.xlu0 %v4478, 16
      %v6162 = vpop.permute.xlu0 %6161
      %6163 = vrot.lane.b32.xlu0 %v4554, 16
      %v6164 = vpop.permute.xlu0 %6163
      %6165 = vrot.lane.b32.xlu0 %v4630, 16
      %v6166 = vpop.permute.xlu0 %6165
      %6167 = vrot.lane.b32.xlu0 %v4706, 16
      %v6168 = vpop.permute.xlu0 %6167
      %6169 = vrot.lane.b32.xlu0 %v4782, 16
      %v6170 = vpop.permute.xlu0 %6169
      %6187 = vrot.lane.b32.xlu0 %v5580, 24
      %v6188 = vpop.permute.xlu0 %6187
      %6189 = vrot.lane.b32.xlu0 %v5656, 24
      %v6190 = vpop.permute.xlu0 %6189
      %6191 = vrot.lane.b32.xlu0 %v5732, 24
      %v6192 = vpop.permute.xlu0 %6191
      %6193 = vrot.lane.b32.xlu0 %v5808, 24
      %v6194 = vpop.permute.xlu0 %6193
      %6195 = vrot.lane.b32.xlu0 %v5884, 24
      %v6196 = vpop.permute.xlu0 %6195
      %6197 = vrot.lane.b32.xlu0 %v5960, 24
      %v6198 = vpop.permute.xlu0 %6197
      %6199 = vrot.lane.b32.xlu0 %v6036, 24
      %v6200 = vpop.permute.xlu0 %6199
      %6201 = vrot.lane.b32.xlu0 %v6112, 24
      %v6202 = vpop.permute.xlu0 %6201
      %v6211 = vsel %vm799, %v1590, %v6124
      %v6212 = vsel %vm799, %v1666, %v6126
      %v6213 = vsel %vm799, %v1742, %v6128
      %v6214 = vsel %vm799, %v1818, %v6130
      %v6215 = vsel %vm799, %v1894, %v6132
      %v6216 = vsel %vm799, %v1970, %v6134
      %v6217 = vsel %vm799, %v2046, %v6136
      %v6218 = vsel %vm799, %v2122, %v6138
      %vm6219 = vcmask 130048
      %v6220 = vsel %vm6219, %v6211, %v6156
      %v6221 = vsel %vm6219, %v6212, %v6158
      %v6222 = vsel %vm6219, %v6213, %v6160
      %v6223 = vsel %vm6219, %v6214, %v6162
      %v6224 = vsel %vm6219, %v6215, %v6164
      %v6225 = vsel %vm6219, %v6216, %v6166
      %v6226 = vsel %vm6219, %v6217, %v6168
      %v6227 = vsel %vm6219, %v6218, %v6170
      %vm6228 = vcmask 195584
      %v6229 = vsel %vm6228, %v6220, %v6188
      %v6230 = vsel %vm6228, %v6221, %v6190
      %v6231 = vsel %vm6228, %v6222, %v6192
      %v6232 = vsel %vm6228, %v6223, %v6194
      %v6233 = vsel %vm6228, %v6224, %v6196
      %v6234 = vsel %vm6228, %v6225, %v6198
      %v6235 = vsel %vm6228, %v6226, %v6200
      %v6236 = vsel %vm6228, %v6227, %v6202
      %v6237 = vld [vmem:[%s7] sm:$0xff]
      %v6238 = vld [vmem:[%s7 + $0x8] sm:$0xff]
      %v6239 = vld [vmem:[%s7 + $0x10] sm:$0xff]
      %v6240 = vld [vmem:[%s7 + $0x18] sm:$0xff]
      %v6241 = vld [vmem:[%s8] sm:$0x1]
      %v6243 = vlaneseq
      %v6244 = vshrl.u32 %v6243, 7
      %v6245 = vsub.s32 0, %v6244
      %v6246 = vrot.slane %v6241, %v6245
      %v6249 = vsel %vm503, %v6229, 0
      %v6252 = vsel %vm503, %v6230, 0
      %v6255 = vsel %vm503, %v6231, 0
      %v6258 = vsel %vm503, %v6232, 0
      %v6261 = vsel %vm503, %v6233, 0
      %v6264 = vsel %vm503, %v6234, 0
      %v6267 = vsel %vm503, %v6235, 0
      %v6270 = vsel %vm503, %v6236, 0
      %6272 = vmatprep.subr.mxu0 0.0
      %6273 = vmatpush1.msra.mxu0 %v6237
      %6274 = vmatprep.subr.mxu0 0.0
      %6275 = vmatpush1.msra.mxu0 %v6238
      %6276 = vmatprep.subr.mxu0 0.0
      %6277 = vmatpush1.msra.mxu0 %v6239
      %6278 = vmatprep.subr.mxu0 0.0
      %6279 = vmatpush1.msra.mxu0 %v6240
      %6280 = vmatprep.subr.mxu0 0.0
      %6281 = vmatpush1.msra.mxu0 0.0
      %6282 = vmatprep.subr.mxu0 0.0
      %6283 = vmatpush1.msra.mxu0 0.0
      %6284 = vmatprep.subr.mxu0 0.0
      %6285 = vmatpush1.msra.mxu0 0.0
      %6286 = vmatprep.subr.mxu0 0.0
      %6287 = vmatpush1.msra.mxu0 0.0
      %6288 = vmatprep.subr.mxu0 0.0
      %6289 = vmatpush1.msra.mxu0 0.0
      %6290 = vmatprep.subr.mxu0 0.0
      %6291 = vmatpush1.msra.mxu0 0.0
      %6292 = vmatprep.subr.mxu0 0.0
      %6293 = vmatpush1.msra.mxu0 0.0
      %6294 = vmatprep.subr.mxu0 0.0
      %6295 = vmatpush1.msra.mxu0 0.0
      %6296 = vmatprep.subr.mxu0 0.0
      %6297 = vmatpush1.msra.mxu0 0.0
      %6298 = vmatprep.subr.mxu0 0.0
      %6299 = vmatpush1.msra.mxu0 0.0
      %6300 = vmatprep.subr.mxu0 0.0
      %6301 = vmatpush1.msra.mxu0 0.0
      %6302 = vmatprep.subr.mxu0 0.0
      %6303 = vmatpush1.msra.mxu0 0.0
      %6304 = vmatprep.subr.mxu0 0.0
      %6305 = vmatpush1.msra.mxu0 0.0
      %6306 = vmatprep.subr.mxu0 0.0
      %6307 = vmatpush1.msra.mxu0 0.0
      %6308 = vmatprep.subr.mxu0 0.0
      %6309 = vmatpush1.msra.mxu0 0.0
      %6310 = vmatprep.subr.mxu0 0.0
      %6311 = vmatpush1.msra.mxu0 0.0
      %6312 = vmatprep.subr.mxu0 0.0
      %6313 = vmatpush1.msra.mxu0 0.0
      %6314 = vmatprep.subr.mxu0 0.0
      %6315 = vmatpush1.msra.mxu0 0.0
      %6316 = vmatprep.subr.mxu0 0.0
      %6317 = vmatpush1.msra.mxu0 0.0
      %6318 = vmatprep.subr.mxu0 0.0
      %6319 = vmatpush1.msra.mxu0 0.0
      %6320 = vmatprep.subr.mxu0 0.0
      %6321 = vmatpush1.msra.mxu0 0.0
      %6322 = vmatprep.subr.mxu0 0.0
      %6323 = vmatpush1.msra.mxu0 0.0
      %6324 = vmatprep.subr.mxu0 0.0
      %6325 = vmatpush1.msra.mxu0 0.0
      %6326 = vmatprep.subr.mxu0 0.0
      %6327 = vmatpush1.msra.mxu0 0.0
      %6328 = vmatprep.subr.mxu0 0.0
      %6329 = vmatpush1.msra.mxu0 0.0
      %6330 = vmatprep.subr.mxu0 0.0
      %6331 = vmatpush1.msra.mxu0 0.0
      %6332 = vmatprep.subr.mxu0 0.0
      %6333 = vmatpush1.msra.mxu0 0.0
      %6334 = vmatprep.subr.mxu0 0.0
      %6335 = vmatpush1.msra.mxu0 0.0
      %6336 = vmatprep.mubr.f32.mxu0 0.0
      %6337 = vmatmul.mubr.f32.gmra.mrb[0].mxu0 %v6249
      %v6338 = vpop.f32.mrb[0].mxu0
      %v6339 = vadd.f32 %v6246, %v6338
      %v6340 = vpop.f32.mrb[0].mxu0
      %6341 = vmatprep.mubr.f32.mxu0 0.0
      %6342 = vmatmul.mubr.f32.gmra.mrb[0].mxu0 %v6252
      %v6343 = vpop.f32.mrb[0].mxu0
      %v6344 = vadd.f32 %v6246, %v6343
      %v6345 = vpop.f32.mrb[0].mxu0
      %6346 = vmatprep.mubr.f32.mxu0 0.0
      %6347 = vmatmul.mubr.f32.gmra.mrb[0].mxu0 %v6255
      %v6348 = vpop.f32.mrb[0].mxu0
      %v6349 = vadd.f32 %v6246, %v6348
      %v6350 = vpop.f32.mrb[0].mxu0
      %6351 = vmatprep.mubr.f32.mxu0 0.0
      %6352 = vmatmul.mubr.f32.gmra.mrb[0].mxu0 %v6258
      %v6353 = vpop.f32.mrb[0].mxu0
      %v6354 = vadd.f32 %v6246, %v6353
      %v6355 = vpop.f32.mrb[0].mxu0
      %6356 = vmatprep.mubr.f32.mxu0 0.0
      %6357 = vmatmul.mubr.f32.gmra.mrb[0].mxu0 %v6261
      %v6358 = vpop.f32.mrb[0].mxu0
      %v6359 = vadd.f32 %v6246, %v6358
      %v6360 = vpop.f32.mrb[0].mxu0
      %6361 = vmatprep.mubr.f32.mxu0 0.0
      %6362 = vmatmul.mubr.f32.gmra.mrb[0].mxu0 %v6264
      %v6363 = vpop.f32.mrb[0].mxu0
      %v6364 = vadd.f32 %v6246, %v6363
      %v6365 = vpop.f32.mrb[0].mxu0
      %6366 = vmatprep.mubr.f32.mxu0 0.0
      %6367 = vmatmul.mubr.f32.gmra.mrb[0].mxu0 %v6267
      %v6368 = vpop.f32.mrb[0].mxu0
      %v6369 = vadd.f32 %v6246, %v6368
      %v6370 = vpop.f32.mrb[0].mxu0
      %6371 = vmatprep.mubr.f32.mxu0 0.0
      %6372 = vmatmul.mubr.f32.gmra.mrb[0].mxu0 %v6270
      %v6373 = vpop.f32.mrb[0].mxu0
      %v6374 = vadd.f32 %v6246, %v6373
      %v6375 = vpop.f32.mrb[0].mxu0
      %6376 = vdwg.mxu0
      %v6377 = vadd.f32 %v495, %v6339
      %v6378 = vadd.f32 %v496, %v6344
      %v6379 = vadd.f32 %v497, %v6349
      %v6380 = vadd.f32 %v498, %v6354
      %v6381 = vadd.f32 %v499, %v6359
      %v6382 = vadd.f32 %v500, %v6364
      %v6383 = vadd.f32 %v501, %v6369
      %v6384 = vadd.f32 %v502, %v6374
      %v6385 = vsel %vm503, %v6377, 0.0
      %6386 = vadd.xlane.f32.xlu0 %v6385
      %v6387 = vpop.xlane.xlu0 %6386
      %v6388 = vsel %vm503, %v6378, 0.0
      %6389 = vadd.xlane.f32.xlu0 %v6388
      %v6390 = vpop.xlane.xlu0 %6389
      %v6391 = vsel %vm503, %v6379, 0.0
      %6392 = vadd.xlane.f32.xlu0 %v6391
      %v6393 = vpop.xlane.xlu0 %6392
      %v6394 = vsel %vm503, %v6380, 0.0
      %6395 = vadd.xlane.f32.xlu0 %v6394
      %v6396 = vpop.xlane.xlu0 %6395
      %v6397 = vsel %vm503, %v6381, 0.0
      %6398 = vadd.xlane.f32.xlu0 %v6397
      %v6399 = vpop.xlane.xlu0 %6398
      %v6400 = vsel %vm503, %v6382, 0.0
      %6401 = vadd.xlane.f32.xlu0 %v6400
      %v6402 = vpop.xlane.xlu0 %6401
      %v6403 = vsel %vm503, %v6383, 0.0
      %6404 = vadd.xlane.f32.xlu0 %v6403
      %v6405 = vpop.xlane.xlu0 %6404
      %v6406 = vsel %vm503, %v6384, 0.0
      %6407 = vadd.xlane.f32.xlu0 %v6406
      %v6408 = vpop.xlane.xlu0 %6407
      %v6409 = vmul.f32 %v6387, %v528
      %v6410 = vmul.f32 %v6390, %v528
      %v6411 = vmul.f32 %v6393, %v528
      %v6412 = vmul.f32 %v6396, %v528
      %v6413 = vmul.f32 %v6399, %v528
      %v6414 = vmul.f32 %v6402, %v528
      %v6415 = vmul.f32 %v6405, %v528
      %v6416 = vmul.f32 %v6408, %v528
      %v6417 = vsub.f32 %v6377, %v6409
      %v6418 = vsub.f32 %v6378, %v6410
      %v6419 = vsub.f32 %v6379, %v6411
      %v6420 = vsub.f32 %v6380, %v6412
      %v6421 = vsub.f32 %v6381, %v6413
      %v6422 = vsub.f32 %v6382, %v6414
      %v6423 = vsub.f32 %v6383, %v6415
      %v6424 = vsub.f32 %v6384, %v6416
      %v6425 = vmul.f32 %v6417, %v6417
      %v6426 = vmul.f32 %v6418, %v6418
      %v6427 = vmul.f32 %v6419, %v6419
      %v6428 = vmul.f32 %v6420, %v6420
      %v6429 = vmul.f32 %v6421, %v6421
      %v6430 = vmul.f32 %v6422, %v6422
      %v6431 = vmul.f32 %v6423, %v6423
      %v6432 = vmul.f32 %v6424, %v6424
      %v6433 = vsel %vm503, %v6425, 0.0
      %6434 = vadd.xlane.f32.xlu0 %v6433
      %v6435 = vpop.xlane.xlu0 %6434
      %v6436 = vsel %vm503, %v6426, 0.0
      %6437 = vadd.xlane.f32.xlu0 %v6436
      %v6438 = vpop.xlane.xlu0 %6437
      %v6439 = vsel %vm503, %v6427, 0.0
      %6440 = vadd.xlane.f32.xlu0 %v6439
      %v6441 = vpop.xlane.xlu0 %6440
      %v6442 = vsel %vm503, %v6428, 0.0
      %6443 = vadd.xlane.f32.xlu0 %v6442
      %v6444 = vpop.xlane.xlu0 %6443
      %v6445 = vsel %vm503, %v6429, 0.0
      %6446 = vadd.xlane.f32.xlu0 %v6445
      %v6447 = vpop.xlane.xlu0 %6446
      %v6448 = vsel %vm503, %v6430, 0.0
      %6449 = vadd.xlane.f32.xlu0 %v6448
      %v6450 = vpop.xlane.xlu0 %6449
      %v6451 = vsel %vm503, %v6431, 0.0
      %6452 = vadd.xlane.f32.xlu0 %v6451
      %v6453 = vpop.xlane.xlu0 %6452
      %v6454 = vsel %vm503, %v6432, 0.0
      %6455 = vadd.xlane.f32.xlu0 %v6454
      %v6456 = vpop.xlane.xlu0 %6455
      %v6457 = vmul.f32 %v6435, %v528
      %v6458 = vmul.f32 %v6438, %v528
      %v6459 = vmul.f32 %v6441, %v528
      %v6460 = vmul.f32 %v6444, %v528
      %v6461 = vmul.f32 %v6447, %v528
      %v6462 = vmul.f32 %v6450, %v528
      %v6463 = vmul.f32 %v6453, %v528
      %v6464 = vmul.f32 %v6456, %v528
      %v6465 = vadd.f32 %v6457, 1e-05
      %v6466 = vadd.f32 %v6458, 1e-05
      %v6467 = vadd.f32 %v6459, 1e-05
      %v6468 = vadd.f32 %v6460, 1e-05
      %v6469 = vadd.f32 %v6461, 1e-05
      %v6470 = vadd.f32 %v6462, 1e-05
      %v6471 = vadd.f32 %v6463, 1e-05
      %v6472 = vadd.f32 %v6464, 1e-05
      %v6473 = vrsqrt.pop %v6465
      %v6474 = vrsqrt.pop %v6466
      %v6475 = vrsqrt.pop %v6467
      %v6476 = vrsqrt.pop %v6468
      %v6477 = vrsqrt.pop %v6469
      %v6478 = vrsqrt.pop %v6470
      %v6479 = vrsqrt.pop %v6471
      %v6480 = vrsqrt.pop %v6472
      %v6481 = vmul.f32 %v6417, %v6473
      %v6482 = vmul.f32 %v6418, %v6474
      %v6483 = vmul.f32 %v6419, %v6475
      %v6484 = vmul.f32 %v6420, %v6476
      %v6485 = vmul.f32 %v6421, %v6477
      %v6486 = vmul.f32 %v6422, %v6478
      %v6487 = vmul.f32 %v6423, %v6479
      %v6488 = vmul.f32 %v6424, %v6480
      %v6489 = vld [vmem:[%s9] sm:$0x1]
      %v6491 = vlaneseq
      %v6492 = vshrl.u32 %v6491, 7
      %v6493 = vsub.s32 0, %v6492
      %v6494 = vrot.slane %v6489, %v6493
      %v6496 = vmul.f32 %v6481, %v6494
      %v6497 = vmul.f32 %v6482, %v6494
      %v6498 = vmul.f32 %v6483, %v6494
      %v6499 = vmul.f32 %v6484, %v6494
      %v6500 = vmul.f32 %v6485, %v6494
      %v6501 = vmul.f32 %v6486, %v6494
      %v6502 = vmul.f32 %v6487, %v6494
      %v6503 = vmul.f32 %v6488, %v6494
      %v6504 = vld [vmem:[%s10] sm:$0x1]
      %v6506 = vlaneseq
      %v6507 = vshrl.u32 %v6506, 7
      %v6508 = vsub.s32 0, %v6507
      %v6509 = vrot.slane %v6504, %v6508
      %v6511 = vadd.f32 %v6496, %v6509
      %v6512 = vadd.f32 %v6497, %v6509
      %v6513 = vadd.f32 %v6498, %v6509
      %v6514 = vadd.f32 %v6499, %v6509
      %v6515 = vadd.f32 %v6500, %v6509
      %v6516 = vadd.f32 %v6501, %v6509
      %v6517 = vadd.f32 %v6502, %v6509
      %v6518 = vadd.f32 %v6503, %v6509
      %v6519 = vld [vmem:[%s11] sm:$0xff]
      %v6520 = vld [vmem:[%s11 + $0x8] sm:$0xff]
      %v6521 = vld [vmem:[%s11 + $0x10] sm:$0xff]
      %v6522 = vld [vmem:[%s11 + $0x18] sm:$0xff]
      %v6523 = vld [vmem:[%s12] sm:$0x1]
      %v6525 = vlaneseq
      %v6526 = vshrl.u32 %v6525, 7
      %v6527 = vsub.s32 0, %v6526
      %v6528 = vrot.slane %v6523, %v6527
      %v6531 = vsel %vm503, %v6511, 0
      %v6534 = vsel %vm503, %v6512, 0
      %v6537 = vsel %vm503, %v6513, 0
      %v6540 = vsel %vm503, %v6514, 0
      %v6543 = vsel %vm503, %v6515, 0
      %v6546 = vsel %vm503, %v6516, 0
      %v6549 = vsel %vm503, %v6517, 0
      %v6552 = vsel %vm503, %v6518, 0
      %6554 = vmatprep.subr.mxu0 0.0
      %6555 = vmatpush1.msra.mxu0 %v6519
      %6556 = vmatprep.subr.mxu0 0.0
      %6557 = vmatpush1.msra.mxu0 %v6520
      %6558 = vmatprep.subr.mxu0 0.0
      %6559 = vmatpush1.msra.mxu0 %v6521
      %6560 = vmatprep.subr.mxu0 0.0
      %6561 = vmatpush1.msra.mxu0 %v6522
      %6562 = vmatprep.subr.mxu0 0.0
      %6563 = vmatpush1.msra.mxu0 0.0
      %6564 = vmatprep.subr.mxu0 0.0
      %6565 = vmatpush1.msra.mxu0 0.0
      %6566 = vmatprep.subr.mxu0 0.0
      %6567 = vmatpush1.msra.mxu0 0.0
      %6568 = vmatprep.subr.mxu0 0.0
      %6569 = vmatpush1.msra.mxu0 0.0
      %6570 = vmatprep.subr.mxu0 0.0
      %6571 = vmatpush1.msra.mxu0 0.0
      %6572 = vmatprep.subr.mxu0 0.0
      %6573 = vmatpush1.msra.mxu0 0.0
      %6574 = vmatprep.subr.mxu0 0.0
      %6575 = vmatpush1.msra.mxu0 0.0
      %6576 = vmatprep.subr.mxu0 0.0
      %6577 = vmatpush1.msra.mxu0 0.0
      %6578 = vmatprep.subr.mxu0 0.0
      %6579 = vmatpush1.msra.mxu0 0.0
      %6580 = vmatprep.subr.mxu0 0.0
      %6581 = vmatpush1.msra.mxu0 0.0
      %6582 = vmatprep.subr.mxu0 0.0
      %6583 = vmatpush1.msra.mxu0 0.0
      %6584 = vmatprep.subr.mxu0 0.0
      %6585 = vmatpush1.msra.mxu0 0.0
      %6586 = vmatprep.subr.mxu0 0.0
      %6587 = vmatpush1.msra.mxu0 0.0
      %6588 = vmatprep.subr.mxu0 0.0
      %6589 = vmatpush1.msra.mxu0 0.0
      %6590 = vmatprep.subr.mxu0 0.0
      %6591 = vmatpush1.msra.mxu0 0.0
      %6592 = vmatprep.subr.mxu0 0.0
      %6593 = vmatpush1.msra.mxu0 0.0
      %6594 = vmatprep.subr.mxu0 0.0
      %6595 = vmatpush1.msra.mxu0 0.0
      %6596 = vmatprep.subr.mxu0 0.0
      %6597 = vmatpush1.msra.mxu0 0.0
      %6598 = vmatprep.subr.mxu0 0.0
      %6599 = vmatpush1.msra.mxu0 0.0
      %6600 = vmatprep.subr.mxu0 0.0
      %6601 = vmatpush1.msra.mxu0 0.0
      %6602 = vmatprep.subr.mxu0 0.0
      %6603 = vmatpush1.msra.mxu0 0.0
      %6604 = vmatprep.subr.mxu0 0.0
      %6605 = vmatpush1.msra.mxu0 0.0
      %6606 = vmatprep.subr.mxu0 0.0
      %6607 = vmatpush1.msra.mxu0 0.0
      %6608 = vmatprep.subr.mxu0 0.0
      %6609 = vmatpush1.msra.mxu0 0.0
      %6610 = vmatprep.subr.mxu0 0.0
      %6611 = vmatpush1.msra.mxu0 0.0
      %6612 = vmatprep.subr.mxu0 0.0
      %6613 = vmatpush1.msra.mxu0 0.0
      %6614 = vmatprep.subr.mxu0 0.0
      %6615 = vmatpush1.msra.mxu0 0.0
      %6616 = vmatprep.subr.mxu0 0.0
      %6617 = vmatpush1.msra.mxu0 0.0
      %6618 = vmatprep.mubr.f32.mxu0 0.0
      %6619 = vmatmul.mubr.f32.gmra.mrb[0].mxu0 %v6531
      %v6620 = vpop.f32.mrb[0].mxu0
      %v6621 = vadd.f32 %v6528, %v6620
      %v6622 = vpop.f32.mrb[0].mxu0
      %6623 = vmatprep.mubr.f32.mxu0 0.0
      %6624 = vmatmul.mubr.f32.gmra.mrb[0].mxu0 %v6534
      %v6625 = vpop.f32.mrb[0].mxu0
      %v6626 = vadd.f32 %v6528, %v6625
      %v6627 = vpop.f32.mrb[0].mxu0
      %6628 = vmatprep.mubr.f32.mxu0 0.0
      %6629 = vmatmul.mubr.f32.gmra.mrb[0].mxu0 %v6537
      %v6630 = vpop.f32.mrb[0].mxu0
      %v6631 = vadd.f32 %v6528, %v6630
      %v6632 = vpop.f32.mrb[0].mxu0
      %6633 = vmatprep.mubr.f32.mxu0 0.0
      %6634 = vmatmul.mubr.f32.gmra.mrb[0].mxu0 %v6540
      %v6635 = vpop.f32.mrb[0].mxu0
      %v6636 = vadd.f32 %v6528, %v6635
      %v6637 = vpop.f32.mrb[0].mxu0
      %6638 = vmatprep.mubr.f32.mxu0 0.0
      %6639 = vmatmul.mubr.f32.gmra.mrb[0].mxu0 %v6543
      %v6640 = vpop.f32.mrb[0].mxu0
      %v6641 = vadd.f32 %v6528, %v6640
      %v6642 = vpop.f32.mrb[0].mxu0
      %6643 = vmatprep.mubr.f32.mxu0 0.0
      %6644 = vmatmul.mubr.f32.gmra.mrb[0].mxu0 %v6546
      %v6645 = vpop.f32.mrb[0].mxu0
      %v6646 = vadd.f32 %v6528, %v6645
      %v6647 = vpop.f32.mrb[0].mxu0
      %6648 = vmatprep.mubr.f32.mxu0 0.0
      %6649 = vmatmul.mubr.f32.gmra.mrb[0].mxu0 %v6549
      %v6650 = vpop.f32.mrb[0].mxu0
      %v6651 = vadd.f32 %v6528, %v6650
      %v6652 = vpop.f32.mrb[0].mxu0
      %6653 = vmatprep.mubr.f32.mxu0 0.0
      %6654 = vmatmul.mubr.f32.gmra.mrb[0].mxu0 %v6552
      %v6655 = vpop.f32.mrb[0].mxu0
      %v6656 = vadd.f32 %v6528, %v6655
      %v6657 = vpop.f32.mrb[0].mxu0
      %6658 = vdwg.mxu0
      %v6659 = vmul.f32 %v6621, 0.5
      %v6660 = vmul.f32 %v6626, 0.5
      %v6661 = vmul.f32 %v6631, 0.5
      %v6662 = vmul.f32 %v6636, 0.5
      %v6663 = vmul.f32 %v6641, 0.5
      %v6664 = vmul.f32 %v6646, 0.5
      %v6665 = vmul.f32 %v6651, 0.5
      %v6666 = vmul.f32 %v6656, 0.5
      %v6667 = vmul.f32 %v6621, 0.70710677
      %v6668 = vmul.f32 %v6626, 0.70710677
      %v6669 = vmul.f32 %v6631, 0.70710677
      %v6670 = vmul.f32 %v6636, 0.70710677
      %v6671 = vmul.f32 %v6641, 0.70710677
      %v6672 = vmul.f32 %v6646, 0.70710677
      %v6673 = vmul.f32 %v6651, 0.70710677
      %v6674 = vmul.f32 %v6656, 0.70710677
      %v6675 = verf.f32.pop %v6667
      %v6676 = verf.f32.pop %v6668
      %v6677 = verf.f32.pop %v6669
      %v6678 = verf.f32.pop %v6670
      %v6679 = verf.f32.pop %v6671
      %v6680 = verf.f32.pop %v6672
      %v6681 = verf.f32.pop %v6673
      %v6682 = verf.f32.pop %v6674
      %v6683 = vadd.f32 %v6675, 1.0
      %v6684 = vadd.f32 %v6676, 1.0
      %v6685 = vadd.f32 %v6677, 1.0
      %v6686 = vadd.f32 %v6678, 1.0
      %v6687 = vadd.f32 %v6679, 1.0
      %v6688 = vadd.f32 %v6680, 1.0
      %v6689 = vadd.f32 %v6681, 1.0
      %v6690 = vadd.f32 %v6682, 1.0
      %v6691 = vmul.f32 %v6659, %v6683
      %v6692 = vmul.f32 %v6660, %v6684
      %v6693 = vmul.f32 %v6661, %v6685
      %v6694 = vmul.f32 %v6662, %v6686
      %v6695 = vmul.f32 %v6663, %v6687
      %v6696 = vmul.f32 %v6664, %v6688
      %v6697 = vmul.f32 %v6665, %v6689
      %v6698 = vmul.f32 %v6666, %v6690
      %v6699 = vld [vmem:[%s13] sm:$0xff]
      %v6700 = vld [vmem:[%s13 + $0x8] sm:$0xff]
      %v6701 = vld [vmem:[%s13 + $0x10] sm:$0xff]
      %v6702 = vld [vmem:[%s13 + $0x18] sm:$0xff]
      %v6703 = vld [vmem:[%s13 + $0x20] sm:$0xff]
      %v6704 = vld [vmem:[%s13 + $0x28] sm:$0xff]
      %v6705 = vld [vmem:[%s13 + $0x30] sm:$0xff]
      %v6706 = vld [vmem:[%s13 + $0x38] sm:$0xff]
      %v6707 = vld [vmem:[%s13 + $0x40] sm:$0xff]
      %v6708 = vld [vmem:[%s13 + $0x48] sm:$0xff]
      %v6709 = vld [vmem:[%s13 + $0x50] sm:$0xff]
      %v6710 = vld [vmem:[%s13 + $0x58] sm:$0xff]
      %v6711 = vld [vmem:[%s13 + $0x60] sm:$0xff]
      %v6712 = vld [vmem:[%s13 + $0x68] sm:$0xff]
      %v6713 = vld [vmem:[%s13 + $0x70] sm:$0xff]
      %v6714 = vld [vmem:[%s13 + $0x78] sm:$0xff]
      %6715 = vmatprep.subr.mxu0 0.0
      %6716 = vmatpush1.msra.mxu0 %v6699
      %6717 = vmatprep.subr.mxu0 0.0
      %6718 = vmatpush1.msra.mxu0 %v6700
      %6719 = vmatprep.subr.mxu0 0.0
      %6720 = vmatpush1.msra.mxu0 %v6701
      %6721 = vmatprep.subr.mxu0 0.0
      %6722 = vmatpush1.msra.mxu0 %v6702
      %6723 = vmatprep.subr.mxu0 0.0
      %6724 = vmatpush1.msra.mxu0 %v6703
      %6725 = vmatprep.subr.mxu0 0.0
      %6726 = vmatpush1.msra.mxu0 %v6704
      %6727 = vmatprep.subr.mxu0 0.0
      %6728 = vmatpush1.msra.mxu0 %v6705
      %6729 = vmatprep.subr.mxu0 0.0
      %6730 = vmatpush1.msra.mxu0 %v6706
      %6731 = vmatprep.subr.mxu0 0.0
      %6732 = vmatpush1.msra.mxu0 %v6707
      %6733 = vmatprep.subr.mxu0 0.0
      %6734 = vmatpush1.msra.mxu0 %v6708
      %6735 = vmatprep.subr.mxu0 0.0
      %6736 = vmatpush1.msra.mxu0 %v6709
      %6737 = vmatprep.subr.mxu0 0.0
      %6738 = vmatpush1.msra.mxu0 %v6710
      %6739 = vmatprep.subr.mxu0 0.0
      %6740 = vmatpush1.msra.mxu0 %v6711
      %6741 = vmatprep.subr.mxu0 0.0
      %6742 = vmatpush1.msra.mxu0 %v6712
      %6743 = vmatprep.subr.mxu0 0.0
      %6744 = vmatpush1.msra.mxu0 %v6713
      %6745 = vmatprep.subr.mxu0 0.0
      %6746 = vmatpush1.msra.mxu0 %v6714
      %6747 = vmatprep.subr.mxu0 0.0
      %6748 = vmatpush1.msra.mxu0 0.0
      %6749 = vmatprep.subr.mxu0 0.0
      %6750 = vmatpush1.msra.mxu0 0.0
      %6751 = vmatprep.subr.mxu0 0.0
      %6752 = vmatpush1.msra.mxu0 0.0
      %6753 = vmatprep.subr.mxu0 0.0
      %6754 = vmatpush1.msra.mxu0 0.0
      %6755 = vmatprep.subr.mxu0 0.0
      %6756 = vmatpush1.msra.mxu0 0.0
      %6757 = vmatprep.subr.mxu0 0.0
      %6758 = vmatpush1.msra.mxu0 0.0
      %6759 = vmatprep.subr.mxu0 0.0
      %6760 = vmatpush1.msra.mxu0 0.0
      %6761 = vmatprep.subr.mxu0 0.0
      %6762 = vmatpush1.msra.mxu0 0.0
      %6763 = vmatprep.subr.mxu0 0.0
      %6764 = vmatpush1.msra.mxu0 0.0
      %6765 = vmatprep.subr.mxu0 0.0
      %6766 = vmatpush1.msra.mxu0 0.0
      %6767 = vmatprep.subr.mxu0 0.0
      %6768 = vmatpush1.msra.mxu0 0.0
      %6769 = vmatprep.subr.mxu0 0.0
      %6770 = vmatpush1.msra.mxu0 0.0
      %6771 = vmatprep.subr.mxu0 0.0
      %6772 = vmatpush1.msra.mxu0 0.0
      %6773 = vmatprep.subr.mxu0 0.0
      %6774 = vmatpush1.msra.mxu0 0.0
      %6775 = vmatprep.subr.mxu0 0.0
      %6776 = vmatpush1.msra.mxu0 0.0
      %6777 = vmatprep.subr.mxu0 0.0
      %6778 = vmatpush1.msra.mxu0 0.0
      %6779 = vmatprep.mubr.f32.mxu0 0.0
      %6780 = vmatmul.mubr.f32.gmra.mrb[0].mxu0 %v6691
      %v6781 = vpop.f32.mrb[0].mxu0
      %v6782 = vadd.f32 0.0, %v6781
      %v6783 = vpop.f32.mrb[0].mxu0
      %6784 = vmatprep.mubr.f32.mxu0 0.0
      %6785 = vmatmul.mubr.f32.gmra.mrb[0].mxu0 %v6692
      %v6786 = vpop.f32.mrb[0].mxu0
      %v6787 = vadd.f32 0.0, %v6786
      %v6788 = vpop.f32.mrb[0].mxu0
      %6789 = vmatprep.mubr.f32.mxu0 0.0
      %6790 = vmatmul.mubr.f32.gmra.mrb[0].mxu0 %v6693
      %v6791 = vpop.f32.mrb[0].mxu0
      %v6792 = vadd.f32 0.0, %v6791
      %v6793 = vpop.f32.mrb[0].mxu0
      %6794 = vmatprep.mubr.f32.mxu0 0.0
      %6795 = vmatmul.mubr.f32.gmra.mrb[0].mxu0 %v6694
      %v6796 = vpop.f32.mrb[0].mxu0
      %v6797 = vadd.f32 0.0, %v6796
      %v6798 = vpop.f32.mrb[0].mxu0
      %6799 = vmatprep.mubr.f32.mxu0 0.0
      %6800 = vmatmul.mubr.f32.gmra.mrb[0].mxu0 %v6695
      %v6801 = vpop.f32.mrb[0].mxu0
      %v6802 = vadd.f32 0.0, %v6801
      %v6803 = vpop.f32.mrb[0].mxu0
      %6804 = vmatprep.mubr.f32.mxu0 0.0
      %6805 = vmatmul.mubr.f32.gmra.mrb[0].mxu0 %v6696
      %v6806 = vpop.f32.mrb[0].mxu0
      %v6807 = vadd.f32 0.0, %v6806
      %v6808 = vpop.f32.mrb[0].mxu0
      %6809 = vmatprep.mubr.f32.mxu0 0.0
      %6810 = vmatmul.mubr.f32.gmra.mrb[0].mxu0 %v6697
      %v6811 = vpop.f32.mrb[0].mxu0
      %v6812 = vadd.f32 0.0, %v6811
      %v6813 = vpop.f32.mrb[0].mxu0
      %6814 = vmatprep.mubr.f32.mxu0 0.0
      %6815 = vmatmul.mubr.f32.gmra.mrb[0].mxu0 %v6698
      %v6816 = vpop.f32.mrb[0].mxu0
      %v6817 = vadd.f32 0.0, %v6816
      %v6818 = vpop.f32.mrb[0].mxu0
      %6819 = vdwg.mxu0
      %v6820 = vadd.f32 %v6377, %v6782
      %v6821 = vadd.f32 %v6378, %v6787
      %v6822 = vadd.f32 %v6379, %v6792
      %v6823 = vadd.f32 %v6380, %v6797
      %v6824 = vadd.f32 %v6381, %v6802
      %v6825 = vadd.f32 %v6382, %v6807
      %v6826 = vadd.f32 %v6383, %v6812
      %v6827 = vadd.f32 %v6384, %v6817
      %v6828 = vld [vmem:[%s14] sm:$0x1]
      %v6830 = vlaneseq
      %v6831 = vshrl.u32 %v6830, 7
      %v6832 = vsub.s32 0, %v6831
      %v6833 = vrot.slane %v6828, %v6832
      %v6835 = vadd.f32 %v6820, %v6833
      %v6836 = vadd.f32 %v6821, %v6833
      %v6837 = vadd.f32 %v6822, %v6833
      %v6838 = vadd.f32 %v6823, %v6833
      %v6839 = vadd.f32 %v6824, %v6833
      %v6840 = vadd.f32 %v6825, %v6833
      %v6841 = vadd.f32 %v6826, %v6833
      %v6842 = vadd.f32 %v6827, %v6833
      %6843 = vst.msk [vmem:[%s494] sm:$0xff] %vm503, %v6835
      %6844 = vst.msk [vmem:[%s494 + $0x8] sm:$0xff] %vm503, %v6836
      %6845 = vst.msk [vmem:[%s494 + $0x10] sm:$0xff] %vm503, %v6837
      %6846 = vst.msk [vmem:[%s494 + $0x18] sm:$0xff] %vm503, %v6838
      %6847 = vst.msk [vmem:[%s494 + $0x20] sm:$0xff] %vm503, %v6839
      %6848 = vst.msk [vmem:[%s494 + $0x28] sm:$0xff] %vm503, %v6840
      %6849 = vst.msk [vmem:[%s494 + $0x30] sm:$0xff] %vm503, %v6841
      %6850 = vst.msk [vmem:[%s494 + $0x38] sm:$0xff] %vm503, %v6842
      %p6851 = scmp.lt.s32.totalorder %s26, 1
      %s6852 = scalar_select %p6851, %s26, 1
      %s6853 = smul.addr %s6852, 8
      %s6854 = smul.addr %s6853, 8
      %s6855 = scalar_lea.vmem %s15, %s6854
      // Predicated region
      $region81: #{swin_transformer_block.1} parent=79 // pred_check
        %p6856 = pneg %p364
      $region82: #{swin_transformer_block.1} parent=79 // pred_check_branch
        %6858 = sbr.rel (%p6856) target = $region84
      $region83: #{swin_transformer_block.1} parent=79 // pred_region
        _
      $region84: #{swin_transformer_block.1} parent=79 // pred_fallthru
        _
    $region80: #{swin_transformer_block.1} parent=5 // pred_fallthru
      _
    %p6859 = scmp.le.s32.totalorder 2, %s21
    // Predicated region
    $region85: #{swin_transformer_block.1} parent=5 // pred_check
      %p6860 = pneg %p6859
    $region86: #{swin_transformer_block.1} parent=5 // pred_check_branch
      %6862 = sbr.rel (%p6860) target = $region88
    $region87: #{swin_transformer_block.1} parent=5 // pred_region
      %s6863 = ssub.s32 %s21, 2
      // Predicated region
      $region89: #{swin_transformer_block.1} parent=87 // pred_check
        %p6864 = pneg %p370
      $region90: #{swin_transformer_block.1} parent=87 // pred_check_branch
        %6866 = sbr.rel (%p6864) target = $region92
      $region91: #{swin_transformer_block.1} parent=87 // pred_region
        %p6867 = scmp.lt.s32.totalorder %s27, 1
        %s6868 = scalar_select %p6867, %s27, 1
        %s6869 = smul.addr %s6868, 8
        %s6870 = smul.addr %s6869, 8
        %s6871 = scalar_lea.vmem %s15, %s6870
      $region92: #{swin_transformer_block.1} parent=87 // pred_fallthru
        _
    $region88: #{swin_transformer_block.1} parent=5 // pred_fallthru
      _
  $region6: #{swin_transformer_block.1} parent=0 // loop_footer
    %s25 = sadd.s32 1, %s21
  $region7: #{swin_transformer_block.1} parent=0 // loop_footer_branch
    %20 = sbr.rel target = $region3
  $region8: #{swin_transformer_block.1} parent=0 // loop_exit
    _

</llo_original>
